<compile_context>
chip_gen: v5e
topology: v5e:2x2
jax: 0.10.0
libtpu: 0.0.40
codegen_flags: <defaults>
</compile_context>

<pallas_src>
import functools

import jax
import jax.numpy as jnp
from jax.experimental import pallas as pl
from jax.experimental.pallas import tpu as pltpu

# ----------------------------- small config ---------------------------------
NUM_SYMBOLS = 16       # config.num_symbols
EMB_DIM     = 128      # config.symbol_embedding_dim
HIDDEN      = 128      # config.lstm_hidden_dim
NUM_LAYERS  = 2        # config.num_lstm_layers
OUTPUT_DIM  = 256      # config.output_dim
LSTM_LN_EPS = 1e-3     # config.lstm_layer_norm_epsilon
LN_EPS      = 1e-5     # torch.nn.LayerNorm default (input / output norms)

SOS_TOKEN   = NUM_SYMBOLS - 1   # defined by the module, unused in forward()
BLANK_TOKEN = 0

assert EMB_DIM == HIDDEN, "activation scratch reuse assumes emb_dim == hidden_dim"


# ----------------------------- helpers ---------------------------------------
def _ln(x, gamma, beta, eps):
    # var = E[x^2] - E[x]^2 : the two reductions are independent (overlap on XLU).
    m = jnp.mean(x, axis=-1, keepdims=True)
    ms = jnp.mean(x * x, axis=-1, keepdims=True)
    v = ms - m * m
    return (x - m) * jax.lax.rsqrt(v + eps) * gamma + beta


def _permute_gate_cols(w):
    """torch gate order (i, f, g, o) -> kernel order (i, f, o, g) along last axis."""
    i, f, g, o = jnp.split(w, 4, axis=-1)
    return jnp.concatenate([i, f, o, g], axis=-1)


# ----------------------------- kernel ----------------------------------------
def fused_predictor_kernel(tok_ref, emb_ref, inln_ref,
                           wx_ref, wh_ref, gln_ref, cln_ref,
                           h0_ref, c0_ref,
                           wo_ref, om_ref,
                           out_ref, hout_ref, cout_ref,
                           x_sc, gx_sc,
                           *, seq_len, batch, hidden, num_layers, num_symbols,
                           ln_eps, lstm_eps):
    TB = seq_len * batch
    H = hidden

    # ---- embedding lookup: one-hot matmul against the VMEM-resident table ----
    tok = tok_ref[...]                                              # (TB, 1) int32
    sym = jax.lax.broadcasted_iota(jnp.int32, (TB, num_symbols), 1)
    onehot = (sym == tok).astype(jnp.float32)                       # (TB, S)
    emb = jnp.dot(onehot, emb_ref[...],
                  preferred_element_type=jnp.float32)               # (TB, E) exact gather

    # ---- input LayerNorm ----
    inln = inln_ref[...]                                            # (2, E)
    x_sc[...] = _ln(emb, inln[0:1, :], inln[1:2, :], ln_eps)        # (TB, E) f32

    # ---- layer-0 input projection hoisted off the recurrence ----
    gx_sc[0] = jnp.dot(x_sc[...].astype(jnp.bfloat16), wx_ref[0],
                       preferred_element_type=jnp.float32)          # (TB, 4H) f32

    # ---- LSTM stack (time loop fully inside the kernel) ----
    for li in range(num_layers):
        gln = gln_ref[li]                    # (2, 4H) f32 (small, OK to hold live)
        cln = cln_ref[li]                    # (2, H)
        gg, gb = gln[0:1, :], gln[1:2, :]
        cg, cb = cln[0:1, :], cln[1:2, :]
        gx_cur = gx_sc.at[li % 2]            # (TB, 4H) view — zero-cost
        gx_nxt = gx_sc.at[(li + 1) % 2]
        last = (li == num_layers - 1)

        def step(t, carry, li=li, gg=gg, gb=gb, cg=cg, cb=cb,
                 gx_cur=gx_cur, gx_nxt=gx_nxt, last=last):
            h, c = carry                                            # (B, H) f32 each
            off = pl.multiple_of(t * batch, batch)
            # Wh streamed from VMEM per step — NOT pinned across the unrolled loop.
            gates = gx_cur[pl.ds(off, batch), :] + jnp.dot(
                h.astype(jnp.bfloat16), wh_ref[li],
                preferred_element_type=jnp.float32)                 # (B, 4H) f32
            gates = _ln(gates, gg, gb, lstm_eps)                    # g_norm (4H)
            # gate layout is (i | f | o | g): one sigmoid, one tanh per step.
            sig = jax.nn.sigmoid(gates[:, 0:3 * H])
            i_g = sig[:, 0 * H:1 * H]
            f_g = sig[:, 1 * H:2 * H]
            o_g = sig[:, 2 * H:3 * H]
            c_g = jnp.tanh(gates[:, 3 * H:4 * H])
            c_new = _ln(f_g * c + i_g * c_g, cg, cb, lstm_eps)      # c_norm (H)
            h_new = o_g * jnp.tanh(c_new)
            if last:
                # last layer: keep the sequence of h for the output projection
                x_sc[pl.ds(off, batch), :] = h_new
            else:
                # interleave the NEXT layer's input projection with this recurrence
                gx_nxt[pl.ds(off, batch), :] = jnp.dot(
                    h_new.astype(jnp.bfloat16), wx_ref[li + 1],
                    preferred_element_type=jnp.float32)
            return h_new, c_new

        h_fin, c_fin = jax.lax.fori_loop(
            0, seq_len, step, (h0_ref[li], c0_ref[li]), unroll=True)
        # Final state written once per layer (not per step).
        hout_ref[li] = h_fin
        cout_ref[li] = c_fin
        # TODO(synk): nn.Dropout(p=0.3) between layers is identity in eval mode.

    # ---- output projection + LayerNorm ----
    om = om_ref[...]                                                # (3, OUT): b, gamma, beta
    y = jnp.dot(x_sc[...].astype(jnp.bfloat16), wo_ref[...],
                preferred_element_type=jnp.float32) + om[0:1, :]    # (TB, OUT)
    out_ref[...] = _ln(y, om[1:2, :], om[2:3, :], ln_eps)


# ----------------------------- parameters ------------------------------------
def init_params(key):
    ks = jax.random.split(key, 2 + 2 * NUM_LAYERS)
    # Weights are built in torch gate order (i,f,g,o) then permuted to (i,f,o,g).
    wx = jnp.stack([
        _permute_gate_cols(
            0.1 * jax.random.normal(ks[2 + 2 * li],
                                    (EMB_DIM if li == 0 else HIDDEN, 4 * HIDDEN),
                                    jnp.float32)).astype(jnp.bfloat16)
        for li in range(NUM_LAYERS)])
    wh = jnp.stack([
        _permute_gate_cols(
            0.1 * jax.random.normal(ks[3 + 2 * li], (HIDDEN, 4 * HIDDEN),
                                    jnp.float32)).astype(jnp.bfloat16)
        for li in range(NUM_LAYERS)])
    # Packed LN / bias parameters (fewer DMA descriptors per call).
    in_ln = jnp.stack([jnp.ones((EMB_DIM,), jnp.float32),
                       jnp.zeros((EMB_DIM,), jnp.float32)])                      # (2, E)
    gate_ln = jnp.stack([jnp.stack([_permute_gate_cols(jnp.ones((4 * HIDDEN,), jnp.float32)),
                                    _permute_gate_cols(jnp.zeros((4 * HIDDEN,), jnp.float32))])
                         for _ in range(NUM_LAYERS)])                            # (L, 2, 4H)
    cell_ln = jnp.stack([jnp.stack([jnp.ones((HIDDEN,), jnp.float32),
                                    jnp.zeros((HIDDEN,), jnp.float32)])
                         for _ in range(NUM_LAYERS)])                            # (L, 2, H)
    out_misc = jnp.stack([jnp.zeros((OUTPUT_DIM,), jnp.float32),   # b_out
                          jnp.ones((OUTPUT_DIM,), jnp.float32),    # out LN gamma
                          jnp.zeros((OUTPUT_DIM,), jnp.float32)])  # out LN beta  (3, OUT)
    return {
        "embedding": 0.1 * jax.random.normal(ks[0], (NUM_SYMBOLS, EMB_DIM), jnp.float32),
        "in_ln":     in_ln,
        # lstm_layer_norm=True -> x2g and p2g have no bias.
        "wx":        wx,                                           # (L, Din, 4H) bf16
        "wh":        wh,                                           # (L, H, 4H) bf16
        "gate_ln":   gate_ln,
        "cell_ln":   cell_ln,
        "w_out":     (0.1 * jax.random.normal(ks[1], (HIDDEN, OUTPUT_DIM),
                                              jnp.float32)).astype(jnp.bfloat16),
        "out_misc":  out_misc,
    }


# ----------------------------- forward ----------------------------------------
def lstm_predictor_forward(params, tokens, lengths, state):
    """tokens: (B, U) int32, lengths: (B,) int32, state: [] or [[h, c], ...]."""
    B, U = tokens.shape
    T = U + 1
    # Pad batch: 8 sublanes for tiny B; multiple of 16 once it grows (bf16 packing).
    BP = 8 if B <= 8 else ((B + 15) // 16) * 16

    # _left_padding: one blank token on the left of every sequence (int32 directly).
    padded = jnp.pad(tokens.astype(jnp.int32), ((0, 0), (1, 0)),
                     constant_values=BLANK_TOKEN)                  # (B, T)
    tok_tb = jnp.pad(padded.T, ((0, 0), (0, BP - B)),
                     constant_values=BLANK_TOKEN)                  # (T, BP) time-major
    tok_flat = tok_tb.reshape(T * BP, 1)

    if state is None or len(state) == 0:
        h0 = jnp.zeros((NUM_LAYERS, BP, HIDDEN), jnp.float32)
        c0 = jnp.zeros((NUM_LAYERS, BP, HIDDEN), jnp.float32)
    else:
        h0 = jnp.stack([jnp.pad(hc[0].astype(jnp.float32), ((0, BP - B), (0, 0)))
                        for hc in state])
        c0 = jnp.stack([jnp.pad(hc[1].astype(jnp.float32), ((0, BP - B), (0, 0)))
                        for hc in state])

    kernel = functools.partial(
        fused_predictor_kernel,
        seq_len=T, batch=BP, hidden=HIDDEN, num_layers=NUM_LAYERS,
        num_symbols=NUM_SYMBOLS, ln_eps=LN_EPS, lstm_eps=LSTM_LN_EPS)

    vmem = pl.BlockSpec(memory_space=pltpu.MemorySpace.VMEM)
    out, h_out, c_out = pl.pallas_call(
        kernel,
        out_shape=(jax.ShapeDtypeStruct((T * BP, OUTPUT_DIM), jnp.float32),
                   jax.ShapeDtypeStruct((NUM_LAYERS, BP, HIDDEN), jnp.float32),
                   jax.ShapeDtypeStruct((NUM_LAYERS, BP, HIDDEN), jnp.float32)),
        in_specs=[vmem] * 11,
        out_specs=(vmem, vmem, vmem),
        scratch_shapes=[pltpu.VMEM((T * BP, HIDDEN), jnp.float32),          # activations
                        pltpu.VMEM((2, T * BP, 4 * HIDDEN), jnp.float32)],  # gx double-buffer
        compiler_params=pltpu.CompilerParams(vmem_limit_bytes=32 * 1024 * 1024),
    )(tok_flat, params["embedding"], params["in_ln"],
      params["wx"], params["wh"], params["gate_ln"], params["cell_ln"],
      h0, c0, params["w_out"], params["out_misc"])

    out = out.reshape(T, BP, OUTPUT_DIM)[:, :B, :].transpose(1, 0, 2)   # (B, U+1, OUT)
    state_out = [[h_out[li, :B], c_out[li, :B]] for li in range(NUM_LAYERS)]
    return out, lengths, state_out


# ----------------------------- main ---------------------------------------------
if __name__ == "__main__":
    key = jax.random.PRNGKey(0)
    pkey, tkey = jax.random.split(key)
    params = init_params(pkey)

    B, U = 2, 7   # T = U + 1 = 8 after left padding
    tokens = jax.random.randint(tkey, (B, U), 1, NUM_SYMBOLS, dtype=jnp.int32)
    lengths = jnp.full((B,), U, dtype=jnp.int32)

    output, out_lengths, state_out = lstm_predictor_forward(params, tokens, lengths, [])
    jax.block_until_ready(output)
    jax.block_until_ready(out_lengths)
    for hc in state_out:
        jax.block_until_ready(hc[0])
        jax.block_until_ready(hc[1])

    assert output.shape == (B, U + 1, OUTPUT_DIM), output.shape
    assert out_lengths.shape == (B,)
    assert len(state_out) == NUM_LAYERS
    assert state_out[0][0].shape == (B, HIDDEN)
    assert bool(jnp.all(jnp.isfinite(output)))

    # run a second step re-feeding the state (streaming-like path)
    output2, _, state_out2 = lstm_predictor_forward(params, tokens, lengths, state_out)
    jax.block_until_ready(output2)
    assert output2.shape == (B, U + 1, OUTPUT_DIM)

    print("KERNEL_OK")
</pallas_src>

<mosaic_0001>
module attributes {stable_mosaic.version = 11 : i64} {
  func.func @fused_predictor_kernel(%arg0: memref<64x1xi32, #tpu.memory_space<vmem>>, %arg1: memref<16x128xf32, #tpu.memory_space<vmem>>, %arg2: memref<2x128xf32, #tpu.memory_space<vmem>>, %arg3: memref<2x128x512xbf16, #tpu.memory_space<vmem>>, %arg4: memref<2x128x512xbf16, #tpu.memory_space<vmem>>, %arg5: memref<2x2x512xf32, #tpu.memory_space<vmem>>, %arg6: memref<2x2x128xf32, #tpu.memory_space<vmem>>, %arg7: memref<2x8x128xf32, #tpu.memory_space<vmem>>, %arg8: memref<2x8x128xf32, #tpu.memory_space<vmem>>, %arg9: memref<128x256xbf16, #tpu.memory_space<vmem>>, %arg10: memref<3x256xf32, #tpu.memory_space<vmem>>, %arg11: memref<64x256xf32, #tpu.memory_space<vmem>>, %arg12: memref<2x8x128xf32, #tpu.memory_space<vmem>>, %arg13: memref<2x8x128xf32, #tpu.memory_space<vmem>>, %arg14: memref<64x128xf32, #tpu.memory_space<vmem>>, %arg15: memref<2x64x512xf32, #tpu.memory_space<vmem>>) attributes {dimension_semantics = [], scalar_prefetch = 0 : i64, scratch_operands = 2 : i64, tpu.core_type = #tpu.core_type<tc>} {
    %c0 = arith.constant 0 : index
    %c0_0 = arith.constant 0 : index
    %0 = vector.load %arg0[%c0, %c0_0] : memref<64x1xi32, #tpu.memory_space<vmem>>, vector<64x1xi32>
    %1 = tpu.iota {dimensions = array<i32: 1>} : vector<64x16xi32>
    %2 = vector.broadcast %0 : vector<64x1xi32> to vector<64x16xi32>
    %3 = arith.cmpi eq, %1, %2 : vector<64x16xi32>
    %4 = arith.extui %3 : vector<64x16xi1> to vector<64x16xi32>
    %5 = arith.sitofp %4 : vector<64x16xi32> to vector<64x16xf32>
    %c0_1 = arith.constant 0 : index
    %c0_2 = arith.constant 0 : index
    %6 = vector.load %arg1[%c0_1, %c0_2] : memref<16x128xf32, #tpu.memory_space<vmem>>, vector<16x128xf32>
    %cst = arith.constant dense<0.000000e+00> : vector<64x128xf32>
    %7 = tpu.matmul %5, %6, %cst {dimension_numbers = #tpu.dot_dimension_numbers<[1], [0], [0], [1], [0, 0, 1, 1], [], []>} : vector<64x16xf32>, vector<16x128xf32>, vector<64x128xf32> -> vector<64x128xf32>
    %c0_3 = arith.constant 0 : index
    %c0_4 = arith.constant 0 : index
    %8 = vector.load %arg2[%c0_3, %c0_4] : memref<2x128xf32, #tpu.memory_space<vmem>>, vector<2x128xf32>
    %9 = vector.extract_strided_slice %8 {offsets = [0, 0], sizes = [1, 128], strides = [1, 1]} : vector<2x128xf32> to vector<1x128xf32>
    %10 = vector.extract_strided_slice %8 {offsets = [1, 0], sizes = [1, 128], strides = [1, 1]} : vector<2x128xf32> to vector<1x128xf32>
    %cst_5 = arith.constant dense<0.000000e+00> : vector<64xf32>
    %11 = vector.multi_reduction <add>, %7, %cst_5 [1] : vector<64x128xf32> to vector<64xf32>
    %12 = vector.shape_cast %11 : vector<64xf32> to vector<64x1xf32>
    %cst_6 = arith.constant 1.280000e+02 : f32
    %13 = vector.broadcast %cst_6 : f32 to vector<64x1xf32>
    %14 = arith.divf %12, %13 : vector<64x1xf32>
    %15 = arith.mulf %7, %7 : vector<64x128xf32>
    %cst_7 = arith.constant dense<0.000000e+00> : vector<64xf32>
    %16 = vector.multi_reduction <add>, %15, %cst_7 [1] : vector<64x128xf32> to vector<64xf32>
    %17 = vector.shape_cast %16 : vector<64xf32> to vector<64x1xf32>
    %cst_8 = arith.constant 1.280000e+02 : f32
    %18 = vector.broadcast %cst_8 : f32 to vector<64x1xf32>
    %19 = arith.divf %17, %18 : vector<64x1xf32>
    %20 = arith.mulf %14, %14 : vector<64x1xf32>
    %21 = arith.subf %19, %20 : vector<64x1xf32>
    %22 = vector.broadcast %14 : vector<64x1xf32> to vector<64x128xf32>
    %23 = arith.subf %7, %22 : vector<64x128xf32>
    %cst_9 = arith.constant 9.99999974E-6 : f32
    %24 = vector.broadcast %cst_9 : f32 to vector<64x1xf32>
    %25 = arith.addf %21, %24 : vector<64x1xf32>
    %26 = math.rsqrt %25 : vector<64x1xf32>
    %27 = vector.broadcast %26 : vector<64x1xf32> to vector<64x128xf32>
    %28 = arith.mulf %23, %27 : vector<64x128xf32>
    %29 = vector.broadcast %9 : vector<1x128xf32> to vector<64x128xf32>
    %30 = arith.mulf %28, %29 : vector<64x128xf32>
    %31 = vector.broadcast %10 : vector<1x128xf32> to vector<64x128xf32>
    %32 = arith.addf %30, %31 : vector<64x128xf32>
    %c0_10 = arith.constant 0 : index
    %c0_11 = arith.constant 0 : index
    %33 = vector.load %arg14[%c0_10, %c0_11] : memref<64x128xf32, #tpu.memory_space<vmem>>, vector<64x128xf32>
    tpu.vector_store %arg14[%c0_10, %c0_11], %32 {strides = array<i32>} : memref<64x128xf32, #tpu.memory_space<vmem>>, vector<64x128xf32>,
    %c0_12 = arith.constant 0 : index
    %c0_13 = arith.constant 0 : index
    %34 = vector.load %arg14[%c0_12, %c0_13] : memref<64x128xf32, #tpu.memory_space<vmem>>, vector<64x128xf32>
    %35 = arith.truncf %34 : vector<64x128xf32> to vector<64x128xbf16>
    %c0_14 = arith.constant 0 : index
    %c0_15 = arith.constant 0 : index
    %c0_16 = arith.constant 0 : index
    %36 = vector.load %arg3[%c0_14, %c0_15, %c0_16] : memref<2x128x512xbf16, #tpu.memory_space<vmem>>, vector<1x128x512xbf16>
    %37 = vector.shape_cast %36 : vector<1x128x512xbf16> to vector<128x512xbf16>
    %cst_17 = arith.constant dense<0.000000e+00> : vector<64x512xf32>
    %38 = tpu.matmul %35, %37, %cst_17 {dimension_numbers = #tpu.dot_dimension_numbers<[1], [0], [0], [1], [0, 0, 1, 1], [], []>} : vector<64x128xbf16>, vector<128x512xbf16>, vector<64x512xf32> -> vector<64x512xf32>
    %c0_18 = arith.constant 0 : index
    %c0_19 = arith.constant 0 : index
    %c0_20 = arith.constant 0 : index
    %39 = vector.load %arg15[%c0_18, %c0_19, %c0_20] : memref<2x64x512xf32, #tpu.memory_space<vmem>>, vector<1x64x512xf32>
    %40 = vector.shape_cast %39 : vector<1x64x512xf32> to vector<64x512xf32>
    %41 = vector.shape_cast %38 : vector<64x512xf32> to vector<1x64x512xf32>
    tpu.vector_store %arg15[%c0_18, %c0_19, %c0_20], %41 {strides = array<i32>} : memref<2x64x512xf32, #tpu.memory_space<vmem>>, vector<1x64x512xf32>,
    %c0_21 = arith.constant 0 : index
    %c0_22 = arith.constant 0 : index
    %c0_23 = arith.constant 0 : index
    %42 = vector.load %arg5[%c0_21, %c0_22, %c0_23] : memref<2x2x512xf32, #tpu.memory_space<vmem>>, vector<1x2x512xf32>
    %43 = vector.shape_cast %42 : vector<1x2x512xf32> to vector<2x512xf32>
    %c0_24 = arith.constant 0 : index
    %c0_25 = arith.constant 0 : index
    %c0_26 = arith.constant 0 : index
    %44 = vector.load %arg6[%c0_24, %c0_25, %c0_26] : memref<2x2x128xf32, #tpu.memory_space<vmem>>, vector<1x2x128xf32>
    %45 = vector.shape_cast %44 : vector<1x2x128xf32> to vector<2x128xf32>
    %46 = vector.extract_strided_slice %43 {offsets = [0, 0], sizes = [1, 512], strides = [1, 1]} : vector<2x512xf32> to vector<1x512xf32>
    %47 = vector.extract_strided_slice %43 {offsets = [1, 0], sizes = [1, 512], strides = [1, 1]} : vector<2x512xf32> to vector<1x512xf32>
    %48 = vector.extract_strided_slice %45 {offsets = [0, 0], sizes = [1, 128], strides = [1, 1]} : vector<2x128xf32> to vector<1x128xf32>
    %49 = vector.extract_strided_slice %45 {offsets = [1, 0], sizes = [1, 128], strides = [1, 1]} : vector<2x128xf32> to vector<1x128xf32>
    %c0_27 = arith.constant 0 : index
    %c0_28 = arith.constant 0 : index
    %c0_29 = arith.constant 0 : index
    %50 = vector.load %arg7[%c0_27, %c0_28, %c0_29] : memref<2x8x128xf32, #tpu.memory_space<vmem>>, vector<1x8x128xf32>
    %51 = vector.shape_cast %50 : vector<1x8x128xf32> to vector<8x128xf32>
    %c0_30 = arith.constant 0 : index
    %c0_31 = arith.constant 0 : index
    %c0_32 = arith.constant 0 : index
    %52 = vector.load %arg8[%c0_30, %c0_31, %c0_32] : memref<2x8x128xf32, #tpu.memory_space<vmem>>, vector<1x8x128xf32>
    %53 = vector.shape_cast %52 : vector<1x8x128xf32> to vector<8x128xf32>
    %c0_i32 = arith.constant 0 : i32
    %c1_i32 = arith.constant 1 : i32
    %c0_i32_33 = arith.constant 0 : i32
    %c8_i32 = arith.constant 8 : i32
    %54 = arith.muli %c0_i32_33, %c8_i32 : i32
    %55 = tpu.assume_multiple %54, 8 : i32
    %c0_i32_34 = arith.constant 0 : i32
    %c0_i32_35 = arith.constant 0 : i32
    %56 = tpu.memref_slice %arg15[%c0_i32, %c0_i32_34, %c0_i32_35] : memref<2x64x512xf32, #tpu.memory_space<vmem>> -> memref<1x64x512xf32, #tpu.memory_space<vmem>>
    %57 = tpu.memref_squeeze %56 : memref<1x64x512xf32, #tpu.memory_space<vmem>> -> memref<64x512xf32, #tpu.memory_space<vmem>>
    %58 = arith.index_cast %55 : i32 to index
    %c0_36 = arith.constant 0 : index
    %59 = vector.load %57[%58, %c0_36] : memref<64x512xf32, #tpu.memory_space<vmem>>, vector<8x512xf32>
    %60 = arith.truncf %51 : vector<8x128xf32> to vector<8x128xbf16>
    %c0_37 = arith.constant 0 : index
    %c0_38 = arith.constant 0 : index
    %c0_39 = arith.constant 0 : index
    %61 = vector.load %arg4[%c0_37, %c0_38, %c0_39] : memref<2x128x512xbf16, #tpu.memory_space<vmem>>, vector<1x128x512xbf16>
    %62 = vector.shape_cast %61 : vector<1x128x512xbf16> to vector<128x512xbf16>
    %cst_40 = arith.constant dense<0.000000e+00> : vector<8x512xf32>
    %63 = tpu.matmul %60, %62, %cst_40 {dimension_numbers = #tpu.dot_dimension_numbers<[1], [0], [0], [1], [0, 0, 1, 1], [], []>} : vector<8x128xbf16>, vector<128x512xbf16>, vector<8x512xf32> -> vector<8x512xf32>
    %64 = arith.addf %59, %63 : vector<8x512xf32>
    %cst_41 = arith.constant dense<0.000000e+00> : vector<8xf32>
    %65 = vector.multi_reduction <add>, %64, %cst_41 [1] : vector<8x512xf32> to vector<8xf32>
    %66 = vector.shape_cast %65 : vector<8xf32> to vector<8x1xf32>
    %cst_42 = arith.constant 5.120000e+02 : f32
    %67 = vector.broadcast %cst_42 : f32 to vector<8x1xf32>
    %68 = arith.divf %66, %67 : vector<8x1xf32>
    %69 = arith.mulf %64, %64 : vector<8x512xf32>
    %cst_43 = arith.constant dense<0.000000e+00> : vector<8xf32>
    %70 = vector.multi_reduction <add>, %69, %cst_43 [1] : vector<8x512xf32> to vector<8xf32>
    %71 = vector.shape_cast %70 : vector<8xf32> to vector<8x1xf32>
    %cst_44 = arith.constant 5.120000e+02 : f32
    %72 = vector.broadcast %cst_44 : f32 to vector<8x1xf32>
    %73 = arith.divf %71, %72 : vector<8x1xf32>
    %74 = arith.mulf %68, %68 : vector<8x1xf32>
    %75 = arith.subf %73, %74 : vector<8x1xf32>
    %76 = vector.broadcast %68 : vector<8x1xf32> to vector<8x512xf32>
    %77 = arith.subf %64, %76 : vector<8x512xf32>
    %cst_45 = arith.constant 1.000000e-03 : f32
    %78 = vector.broadcast %cst_45 : f32 to vector<8x1xf32>
    %79 = arith.addf %75, %78 : vector<8x1xf32>
    %80 = math.rsqrt %79 : vector<8x1xf32>
    %81 = vector.broadcast %80 : vector<8x1xf32> to vector<8x512xf32>
    %82 = arith.mulf %77, %81 : vector<8x512xf32>
    %83 = vector.broadcast %46 : vector<1x512xf32> to vector<8x512xf32>
    %84 = arith.mulf %82, %83 : vector<8x512xf32>
    %85 = vector.broadcast %47 : vector<1x512xf32> to vector<8x512xf32>
    %86 = arith.addf %84, %85 : vector<8x512xf32>
    %87 = vector.extract_strided_slice %86 {offsets = [0, 0], sizes = [8, 384], strides = [1, 1]} : vector<8x512xf32> to vector<8x384xf32>
    %88 = arith.negf %87 : vector<8x384xf32>
    %89 = math.exp %88 : vector<8x384xf32>
    %cst_46 = arith.constant 1.000000e+00 : f32
    %90 = vector.broadcast %cst_46 : f32 to vector<8x384xf32>
    %91 = arith.addf %90, %89 : vector<8x384xf32>
    %92 = arith.divf %90, %91 : vector<8x384xf32>
    %93 = vector.extract_strided_slice %92 {offsets = [0, 0], sizes = [8, 128], strides = [1, 1]} : vector<8x384xf32> to vector<8x128xf32>
    %94 = vector.extract_strided_slice %92 {offsets = [0, 128], sizes = [8, 128], strides = [1, 1]} : vector<8x384xf32> to vector<8x128xf32>
    %95 = vector.extract_strided_slice %92 {offsets = [0, 256], sizes = [8, 128], strides = [1, 1]} : vector<8x384xf32> to vector<8x128xf32>
    %96 = vector.extract_strided_slice %86 {offsets = [0, 384], sizes = [8, 128], strides = [1, 1]} : vector<8x512xf32> to vector<8x128xf32>
    %97 = math.tanh %96 : vector<8x128xf32>
    %98 = arith.mulf %94, %53 : vector<8x128xf32>
    %99 = arith.mulf %93, %97 : vector<8x128xf32>
    %100 = arith.addf %98, %99 : vector<8x128xf32>
    %cst_47 = arith.constant dense<0.000000e+00> : vector<8xf32>
    %101 = vector.multi_reduction <add>, %100, %cst_47 [1] : vector<8x128xf32> to vector<8xf32>
    %102 = vector.shape_cast %101 : vector<8xf32> to vector<8x1xf32>
    %cst_48 = arith.constant 1.280000e+02 : f32
    %103 = vector.broadcast %cst_48 : f32 to vector<8x1xf32>
    %104 = arith.divf %102, %103 : vector<8x1xf32>
    %105 = arith.mulf %100, %100 : vector<8x128xf32>
    %cst_49 = arith.constant dense<0.000000e+00> : vector<8xf32>
    %106 = vector.multi_reduction <add>, %105, %cst_49 [1] : vector<8x128xf32> to vector<8xf32>
    %107 = vector.shape_cast %106 : vector<8xf32> to vector<8x1xf32>
    %cst_50 = arith.constant 1.280000e+02 : f32
    %108 = vector.broadcast %cst_50 : f32 to vector<8x1xf32>
    %109 = arith.divf %107, %108 : vector<8x1xf32>
    %110 = arith.mulf %104, %104 : vector<8x1xf32>
    %111 = arith.subf %109, %110 : vector<8x1xf32>
    %112 = vector.broadcast %104 : vector<8x1xf32> to vector<8x128xf32>
    %113 = arith.subf %100, %112 : vector<8x128xf32>
    %cst_51 = arith.constant 1.000000e-03 : f32
    %114 = vector.broadcast %cst_51 : f32 to vector<8x1xf32>
    %115 = arith.addf %111, %114 : vector<8x1xf32>
    %116 = math.rsqrt %115 : vector<8x1xf32>
    %117 = vector.broadcast %116 : vector<8x1xf32> to vector<8x128xf32>
    %118 = arith.mulf %113, %117 : vector<8x128xf32>
    %119 = vector.broadcast %48 : vector<1x128xf32> to vector<8x128xf32>
    %120 = arith.mulf %118, %119 : vector<8x128xf32>
    %121 = vector.broadcast %49 : vector<1x128xf32> to vector<8x128xf32>
    %122 = arith.addf %120, %121 : vector<8x128xf32>
    %123 = math.tanh %122 : vector<8x128xf32>
    %124 = arith.mulf %95, %123 : vector<8x128xf32>
    %125 = arith.truncf %124 : vector<8x128xf32> to vector<8x128xbf16>
    %c1 = arith.constant 1 : index
    %c0_52 = arith.constant 0 : index
    %c0_53 = arith.constant 0 : index
    %126 = vector.load %arg3[%c1, %c0_52, %c0_53] : memref<2x128x512xbf16, #tpu.memory_space<vmem>>, vector<1x128x512xbf16>
    %127 = vector.shape_cast %126 : vector<1x128x512xbf16> to vector<128x512xbf16>
    %cst_54 = arith.constant dense<0.000000e+00> : vector<8x512xf32>
    %128 = tpu.matmul %125, %127, %cst_54 {dimension_numbers = #tpu.dot_dimension_numbers<[1], [0], [0], [1], [0, 0, 1, 1], [], []>} : vector<8x128xbf16>, vector<128x512xbf16>, vector<8x512xf32> -> vector<8x512xf32>
    %c0_i32_55 = arith.constant 0 : i32
    %c0_i32_56 = arith.constant 0 : i32
    %129 = tpu.memref_slice %arg15[%c1_i32, %c0_i32_55, %c0_i32_56] : memref<2x64x512xf32, #tpu.memory_space<vmem>> -> memref<1x64x512xf32, #tpu.memory_space<vmem>>
    %130 = tpu.memref_squeeze %129 : memref<1x64x512xf32, #tpu.memory_space<vmem>> -> memref<64x512xf32, #tpu.memory_space<vmem>>
    %131 = arith.index_cast %55 : i32 to index
    %c0_57 = arith.constant 0 : index
    %132 = vector.load %130[%131, %c0_57] : memref<64x512xf32, #tpu.memory_space<vmem>>, vector<8x512xf32>
    tpu.vector_store %130[%131, %c0_57], %128 {strides = array<i32>} : memref<64x512xf32, #tpu.memory_space<vmem>>, vector<8x512xf32>,
    %c1_i32_58 = arith.constant 1 : i32
    %c8_i32_59 = arith.constant 8 : i32
    %133 = arith.muli %c1_i32_58, %c8_i32_59 : i32
    %134 = tpu.assume_multiple %133, 8 : i32
    %c0_i32_60 = arith.constant 0 : i32
    %c0_i32_61 = arith.constant 0 : i32
    %135 = tpu.memref_slice %arg15[%c0_i32, %c0_i32_60, %c0_i32_61] : memref<2x64x512xf32, #tpu.memory_space<vmem>> -> memref<1x64x512xf32, #tpu.memory_space<vmem>>
    %136 = tpu.memref_squeeze %135 : memref<1x64x512xf32, #tpu.memory_space<vmem>> -> memref<64x512xf32, #tpu.memory_space<vmem>>
    %137 = arith.index_cast %134 : i32 to index
    %c0_62 = arith.constant 0 : index
    %138 = vector.load %136[%137, %c0_62] : memref<64x512xf32, #tpu.memory_space<vmem>>, vector<8x512xf32>
    %139 = arith.truncf %124 : vector<8x128xf32> to vector<8x128xbf16>
    %c0_63 = arith.constant 0 : index
    %c0_64 = arith.constant 0 : index
    %c0_65 = arith.constant 0 : index
    %140 = vector.load %arg4[%c0_63, %c0_64, %c0_65] : memref<2x128x512xbf16, #tpu.memory_space<vmem>>, vector<1x128x512xbf16>
    %141 = vector.shape_cast %140 : vector<1x128x512xbf16> to vector<128x512xbf16>
    %cst_66 = arith.constant dense<0.000000e+00> : vector<8x512xf32>
    %142 = tpu.matmul %139, %141, %cst_66 {dimension_numbers = #tpu.dot_dimension_numbers<[1], [0], [0], [1], [0, 0, 1, 1], [], []>} : vector<8x128xbf16>, vector<128x512xbf16>, vector<8x512xf32> -> vector<8x512xf32>
    %143 = arith.addf %138, %142 : vector<8x512xf32>
    %cst_67 = arith.constant dense<0.000000e+00> : vector<8xf32>
    %144 = vector.multi_reduction <add>, %143, %cst_67 [1] : vector<8x512xf32> to vector<8xf32>
    %145 = vector.shape_cast %144 : vector<8xf32> to vector<8x1xf32>
    %cst_68 = arith.constant 5.120000e+02 : f32
    %146 = vector.broadcast %cst_68 : f32 to vector<8x1xf32>
    %147 = arith.divf %145, %146 : vector<8x1xf32>
    %148 = arith.mulf %143, %143 : vector<8x512xf32>
    %cst_69 = arith.constant dense<0.000000e+00> : vector<8xf32>
    %149 = vector.multi_reduction <add>, %148, %cst_69 [1] : vector<8x512xf32> to vector<8xf32>
    %150 = vector.shape_cast %149 : vector<8xf32> to vector<8x1xf32>
    %cst_70 = arith.constant 5.120000e+02 : f32
    %151 = vector.broadcast %cst_70 : f32 to vector<8x1xf32>
    %152 = arith.divf %150, %151 : vector<8x1xf32>
    %153 = arith.mulf %147, %147 : vector<8x1xf32>
    %154 = arith.subf %152, %153 : vector<8x1xf32>
    %155 = vector.broadcast %147 : vector<8x1xf32> to vector<8x512xf32>
    %156 = arith.subf %143, %155 : vector<8x512xf32>
    %cst_71 = arith.constant 1.000000e-03 : f32
    %157 = vector.broadcast %cst_71 : f32 to vector<8x1xf32>
    %158 = arith.addf %154, %157 : vector<8x1xf32>
    %159 = math.rsqrt %158 : vector<8x1xf32>
    %160 = vector.broadcast %159 : vector<8x1xf32> to vector<8x512xf32>
    %161 = arith.mulf %156, %160 : vector<8x512xf32>
    %162 = vector.broadcast %46 : vector<1x512xf32> to vector<8x512xf32>
    %163 = arith.mulf %161, %162 : vector<8x512xf32>
    %164 = vector.broadcast %47 : vector<1x512xf32> to vector<8x512xf32>
    %165 = arith.addf %163, %164 : vector<8x512xf32>
    %166 = vector.extract_strided_slice %165 {offsets = [0, 0], sizes = [8, 384], strides = [1, 1]} : vector<8x512xf32> to vector<8x384xf32>
    %167 = arith.negf %166 : vector<8x384xf32>
    %168 = math.exp %167 : vector<8x384xf32>
    %cst_72 = arith.constant 1.000000e+00 : f32
    %169 = vector.broadcast %cst_72 : f32 to vector<8x384xf32>
    %170 = arith.addf %169, %168 : vector<8x384xf32>
    %171 = arith.divf %169, %170 : vector<8x384xf32>
    %172 = vector.extract_strided_slice %171 {offsets = [0, 0], sizes = [8, 128], strides = [1, 1]} : vector<8x384xf32> to vector<8x128xf32>
    %173 = vector.extract_strided_slice %171 {offsets = [0, 128], sizes = [8, 128], strides = [1, 1]} : vector<8x384xf32> to vector<8x128xf32>
    %174 = vector.extract_strided_slice %171 {offsets = [0, 256], sizes = [8, 128], strides = [1, 1]} : vector<8x384xf32> to vector<8x128xf32>
    %175 = vector.extract_strided_slice %165 {offsets = [0, 384], sizes = [8, 128], strides = [1, 1]} : vector<8x512xf32> to vector<8x128xf32>
    %176 = math.tanh %175 : vector<8x128xf32>
    %177 = arith.mulf %173, %122 : vector<8x128xf32>
    %178 = arith.mulf %172, %176 : vector<8x128xf32>
    %179 = arith.addf %177, %178 : vector<8x128xf32>
    %cst_73 = arith.constant dense<0.000000e+00> : vector<8xf32>
    %180 = vector.multi_reduction <add>, %179, %cst_73 [1] : vector<8x128xf32> to vector<8xf32>
    %181 = vector.shape_cast %180 : vector<8xf32> to vector<8x1xf32>
    %cst_74 = arith.constant 1.280000e+02 : f32
    %182 = vector.broadcast %cst_74 : f32 to vector<8x1xf32>
    %183 = arith.divf %181, %182 : vector<8x1xf32>
    %184 = arith.mulf %179, %179 : vector<8x128xf32>
    %cst_75 = arith.constant dense<0.000000e+00> : vector<8xf32>
    %185 = vector.multi_reduction <add>, %184, %cst_75 [1] : vector<8x128xf32> to vector<8xf32>
    %186 = vector.shape_cast %185 : vector<8xf32> to vector<8x1xf32>
    %cst_76 = arith.constant 1.280000e+02 : f32
    %187 = vector.broadcast %cst_76 : f32 to vector<8x1xf32>
    %188 = arith.divf %186, %187 : vector<8x1xf32>
    %189 = arith.mulf %183, %183 : vector<8x1xf32>
    %190 = arith.subf %188, %189 : vector<8x1xf32>
    %191 = vector.broadcast %183 : vector<8x1xf32> to vector<8x128xf32>
    %192 = arith.subf %179, %191 : vector<8x128xf32>
    %cst_77 = arith.constant 1.000000e-03 : f32
    %193 = vector.broadcast %cst_77 : f32 to vector<8x1xf32>
    %194 = arith.addf %190, %193 : vector<8x1xf32>
    %195 = math.rsqrt %194 : vector<8x1xf32>
    %196 = vector.broadcast %195 : vector<8x1xf32> to vector<8x128xf32>
    %197 = arith.mulf %192, %196 : vector<8x128xf32>
    %198 = vector.broadcast %48 : vector<1x128xf32> to vector<8x128xf32>
    %199 = arith.mulf %197, %198 : vector<8x128xf32>
    %200 = vector.broadcast %49 : vector<1x128xf32> to vector<8x128xf32>
    %201 = arith.addf %199, %200 : vector<8x128xf32>
    %202 = math.tanh %201 : vector<8x128xf32>
    %203 = arith.mulf %174, %202 : vector<8x128xf32>
    %204 = arith.truncf %203 : vector<8x128xf32> to vector<8x128xbf16>
    %c1_78 = arith.constant 1 : index
    %c0_79 = arith.constant 0 : index
    %c0_80 = arith.constant 0 : index
    %205 = vector.load %arg3[%c1_78, %c0_79, %c0_80] : memref<2x128x512xbf16, #tpu.memory_space<vmem>>, vector<1x128x512xbf16>
    %206 = vector.shape_cast %205 : vector<1x128x512xbf16> to vector<128x512xbf16>
    %cst_81 = arith.constant dense<0.000000e+00> : vector<8x512xf32>
    %207 = tpu.matmul %204, %206, %cst_81 {dimension_numbers = #tpu.dot_dimension_numbers<[1], [0], [0], [1], [0, 0, 1, 1], [], []>} : vector<8x128xbf16>, vector<128x512xbf16>, vector<8x512xf32> -> vector<8x512xf32>
    %c0_i32_82 = arith.constant 0 : i32
    %c0_i32_83 = arith.constant 0 : i32
    %208 = tpu.memref_slice %arg15[%c1_i32, %c0_i32_82, %c0_i32_83] : memref<2x64x512xf32, #tpu.memory_space<vmem>> -> memref<1x64x512xf32, #tpu.memory_space<vmem>>
    %209 = tpu.memref_squeeze %208 : memref<1x64x512xf32, #tpu.memory_space<vmem>> -> memref<64x512xf32, #tpu.memory_space<vmem>>
    %210 = arith.index_cast %134 : i32 to index
    %c0_84 = arith.constant 0 : index
    %211 = vector.load %209[%210, %c0_84] : memref<64x512xf32, #tpu.memory_space<vmem>>, vector<8x512xf32>
    tpu.vector_store %209[%210, %c0_84], %207 {strides = array<i32>} : memref<64x512xf32, #tpu.memory_space<vmem>>, vector<8x512xf32>,
    %c2_i32 = arith.constant 2 : i32
    %c8_i32_85 = arith.constant 8 : i32
    %212 = arith.muli %c2_i32, %c8_i32_85 : i32
    %213 = tpu.assume_multiple %212, 8 : i32
    %c0_i32_86 = arith.constant 0 : i32
    %c0_i32_87 = arith.constant 0 : i32
    %214 = tpu.memref_slice %arg15[%c0_i32, %c0_i32_86, %c0_i32_87] : memref<2x64x512xf32, #tpu.memory_space<vmem>> -> memref<1x64x512xf32, #tpu.memory_space<vmem>>
    %215 = tpu.memref_squeeze %214 : memref<1x64x512xf32, #tpu.memory_space<vmem>> -> memref<64x512xf32, #tpu.memory_space<vmem>>
    %216 = arith.index_cast %213 : i32 to index
    %c0_88 = arith.constant 0 : index
    %217 = vector.load %215[%216, %c0_88] : memref<64x512xf32, #tpu.memory_space<vmem>>, vector<8x512xf32>
    %218 = arith.truncf %203 : vector<8x128xf32> to vector<8x128xbf16>
    %c0_89 = arith.constant 0 : index
    %c0_90 = arith.constant 0 : index
    %c0_91 = arith.constant 0 : index
    %219 = vector.load %arg4[%c0_89, %c0_90, %c0_91] : memref<2x128x512xbf16, #tpu.memory_space<vmem>>, vector<1x128x512xbf16>
    %220 = vector.shape_cast %219 : vector<1x128x512xbf16> to vector<128x512xbf16>
    %cst_92 = arith.constant dense<0.000000e+00> : vector<8x512xf32>
    %221 = tpu.matmul %218, %220, %cst_92 {dimension_numbers = #tpu.dot_dimension_numbers<[1], [0], [0], [1], [0, 0, 1, 1], [], []>} : vector<8x128xbf16>, vector<128x512xbf16>, vector<8x512xf32> -> vector<8x512xf32>
    %222 = arith.addf %217, %221 : vector<8x512xf32>
    %cst_93 = arith.constant dense<0.000000e+00> : vector<8xf32>
    %223 = vector.multi_reduction <add>, %222, %cst_93 [1] : vector<8x512xf32> to vector<8xf32>
    %224 = vector.shape_cast %223 : vector<8xf32> to vector<8x1xf32>
    %cst_94 = arith.constant 5.120000e+02 : f32
    %225 = vector.broadcast %cst_94 : f32 to vector<8x1xf32>
    %226 = arith.divf %224, %225 : vector<8x1xf32>
    %227 = arith.mulf %222, %222 : vector<8x512xf32>
    %cst_95 = arith.constant dense<0.000000e+00> : vector<8xf32>
    %228 = vector.multi_reduction <add>, %227, %cst_95 [1] : vector<8x512xf32> to vector<8xf32>
    %229 = vector.shape_cast %228 : vector<8xf32> to vector<8x1xf32>
    %cst_96 = arith.constant 5.120000e+02 : f32
    %230 = vector.broadcast %cst_96 : f32 to vector<8x1xf32>
    %231 = arith.divf %229, %230 : vector<8x1xf32>
    %232 = arith.mulf %226, %226 : vector<8x1xf32>
    %233 = arith.subf %231, %232 : vector<8x1xf32>
    %234 = vector.broadcast %226 : vector<8x1xf32> to vector<8x512xf32>
    %235 = arith.subf %222, %234 : vector<8x512xf32>
    %cst_97 = arith.constant 1.000000e-03 : f32
    %236 = vector.broadcast %cst_97 : f32 to vector<8x1xf32>
    %237 = arith.addf %233, %236 : vector<8x1xf32>
    %238 = math.rsqrt %237 : vector<8x1xf32>
    %239 = vector.broadcast %238 : vector<8x1xf32> to vector<8x512xf32>
    %240 = arith.mulf %235, %239 : vector<8x512xf32>
    %241 = vector.broadcast %46 : vector<1x512xf32> to vector<8x512xf32>
    %242 = arith.mulf %240, %241 : vector<8x512xf32>
    %243 = vector.broadcast %47 : vector<1x512xf32> to vector<8x512xf32>
    %244 = arith.addf %242, %243 : vector<8x512xf32>
    %245 = vector.extract_strided_slice %244 {offsets = [0, 0], sizes = [8, 384], strides = [1, 1]} : vector<8x512xf32> to vector<8x384xf32>
    %246 = arith.negf %245 : vector<8x384xf32>
    %247 = math.exp %246 : vector<8x384xf32>
    %cst_98 = arith.constant 1.000000e+00 : f32
    %248 = vector.broadcast %cst_98 : f32 to vector<8x384xf32>
    %249 = arith.addf %248, %247 : vector<8x384xf32>
    %250 = arith.divf %248, %249 : vector<8x384xf32>
    %251 = vector.extract_strided_slice %250 {offsets = [0, 0], sizes = [8, 128], strides = [1, 1]} : vector<8x384xf32> to vector<8x128xf32>
    %252 = vector.extract_strided_slice %250 {offsets = [0, 128], sizes = [8, 128], strides = [1, 1]} : vector<8x384xf32> to vector<8x128xf32>
    %253 = vector.extract_strided_slice %250 {offsets = [0, 256], sizes = [8, 128], strides = [1, 1]} : vector<8x384xf32> to vector<8x128xf32>
    %254 = vector.extract_strided_slice %244 {offsets = [0, 384], sizes = [8, 128], strides = [1, 1]} : vector<8x512xf32> to vector<8x128xf32>
    %255 = math.tanh %254 : vector<8x128xf32>
    %256 = arith.mulf %252, %201 : vector<8x128xf32>
    %257 = arith.mulf %251, %255 : vector<8x128xf32>
    %258 = arith.addf %256, %257 : vector<8x128xf32>
    %cst_99 = arith.constant dense<0.000000e+00> : vector<8xf32>
    %259 = vector.multi_reduction <add>, %258, %cst_99 [1] : vector<8x128xf32> to vector<8xf32>
    %260 = vector.shape_cast %259 : vector<8xf32> to vector<8x1xf32>
    %cst_100 = arith.constant 1.280000e+02 : f32
    %261 = vector.broadcast %cst_100 : f32 to vector<8x1xf32>
    %262 = arith.divf %260, %261 : vector<8x1xf32>
    %263 = arith.mulf %258, %258 : vector<8x128xf32>
    %cst_101 = arith.constant dense<0.000000e+00> : vector<8xf32>
    %264 = vector.multi_reduction <add>, %263, %cst_101 [1] : vector<8x128xf32> to vector<8xf32>
    %265 = vector.shape_cast %264 : vector<8xf32> to vector<8x1xf32>
    %cst_102 = arith.constant 1.280000e+02 : f32
    %266 = vector.broadcast %cst_102 : f32 to vector<8x1xf32>
    %267 = arith.divf %265, %266 : vector<8x1xf32>
    %268 = arith.mulf %262, %262 : vector<8x1xf32>
    %269 = arith.subf %267, %268 : vector<8x1xf32>
    %270 = vector.broadcast %262 : vector<8x1xf32> to vector<8x128xf32>
    %271 = arith.subf %258, %270 : vector<8x128xf32>
    %cst_103 = arith.constant 1.000000e-03 : f32
    %272 = vector.broadcast %cst_103 : f32 to vector<8x1xf32>
    %273 = arith.addf %269, %272 : vector<8x1xf32>
    %274 = math.rsqrt %273 : vector<8x1xf32>
    %275 = vector.broadcast %274 : vector<8x1xf32> to vector<8x128xf32>
    %276 = arith.mulf %271, %275 : vector<8x128xf32>
    %277 = vector.broadcast %48 : vector<1x128xf32> to vector<8x128xf32>
    %278 = arith.mulf %276, %277 : vector<8x128xf32>
    %279 = vector.broadcast %49 : vector<1x128xf32> to vector<8x128xf32>
    %280 = arith.addf %278, %279 : vector<8x128xf32>
    %281 = math.tanh %280 : vector<8x128xf32>
    %282 = arith.mulf %253, %281 : vector<8x128xf32>
    %283 = arith.truncf %282 : vector<8x128xf32> to vector<8x128xbf16>
    %c1_104 = arith.constant 1 : index
    %c0_105 = arith.constant 0 : index
    %c0_106 = arith.constant 0 : index
    %284 = vector.load %arg3[%c1_104, %c0_105, %c0_106] : memref<2x128x512xbf16, #tpu.memory_space<vmem>>, vector<1x128x512xbf16>
    %285 = vector.shape_cast %284 : vector<1x128x512xbf16> to vector<128x512xbf16>
    %cst_107 = arith.constant dense<0.000000e+00> : vector<8x512xf32>
    %286 = tpu.matmul %283, %285, %cst_107 {dimension_numbers = #tpu.dot_dimension_numbers<[1], [0], [0], [1], [0, 0, 1, 1], [], []>} : vector<8x128xbf16>, vector<128x512xbf16>, vector<8x512xf32> -> vector<8x512xf32>
    %c0_i32_108 = arith.constant 0 : i32
    %c0_i32_109 = arith.constant 0 : i32
    %287 = tpu.memref_slice %arg15[%c1_i32, %c0_i32_108, %c0_i32_109] : memref<2x64x512xf32, #tpu.memory_space<vmem>> -> memref<1x64x512xf32, #tpu.memory_space<vmem>>
    %288 = tpu.memref_squeeze %287 : memref<1x64x512xf32, #tpu.memory_space<vmem>> -> memref<64x512xf32, #tpu.memory_space<vmem>>
    %289 = arith.index_cast %213 : i32 to index
    %c0_110 = arith.constant 0 : index
    %290 = vector.load %288[%289, %c0_110] : memref<64x512xf32, #tpu.memory_space<vmem>>, vector<8x512xf32>
    tpu.vector_store %288[%289, %c0_110], %286 {strides = array<i32>} : memref<64x512xf32, #tpu.memory_space<vmem>>, vector<8x512xf32>,
    %c3_i32 = arith.constant 3 : i32
    %c8_i32_111 = arith.constant 8 : i32
    %291 = arith.muli %c3_i32, %c8_i32_111 : i32
    %292 = tpu.assume_multiple %291, 8 : i32
    %c0_i32_112 = arith.constant 0 : i32
    %c0_i32_113 = arith.constant 0 : i32
    %293 = tpu.memref_slice %arg15[%c0_i32, %c0_i32_112, %c0_i32_113] : memref<2x64x512xf32, #tpu.memory_space<vmem>> -> memref<1x64x512xf32, #tpu.memory_space<vmem>>
    %294 = tpu.memref_squeeze %293 : memref<1x64x512xf32, #tpu.memory_space<vmem>> -> memref<64x512xf32, #tpu.memory_space<vmem>>
    %295 = arith.index_cast %292 : i32 to index
    %c0_114 = arith.constant 0 : index
    %296 = vector.load %294[%295, %c0_114] : memref<64x512xf32, #tpu.memory_space<vmem>>, vector<8x512xf32>
    %297 = arith.truncf %282 : vector<8x128xf32> to vector<8x128xbf16>
    %c0_115 = arith.constant 0 : index
    %c0_116 = arith.constant 0 : index
    %c0_117 = arith.constant 0 : index
    %298 = vector.load %arg4[%c0_115, %c0_116, %c0_117] : memref<2x128x512xbf16, #tpu.memory_space<vmem>>, vector<1x128x512xbf16>
    %299 = vector.shape_cast %298 : vector<1x128x512xbf16> to vector<128x512xbf16>
    %cst_118 = arith.constant dense<0.000000e+00> : vector<8x512xf32>
    %300 = tpu.matmul %297, %299, %cst_118 {dimension_numbers = #tpu.dot_dimension_numbers<[1], [0], [0], [1], [0, 0, 1, 1], [], []>} : vector<8x128xbf16>, vector<128x512xbf16>, vector<8x512xf32> -> vector<8x512xf32>
    %301 = arith.addf %296, %300 : vector<8x512xf32>
    %cst_119 = arith.constant dense<0.000000e+00> : vector<8xf32>
    %302 = vector.multi_reduction <add>, %301, %cst_119 [1] : vector<8x512xf32> to vector<8xf32>
    %303 = vector.shape_cast %302 : vector<8xf32> to vector<8x1xf32>
    %cst_120 = arith.constant 5.120000e+02 : f32
    %304 = vector.broadcast %cst_120 : f32 to vector<8x1xf32>
    %305 = arith.divf %303, %304 : vector<8x1xf32>
    %306 = arith.mulf %301, %301 : vector<8x512xf32>
    %cst_121 = arith.constant dense<0.000000e+00> : vector<8xf32>
    %307 = vector.multi_reduction <add>, %306, %cst_121 [1] : vector<8x512xf32> to vector<8xf32>
    %308 = vector.shape_cast %307 : vector<8xf32> to vector<8x1xf32>
    %cst_122 = arith.constant 5.120000e+02 : f32
    %309 = vector.broadcast %cst_122 : f32 to vector<8x1xf32>
    %310 = arith.divf %308, %309 : vector<8x1xf32>
    %311 = arith.mulf %305, %305 : vector<8x1xf32>
    %312 = arith.subf %310, %311 : vector<8x1xf32>
    %313 = vector.broadcast %305 : vector<8x1xf32> to vector<8x512xf32>
    %314 = arith.subf %301, %313 : vector<8x512xf32>
    %cst_123 = arith.constant 1.000000e-03 : f32
    %315 = vector.broadcast %cst_123 : f32 to vector<8x1xf32>
    %316 = arith.addf %312, %315 : vector<8x1xf32>
    %317 = math.rsqrt %316 : vector<8x1xf32>
    %318 = vector.broadcast %317 : vector<8x1xf32> to vector<8x512xf32>
    %319 = arith.mulf %314, %318 : vector<8x512xf32>
    %320 = vector.broadcast %46 : vector<1x512xf32> to vector<8x512xf32>
    %321 = arith.mulf %319, %320 : vector<8x512xf32>
    %322 = vector.broadcast %47 : vector<1x512xf32> to vector<8x512xf32>
    %323 = arith.addf %321, %322 : vector<8x512xf32>
    %324 = vector.extract_strided_slice %323 {offsets = [0, 0], sizes = [8, 384], strides = [1, 1]} : vector<8x512xf32> to vector<8x384xf32>
    %325 = arith.negf %324 : vector<8x384xf32>
    %326 = math.exp %325 : vector<8x384xf32>
    %cst_124 = arith.constant 1.000000e+00 : f32
    %327 = vector.broadcast %cst_124 : f32 to vector<8x384xf32>
    %328 = arith.addf %327, %326 : vector<8x384xf32>
    %329 = arith.divf %327, %328 : vector<8x384xf32>
    %330 = vector.extract_strided_slice %329 {offsets = [0, 0], sizes = [8, 128], strides = [1, 1]} : vector<8x384xf32> to vector<8x128xf32>
    %331 = vector.extract_strided_slice %329 {offsets = [0, 128], sizes = [8, 128], strides = [1, 1]} : vector<8x384xf32> to vector<8x128xf32>
    %332 = vector.extract_strided_slice %329 {offsets = [0, 256], sizes = [8, 128], strides = [1, 1]} : vector<8x384xf32> to vector<8x128xf32>
    %333 = vector.extract_strided_slice %323 {offsets = [0, 384], sizes = [8, 128], strides = [1, 1]} : vector<8x512xf32> to vector<8x128xf32>
    %334 = math.tanh %333 : vector<8x128xf32>
    %335 = arith.mulf %331, %280 : vector<8x128xf32>
    %336 = arith.mulf %330, %334 : vector<8x128xf32>
    %337 = arith.addf %335, %336 : vector<8x128xf32>
    %cst_125 = arith.constant dense<0.000000e+00> : vector<8xf32>
    %338 = vector.multi_reduction <add>, %337, %cst_125 [1] : vector<8x128xf32> to vector<8xf32>
    %339 = vector.shape_cast %338 : vector<8xf32> to vector<8x1xf32>
    %cst_126 = arith.constant 1.280000e+02 : f32
    %340 = vector.broadcast %cst_126 : f32 to vector<8x1xf32>
    %341 = arith.divf %339, %340 : vector<8x1xf32>
    %342 = arith.mulf %337, %337 : vector<8x128xf32>
    %cst_127 = arith.constant dense<0.000000e+00> : vector<8xf32>
    %343 = vector.multi_reduction <add>, %342, %cst_127 [1] : vector<8x128xf32> to vector<8xf32>
    %344 = vector.shape_cast %343 : vector<8xf32> to vector<8x1xf32>
    %cst_128 = arith.constant 1.280000e+02 : f32
    %345 = vector.broadcast %cst_128 : f32 to vector<8x1xf32>
    %346 = arith.divf %344, %345 : vector<8x1xf32>
    %347 = arith.mulf %341, %341 : vector<8x1xf32>
    %348 = arith.subf %346, %347 : vector<8x1xf32>
    %349 = vector.broadcast %341 : vector<8x1xf32> to vector<8x128xf32>
    %350 = arith.subf %337, %349 : vector<8x128xf32>
    %cst_129 = arith.constant 1.000000e-03 : f32
    %351 = vector.broadcast %cst_129 : f32 to vector<8x1xf32>
    %352 = arith.addf %348, %351 : vector<8x1xf32>
    %353 = math.rsqrt %352 : vector<8x1xf32>
    %354 = vector.broadcast %353 : vector<8x1xf32> to vector<8x128xf32>
    %355 = arith.mulf %350, %354 : vector<8x128xf32>
    %356 = vector.broadcast %48 : vector<1x128xf32> to vector<8x128xf32>
    %357 = arith.mulf %355, %356 : vector<8x128xf32>
    %358 = vector.broadcast %49 : vector<1x128xf32> to vector<8x128xf32>
    %359 = arith.addf %357, %358 : vector<8x128xf32>
    %360 = math.tanh %359 : vector<8x128xf32>
    %361 = arith.mulf %332, %360 : vector<8x128xf32>
    %362 = arith.truncf %361 : vector<8x128xf32> to vector<8x128xbf16>
    %c1_130 = arith.constant 1 : index
    %c0_131 = arith.constant 0 : index
    %c0_132 = arith.constant 0 : index
    %363 = vector.load %arg3[%c1_130, %c0_131, %c0_132] : memref<2x128x512xbf16, #tpu.memory_space<vmem>>, vector<1x128x512xbf16>
    %364 = vector.shape_cast %363 : vector<1x128x512xbf16> to vector<128x512xbf16>
    %cst_133 = arith.constant dense<0.000000e+00> : vector<8x512xf32>
    %365 = tpu.matmul %362, %364, %cst_133 {dimension_numbers = #tpu.dot_dimension_numbers<[1], [0], [0], [1], [0, 0, 1, 1], [], []>} : vector<8x128xbf16>, vector<128x512xbf16>, vector<8x512xf32> -> vector<8x512xf32>
    %c0_i32_134 = arith.constant 0 : i32
    %c0_i32_135 = arith.constant 0 : i32
    %366 = tpu.memref_slice %arg15[%c1_i32, %c0_i32_134, %c0_i32_135] : memref<2x64x512xf32, #tpu.memory_space<vmem>> -> memref<1x64x512xf32, #tpu.memory_space<vmem>>
    %367 = tpu.memref_squeeze %366 : memref<1x64x512xf32, #tpu.memory_space<vmem>> -> memref<64x512xf32, #tpu.memory_space<vmem>>
    %368 = arith.index_cast %292 : i32 to index
    %c0_136 = arith.constant 0 : index
    %369 = vector.load %367[%368, %c0_136] : memref<64x512xf32, #tpu.memory_space<vmem>>, vector<8x512xf32>
    tpu.vector_store %367[%368, %c0_136], %365 {strides = array<i32>} : memref<64x512xf32, #tpu.memory_space<vmem>>, vector<8x512xf32>,
    %c4_i32 = arith.constant 4 : i32
    %c8_i32_137 = arith.constant 8 : i32
    %370 = arith.muli %c4_i32, %c8_i32_137 : i32
    %371 = tpu.assume_multiple %370, 8 : i32
    %c0_i32_138 = arith.constant 0 : i32
    %c0_i32_139 = arith.constant 0 : i32
    %372 = tpu.memref_slice %arg15[%c0_i32, %c0_i32_138, %c0_i32_139] : memref<2x64x512xf32, #tpu.memory_space<vmem>> -> memref<1x64x512xf32, #tpu.memory_space<vmem>>
    %373 = tpu.memref_squeeze %372 : memref<1x64x512xf32, #tpu.memory_space<vmem>> -> memref<64x512xf32, #tpu.memory_space<vmem>>
    %374 = arith.index_cast %371 : i32 to index
    %c0_140 = arith.constant 0 : index
    %375 = vector.load %373[%374, %c0_140] : memref<64x512xf32, #tpu.memory_space<vmem>>, vector<8x512xf32>
    %376 = arith.truncf %361 : vector<8x128xf32> to vector<8x128xbf16>
    %c0_141 = arith.constant 0 : index
    %c0_142 = arith.constant 0 : index
    %c0_143 = arith.constant 0 : index
    %377 = vector.load %arg4[%c0_141, %c0_142, %c0_143] : memref<2x128x512xbf16, #tpu.memory_space<vmem>>, vector<1x128x512xbf16>
    %378 = vector.shape_cast %377 : vector<1x128x512xbf16> to vector<128x512xbf16>
    %cst_144 = arith.constant dense<0.000000e+00> : vector<8x512xf32>
    %379 = tpu.matmul %376, %378, %cst_144 {dimension_numbers = #tpu.dot_dimension_numbers<[1], [0], [0], [1], [0, 0, 1, 1], [], []>} : vector<8x128xbf16>, vector<128x512xbf16>, vector<8x512xf32> -> vector<8x512xf32>
    %380 = arith.addf %375, %379 : vector<8x512xf32>
    %cst_145 = arith.constant dense<0.000000e+00> : vector<8xf32>
    %381 = vector.multi_reduction <add>, %380, %cst_145 [1] : vector<8x512xf32> to vector<8xf32>
    %382 = vector.shape_cast %381 : vector<8xf32> to vector<8x1xf32>
    %cst_146 = arith.constant 5.120000e+02 : f32
    %383 = vector.broadcast %cst_146 : f32 to vector<8x1xf32>
    %384 = arith.divf %382, %383 : vector<8x1xf32>
    %385 = arith.mulf %380, %380 : vector<8x512xf32>
    %cst_147 = arith.constant dense<0.000000e+00> : vector<8xf32>
    %386 = vector.multi_reduction <add>, %385, %cst_147 [1] : vector<8x512xf32> to vector<8xf32>
    %387 = vector.shape_cast %386 : vector<8xf32> to vector<8x1xf32>
    %cst_148 = arith.constant 5.120000e+02 : f32
    %388 = vector.broadcast %cst_148 : f32 to vector<8x1xf32>
    %389 = arith.divf %387, %388 : vector<8x1xf32>
    %390 = arith.mulf %384, %384 : vector<8x1xf32>
    %391 = arith.subf %389, %390 : vector<8x1xf32>
    %392 = vector.broadcast %384 : vector<8x1xf32> to vector<8x512xf32>
    %393 = arith.subf %380, %392 : vector<8x512xf32>
    %cst_149 = arith.constant 1.000000e-03 : f32
    %394 = vector.broadcast %cst_149 : f32 to vector<8x1xf32>
    %395 = arith.addf %391, %394 : vector<8x1xf32>
    %396 = math.rsqrt %395 : vector<8x1xf32>
    %397 = vector.broadcast %396 : vector<8x1xf32> to vector<8x512xf32>
    %398 = arith.mulf %393, %397 : vector<8x512xf32>
    %399 = vector.broadcast %46 : vector<1x512xf32> to vector<8x512xf32>
    %400 = arith.mulf %398, %399 : vector<8x512xf32>
    %401 = vector.broadcast %47 : vector<1x512xf32> to vector<8x512xf32>
    %402 = arith.addf %400, %401 : vector<8x512xf32>
    %403 = vector.extract_strided_slice %402 {offsets = [0, 0], sizes = [8, 384], strides = [1, 1]} : vector<8x512xf32> to vector<8x384xf32>
    %404 = arith.negf %403 : vector<8x384xf32>
    %405 = math.exp %404 : vector<8x384xf32>
    %cst_150 = arith.constant 1.000000e+00 : f32
    %406 = vector.broadcast %cst_150 : f32 to vector<8x384xf32>
    %407 = arith.addf %406, %405 : vector<8x384xf32>
    %408 = arith.divf %406, %407 : vector<8x384xf32>
    %409 = vector.extract_strided_slice %408 {offsets = [0, 0], sizes = [8, 128], strides = [1, 1]} : vector<8x384xf32> to vector<8x128xf32>
    %410 = vector.extract_strided_slice %408 {offsets = [0, 128], sizes = [8, 128], strides = [1, 1]} : vector<8x384xf32> to vector<8x128xf32>
    %411 = vector.extract_strided_slice %408 {offsets = [0, 256], sizes = [8, 128], strides = [1, 1]} : vector<8x384xf32> to vector<8x128xf32>
    %412 = vector.extract_strided_slice %402 {offsets = [0, 384], sizes = [8, 128], strides = [1, 1]} : vector<8x512xf32> to vector<8x128xf32>
    %413 = math.tanh %412 : vector<8x128xf32>
    %414 = arith.mulf %410, %359 : vector<8x128xf32>
    %415 = arith.mulf %409, %413 : vector<8x128xf32>
    %416 = arith.addf %414, %415 : vector<8x128xf32>
    %cst_151 = arith.constant dense<0.000000e+00> : vector<8xf32>
    %417 = vector.multi_reduction <add>, %416, %cst_151 [1] : vector<8x128xf32> to vector<8xf32>
    %418 = vector.shape_cast %417 : vector<8xf32> to vector<8x1xf32>
    %cst_152 = arith.constant 1.280000e+02 : f32
    %419 = vector.broadcast %cst_152 : f32 to vector<8x1xf32>
    %420 = arith.divf %418, %419 : vector<8x1xf32>
    %421 = arith.mulf %416, %416 : vector<8x128xf32>
    %cst_153 = arith.constant dense<0.000000e+00> : vector<8xf32>
    %422 = vector.multi_reduction <add>, %421, %cst_153 [1] : vector<8x128xf32> to vector<8xf32>
    %423 = vector.shape_cast %422 : vector<8xf32> to vector<8x1xf32>
    %cst_154 = arith.constant 1.280000e+02 : f32
    %424 = vector.broadcast %cst_154 : f32 to vector<8x1xf32>
    %425 = arith.divf %423, %424 : vector<8x1xf32>
    %426 = arith.mulf %420, %420 : vector<8x1xf32>
    %427 = arith.subf %425, %426 : vector<8x1xf32>
    %428 = vector.broadcast %420 : vector<8x1xf32> to vector<8x128xf32>
    %429 = arith.subf %416, %428 : vector<8x128xf32>
    %cst_155 = arith.constant 1.000000e-03 : f32
    %430 = vector.broadcast %cst_155 : f32 to vector<8x1xf32>
    %431 = arith.addf %427, %430 : vector<8x1xf32>
    %432 = math.rsqrt %431 : vector<8x1xf32>
    %433 = vector.broadcast %432 : vector<8x1xf32> to vector<8x128xf32>
    %434 = arith.mulf %429, %433 : vector<8x128xf32>
    %435 = vector.broadcast %48 : vector<1x128xf32> to vector<8x128xf32>
    %436 = arith.mulf %434, %435 : vector<8x128xf32>
    %437 = vector.broadcast %49 : vector<1x128xf32> to vector<8x128xf32>
    %438 = arith.addf %436, %437 : vector<8x128xf32>
    %439 = math.tanh %438 : vector<8x128xf32>
    %440 = arith.mulf %411, %439 : vector<8x128xf32>
    %441 = arith.truncf %440 : vector<8x128xf32> to vector<8x128xbf16>
    %c1_156 = arith.constant 1 : index
    %c0_157 = arith.constant 0 : index
    %c0_158 = arith.constant 0 : index
    %442 = vector.load %arg3[%c1_156, %c0_157, %c0_158] : memref<2x128x512xbf16, #tpu.memory_space<vmem>>, vector<1x128x512xbf16>
    %443 = vector.shape_cast %442 : vector<1x128x512xbf16> to vector<128x512xbf16>
    %cst_159 = arith.constant dense<0.000000e+00> : vector<8x512xf32>
    %444 = tpu.matmul %441, %443, %cst_159 {dimension_numbers = #tpu.dot_dimension_numbers<[1], [0], [0], [1], [0, 0, 1, 1], [], []>} : vector<8x128xbf16>, vector<128x512xbf16>, vector<8x512xf32> -> vector<8x512xf32>
    %c0_i32_160 = arith.constant 0 : i32
    %c0_i32_161 = arith.constant 0 : i32
    %445 = tpu.memref_slice %arg15[%c1_i32, %c0_i32_160, %c0_i32_161] : memref<2x64x512xf32, #tpu.memory_space<vmem>> -> memref<1x64x512xf32, #tpu.memory_space<vmem>>
    %446 = tpu.memref_squeeze %445 : memref<1x64x512xf32, #tpu.memory_space<vmem>> -> memref<64x512xf32, #tpu.memory_space<vmem>>
    %447 = arith.index_cast %371 : i32 to index
    %c0_162 = arith.constant 0 : index
    %448 = vector.load %446[%447, %c0_162] : memref<64x512xf32, #tpu.memory_space<vmem>>, vector<8x512xf32>
    tpu.vector_store %446[%447, %c0_162], %444 {strides = array<i32>} : memref<64x512xf32, #tpu.memory_space<vmem>>, vector<8x512xf32>,
    %c5_i32 = arith.constant 5 : i32
    %c8_i32_163 = arith.constant 8 : i32
    %449 = arith.muli %c5_i32, %c8_i32_163 : i32
    %450 = tpu.assume_multiple %449, 8 : i32
    %c0_i32_164 = arith.constant 0 : i32
    %c0_i32_165 = arith.constant 0 : i32
    %451 = tpu.memref_slice %arg15[%c0_i32, %c0_i32_164, %c0_i32_165] : memref<2x64x512xf32, #tpu.memory_space<vmem>> -> memref<1x64x512xf32, #tpu.memory_space<vmem>>
    %452 = tpu.memref_squeeze %451 : memref<1x64x512xf32, #tpu.memory_space<vmem>> -> memref<64x512xf32, #tpu.memory_space<vmem>>
    %453 = arith.index_cast %450 : i32 to index
    %c0_166 = arith.constant 0 : index
    %454 = vector.load %452[%453, %c0_166] : memref<64x512xf32, #tpu.memory_space<vmem>>, vector<8x512xf32>
    %455 = arith.truncf %440 : vector<8x128xf32> to vector<8x128xbf16>
    %c0_167 = arith.constant 0 : index
    %c0_168 = arith.constant 0 : index
    %c0_169 = arith.constant 0 : index
    %456 = vector.load %arg4[%c0_167, %c0_168, %c0_169] : memref<2x128x512xbf16, #tpu.memory_space<vmem>>, vector<1x128x512xbf16>
    %457 = vector.shape_cast %456 : vector<1x128x512xbf16> to vector<128x512xbf16>
    %cst_170 = arith.constant dense<0.000000e+00> : vector<8x512xf32>
    %458 = tpu.matmul %455, %457, %cst_170 {dimension_numbers = #tpu.dot_dimension_numbers<[1], [0], [0], [1], [0, 0, 1, 1], [], []>} : vector<8x128xbf16>, vector<128x512xbf16>, vector<8x512xf32> -> vector<8x512xf32>
    %459 = arith.addf %454, %458 : vector<8x512xf32>
    %cst_171 = arith.constant dense<0.000000e+00> : vector<8xf32>
    %460 = vector.multi_reduction <add>, %459, %cst_171 [1] : vector<8x512xf32> to vector<8xf32>
    %461 = vector.shape_cast %460 : vector<8xf32> to vector<8x1xf32>
    %cst_172 = arith.constant 5.120000e+02 : f32
    %462 = vector.broadcast %cst_172 : f32 to vector<8x1xf32>
    %463 = arith.divf %461, %462 : vector<8x1xf32>
    %464 = arith.mulf %459, %459 : vector<8x512xf32>
    %cst_173 = arith.constant dense<0.000000e+00> : vector<8xf32>
    %465 = vector.multi_reduction <add>, %464, %cst_173 [1] : vector<8x512xf32> to vector<8xf32>
    %466 = vector.shape_cast %465 : vector<8xf32> to vector<8x1xf32>
    %cst_174 = arith.constant 5.120000e+02 : f32
    %467 = vector.broadcast %cst_174 : f32 to vector<8x1xf32>
    %468 = arith.divf %466, %467 : vector<8x1xf32>
    %469 = arith.mulf %463, %463 : vector<8x1xf32>
    %470 = arith.subf %468, %469 : vector<8x1xf32>
    %471 = vector.broadcast %463 : vector<8x1xf32> to vector<8x512xf32>
    %472 = arith.subf %459, %471 : vector<8x512xf32>
    %cst_175 = arith.constant 1.000000e-03 : f32
    %473 = vector.broadcast %cst_175 : f32 to vector<8x1xf32>
    %474 = arith.addf %470, %473 : vector<8x1xf32>
    %475 = math.rsqrt %474 : vector<8x1xf32>
    %476 = vector.broadcast %475 : vector<8x1xf32> to vector<8x512xf32>
    %477 = arith.mulf %472, %476 : vector<8x512xf32>
    %478 = vector.broadcast %46 : vector<1x512xf32> to vector<8x512xf32>
    %479 = arith.mulf %477, %478 : vector<8x512xf32>
    %480 = vector.broadcast %47 : vector<1x512xf32> to vector<8x512xf32>
    %481 = arith.addf %479, %480 : vector<8x512xf32>
    %482 = vector.extract_strided_slice %481 {offsets = [0, 0], sizes = [8, 384], strides = [1, 1]} : vector<8x512xf32> to vector<8x384xf32>
    %483 = arith.negf %482 : vector<8x384xf32>
    %484 = math.exp %483 : vector<8x384xf32>
    %cst_176 = arith.constant 1.000000e+00 : f32
    %485 = vector.broadcast %cst_176 : f32 to vector<8x384xf32>
    %486 = arith.addf %485, %484 : vector<8x384xf32>
    %487 = arith.divf %485, %486 : vector<8x384xf32>
    %488 = vector.extract_strided_slice %487 {offsets = [0, 0], sizes = [8, 128], strides = [1, 1]} : vector<8x384xf32> to vector<8x128xf32>
    %489 = vector.extract_strided_slice %487 {offsets = [0, 128], sizes = [8, 128], strides = [1, 1]} : vector<8x384xf32> to vector<8x128xf32>
    %490 = vector.extract_strided_slice %487 {offsets = [0, 256], sizes = [8, 128], strides = [1, 1]} : vector<8x384xf32> to vector<8x128xf32>
    %491 = vector.extract_strided_slice %481 {offsets = [0, 384], sizes = [8, 128], strides = [1, 1]} : vector<8x512xf32> to vector<8x128xf32>
    %492 = math.tanh %491 : vector<8x128xf32>
    %493 = arith.mulf %489, %438 : vector<8x128xf32>
    %494 = arith.mulf %488, %492 : vector<8x128xf32>
    %495 = arith.addf %493, %494 : vector<8x128xf32>
    %cst_177 = arith.constant dense<0.000000e+00> : vector<8xf32>
    %496 = vector.multi_reduction <add>, %495, %cst_177 [1] : vector<8x128xf32> to vector<8xf32>
    %497 = vector.shape_cast %496 : vector<8xf32> to vector<8x1xf32>
    %cst_178 = arith.constant 1.280000e+02 : f32
    %498 = vector.broadcast %cst_178 : f32 to vector<8x1xf32>
    %499 = arith.divf %497, %498 : vector<8x1xf32>
    %500 = arith.mulf %495, %495 : vector<8x128xf32>
    %cst_179 = arith.constant dense<0.000000e+00> : vector<8xf32>
    %501 = vector.multi_reduction <add>, %500, %cst_179 [1] : vector<8x128xf32> to vector<8xf32>
    %502 = vector.shape_cast %501 : vector<8xf32> to vector<8x1xf32>
    %cst_180 = arith.constant 1.280000e+02 : f32
    %503 = vector.broadcast %cst_180 : f32 to vector<8x1xf32>
    %504 = arith.divf %502, %503 : vector<8x1xf32>
    %505 = arith.mulf %499, %499 : vector<8x1xf32>
    %506 = arith.subf %504, %505 : vector<8x1xf32>
    %507 = vector.broadcast %499 : vector<8x1xf32> to vector<8x128xf32>
    %508 = arith.subf %495, %507 : vector<8x128xf32>
    %cst_181 = arith.constant 1.000000e-03 : f32
    %509 = vector.broadcast %cst_181 : f32 to vector<8x1xf32>
    %510 = arith.addf %506, %509 : vector<8x1xf32>
    %511 = math.rsqrt %510 : vector<8x1xf32>
    %512 = vector.broadcast %511 : vector<8x1xf32> to vector<8x128xf32>
    %513 = arith.mulf %508, %512 : vector<8x128xf32>
    %514 = vector.broadcast %48 : vector<1x128xf32> to vector<8x128xf32>
    %515 = arith.mulf %513, %514 : vector<8x128xf32>
    %516 = vector.broadcast %49 : vector<1x128xf32> to vector<8x128xf32>
    %517 = arith.addf %515, %516 : vector<8x128xf32>
    %518 = math.tanh %517 : vector<8x128xf32>
    %519 = arith.mulf %490, %518 : vector<8x128xf32>
    %520 = arith.truncf %519 : vector<8x128xf32> to vector<8x128xbf16>
    %c1_182 = arith.constant 1 : index
    %c0_183 = arith.constant 0 : index
    %c0_184 = arith.constant 0 : index
    %521 = vector.load %arg3[%c1_182, %c0_183, %c0_184] : memref<2x128x512xbf16, #tpu.memory_space<vmem>>, vector<1x128x512xbf16>
    %522 = vector.shape_cast %521 : vector<1x128x512xbf16> to vector<128x512xbf16>
    %cst_185 = arith.constant dense<0.000000e+00> : vector<8x512xf32>
    %523 = tpu.matmul %520, %522, %cst_185 {dimension_numbers = #tpu.dot_dimension_numbers<[1], [0], [0], [1], [0, 0, 1, 1], [], []>} : vector<8x128xbf16>, vector<128x512xbf16>, vector<8x512xf32> -> vector<8x512xf32>
    %c0_i32_186 = arith.constant 0 : i32
    %c0_i32_187 = arith.constant 0 : i32
    %524 = tpu.memref_slice %arg15[%c1_i32, %c0_i32_186, %c0_i32_187] : memref<2x64x512xf32, #tpu.memory_space<vmem>> -> memref<1x64x512xf32, #tpu.memory_space<vmem>>
    %525 = tpu.memref_squeeze %524 : memref<1x64x512xf32, #tpu.memory_space<vmem>> -> memref<64x512xf32, #tpu.memory_space<vmem>>
    %526 = arith.index_cast %450 : i32 to index
    %c0_188 = arith.constant 0 : index
    %527 = vector.load %525[%526, %c0_188] : memref<64x512xf32, #tpu.memory_space<vmem>>, vector<8x512xf32>
    tpu.vector_store %525[%526, %c0_188], %523 {strides = array<i32>} : memref<64x512xf32, #tpu.memory_space<vmem>>, vector<8x512xf32>,
    %c6_i32 = arith.constant 6 : i32
    %c8_i32_189 = arith.constant 8 : i32
    %528 = arith.muli %c6_i32, %c8_i32_189 : i32
    %529 = tpu.assume_multiple %528, 8 : i32
    %c0_i32_190 = arith.constant 0 : i32
    %c0_i32_191 = arith.constant 0 : i32
    %530 = tpu.memref_slice %arg15[%c0_i32, %c0_i32_190, %c0_i32_191] : memref<2x64x512xf32, #tpu.memory_space<vmem>> -> memref<1x64x512xf32, #tpu.memory_space<vmem>>
    %531 = tpu.memref_squeeze %530 : memref<1x64x512xf32, #tpu.memory_space<vmem>> -> memref<64x512xf32, #tpu.memory_space<vmem>>
    %532 = arith.index_cast %529 : i32 to index
    %c0_192 = arith.constant 0 : index
    %533 = vector.load %531[%532, %c0_192] : memref<64x512xf32, #tpu.memory_space<vmem>>, vector<8x512xf32>
    %534 = arith.truncf %519 : vector<8x128xf32> to vector<8x128xbf16>
    %c0_193 = arith.constant 0 : index
    %c0_194 = arith.constant 0 : index
    %c0_195 = arith.constant 0 : index
    %535 = vector.load %arg4[%c0_193, %c0_194, %c0_195] : memref<2x128x512xbf16, #tpu.memory_space<vmem>>, vector<1x128x512xbf16>
    %536 = vector.shape_cast %535 : vector<1x128x512xbf16> to vector<128x512xbf16>
    %cst_196 = arith.constant dense<0.000000e+00> : vector<8x512xf32>
    %537 = tpu.matmul %534, %536, %cst_196 {dimension_numbers = #tpu.dot_dimension_numbers<[1], [0], [0], [1], [0, 0, 1, 1], [], []>} : vector<8x128xbf16>, vector<128x512xbf16>, vector<8x512xf32> -> vector<8x512xf32>
    %538 = arith.addf %533, %537 : vector<8x512xf32>
    %cst_197 = arith.constant dense<0.000000e+00> : vector<8xf32>
    %539 = vector.multi_reduction <add>, %538, %cst_197 [1] : vector<8x512xf32> to vector<8xf32>
    %540 = vector.shape_cast %539 : vector<8xf32> to vector<8x1xf32>
    %cst_198 = arith.constant 5.120000e+02 : f32
    %541 = vector.broadcast %cst_198 : f32 to vector<8x1xf32>
    %542 = arith.divf %540, %541 : vector<8x1xf32>
    %543 = arith.mulf %538, %538 : vector<8x512xf32>
    %cst_199 = arith.constant dense<0.000000e+00> : vector<8xf32>
    %544 = vector.multi_reduction <add>, %543, %cst_199 [1] : vector<8x512xf32> to vector<8xf32>
    %545 = vector.shape_cast %544 : vector<8xf32> to vector<8x1xf32>
    %cst_200 = arith.constant 5.120000e+02 : f32
    %546 = vector.broadcast %cst_200 : f32 to vector<8x1xf32>
    %547 = arith.divf %545, %546 : vector<8x1xf32>
    %548 = arith.mulf %542, %542 : vector<8x1xf32>
    %549 = arith.subf %547, %548 : vector<8x1xf32>
    %550 = vector.broadcast %542 : vector<8x1xf32> to vector<8x512xf32>
    %551 = arith.subf %538, %550 : vector<8x512xf32>
    %cst_201 = arith.constant 1.000000e-03 : f32
    %552 = vector.broadcast %cst_201 : f32 to vector<8x1xf32>
    %553 = arith.addf %549, %552 : vector<8x1xf32>
    %554 = math.rsqrt %553 : vector<8x1xf32>
    %555 = vector.broadcast %554 : vector<8x1xf32> to vector<8x512xf32>
    %556 = arith.mulf %551, %555 : vector<8x512xf32>
    %557 = vector.broadcast %46 : vector<1x512xf32> to vector<8x512xf32>
    %558 = arith.mulf %556, %557 : vector<8x512xf32>
    %559 = vector.broadcast %47 : vector<1x512xf32> to vector<8x512xf32>
    %560 = arith.addf %558, %559 : vector<8x512xf32>
    %561 = vector.extract_strided_slice %560 {offsets = [0, 0], sizes = [8, 384], strides = [1, 1]} : vector<8x512xf32> to vector<8x384xf32>
    %562 = arith.negf %561 : vector<8x384xf32>
    %563 = math.exp %562 : vector<8x384xf32>
    %cst_202 = arith.constant 1.000000e+00 : f32
    %564 = vector.broadcast %cst_202 : f32 to vector<8x384xf32>
    %565 = arith.addf %564, %563 : vector<8x384xf32>
    %566 = arith.divf %564, %565 : vector<8x384xf32>
    %567 = vector.extract_strided_slice %566 {offsets = [0, 0], sizes = [8, 128], strides = [1, 1]} : vector<8x384xf32> to vector<8x128xf32>
    %568 = vector.extract_strided_slice %566 {offsets = [0, 128], sizes = [8, 128], strides = [1, 1]} : vector<8x384xf32> to vector<8x128xf32>
    %569 = vector.extract_strided_slice %566 {offsets = [0, 256], sizes = [8, 128], strides = [1, 1]} : vector<8x384xf32> to vector<8x128xf32>
    %570 = vector.extract_strided_slice %560 {offsets = [0, 384], sizes = [8, 128], strides = [1, 1]} : vector<8x512xf32> to vector<8x128xf32>
    %571 = math.tanh %570 : vector<8x128xf32>
    %572 = arith.mulf %568, %517 : vector<8x128xf32>
    %573 = arith.mulf %567, %571 : vector<8x128xf32>
    %574 = arith.addf %572, %573 : vector<8x128xf32>
    %cst_203 = arith.constant dense<0.000000e+00> : vector<8xf32>
    %575 = vector.multi_reduction <add>, %574, %cst_203 [1] : vector<8x128xf32> to vector<8xf32>
    %576 = vector.shape_cast %575 : vector<8xf32> to vector<8x1xf32>
    %cst_204 = arith.constant 1.280000e+02 : f32
    %577 = vector.broadcast %cst_204 : f32 to vector<8x1xf32>
    %578 = arith.divf %576, %577 : vector<8x1xf32>
    %579 = arith.mulf %574, %574 : vector<8x128xf32>
    %cst_205 = arith.constant dense<0.000000e+00> : vector<8xf32>
    %580 = vector.multi_reduction <add>, %579, %cst_205 [1] : vector<8x128xf32> to vector<8xf32>
    %581 = vector.shape_cast %580 : vector<8xf32> to vector<8x1xf32>
    %cst_206 = arith.constant 1.280000e+02 : f32
    %582 = vector.broadcast %cst_206 : f32 to vector<8x1xf32>
    %583 = arith.divf %581, %582 : vector<8x1xf32>
    %584 = arith.mulf %578, %578 : vector<8x1xf32>
    %585 = arith.subf %583, %584 : vector<8x1xf32>
    %586 = vector.broadcast %578 : vector<8x1xf32> to vector<8x128xf32>
    %587 = arith.subf %574, %586 : vector<8x128xf32>
    %cst_207 = arith.constant 1.000000e-03 : f32
    %588 = vector.broadcast %cst_207 : f32 to vector<8x1xf32>
    %589 = arith.addf %585, %588 : vector<8x1xf32>
    %590 = math.rsqrt %589 : vector<8x1xf32>
    %591 = vector.broadcast %590 : vector<8x1xf32> to vector<8x128xf32>
    %592 = arith.mulf %587, %591 : vector<8x128xf32>
    %593 = vector.broadcast %48 : vector<1x128xf32> to vector<8x128xf32>
    %594 = arith.mulf %592, %593 : vector<8x128xf32>
    %595 = vector.broadcast %49 : vector<1x128xf32> to vector<8x128xf32>
    %596 = arith.addf %594, %595 : vector<8x128xf32>
    %597 = math.tanh %596 : vector<8x128xf32>
    %598 = arith.mulf %569, %597 : vector<8x128xf32>
    %599 = arith.truncf %598 : vector<8x128xf32> to vector<8x128xbf16>
    %c1_208 = arith.constant 1 : index
    %c0_209 = arith.constant 0 : index
    %c0_210 = arith.constant 0 : index
    %600 = vector.load %arg3[%c1_208, %c0_209, %c0_210] : memref<2x128x512xbf16, #tpu.memory_space<vmem>>, vector<1x128x512xbf16>
    %601 = vector.shape_cast %600 : vector<1x128x512xbf16> to vector<128x512xbf16>
    %cst_211 = arith.constant dense<0.000000e+00> : vector<8x512xf32>
    %602 = tpu.matmul %599, %601, %cst_211 {dimension_numbers = #tpu.dot_dimension_numbers<[1], [0], [0], [1], [0, 0, 1, 1], [], []>} : vector<8x128xbf16>, vector<128x512xbf16>, vector<8x512xf32> -> vector<8x512xf32>
    %c0_i32_212 = arith.constant 0 : i32
    %c0_i32_213 = arith.constant 0 : i32
    %603 = tpu.memref_slice %arg15[%c1_i32, %c0_i32_212, %c0_i32_213] : memref<2x64x512xf32, #tpu.memory_space<vmem>> -> memref<1x64x512xf32, #tpu.memory_space<vmem>>
    %604 = tpu.memref_squeeze %603 : memref<1x64x512xf32, #tpu.memory_space<vmem>> -> memref<64x512xf32, #tpu.memory_space<vmem>>
    %605 = arith.index_cast %529 : i32 to index
    %c0_214 = arith.constant 0 : index
    %606 = vector.load %604[%605, %c0_214] : memref<64x512xf32, #tpu.memory_space<vmem>>, vector<8x512xf32>
    tpu.vector_store %604[%605, %c0_214], %602 {strides = array<i32>} : memref<64x512xf32, #tpu.memory_space<vmem>>, vector<8x512xf32>,
    %c7_i32 = arith.constant 7 : i32
    %c8_i32_215 = arith.constant 8 : i32
    %607 = arith.muli %c7_i32, %c8_i32_215 : i32
    %608 = tpu.assume_multiple %607, 8 : i32
    %c0_i32_216 = arith.constant 0 : i32
    %c0_i32_217 = arith.constant 0 : i32
    %609 = tpu.memref_slice %arg15[%c0_i32, %c0_i32_216, %c0_i32_217] : memref<2x64x512xf32, #tpu.memory_space<vmem>> -> memref<1x64x512xf32, #tpu.memory_space<vmem>>
    %610 = tpu.memref_squeeze %609 : memref<1x64x512xf32, #tpu.memory_space<vmem>> -> memref<64x512xf32, #tpu.memory_space<vmem>>
    %611 = arith.index_cast %608 : i32 to index
    %c0_218 = arith.constant 0 : index
    %612 = vector.load %610[%611, %c0_218] : memref<64x512xf32, #tpu.memory_space<vmem>>, vector<8x512xf32>
    %613 = arith.truncf %598 : vector<8x128xf32> to vector<8x128xbf16>
    %c0_219 = arith.constant 0 : index
    %c0_220 = arith.constant 0 : index
    %c0_221 = arith.constant 0 : index
    %614 = vector.load %arg4[%c0_219, %c0_220, %c0_221] : memref<2x128x512xbf16, #tpu.memory_space<vmem>>, vector<1x128x512xbf16>
    %615 = vector.shape_cast %614 : vector<1x128x512xbf16> to vector<128x512xbf16>
    %cst_222 = arith.constant dense<0.000000e+00> : vector<8x512xf32>
    %616 = tpu.matmul %613, %615, %cst_222 {dimension_numbers = #tpu.dot_dimension_numbers<[1], [0], [0], [1], [0, 0, 1, 1], [], []>} : vector<8x128xbf16>, vector<128x512xbf16>, vector<8x512xf32> -> vector<8x512xf32>
    %617 = arith.addf %612, %616 : vector<8x512xf32>
    %cst_223 = arith.constant dense<0.000000e+00> : vector<8xf32>
    %618 = vector.multi_reduction <add>, %617, %cst_223 [1] : vector<8x512xf32> to vector<8xf32>
    %619 = vector.shape_cast %618 : vector<8xf32> to vector<8x1xf32>
    %cst_224 = arith.constant 5.120000e+02 : f32
    %620 = vector.broadcast %cst_224 : f32 to vector<8x1xf32>
    %621 = arith.divf %619, %620 : vector<8x1xf32>
    %622 = arith.mulf %617, %617 : vector<8x512xf32>
    %cst_225 = arith.constant dense<0.000000e+00> : vector<8xf32>
    %623 = vector.multi_reduction <add>, %622, %cst_225 [1] : vector<8x512xf32> to vector<8xf32>
    %624 = vector.shape_cast %623 : vector<8xf32> to vector<8x1xf32>
    %cst_226 = arith.constant 5.120000e+02 : f32
    %625 = vector.broadcast %cst_226 : f32 to vector<8x1xf32>
    %626 = arith.divf %624, %625 : vector<8x1xf32>
    %627 = arith.mulf %621, %621 : vector<8x1xf32>
    %628 = arith.subf %626, %627 : vector<8x1xf32>
    %629 = vector.broadcast %621 : vector<8x1xf32> to vector<8x512xf32>
    %630 = arith.subf %617, %629 : vector<8x512xf32>
    %cst_227 = arith.constant 1.000000e-03 : f32
    %631 = vector.broadcast %cst_227 : f32 to vector<8x1xf32>
    %632 = arith.addf %628, %631 : vector<8x1xf32>
    %633 = math.rsqrt %632 : vector<8x1xf32>
    %634 = vector.broadcast %633 : vector<8x1xf32> to vector<8x512xf32>
    %635 = arith.mulf %630, %634 : vector<8x512xf32>
    %636 = vector.broadcast %46 : vector<1x512xf32> to vector<8x512xf32>
    %637 = arith.mulf %635, %636 : vector<8x512xf32>
    %638 = vector.broadcast %47 : vector<1x512xf32> to vector<8x512xf32>
    %639 = arith.addf %637, %638 : vector<8x512xf32>
    %640 = vector.extract_strided_slice %639 {offsets = [0, 0], sizes = [8, 384], strides = [1, 1]} : vector<8x512xf32> to vector<8x384xf32>
    %641 = arith.negf %640 : vector<8x384xf32>
    %642 = math.exp %641 : vector<8x384xf32>
    %cst_228 = arith.constant 1.000000e+00 : f32
    %643 = vector.broadcast %cst_228 : f32 to vector<8x384xf32>
    %644 = arith.addf %643, %642 : vector<8x384xf32>
    %645 = arith.divf %643, %644 : vector<8x384xf32>
    %646 = vector.extract_strided_slice %645 {offsets = [0, 0], sizes = [8, 128], strides = [1, 1]} : vector<8x384xf32> to vector<8x128xf32>
    %647 = vector.extract_strided_slice %645 {offsets = [0, 128], sizes = [8, 128], strides = [1, 1]} : vector<8x384xf32> to vector<8x128xf32>
    %648 = vector.extract_strided_slice %645 {offsets = [0, 256], sizes = [8, 128], strides = [1, 1]} : vector<8x384xf32> to vector<8x128xf32>
    %649 = vector.extract_strided_slice %639 {offsets = [0, 384], sizes = [8, 128], strides = [1, 1]} : vector<8x512xf32> to vector<8x128xf32>
    %650 = math.tanh %649 : vector<8x128xf32>
    %651 = arith.mulf %647, %596 : vector<8x128xf32>
    %652 = arith.mulf %646, %650 : vector<8x128xf32>
    %653 = arith.addf %651, %652 : vector<8x128xf32>
    %cst_229 = arith.constant dense<0.000000e+00> : vector<8xf32>
    %654 = vector.multi_reduction <add>, %653, %cst_229 [1] : vector<8x128xf32> to vector<8xf32>
    %655 = vector.shape_cast %654 : vector<8xf32> to vector<8x1xf32>
    %cst_230 = arith.constant 1.280000e+02 : f32
    %656 = vector.broadcast %cst_230 : f32 to vector<8x1xf32>
    %657 = arith.divf %655, %656 : vector<8x1xf32>
    %658 = arith.mulf %653, %653 : vector<8x128xf32>
    %cst_231 = arith.constant dense<0.000000e+00> : vector<8xf32>
    %659 = vector.multi_reduction <add>, %658, %cst_231 [1] : vector<8x128xf32> to vector<8xf32>
    %660 = vector.shape_cast %659 : vector<8xf32> to vector<8x1xf32>
    %cst_232 = arith.constant 1.280000e+02 : f32
    %661 = vector.broadcast %cst_232 : f32 to vector<8x1xf32>
    %662 = arith.divf %660, %661 : vector<8x1xf32>
    %663 = arith.mulf %657, %657 : vector<8x1xf32>
    %664 = arith.subf %662, %663 : vector<8x1xf32>
    %665 = vector.broadcast %657 : vector<8x1xf32> to vector<8x128xf32>
    %666 = arith.subf %653, %665 : vector<8x128xf32>
    %cst_233 = arith.constant 1.000000e-03 : f32
    %667 = vector.broadcast %cst_233 : f32 to vector<8x1xf32>
    %668 = arith.addf %664, %667 : vector<8x1xf32>
    %669 = math.rsqrt %668 : vector<8x1xf32>
    %670 = vector.broadcast %669 : vector<8x1xf32> to vector<8x128xf32>
    %671 = arith.mulf %666, %670 : vector<8x128xf32>
    %672 = vector.broadcast %48 : vector<1x128xf32> to vector<8x128xf32>
    %673 = arith.mulf %671, %672 : vector<8x128xf32>
    %674 = vector.broadcast %49 : vector<1x128xf32> to vector<8x128xf32>
    %675 = arith.addf %673, %674 : vector<8x128xf32>
    %676 = math.tanh %675 : vector<8x128xf32>
    %677 = arith.mulf %648, %676 : vector<8x128xf32>
    %678 = arith.truncf %677 : vector<8x128xf32> to vector<8x128xbf16>
    %c1_234 = arith.constant 1 : index
    %c0_235 = arith.constant 0 : index
    %c0_236 = arith.constant 0 : index
    %679 = vector.load %arg3[%c1_234, %c0_235, %c0_236] : memref<2x128x512xbf16, #tpu.memory_space<vmem>>, vector<1x128x512xbf16>
    %680 = vector.shape_cast %679 : vector<1x128x512xbf16> to vector<128x512xbf16>
    %cst_237 = arith.constant dense<0.000000e+00> : vector<8x512xf32>
    %681 = tpu.matmul %678, %680, %cst_237 {dimension_numbers = #tpu.dot_dimension_numbers<[1], [0], [0], [1], [0, 0, 1, 1], [], []>} : vector<8x128xbf16>, vector<128x512xbf16>, vector<8x512xf32> -> vector<8x512xf32>
    %c0_i32_238 = arith.constant 0 : i32
    %c0_i32_239 = arith.constant 0 : i32
    %682 = tpu.memref_slice %arg15[%c1_i32, %c0_i32_238, %c0_i32_239] : memref<2x64x512xf32, #tpu.memory_space<vmem>> -> memref<1x64x512xf32, #tpu.memory_space<vmem>>
    %683 = tpu.memref_squeeze %682 : memref<1x64x512xf32, #tpu.memory_space<vmem>> -> memref<64x512xf32, #tpu.memory_space<vmem>>
    %684 = arith.index_cast %608 : i32 to index
    %c0_240 = arith.constant 0 : index
    %685 = vector.load %683[%684, %c0_240] : memref<64x512xf32, #tpu.memory_space<vmem>>, vector<8x512xf32>
    tpu.vector_store %683[%684, %c0_240], %681 {strides = array<i32>} : memref<64x512xf32, #tpu.memory_space<vmem>>, vector<8x512xf32>,
    %c8_i32_241 = arith.constant 8 : i32
    %c0_242 = arith.constant 0 : index
    %c0_243 = arith.constant 0 : index
    %c0_244 = arith.constant 0 : index
    %686 = vector.load %arg12[%c0_242, %c0_243, %c0_244] : memref<2x8x128xf32, #tpu.memory_space<vmem>>, vector<1x8x128xf32>
    %687 = vector.shape_cast %686 : vector<1x8x128xf32> to vector<8x128xf32>
    %688 = vector.shape_cast %677 : vector<8x128xf32> to vector<1x8x128xf32>
    tpu.vector_store %arg12[%c0_242, %c0_243, %c0_244], %688 {strides = array<i32>} : memref<2x8x128xf32, #tpu.memory_space<vmem>>, vector<1x8x128xf32>,
    %c0_245 = arith.constant 0 : index
    %c0_246 = arith.constant 0 : index
    %c0_247 = arith.constant 0 : index
    %689 = vector.load %arg13[%c0_245, %c0_246, %c0_247] : memref<2x8x128xf32, #tpu.memory_space<vmem>>, vector<1x8x128xf32>
    %690 = vector.shape_cast %689 : vector<1x8x128xf32> to vector<8x128xf32>
    %691 = vector.shape_cast %675 : vector<8x128xf32> to vector<1x8x128xf32>
    tpu.vector_store %arg13[%c0_245, %c0_246, %c0_247], %691 {strides = array<i32>} : memref<2x8x128xf32, #tpu.memory_space<vmem>>, vector<1x8x128xf32>,
    %c1_248 = arith.constant 1 : index
    %c0_249 = arith.constant 0 : index
    %c0_250 = arith.constant 0 : index
    %692 = vector.load %arg5[%c1_248, %c0_249, %c0_250] : memref<2x2x512xf32, #tpu.memory_space<vmem>>, vector<1x2x512xf32>
    %693 = vector.shape_cast %692 : vector<1x2x512xf32> to vector<2x512xf32>
    %c1_251 = arith.constant 1 : index
    %c0_252 = arith.constant 0 : index
    %c0_253 = arith.constant 0 : index
    %694 = vector.load %arg6[%c1_251, %c0_252, %c0_253] : memref<2x2x128xf32, #tpu.memory_space<vmem>>, vector<1x2x128xf32>
    %695 = vector.shape_cast %694 : vector<1x2x128xf32> to vector<2x128xf32>
    %696 = vector.extract_strided_slice %693 {offsets = [0, 0], sizes = [1, 512], strides = [1, 1]} : vector<2x512xf32> to vector<1x512xf32>
    %697 = vector.extract_strided_slice %693 {offsets = [1, 0], sizes = [1, 512], strides = [1, 1]} : vector<2x512xf32> to vector<1x512xf32>
    %698 = vector.extract_strided_slice %695 {offsets = [0, 0], sizes = [1, 128], strides = [1, 1]} : vector<2x128xf32> to vector<1x128xf32>
    %699 = vector.extract_strided_slice %695 {offsets = [1, 0], sizes = [1, 128], strides = [1, 1]} : vector<2x128xf32> to vector<1x128xf32>
    %c1_254 = arith.constant 1 : index
    %c0_255 = arith.constant 0 : index
    %c0_256 = arith.constant 0 : index
    %700 = vector.load %arg7[%c1_254, %c0_255, %c0_256] : memref<2x8x128xf32, #tpu.memory_space<vmem>>, vector<1x8x128xf32>
    %701 = vector.shape_cast %700 : vector<1x8x128xf32> to vector<8x128xf32>
    %c1_257 = arith.constant 1 : index
    %c0_258 = arith.constant 0 : index
    %c0_259 = arith.constant 0 : index
    %702 = vector.load %arg8[%c1_257, %c0_258, %c0_259] : memref<2x8x128xf32, #tpu.memory_space<vmem>>, vector<1x8x128xf32>
    %703 = vector.shape_cast %702 : vector<1x8x128xf32> to vector<8x128xf32>
    %c1_i32_260 = arith.constant 1 : i32
    %c0_i32_261 = arith.constant 0 : i32
    %c8_i32_262 = arith.constant 8 : i32
    %704 = arith.muli %c0_i32_261, %c8_i32_262 : i32
    %705 = tpu.assume_multiple %704, 8 : i32
    %c0_i32_263 = arith.constant 0 : i32
    %c0_i32_264 = arith.constant 0 : i32
    %706 = tpu.memref_slice %arg15[%c1_i32_260, %c0_i32_263, %c0_i32_264] : memref<2x64x512xf32, #tpu.memory_space<vmem>> -> memref<1x64x512xf32, #tpu.memory_space<vmem>>
    %707 = tpu.memref_squeeze %706 : memref<1x64x512xf32, #tpu.memory_space<vmem>> -> memref<64x512xf32, #tpu.memory_space<vmem>>
    %708 = arith.index_cast %705 : i32 to index
    %c0_265 = arith.constant 0 : index
    %709 = vector.load %707[%708, %c0_265] : memref<64x512xf32, #tpu.memory_space<vmem>>, vector<8x512xf32>
    %710 = arith.truncf %701 : vector<8x128xf32> to vector<8x128xbf16>
    %c1_266 = arith.constant 1 : index
    %c0_267 = arith.constant 0 : index
    %c0_268 = arith.constant 0 : index
    %711 = vector.load %arg4[%c1_266, %c0_267, %c0_268] : memref<2x128x512xbf16, #tpu.memory_space<vmem>>, vector<1x128x512xbf16>
    %712 = vector.shape_cast %711 : vector<1x128x512xbf16> to vector<128x512xbf16>
    %cst_269 = arith.constant dense<0.000000e+00> : vector<8x512xf32>
    %713 = tpu.matmul %710, %712, %cst_269 {dimension_numbers = #tpu.dot_dimension_numbers<[1], [0], [0], [1], [0, 0, 1, 1], [], []>} : vector<8x128xbf16>, vector<128x512xbf16>, vector<8x512xf32> -> vector<8x512xf32>
    %714 = arith.addf %709, %713 : vector<8x512xf32>
    %cst_270 = arith.constant dense<0.000000e+00> : vector<8xf32>
    %715 = vector.multi_reduction <add>, %714, %cst_270 [1] : vector<8x512xf32> to vector<8xf32>
    %716 = vector.shape_cast %715 : vector<8xf32> to vector<8x1xf32>
    %cst_271 = arith.constant 5.120000e+02 : f32
    %717 = vector.broadcast %cst_271 : f32 to vector<8x1xf32>
    %718 = arith.divf %716, %717 : vector<8x1xf32>
    %719 = arith.mulf %714, %714 : vector<8x512xf32>
    %cst_272 = arith.constant dense<0.000000e+00> : vector<8xf32>
    %720 = vector.multi_reduction <add>, %719, %cst_272 [1] : vector<8x512xf32> to vector<8xf32>
    %721 = vector.shape_cast %720 : vector<8xf32> to vector<8x1xf32>
    %cst_273 = arith.constant 5.120000e+02 : f32
    %722 = vector.broadcast %cst_273 : f32 to vector<8x1xf32>
    %723 = arith.divf %721, %722 : vector<8x1xf32>
    %724 = arith.mulf %718, %718 : vector<8x1xf32>
    %725 = arith.subf %723, %724 : vector<8x1xf32>
    %726 = vector.broadcast %718 : vector<8x1xf32> to vector<8x512xf32>
    %727 = arith.subf %714, %726 : vector<8x512xf32>
    %cst_274 = arith.constant 1.000000e-03 : f32
    %728 = vector.broadcast %cst_274 : f32 to vector<8x1xf32>
    %729 = arith.addf %725, %728 : vector<8x1xf32>
    %730 = math.rsqrt %729 : vector<8x1xf32>
    %731 = vector.broadcast %730 : vector<8x1xf32> to vector<8x512xf32>
    %732 = arith.mulf %727, %731 : vector<8x512xf32>
    %733 = vector.broadcast %696 : vector<1x512xf32> to vector<8x512xf32>
    %734 = arith.mulf %732, %733 : vector<8x512xf32>
    %735 = vector.broadcast %697 : vector<1x512xf32> to vector<8x512xf32>
    %736 = arith.addf %734, %735 : vector<8x512xf32>
    %737 = vector.extract_strided_slice %736 {offsets = [0, 0], sizes = [8, 384], strides = [1, 1]} : vector<8x512xf32> to vector<8x384xf32>
    %738 = arith.negf %737 : vector<8x384xf32>
    %739 = math.exp %738 : vector<8x384xf32>
    %cst_275 = arith.constant 1.000000e+00 : f32
    %740 = vector.broadcast %cst_275 : f32 to vector<8x384xf32>
    %741 = arith.addf %740, %739 : vector<8x384xf32>
    %742 = arith.divf %740, %741 : vector<8x384xf32>
    %743 = vector.extract_strided_slice %742 {offsets = [0, 0], sizes = [8, 128], strides = [1, 1]} : vector<8x384xf32> to vector<8x128xf32>
    %744 = vector.extract_strided_slice %742 {offsets = [0, 128], sizes = [8, 128], strides = [1, 1]} : vector<8x384xf32> to vector<8x128xf32>
    %745 = vector.extract_strided_slice %742 {offsets = [0, 256], sizes = [8, 128], strides = [1, 1]} : vector<8x384xf32> to vector<8x128xf32>
    %746 = vector.extract_strided_slice %736 {offsets = [0, 384], sizes = [8, 128], strides = [1, 1]} : vector<8x512xf32> to vector<8x128xf32>
    %747 = math.tanh %746 : vector<8x128xf32>
    %748 = arith.mulf %744, %703 : vector<8x128xf32>
    %749 = arith.mulf %743, %747 : vector<8x128xf32>
    %750 = arith.addf %748, %749 : vector<8x128xf32>
    %cst_276 = arith.constant dense<0.000000e+00> : vector<8xf32>
    %751 = vector.multi_reduction <add>, %750, %cst_276 [1] : vector<8x128xf32> to vector<8xf32>
    %752 = vector.shape_cast %751 : vector<8xf32> to vector<8x1xf32>
    %cst_277 = arith.constant 1.280000e+02 : f32
    %753 = vector.broadcast %cst_277 : f32 to vector<8x1xf32>
    %754 = arith.divf %752, %753 : vector<8x1xf32>
    %755 = arith.mulf %750, %750 : vector<8x128xf32>
    %cst_278 = arith.constant dense<0.000000e+00> : vector<8xf32>
    %756 = vector.multi_reduction <add>, %755, %cst_278 [1] : vector<8x128xf32> to vector<8xf32>
    %757 = vector.shape_cast %756 : vector<8xf32> to vector<8x1xf32>
    %cst_279 = arith.constant 1.280000e+02 : f32
    %758 = vector.broadcast %cst_279 : f32 to vector<8x1xf32>
    %759 = arith.divf %757, %758 : vector<8x1xf32>
    %760 = arith.mulf %754, %754 : vector<8x1xf32>
    %761 = arith.subf %759, %760 : vector<8x1xf32>
    %762 = vector.broadcast %754 : vector<8x1xf32> to vector<8x128xf32>
    %763 = arith.subf %750, %762 : vector<8x128xf32>
    %cst_280 = arith.constant 1.000000e-03 : f32
    %764 = vector.broadcast %cst_280 : f32 to vector<8x1xf32>
    %765 = arith.addf %761, %764 : vector<8x1xf32>
    %766 = math.rsqrt %765 : vector<8x1xf32>
    %767 = vector.broadcast %766 : vector<8x1xf32> to vector<8x128xf32>
    %768 = arith.mulf %763, %767 : vector<8x128xf32>
    %769 = vector.broadcast %698 : vector<1x128xf32> to vector<8x128xf32>
    %770 = arith.mulf %768, %769 : vector<8x128xf32>
    %771 = vector.broadcast %699 : vector<1x128xf32> to vector<8x128xf32>
    %772 = arith.addf %770, %771 : vector<8x128xf32>
    %773 = math.tanh %772 : vector<8x128xf32>
    %774 = arith.mulf %745, %773 : vector<8x128xf32>
    %775 = arith.index_cast %705 : i32 to index
    %c0_281 = arith.constant 0 : index
    %776 = vector.load %arg14[%775, %c0_281] : memref<64x128xf32, #tpu.memory_space<vmem>>, vector<8x128xf32>
    tpu.vector_store %arg14[%775, %c0_281], %774 {strides = array<i32>} : memref<64x128xf32, #tpu.memory_space<vmem>>, vector<8x128xf32>,
    %c1_i32_282 = arith.constant 1 : i32
    %c8_i32_283 = arith.constant 8 : i32
    %777 = arith.muli %c1_i32_282, %c8_i32_283 : i32
    %778 = tpu.assume_multiple %777, 8 : i32
    %c0_i32_284 = arith.constant 0 : i32
    %c0_i32_285 = arith.constant 0 : i32
    %779 = tpu.memref_slice %arg15[%c1_i32_260, %c0_i32_284, %c0_i32_285] : memref<2x64x512xf32, #tpu.memory_space<vmem>> -> memref<1x64x512xf32, #tpu.memory_space<vmem>>
    %780 = tpu.memref_squeeze %779 : memref<1x64x512xf32, #tpu.memory_space<vmem>> -> memref<64x512xf32, #tpu.memory_space<vmem>>
    %781 = arith.index_cast %778 : i32 to index
    %c0_286 = arith.constant 0 : index
    %782 = vector.load %780[%781, %c0_286] : memref<64x512xf32, #tpu.memory_space<vmem>>, vector<8x512xf32>
    %783 = arith.truncf %774 : vector<8x128xf32> to vector<8x128xbf16>
    %c1_287 = arith.constant 1 : index
    %c0_288 = arith.constant 0 : index
    %c0_289 = arith.constant 0 : index
    %784 = vector.load %arg4[%c1_287, %c0_288, %c0_289] : memref<2x128x512xbf16, #tpu.memory_space<vmem>>, vector<1x128x512xbf16>
    %785 = vector.shape_cast %784 : vector<1x128x512xbf16> to vector<128x512xbf16>
    %cst_290 = arith.constant dense<0.000000e+00> : vector<8x512xf32>
    %786 = tpu.matmul %783, %785, %cst_290 {dimension_numbers = #tpu.dot_dimension_numbers<[1], [0], [0], [1], [0, 0, 1, 1], [], []>} : vector<8x128xbf16>, vector<128x512xbf16>, vector<8x512xf32> -> vector<8x512xf32>
    %787 = arith.addf %782, %786 : vector<8x512xf32>
    %cst_291 = arith.constant dense<0.000000e+00> : vector<8xf32>
    %788 = vector.multi_reduction <add>, %787, %cst_291 [1] : vector<8x512xf32> to vector<8xf32>
    %789 = vector.shape_cast %788 : vector<8xf32> to vector<8x1xf32>
    %cst_292 = arith.constant 5.120000e+02 : f32
    %790 = vector.broadcast %cst_292 : f32 to vector<8x1xf32>
    %791 = arith.divf %789, %790 : vector<8x1xf32>
    %792 = arith.mulf %787, %787 : vector<8x512xf32>
    %cst_293 = arith.constant dense<0.000000e+00> : vector<8xf32>
    %793 = vector.multi_reduction <add>, %792, %cst_293 [1] : vector<8x512xf32> to vector<8xf32>
    %794 = vector.shape_cast %793 : vector<8xf32> to vector<8x1xf32>
    %cst_294 = arith.constant 5.120000e+02 : f32
    %795 = vector.broadcast %cst_294 : f32 to vector<8x1xf32>
    %796 = arith.divf %794, %795 : vector<8x1xf32>
    %797 = arith.mulf %791, %791 : vector<8x1xf32>
    %798 = arith.subf %796, %797 : vector<8x1xf32>
    %799 = vector.broadcast %791 : vector<8x1xf32> to vector<8x512xf32>
    %800 = arith.subf %787, %799 : vector<8x512xf32>
    %cst_295 = arith.constant 1.000000e-03 : f32
    %801 = vector.broadcast %cst_295 : f32 to vector<8x1xf32>
    %802 = arith.addf %798, %801 : vector<8x1xf32>
    %803 = math.rsqrt %802 : vector<8x1xf32>
    %804 = vector.broadcast %803 : vector<8x1xf32> to vector<8x512xf32>
    %805 = arith.mulf %800, %804 : vector<8x512xf32>
    %806 = vector.broadcast %696 : vector<1x512xf32> to vector<8x512xf32>
    %807 = arith.mulf %805, %806 : vector<8x512xf32>
    %808 = vector.broadcast %697 : vector<1x512xf32> to vector<8x512xf32>
    %809 = arith.addf %807, %808 : vector<8x512xf32>
    %810 = vector.extract_strided_slice %809 {offsets = [0, 0], sizes = [8, 384], strides = [1, 1]} : vector<8x512xf32> to vector<8x384xf32>
    %811 = arith.negf %810 : vector<8x384xf32>
    %812 = math.exp %811 : vector<8x384xf32>
    %cst_296 = arith.constant 1.000000e+00 : f32
    %813 = vector.broadcast %cst_296 : f32 to vector<8x384xf32>
    %814 = arith.addf %813, %812 : vector<8x384xf32>
    %815 = arith.divf %813, %814 : vector<8x384xf32>
    %816 = vector.extract_strided_slice %815 {offsets = [0, 0], sizes = [8, 128], strides = [1, 1]} : vector<8x384xf32> to vector<8x128xf32>
    %817 = vector.extract_strided_slice %815 {offsets = [0, 128], sizes = [8, 128], strides = [1, 1]} : vector<8x384xf32> to vector<8x128xf32>
    %818 = vector.extract_strided_slice %815 {offsets = [0, 256], sizes = [8, 128], strides = [1, 1]} : vector<8x384xf32> to vector<8x128xf32>
    %819 = vector.extract_strided_slice %809 {offsets = [0, 384], sizes = [8, 128], strides = [1, 1]} : vector<8x512xf32> to vector<8x128xf32>
    %820 = math.tanh %819 : vector<8x128xf32>
    %821 = arith.mulf %817, %772 : vector<8x128xf32>
    %822 = arith.mulf %816, %820 : vector<8x128xf32>
    %823 = arith.addf %821, %822 : vector<8x128xf32>
    %cst_297 = arith.constant dense<0.000000e+00> : vector<8xf32>
    %824 = vector.multi_reduction <add>, %823, %cst_297 [1] : vector<8x128xf32> to vector<8xf32>
    %825 = vector.shape_cast %824 : vector<8xf32> to vector<8x1xf32>
    %cst_298 = arith.constant 1.280000e+02 : f32
    %826 = vector.broadcast %cst_298 : f32 to vector<8x1xf32>
    %827 = arith.divf %825, %826 : vector<8x1xf32>
    %828 = arith.mulf %823, %823 : vector<8x128xf32>
    %cst_299 = arith.constant dense<0.000000e+00> : vector<8xf32>
    %829 = vector.multi_reduction <add>, %828, %cst_299 [1] : vector<8x128xf32> to vector<8xf32>
    %830 = vector.shape_cast %829 : vector<8xf32> to vector<8x1xf32>
    %cst_300 = arith.constant 1.280000e+02 : f32
    %831 = vector.broadcast %cst_300 : f32 to vector<8x1xf32>
    %832 = arith.divf %830, %831 : vector<8x1xf32>
    %833 = arith.mulf %827, %827 : vector<8x1xf32>
    %834 = arith.subf %832, %833 : vector<8x1xf32>
    %835 = vector.broadcast %827 : vector<8x1xf32> to vector<8x128xf32>
    %836 = arith.subf %823, %835 : vector<8x128xf32>
    %cst_301 = arith.constant 1.000000e-03 : f32
    %837 = vector.broadcast %cst_301 : f32 to vector<8x1xf32>
    %838 = arith.addf %834, %837 : vector<8x1xf32>
    %839 = math.rsqrt %838 : vector<8x1xf32>
    %840 = vector.broadcast %839 : vector<8x1xf32> to vector<8x128xf32>
    %841 = arith.mulf %836, %840 : vector<8x128xf32>
    %842 = vector.broadcast %698 : vector<1x128xf32> to vector<8x128xf32>
    %843 = arith.mulf %841, %842 : vector<8x128xf32>
    %844 = vector.broadcast %699 : vector<1x128xf32> to vector<8x128xf32>
    %845 = arith.addf %843, %844 : vector<8x128xf32>
    %846 = math.tanh %845 : vector<8x128xf32>
    %847 = arith.mulf %818, %846 : vector<8x128xf32>
    %848 = arith.index_cast %778 : i32 to index
    %c0_302 = arith.constant 0 : index
    %849 = vector.load %arg14[%848, %c0_302] : memref<64x128xf32, #tpu.memory_space<vmem>>, vector<8x128xf32>
    tpu.vector_store %arg14[%848, %c0_302], %847 {strides = array<i32>} : memref<64x128xf32, #tpu.memory_space<vmem>>, vector<8x128xf32>,
    %c2_i32_303 = arith.constant 2 : i32
    %c8_i32_304 = arith.constant 8 : i32
    %850 = arith.muli %c2_i32_303, %c8_i32_304 : i32
    %851 = tpu.assume_multiple %850, 8 : i32
    %c0_i32_305 = arith.constant 0 : i32
    %c0_i32_306 = arith.constant 0 : i32
    %852 = tpu.memref_slice %arg15[%c1_i32_260, %c0_i32_305, %c0_i32_306] : memref<2x64x512xf32, #tpu.memory_space<vmem>> -> memref<1x64x512xf32, #tpu.memory_space<vmem>>
    %853 = tpu.memref_squeeze %852 : memref<1x64x512xf32, #tpu.memory_space<vmem>> -> memref<64x512xf32, #tpu.memory_space<vmem>>
    %854 = arith.index_cast %851 : i32 to index
    %c0_307 = arith.constant 0 : index
    %855 = vector.load %853[%854, %c0_307] : memref<64x512xf32, #tpu.memory_space<vmem>>, vector<8x512xf32>
    %856 = arith.truncf %847 : vector<8x128xf32> to vector<8x128xbf16>
    %c1_308 = arith.constant 1 : index
    %c0_309 = arith.constant 0 : index
    %c0_310 = arith.constant 0 : index
    %857 = vector.load %arg4[%c1_308, %c0_309, %c0_310] : memref<2x128x512xbf16, #tpu.memory_space<vmem>>, vector<1x128x512xbf16>
    %858 = vector.shape_cast %857 : vector<1x128x512xbf16> to vector<128x512xbf16>
    %cst_311 = arith.constant dense<0.000000e+00> : vector<8x512xf32>
    %859 = tpu.matmul %856, %858, %cst_311 {dimension_numbers = #tpu.dot_dimension_numbers<[1], [0], [0], [1], [0, 0, 1, 1], [], []>} : vector<8x128xbf16>, vector<128x512xbf16>, vector<8x512xf32> -> vector<8x512xf32>
    %860 = arith.addf %855, %859 : vector<8x512xf32>
    %cst_312 = arith.constant dense<0.000000e+00> : vector<8xf32>
    %861 = vector.multi_reduction <add>, %860, %cst_312 [1] : vector<8x512xf32> to vector<8xf32>
    %862 = vector.shape_cast %861 : vector<8xf32> to vector<8x1xf32>
    %cst_313 = arith.constant 5.120000e+02 : f32
    %863 = vector.broadcast %cst_313 : f32 to vector<8x1xf32>
    %864 = arith.divf %862, %863 : vector<8x1xf32>
    %865 = arith.mulf %860, %860 : vector<8x512xf32>
    %cst_314 = arith.constant dense<0.000000e+00> : vector<8xf32>
    %866 = vector.multi_reduction <add>, %865, %cst_314 [1] : vector<8x512xf32> to vector<8xf32>
    %867 = vector.shape_cast %866 : vector<8xf32> to vector<8x1xf32>
    %cst_315 = arith.constant 5.120000e+02 : f32
    %868 = vector.broadcast %cst_315 : f32 to vector<8x1xf32>
    %869 = arith.divf %867, %868 : vector<8x1xf32>
    %870 = arith.mulf %864, %864 : vector<8x1xf32>
    %871 = arith.subf %869, %870 : vector<8x1xf32>
    %872 = vector.broadcast %864 : vector<8x1xf32> to vector<8x512xf32>
    %873 = arith.subf %860, %872 : vector<8x512xf32>
    %cst_316 = arith.constant 1.000000e-03 : f32
    %874 = vector.broadcast %cst_316 : f32 to vector<8x1xf32>
    %875 = arith.addf %871, %874 : vector<8x1xf32>
    %876 = math.rsqrt %875 : vector<8x1xf32>
    %877 = vector.broadcast %876 : vector<8x1xf32> to vector<8x512xf32>
    %878 = arith.mulf %873, %877 : vector<8x512xf32>
    %879 = vector.broadcast %696 : vector<1x512xf32> to vector<8x512xf32>
    %880 = arith.mulf %878, %879 : vector<8x512xf32>
    %881 = vector.broadcast %697 : vector<1x512xf32> to vector<8x512xf32>
    %882 = arith.addf %880, %881 : vector<8x512xf32>
    %883 = vector.extract_strided_slice %882 {offsets = [0, 0], sizes = [8, 384], strides = [1, 1]} : vector<8x512xf32> to vector<8x384xf32>
    %884 = arith.negf %883 : vector<8x384xf32>
    %885 = math.exp %884 : vector<8x384xf32>
    %cst_317 = arith.constant 1.000000e+00 : f32
    %886 = vector.broadcast %cst_317 : f32 to vector<8x384xf32>
    %887 = arith.addf %886, %885 : vector<8x384xf32>
    %888 = arith.divf %886, %887 : vector<8x384xf32>
    %889 = vector.extract_strided_slice %888 {offsets = [0, 0], sizes = [8, 128], strides = [1, 1]} : vector<8x384xf32> to vector<8x128xf32>
    %890 = vector.extract_strided_slice %888 {offsets = [0, 128], sizes = [8, 128], strides = [1, 1]} : vector<8x384xf32> to vector<8x128xf32>
    %891 = vector.extract_strided_slice %888 {offsets = [0, 256], sizes = [8, 128], strides = [1, 1]} : vector<8x384xf32> to vector<8x128xf32>
    %892 = vector.extract_strided_slice %882 {offsets = [0, 384], sizes = [8, 128], strides = [1, 1]} : vector<8x512xf32> to vector<8x128xf32>
    %893 = math.tanh %892 : vector<8x128xf32>
    %894 = arith.mulf %890, %845 : vector<8x128xf32>
    %895 = arith.mulf %889, %893 : vector<8x128xf32>
    %896 = arith.addf %894, %895 : vector<8x128xf32>
    %cst_318 = arith.constant dense<0.000000e+00> : vector<8xf32>
    %897 = vector.multi_reduction <add>, %896, %cst_318 [1] : vector<8x128xf32> to vector<8xf32>
    %898 = vector.shape_cast %897 : vector<8xf32> to vector<8x1xf32>
    %cst_319 = arith.constant 1.280000e+02 : f32
    %899 = vector.broadcast %cst_319 : f32 to vector<8x1xf32>
    %900 = arith.divf %898, %899 : vector<8x1xf32>
    %901 = arith.mulf %896, %896 : vector<8x128xf32>
    %cst_320 = arith.constant dense<0.000000e+00> : vector<8xf32>
    %902 = vector.multi_reduction <add>, %901, %cst_320 [1] : vector<8x128xf32> to vector<8xf32>
    %903 = vector.shape_cast %902 : vector<8xf32> to vector<8x1xf32>
    %cst_321 = arith.constant 1.280000e+02 : f32
    %904 = vector.broadcast %cst_321 : f32 to vector<8x1xf32>
    %905 = arith.divf %903, %904 : vector<8x1xf32>
    %906 = arith.mulf %900, %900 : vector<8x1xf32>
    %907 = arith.subf %905, %906 : vector<8x1xf32>
    %908 = vector.broadcast %900 : vector<8x1xf32> to vector<8x128xf32>
    %909 = arith.subf %896, %908 : vector<8x128xf32>
    %cst_322 = arith.constant 1.000000e-03 : f32
    %910 = vector.broadcast %cst_322 : f32 to vector<8x1xf32>
    %911 = arith.addf %907, %910 : vector<8x1xf32>
    %912 = math.rsqrt %911 : vector<8x1xf32>
    %913 = vector.broadcast %912 : vector<8x1xf32> to vector<8x128xf32>
    %914 = arith.mulf %909, %913 : vector<8x128xf32>
    %915 = vector.broadcast %698 : vector<1x128xf32> to vector<8x128xf32>
    %916 = arith.mulf %914, %915 : vector<8x128xf32>
    %917 = vector.broadcast %699 : vector<1x128xf32> to vector<8x128xf32>
    %918 = arith.addf %916, %917 : vector<8x128xf32>
    %919 = math.tanh %918 : vector<8x128xf32>
    %920 = arith.mulf %891, %919 : vector<8x128xf32>
    %921 = arith.index_cast %851 : i32 to index
    %c0_323 = arith.constant 0 : index
    %922 = vector.load %arg14[%921, %c0_323] : memref<64x128xf32, #tpu.memory_space<vmem>>, vector<8x128xf32>
    tpu.vector_store %arg14[%921, %c0_323], %920 {strides = array<i32>} : memref<64x128xf32, #tpu.memory_space<vmem>>, vector<8x128xf32>,
    %c3_i32_324 = arith.constant 3 : i32
    %c8_i32_325 = arith.constant 8 : i32
    %923 = arith.muli %c3_i32_324, %c8_i32_325 : i32
    %924 = tpu.assume_multiple %923, 8 : i32
    %c0_i32_326 = arith.constant 0 : i32
    %c0_i32_327 = arith.constant 0 : i32
    %925 = tpu.memref_slice %arg15[%c1_i32_260, %c0_i32_326, %c0_i32_327] : memref<2x64x512xf32, #tpu.memory_space<vmem>> -> memref<1x64x512xf32, #tpu.memory_space<vmem>>
    %926 = tpu.memref_squeeze %925 : memref<1x64x512xf32, #tpu.memory_space<vmem>> -> memref<64x512xf32, #tpu.memory_space<vmem>>
    %927 = arith.index_cast %924 : i32 to index
    %c0_328 = arith.constant 0 : index
    %928 = vector.load %926[%927, %c0_328] : memref<64x512xf32, #tpu.memory_space<vmem>>, vector<8x512xf32>
    %929 = arith.truncf %920 : vector<8x128xf32> to vector<8x128xbf16>
    %c1_329 = arith.constant 1 : index
    %c0_330 = arith.constant 0 : index
    %c0_331 = arith.constant 0 : index
    %930 = vector.load %arg4[%c1_329, %c0_330, %c0_331] : memref<2x128x512xbf16, #tpu.memory_space<vmem>>, vector<1x128x512xbf16>
    %931 = vector.shape_cast %930 : vector<1x128x512xbf16> to vector<128x512xbf16>
    %cst_332 = arith.constant dense<0.000000e+00> : vector<8x512xf32>
    %932 = tpu.matmul %929, %931, %cst_332 {dimension_numbers = #tpu.dot_dimension_numbers<[1], [0], [0], [1], [0, 0, 1, 1], [], []>} : vector<8x128xbf16>, vector<128x512xbf16>, vector<8x512xf32> -> vector<8x512xf32>
    %933 = arith.addf %928, %932 : vector<8x512xf32>
    %cst_333 = arith.constant dense<0.000000e+00> : vector<8xf32>
    %934 = vector.multi_reduction <add>, %933, %cst_333 [1] : vector<8x512xf32> to vector<8xf32>
    %935 = vector.shape_cast %934 : vector<8xf32> to vector<8x1xf32>
    %cst_334 = arith.constant 5.120000e+02 : f32
    %936 = vector.broadcast %cst_334 : f32 to vector<8x1xf32>
    %937 = arith.divf %935, %936 : vector<8x1xf32>
    %938 = arith.mulf %933, %933 : vector<8x512xf32>
    %cst_335 = arith.constant dense<0.000000e+00> : vector<8xf32>
    %939 = vector.multi_reduction <add>, %938, %cst_335 [1] : vector<8x512xf32> to vector<8xf32>
    %940 = vector.shape_cast %939 : vector<8xf32> to vector<8x1xf32>
    %cst_336 = arith.constant 5.120000e+02 : f32
    %941 = vector.broadcast %cst_336 : f32 to vector<8x1xf32>
    %942 = arith.divf %940, %941 : vector<8x1xf32>
    %943 = arith.mulf %937, %937 : vector<8x1xf32>
    %944 = arith.subf %942, %943 : vector<8x1xf32>
    %945 = vector.broadcast %937 : vector<8x1xf32> to vector<8x512xf32>
    %946 = arith.subf %933, %945 : vector<8x512xf32>
    %cst_337 = arith.constant 1.000000e-03 : f32
    %947 = vector.broadcast %cst_337 : f32 to vector<8x1xf32>
    %948 = arith.addf %944, %947 : vector<8x1xf32>
    %949 = math.rsqrt %948 : vector<8x1xf32>
    %950 = vector.broadcast %949 : vector<8x1xf32> to vector<8x512xf32>
    %951 = arith.mulf %946, %950 : vector<8x512xf32>
    %952 = vector.broadcast %696 : vector<1x512xf32> to vector<8x512xf32>
    %953 = arith.mulf %951, %952 : vector<8x512xf32>
    %954 = vector.broadcast %697 : vector<1x512xf32> to vector<8x512xf32>
    %955 = arith.addf %953, %954 : vector<8x512xf32>
    %956 = vector.extract_strided_slice %955 {offsets = [0, 0], sizes = [8, 384], strides = [1, 1]} : vector<8x512xf32> to vector<8x384xf32>
    %957 = arith.negf %956 : vector<8x384xf32>
    %958 = math.exp %957 : vector<8x384xf32>
    %cst_338 = arith.constant 1.000000e+00 : f32
    %959 = vector.broadcast %cst_338 : f32 to vector<8x384xf32>
    %960 = arith.addf %959, %958 : vector<8x384xf32>
    %961 = arith.divf %959, %960 : vector<8x384xf32>
    %962 = vector.extract_strided_slice %961 {offsets = [0, 0], sizes = [8, 128], strides = [1, 1]} : vector<8x384xf32> to vector<8x128xf32>
    %963 = vector.extract_strided_slice %961 {offsets = [0, 128], sizes = [8, 128], strides = [1, 1]} : vector<8x384xf32> to vector<8x128xf32>
    %964 = vector.extract_strided_slice %961 {offsets = [0, 256], sizes = [8, 128], strides = [1, 1]} : vector<8x384xf32> to vector<8x128xf32>
    %965 = vector.extract_strided_slice %955 {offsets = [0, 384], sizes = [8, 128], strides = [1, 1]} : vector<8x512xf32> to vector<8x128xf32>
    %966 = math.tanh %965 : vector<8x128xf32>
    %967 = arith.mulf %963, %918 : vector<8x128xf32>
    %968 = arith.mulf %962, %966 : vector<8x128xf32>
    %969 = arith.addf %967, %968 : vector<8x128xf32>
    %cst_339 = arith.constant dense<0.000000e+00> : vector<8xf32>
    %970 = vector.multi_reduction <add>, %969, %cst_339 [1] : vector<8x128xf32> to vector<8xf32>
    %971 = vector.shape_cast %970 : vector<8xf32> to vector<8x1xf32>
    %cst_340 = arith.constant 1.280000e+02 : f32
    %972 = vector.broadcast %cst_340 : f32 to vector<8x1xf32>
    %973 = arith.divf %971, %972 : vector<8x1xf32>
    %974 = arith.mulf %969, %969 : vector<8x128xf32>
    %cst_341 = arith.constant dense<0.000000e+00> : vector<8xf32>
    %975 = vector.multi_reduction <add>, %974, %cst_341 [1] : vector<8x128xf32> to vector<8xf32>
    %976 = vector.shape_cast %975 : vector<8xf32> to vector<8x1xf32>
    %cst_342 = arith.constant 1.280000e+02 : f32
    %977 = vector.broadcast %cst_342 : f32 to vector<8x1xf32>
    %978 = arith.divf %976, %977 : vector<8x1xf32>
    %979 = arith.mulf %973, %973 : vector<8x1xf32>
    %980 = arith.subf %978, %979 : vector<8x1xf32>
    %981 = vector.broadcast %973 : vector<8x1xf32> to vector<8x128xf32>
    %982 = arith.subf %969, %981 : vector<8x128xf32>
    %cst_343 = arith.constant 1.000000e-03 : f32
    %983 = vector.broadcast %cst_343 : f32 to vector<8x1xf32>
    %984 = arith.addf %980, %983 : vector<8x1xf32>
    %985 = math.rsqrt %984 : vector<8x1xf32>
    %986 = vector.broadcast %985 : vector<8x1xf32> to vector<8x128xf32>
    %987 = arith.mulf %982, %986 : vector<8x128xf32>
    %988 = vector.broadcast %698 : vector<1x128xf32> to vector<8x128xf32>
    %989 = arith.mulf %987, %988 : vector<8x128xf32>
    %990 = vector.broadcast %699 : vector<1x128xf32> to vector<8x128xf32>
    %991 = arith.addf %989, %990 : vector<8x128xf32>
    %992 = math.tanh %991 : vector<8x128xf32>
    %993 = arith.mulf %964, %992 : vector<8x128xf32>
    %994 = arith.index_cast %924 : i32 to index
    %c0_344 = arith.constant 0 : index
    %995 = vector.load %arg14[%994, %c0_344] : memref<64x128xf32, #tpu.memory_space<vmem>>, vector<8x128xf32>
    tpu.vector_store %arg14[%994, %c0_344], %993 {strides = array<i32>} : memref<64x128xf32, #tpu.memory_space<vmem>>, vector<8x128xf32>,
    %c4_i32_345 = arith.constant 4 : i32
    %c8_i32_346 = arith.constant 8 : i32
    %996 = arith.muli %c4_i32_345, %c8_i32_346 : i32
    %997 = tpu.assume_multiple %996, 8 : i32
    %c0_i32_347 = arith.constant 0 : i32
    %c0_i32_348 = arith.constant 0 : i32
    %998 = tpu.memref_slice %arg15[%c1_i32_260, %c0_i32_347, %c0_i32_348] : memref<2x64x512xf32, #tpu.memory_space<vmem>> -> memref<1x64x512xf32, #tpu.memory_space<vmem>>
    %999 = tpu.memref_squeeze %998 : memref<1x64x512xf32, #tpu.memory_space<vmem>> -> memref<64x512xf32, #tpu.memory_space<vmem>>
    %1000 = arith.index_cast %997 : i32 to index
    %c0_349 = arith.constant 0 : index
    %1001 = vector.load %999[%1000, %c0_349] : memref<64x512xf32, #tpu.memory_space<vmem>>, vector<8x512xf32>
    %1002 = arith.truncf %993 : vector<8x128xf32> to vector<8x128xbf16>
    %c1_350 = arith.constant 1 : index
    %c0_351 = arith.constant 0 : index
    %c0_352 = arith.constant 0 : index
    %1003 = vector.load %arg4[%c1_350, %c0_351, %c0_352] : memref<2x128x512xbf16, #tpu.memory_space<vmem>>, vector<1x128x512xbf16>
    %1004 = vector.shape_cast %1003 : vector<1x128x512xbf16> to vector<128x512xbf16>
    %cst_353 = arith.constant dense<0.000000e+00> : vector<8x512xf32>
    %1005 = tpu.matmul %1002, %1004, %cst_353 {dimension_numbers = #tpu.dot_dimension_numbers<[1], [0], [0], [1], [0, 0, 1, 1], [], []>} : vector<8x128xbf16>, vector<128x512xbf16>, vector<8x512xf32> -> vector<8x512xf32>
    %1006 = arith.addf %1001, %1005 : vector<8x512xf32>
    %cst_354 = arith.constant dense<0.000000e+00> : vector<8xf32>
    %1007 = vector.multi_reduction <add>, %1006, %cst_354 [1] : vector<8x512xf32> to vector<8xf32>
    %1008 = vector.shape_cast %1007 : vector<8xf32> to vector<8x1xf32>
    %cst_355 = arith.constant 5.120000e+02 : f32
    %1009 = vector.broadcast %cst_355 : f32 to vector<8x1xf32>
    %1010 = arith.divf %1008, %1009 : vector<8x1xf32>
    %1011 = arith.mulf %1006, %1006 : vector<8x512xf32>
    %cst_356 = arith.constant dense<0.000000e+00> : vector<8xf32>
    %1012 = vector.multi_reduction <add>, %1011, %cst_356 [1] : vector<8x512xf32> to vector<8xf32>
    %1013 = vector.shape_cast %1012 : vector<8xf32> to vector<8x1xf32>
    %cst_357 = arith.constant 5.120000e+02 : f32
    %1014 = vector.broadcast %cst_357 : f32 to vector<8x1xf32>
    %1015 = arith.divf %1013, %1014 : vector<8x1xf32>
    %1016 = arith.mulf %1010, %1010 : vector<8x1xf32>
    %1017 = arith.subf %1015, %1016 : vector<8x1xf32>
    %1018 = vector.broadcast %1010 : vector<8x1xf32> to vector<8x512xf32>
    %1019 = arith.subf %1006, %1018 : vector<8x512xf32>
    %cst_358 = arith.constant 1.000000e-03 : f32
    %1020 = vector.broadcast %cst_358 : f32 to vector<8x1xf32>
    %1021 = arith.addf %1017, %1020 : vector<8x1xf32>
    %1022 = math.rsqrt %1021 : vector<8x1xf32>
    %1023 = vector.broadcast %1022 : vector<8x1xf32> to vector<8x512xf32>
    %1024 = arith.mulf %1019, %1023 : vector<8x512xf32>
    %1025 = vector.broadcast %696 : vector<1x512xf32> to vector<8x512xf32>
    %1026 = arith.mulf %1024, %1025 : vector<8x512xf32>
    %1027 = vector.broadcast %697 : vector<1x512xf32> to vector<8x512xf32>
    %1028 = arith.addf %1026, %1027 : vector<8x512xf32>
    %1029 = vector.extract_strided_slice %1028 {offsets = [0, 0], sizes = [8, 384], strides = [1, 1]} : vector<8x512xf32> to vector<8x384xf32>
    %1030 = arith.negf %1029 : vector<8x384xf32>
    %1031 = math.exp %1030 : vector<8x384xf32>
    %cst_359 = arith.constant 1.000000e+00 : f32
    %1032 = vector.broadcast %cst_359 : f32 to vector<8x384xf32>
    %1033 = arith.addf %1032, %1031 : vector<8x384xf32>
    %1034 = arith.divf %1032, %1033 : vector<8x384xf32>
    %1035 = vector.extract_strided_slice %1034 {offsets = [0, 0], sizes = [8, 128], strides = [1, 1]} : vector<8x384xf32> to vector<8x128xf32>
    %1036 = vector.extract_strided_slice %1034 {offsets = [0, 128], sizes = [8, 128], strides = [1, 1]} : vector<8x384xf32> to vector<8x128xf32>
    %1037 = vector.extract_strided_slice %1034 {offsets = [0, 256], sizes = [8, 128], strides = [1, 1]} : vector<8x384xf32> to vector<8x128xf32>
    %1038 = vector.extract_strided_slice %1028 {offsets = [0, 384], sizes = [8, 128], strides = [1, 1]} : vector<8x512xf32> to vector<8x128xf32>
    %1039 = math.tanh %1038 : vector<8x128xf32>
    %1040 = arith.mulf %1036, %991 : vector<8x128xf32>
    %1041 = arith.mulf %1035, %1039 : vector<8x128xf32>
    %1042 = arith.addf %1040, %1041 : vector<8x128xf32>
    %cst_360 = arith.constant dense<0.000000e+00> : vector<8xf32>
    %1043 = vector.multi_reduction <add>, %1042, %cst_360 [1] : vector<8x128xf32> to vector<8xf32>
    %1044 = vector.shape_cast %1043 : vector<8xf32> to vector<8x1xf32>
    %cst_361 = arith.constant 1.280000e+02 : f32
    %1045 = vector.broadcast %cst_361 : f32 to vector<8x1xf32>
    %1046 = arith.divf %1044, %1045 : vector<8x1xf32>
    %1047 = arith.mulf %1042, %1042 : vector<8x128xf32>
    %cst_362 = arith.constant dense<0.000000e+00> : vector<8xf32>
    %1048 = vector.multi_reduction <add>, %1047, %cst_362 [1] : vector<8x128xf32> to vector<8xf32>
    %1049 = vector.shape_cast %1048 : vector<8xf32> to vector<8x1xf32>
    %cst_363 = arith.constant 1.280000e+02 : f32
    %1050 = vector.broadcast %cst_363 : f32 to vector<8x1xf32>
    %1051 = arith.divf %1049, %1050 : vector<8x1xf32>
    %1052 = arith.mulf %1046, %1046 : vector<8x1xf32>
    %1053 = arith.subf %1051, %1052 : vector<8x1xf32>
    %1054 = vector.broadcast %1046 : vector<8x1xf32> to vector<8x128xf32>
    %1055 = arith.subf %1042, %1054 : vector<8x128xf32>
    %cst_364 = arith.constant 1.000000e-03 : f32
    %1056 = vector.broadcast %cst_364 : f32 to vector<8x1xf32>
    %1057 = arith.addf %1053, %1056 : vector<8x1xf32>
    %1058 = math.rsqrt %1057 : vector<8x1xf32>
    %1059 = vector.broadcast %1058 : vector<8x1xf32> to vector<8x128xf32>
    %1060 = arith.mulf %1055, %1059 : vector<8x128xf32>
    %1061 = vector.broadcast %698 : vector<1x128xf32> to vector<8x128xf32>
    %1062 = arith.mulf %1060, %1061 : vector<8x128xf32>
    %1063 = vector.broadcast %699 : vector<1x128xf32> to vector<8x128xf32>
    %1064 = arith.addf %1062, %1063 : vector<8x128xf32>
    %1065 = math.tanh %1064 : vector<8x128xf32>
    %1066 = arith.mulf %1037, %1065 : vector<8x128xf32>
    %1067 = arith.index_cast %997 : i32 to index
    %c0_365 = arith.constant 0 : index
    %1068 = vector.load %arg14[%1067, %c0_365] : memref<64x128xf32, #tpu.memory_space<vmem>>, vector<8x128xf32>
    tpu.vector_store %arg14[%1067, %c0_365], %1066 {strides = array<i32>} : memref<64x128xf32, #tpu.memory_space<vmem>>, vector<8x128xf32>,
    %c5_i32_366 = arith.constant 5 : i32
    %c8_i32_367 = arith.constant 8 : i32
    %1069 = arith.muli %c5_i32_366, %c8_i32_367 : i32
    %1070 = tpu.assume_multiple %1069, 8 : i32
    %c0_i32_368 = arith.constant 0 : i32
    %c0_i32_369 = arith.constant 0 : i32
    %1071 = tpu.memref_slice %arg15[%c1_i32_260, %c0_i32_368, %c0_i32_369] : memref<2x64x512xf32, #tpu.memory_space<vmem>> -> memref<1x64x512xf32, #tpu.memory_space<vmem>>
    %1072 = tpu.memref_squeeze %1071 : memref<1x64x512xf32, #tpu.memory_space<vmem>> -> memref<64x512xf32, #tpu.memory_space<vmem>>
    %1073 = arith.index_cast %1070 : i32 to index
    %c0_370 = arith.constant 0 : index
    %1074 = vector.load %1072[%1073, %c0_370] : memref<64x512xf32, #tpu.memory_space<vmem>>, vector<8x512xf32>
    %1075 = arith.truncf %1066 : vector<8x128xf32> to vector<8x128xbf16>
    %c1_371 = arith.constant 1 : index
    %c0_372 = arith.constant 0 : index
    %c0_373 = arith.constant 0 : index
    %1076 = vector.load %arg4[%c1_371, %c0_372, %c0_373] : memref<2x128x512xbf16, #tpu.memory_space<vmem>>, vector<1x128x512xbf16>
    %1077 = vector.shape_cast %1076 : vector<1x128x512xbf16> to vector<128x512xbf16>
    %cst_374 = arith.constant dense<0.000000e+00> : vector<8x512xf32>
    %1078 = tpu.matmul %1075, %1077, %cst_374 {dimension_numbers = #tpu.dot_dimension_numbers<[1], [0], [0], [1], [0, 0, 1, 1], [], []>} : vector<8x128xbf16>, vector<128x512xbf16>, vector<8x512xf32> -> vector<8x512xf32>
    %1079 = arith.addf %1074, %1078 : vector<8x512xf32>
    %cst_375 = arith.constant dense<0.000000e+00> : vector<8xf32>
    %1080 = vector.multi_reduction <add>, %1079, %cst_375 [1] : vector<8x512xf32> to vector<8xf32>
    %1081 = vector.shape_cast %1080 : vector<8xf32> to vector<8x1xf32>
    %cst_376 = arith.constant 5.120000e+02 : f32
    %1082 = vector.broadcast %cst_376 : f32 to vector<8x1xf32>
    %1083 = arith.divf %1081, %1082 : vector<8x1xf32>
    %1084 = arith.mulf %1079, %1079 : vector<8x512xf32>
    %cst_377 = arith.constant dense<0.000000e+00> : vector<8xf32>
    %1085 = vector.multi_reduction <add>, %1084, %cst_377 [1] : vector<8x512xf32> to vector<8xf32>
    %1086 = vector.shape_cast %1085 : vector<8xf32> to vector<8x1xf32>
    %cst_378 = arith.constant 5.120000e+02 : f32
    %1087 = vector.broadcast %cst_378 : f32 to vector<8x1xf32>
    %1088 = arith.divf %1086, %1087 : vector<8x1xf32>
    %1089 = arith.mulf %1083, %1083 : vector<8x1xf32>
    %1090 = arith.subf %1088, %1089 : vector<8x1xf32>
    %1091 = vector.broadcast %1083 : vector<8x1xf32> to vector<8x512xf32>
    %1092 = arith.subf %1079, %1091 : vector<8x512xf32>
    %cst_379 = arith.constant 1.000000e-03 : f32
    %1093 = vector.broadcast %cst_379 : f32 to vector<8x1xf32>
    %1094 = arith.addf %1090, %1093 : vector<8x1xf32>
    %1095 = math.rsqrt %1094 : vector<8x1xf32>
    %1096 = vector.broadcast %1095 : vector<8x1xf32> to vector<8x512xf32>
    %1097 = arith.mulf %1092, %1096 : vector<8x512xf32>
    %1098 = vector.broadcast %696 : vector<1x512xf32> to vector<8x512xf32>
    %1099 = arith.mulf %1097, %1098 : vector<8x512xf32>
    %1100 = vector.broadcast %697 : vector<1x512xf32> to vector<8x512xf32>
    %1101 = arith.addf %1099, %1100 : vector<8x512xf32>
    %1102 = vector.extract_strided_slice %1101 {offsets = [0, 0], sizes = [8, 384], strides = [1, 1]} : vector<8x512xf32> to vector<8x384xf32>
    %1103 = arith.negf %1102 : vector<8x384xf32>
    %1104 = math.exp %1103 : vector<8x384xf32>
    %cst_380 = arith.constant 1.000000e+00 : f32
    %1105 = vector.broadcast %cst_380 : f32 to vector<8x384xf32>
    %1106 = arith.addf %1105, %1104 : vector<8x384xf32>
    %1107 = arith.divf %1105, %1106 : vector<8x384xf32>
    %1108 = vector.extract_strided_slice %1107 {offsets = [0, 0], sizes = [8, 128], strides = [1, 1]} : vector<8x384xf32> to vector<8x128xf32>
    %1109 = vector.extract_strided_slice %1107 {offsets = [0, 128], sizes = [8, 128], strides = [1, 1]} : vector<8x384xf32> to vector<8x128xf32>
    %1110 = vector.extract_strided_slice %1107 {offsets = [0, 256], sizes = [8, 128], strides = [1, 1]} : vector<8x384xf32> to vector<8x128xf32>
    %1111 = vector.extract_strided_slice %1101 {offsets = [0, 384], sizes = [8, 128], strides = [1, 1]} : vector<8x512xf32> to vector<8x128xf32>
    %1112 = math.tanh %1111 : vector<8x128xf32>
    %1113 = arith.mulf %1109, %1064 : vector<8x128xf32>
    %1114 = arith.mulf %1108, %1112 : vector<8x128xf32>
    %1115 = arith.addf %1113, %1114 : vector<8x128xf32>
    %cst_381 = arith.constant dense<0.000000e+00> : vector<8xf32>
    %1116 = vector.multi_reduction <add>, %1115, %cst_381 [1] : vector<8x128xf32> to vector<8xf32>
    %1117 = vector.shape_cast %1116 : vector<8xf32> to vector<8x1xf32>
    %cst_382 = arith.constant 1.280000e+02 : f32
    %1118 = vector.broadcast %cst_382 : f32 to vector<8x1xf32>
    %1119 = arith.divf %1117, %1118 : vector<8x1xf32>
    %1120 = arith.mulf %1115, %1115 : vector<8x128xf32>
    %cst_383 = arith.constant dense<0.000000e+00> : vector<8xf32>
    %1121 = vector.multi_reduction <add>, %1120, %cst_383 [1] : vector<8x128xf32> to vector<8xf32>
    %1122 = vector.shape_cast %1121 : vector<8xf32> to vector<8x1xf32>
    %cst_384 = arith.constant 1.280000e+02 : f32
    %1123 = vector.broadcast %cst_384 : f32 to vector<8x1xf32>
    %1124 = arith.divf %1122, %1123 : vector<8x1xf32>
    %1125 = arith.mulf %1119, %1119 : vector<8x1xf32>
    %1126 = arith.subf %1124, %1125 : vector<8x1xf32>
    %1127 = vector.broadcast %1119 : vector<8x1xf32> to vector<8x128xf32>
    %1128 = arith.subf %1115, %1127 : vector<8x128xf32>
    %cst_385 = arith.constant 1.000000e-03 : f32
    %1129 = vector.broadcast %cst_385 : f32 to vector<8x1xf32>
    %1130 = arith.addf %1126, %1129 : vector<8x1xf32>
    %1131 = math.rsqrt %1130 : vector<8x1xf32>
    %1132 = vector.broadcast %1131 : vector<8x1xf32> to vector<8x128xf32>
    %1133 = arith.mulf %1128, %1132 : vector<8x128xf32>
    %1134 = vector.broadcast %698 : vector<1x128xf32> to vector<8x128xf32>
    %1135 = arith.mulf %1133, %1134 : vector<8x128xf32>
    %1136 = vector.broadcast %699 : vector<1x128xf32> to vector<8x128xf32>
    %1137 = arith.addf %1135, %1136 : vector<8x128xf32>
    %1138 = math.tanh %1137 : vector<8x128xf32>
    %1139 = arith.mulf %1110, %1138 : vector<8x128xf32>
    %1140 = arith.index_cast %1070 : i32 to index
    %c0_386 = arith.constant 0 : index
    %1141 = vector.load %arg14[%1140, %c0_386] : memref<64x128xf32, #tpu.memory_space<vmem>>, vector<8x128xf32>
    tpu.vector_store %arg14[%1140, %c0_386], %1139 {strides = array<i32>} : memref<64x128xf32, #tpu.memory_space<vmem>>, vector<8x128xf32>,
    %c6_i32_387 = arith.constant 6 : i32
    %c8_i32_388 = arith.constant 8 : i32
    %1142 = arith.muli %c6_i32_387, %c8_i32_388 : i32
    %1143 = tpu.assume_multiple %1142, 8 : i32
    %c0_i32_389 = arith.constant 0 : i32
    %c0_i32_390 = arith.constant 0 : i32
    %1144 = tpu.memref_slice %arg15[%c1_i32_260, %c0_i32_389, %c0_i32_390] : memref<2x64x512xf32, #tpu.memory_space<vmem>> -> memref<1x64x512xf32, #tpu.memory_space<vmem>>
    %1145 = tpu.memref_squeeze %1144 : memref<1x64x512xf32, #tpu.memory_space<vmem>> -> memref<64x512xf32, #tpu.memory_space<vmem>>
    %1146 = arith.index_cast %1143 : i32 to index
    %c0_391 = arith.constant 0 : index
    %1147 = vector.load %1145[%1146, %c0_391] : memref<64x512xf32, #tpu.memory_space<vmem>>, vector<8x512xf32>
    %1148 = arith.truncf %1139 : vector<8x128xf32> to vector<8x128xbf16>
    %c1_392 = arith.constant 1 : index
    %c0_393 = arith.constant 0 : index
    %c0_394 = arith.constant 0 : index
    %1149 = vector.load %arg4[%c1_392, %c0_393, %c0_394] : memref<2x128x512xbf16, #tpu.memory_space<vmem>>, vector<1x128x512xbf16>
    %1150 = vector.shape_cast %1149 : vector<1x128x512xbf16> to vector<128x512xbf16>
    %cst_395 = arith.constant dense<0.000000e+00> : vector<8x512xf32>
    %1151 = tpu.matmul %1148, %1150, %cst_395 {dimension_numbers = #tpu.dot_dimension_numbers<[1], [0], [0], [1], [0, 0, 1, 1], [], []>} : vector<8x128xbf16>, vector<128x512xbf16>, vector<8x512xf32> -> vector<8x512xf32>
    %1152 = arith.addf %1147, %1151 : vector<8x512xf32>
    %cst_396 = arith.constant dense<0.000000e+00> : vector<8xf32>
    %1153 = vector.multi_reduction <add>, %1152, %cst_396 [1] : vector<8x512xf32> to vector<8xf32>
    %1154 = vector.shape_cast %1153 : vector<8xf32> to vector<8x1xf32>
    %cst_397 = arith.constant 5.120000e+02 : f32
    %1155 = vector.broadcast %cst_397 : f32 to vector<8x1xf32>
    %1156 = arith.divf %1154, %1155 : vector<8x1xf32>
    %1157 = arith.mulf %1152, %1152 : vector<8x512xf32>
    %cst_398 = arith.constant dense<0.000000e+00> : vector<8xf32>
    %1158 = vector.multi_reduction <add>, %1157, %cst_398 [1] : vector<8x512xf32> to vector<8xf32>
    %1159 = vector.shape_cast %1158 : vector<8xf32> to vector<8x1xf32>
    %cst_399 = arith.constant 5.120000e+02 : f32
    %1160 = vector.broadcast %cst_399 : f32 to vector<8x1xf32>
    %1161 = arith.divf %1159, %1160 : vector<8x1xf32>
    %1162 = arith.mulf %1156, %1156 : vector<8x1xf32>
    %1163 = arith.subf %1161, %1162 : vector<8x1xf32>
    %1164 = vector.broadcast %1156 : vector<8x1xf32> to vector<8x512xf32>
    %1165 = arith.subf %1152, %1164 : vector<8x512xf32>
    %cst_400 = arith.constant 1.000000e-03 : f32
    %1166 = vector.broadcast %cst_400 : f32 to vector<8x1xf32>
    %1167 = arith.addf %1163, %1166 : vector<8x1xf32>
    %1168 = math.rsqrt %1167 : vector<8x1xf32>
    %1169 = vector.broadcast %1168 : vector<8x1xf32> to vector<8x512xf32>
    %1170 = arith.mulf %1165, %1169 : vector<8x512xf32>
    %1171 = vector.broadcast %696 : vector<1x512xf32> to vector<8x512xf32>
    %1172 = arith.mulf %1170, %1171 : vector<8x512xf32>
    %1173 = vector.broadcast %697 : vector<1x512xf32> to vector<8x512xf32>
    %1174 = arith.addf %1172, %1173 : vector<8x512xf32>
    %1175 = vector.extract_strided_slice %1174 {offsets = [0, 0], sizes = [8, 384], strides = [1, 1]} : vector<8x512xf32> to vector<8x384xf32>
    %1176 = arith.negf %1175 : vector<8x384xf32>
    %1177 = math.exp %1176 : vector<8x384xf32>
    %cst_401 = arith.constant 1.000000e+00 : f32
    %1178 = vector.broadcast %cst_401 : f32 to vector<8x384xf32>
    %1179 = arith.addf %1178, %1177 : vector<8x384xf32>
    %1180 = arith.divf %1178, %1179 : vector<8x384xf32>
    %1181 = vector.extract_strided_slice %1180 {offsets = [0, 0], sizes = [8, 128], strides = [1, 1]} : vector<8x384xf32> to vector<8x128xf32>
    %1182 = vector.extract_strided_slice %1180 {offsets = [0, 128], sizes = [8, 128], strides = [1, 1]} : vector<8x384xf32> to vector<8x128xf32>
    %1183 = vector.extract_strided_slice %1180 {offsets = [0, 256], sizes = [8, 128], strides = [1, 1]} : vector<8x384xf32> to vector<8x128xf32>
    %1184 = vector.extract_strided_slice %1174 {offsets = [0, 384], sizes = [8, 128], strides = [1, 1]} : vector<8x512xf32> to vector<8x128xf32>
    %1185 = math.tanh %1184 : vector<8x128xf32>
    %1186 = arith.mulf %1182, %1137 : vector<8x128xf32>
    %1187 = arith.mulf %1181, %1185 : vector<8x128xf32>
    %1188 = arith.addf %1186, %1187 : vector<8x128xf32>
    %cst_402 = arith.constant dense<0.000000e+00> : vector<8xf32>
    %1189 = vector.multi_reduction <add>, %1188, %cst_402 [1] : vector<8x128xf32> to vector<8xf32>
    %1190 = vector.shape_cast %1189 : vector<8xf32> to vector<8x1xf32>
    %cst_403 = arith.constant 1.280000e+02 : f32
    %1191 = vector.broadcast %cst_403 : f32 to vector<8x1xf32>
    %1192 = arith.divf %1190, %1191 : vector<8x1xf32>
    %1193 = arith.mulf %1188, %1188 : vector<8x128xf32>
    %cst_404 = arith.constant dense<0.000000e+00> : vector<8xf32>
    %1194 = vector.multi_reduction <add>, %1193, %cst_404 [1] : vector<8x128xf32> to vector<8xf32>
    %1195 = vector.shape_cast %1194 : vector<8xf32> to vector<8x1xf32>
    %cst_405 = arith.constant 1.280000e+02 : f32
    %1196 = vector.broadcast %cst_405 : f32 to vector<8x1xf32>
    %1197 = arith.divf %1195, %1196 : vector<8x1xf32>
    %1198 = arith.mulf %1192, %1192 : vector<8x1xf32>
    %1199 = arith.subf %1197, %1198 : vector<8x1xf32>
    %1200 = vector.broadcast %1192 : vector<8x1xf32> to vector<8x128xf32>
    %1201 = arith.subf %1188, %1200 : vector<8x128xf32>
    %cst_406 = arith.constant 1.000000e-03 : f32
    %1202 = vector.broadcast %cst_406 : f32 to vector<8x1xf32>
    %1203 = arith.addf %1199, %1202 : vector<8x1xf32>
    %1204 = math.rsqrt %1203 : vector<8x1xf32>
    %1205 = vector.broadcast %1204 : vector<8x1xf32> to vector<8x128xf32>
    %1206 = arith.mulf %1201, %1205 : vector<8x128xf32>
    %1207 = vector.broadcast %698 : vector<1x128xf32> to vector<8x128xf32>
    %1208 = arith.mulf %1206, %1207 : vector<8x128xf32>
    %1209 = vector.broadcast %699 : vector<1x128xf32> to vector<8x128xf32>
    %1210 = arith.addf %1208, %1209 : vector<8x128xf32>
    %1211 = math.tanh %1210 : vector<8x128xf32>
    %1212 = arith.mulf %1183, %1211 : vector<8x128xf32>
    %1213 = arith.index_cast %1143 : i32 to index
    %c0_407 = arith.constant 0 : index
    %1214 = vector.load %arg14[%1213, %c0_407] : memref<64x128xf32, #tpu.memory_space<vmem>>, vector<8x128xf32>
    tpu.vector_store %arg14[%1213, %c0_407], %1212 {strides = array<i32>} : memref<64x128xf32, #tpu.memory_space<vmem>>, vector<8x128xf32>,
    %c7_i32_408 = arith.constant 7 : i32
    %c8_i32_409 = arith.constant 8 : i32
    %1215 = arith.muli %c7_i32_408, %c8_i32_409 : i32
    %1216 = tpu.assume_multiple %1215, 8 : i32
    %c0_i32_410 = arith.constant 0 : i32
    %c0_i32_411 = arith.constant 0 : i32
    %1217 = tpu.memref_slice %arg15[%c1_i32_260, %c0_i32_410, %c0_i32_411] : memref<2x64x512xf32, #tpu.memory_space<vmem>> -> memref<1x64x512xf32, #tpu.memory_space<vmem>>
    %1218 = tpu.memref_squeeze %1217 : memref<1x64x512xf32, #tpu.memory_space<vmem>> -> memref<64x512xf32, #tpu.memory_space<vmem>>
    %1219 = arith.index_cast %1216 : i32 to index
    %c0_412 = arith.constant 0 : index
    %1220 = vector.load %1218[%1219, %c0_412] : memref<64x512xf32, #tpu.memory_space<vmem>>, vector<8x512xf32>
    %1221 = arith.truncf %1212 : vector<8x128xf32> to vector<8x128xbf16>
    %c1_413 = arith.constant 1 : index
    %c0_414 = arith.constant 0 : index
    %c0_415 = arith.constant 0 : index
    %1222 = vector.load %arg4[%c1_413, %c0_414, %c0_415] : memref<2x128x512xbf16, #tpu.memory_space<vmem>>, vector<1x128x512xbf16>
    %1223 = vector.shape_cast %1222 : vector<1x128x512xbf16> to vector<128x512xbf16>
    %cst_416 = arith.constant dense<0.000000e+00> : vector<8x512xf32>
    %1224 = tpu.matmul %1221, %1223, %cst_416 {dimension_numbers = #tpu.dot_dimension_numbers<[1], [0], [0], [1], [0, 0, 1, 1], [], []>} : vector<8x128xbf16>, vector<128x512xbf16>, vector<8x512xf32> -> vector<8x512xf32>
    %1225 = arith.addf %1220, %1224 : vector<8x512xf32>
    %cst_417 = arith.constant dense<0.000000e+00> : vector<8xf32>
    %1226 = vector.multi_reduction <add>, %1225, %cst_417 [1] : vector<8x512xf32> to vector<8xf32>
    %1227 = vector.shape_cast %1226 : vector<8xf32> to vector<8x1xf32>
    %cst_418 = arith.constant 5.120000e+02 : f32
    %1228 = vector.broadcast %cst_418 : f32 to vector<8x1xf32>
    %1229 = arith.divf %1227, %1228 : vector<8x1xf32>
    %1230 = arith.mulf %1225, %1225 : vector<8x512xf32>
    %cst_419 = arith.constant dense<0.000000e+00> : vector<8xf32>
    %1231 = vector.multi_reduction <add>, %1230, %cst_419 [1] : vector<8x512xf32> to vector<8xf32>
    %1232 = vector.shape_cast %1231 : vector<8xf32> to vector<8x1xf32>
    %cst_420 = arith.constant 5.120000e+02 : f32
    %1233 = vector.broadcast %cst_420 : f32 to vector<8x1xf32>
    %1234 = arith.divf %1232, %1233 : vector<8x1xf32>
    %1235 = arith.mulf %1229, %1229 : vector<8x1xf32>
    %1236 = arith.subf %1234, %1235 : vector<8x1xf32>
    %1237 = vector.broadcast %1229 : vector<8x1xf32> to vector<8x512xf32>
    %1238 = arith.subf %1225, %1237 : vector<8x512xf32>
    %cst_421 = arith.constant 1.000000e-03 : f32
    %1239 = vector.broadcast %cst_421 : f32 to vector<8x1xf32>
    %1240 = arith.addf %1236, %1239 : vector<8x1xf32>
    %1241 = math.rsqrt %1240 : vector<8x1xf32>
    %1242 = vector.broadcast %1241 : vector<8x1xf32> to vector<8x512xf32>
    %1243 = arith.mulf %1238, %1242 : vector<8x512xf32>
    %1244 = vector.broadcast %696 : vector<1x512xf32> to vector<8x512xf32>
    %1245 = arith.mulf %1243, %1244 : vector<8x512xf32>
    %1246 = vector.broadcast %697 : vector<1x512xf32> to vector<8x512xf32>
    %1247 = arith.addf %1245, %1246 : vector<8x512xf32>
    %1248 = vector.extract_strided_slice %1247 {offsets = [0, 0], sizes = [8, 384], strides = [1, 1]} : vector<8x512xf32> to vector<8x384xf32>
    %1249 = arith.negf %1248 : vector<8x384xf32>
    %1250 = math.exp %1249 : vector<8x384xf32>
    %cst_422 = arith.constant 1.000000e+00 : f32
    %1251 = vector.broadcast %cst_422 : f32 to vector<8x384xf32>
    %1252 = arith.addf %1251, %1250 : vector<8x384xf32>
    %1253 = arith.divf %1251, %1252 : vector<8x384xf32>
    %1254 = vector.extract_strided_slice %1253 {offsets = [0, 0], sizes = [8, 128], strides = [1, 1]} : vector<8x384xf32> to vector<8x128xf32>
    %1255 = vector.extract_strided_slice %1253 {offsets = [0, 128], sizes = [8, 128], strides = [1, 1]} : vector<8x384xf32> to vector<8x128xf32>
    %1256 = vector.extract_strided_slice %1253 {offsets = [0, 256], sizes = [8, 128], strides = [1, 1]} : vector<8x384xf32> to vector<8x128xf32>
    %1257 = vector.extract_strided_slice %1247 {offsets = [0, 384], sizes = [8, 128], strides = [1, 1]} : vector<8x512xf32> to vector<8x128xf32>
    %1258 = math.tanh %1257 : vector<8x128xf32>
    %1259 = arith.mulf %1255, %1210 : vector<8x128xf32>
    %1260 = arith.mulf %1254, %1258 : vector<8x128xf32>
    %1261 = arith.addf %1259, %1260 : vector<8x128xf32>
    %cst_423 = arith.constant dense<0.000000e+00> : vector<8xf32>
    %1262 = vector.multi_reduction <add>, %1261, %cst_423 [1] : vector<8x128xf32> to vector<8xf32>
    %1263 = vector.shape_cast %1262 : vector<8xf32> to vector<8x1xf32>
    %cst_424 = arith.constant 1.280000e+02 : f32
    %1264 = vector.broadcast %cst_424 : f32 to vector<8x1xf32>
    %1265 = arith.divf %1263, %1264 : vector<8x1xf32>
    %1266 = arith.mulf %1261, %1261 : vector<8x128xf32>
    %cst_425 = arith.constant dense<0.000000e+00> : vector<8xf32>
    %1267 = vector.multi_reduction <add>, %1266, %cst_425 [1] : vector<8x128xf32> to vector<8xf32>
    %1268 = vector.shape_cast %1267 : vector<8xf32> to vector<8x1xf32>
    %cst_426 = arith.constant 1.280000e+02 : f32
    %1269 = vector.broadcast %cst_426 : f32 to vector<8x1xf32>
    %1270 = arith.divf %1268, %1269 : vector<8x1xf32>
    %1271 = arith.mulf %1265, %1265 : vector<8x1xf32>
    %1272 = arith.subf %1270, %1271 : vector<8x1xf32>
    %1273 = vector.broadcast %1265 : vector<8x1xf32> to vector<8x128xf32>
    %1274 = arith.subf %1261, %1273 : vector<8x128xf32>
    %cst_427 = arith.constant 1.000000e-03 : f32
    %1275 = vector.broadcast %cst_427 : f32 to vector<8x1xf32>
    %1276 = arith.addf %1272, %1275 : vector<8x1xf32>
    %1277 = math.rsqrt %1276 : vector<8x1xf32>
    %1278 = vector.broadcast %1277 : vector<8x1xf32> to vector<8x128xf32>
    %1279 = arith.mulf %1274, %1278 : vector<8x128xf32>
    %1280 = vector.broadcast %698 : vector<1x128xf32> to vector<8x128xf32>
    %1281 = arith.mulf %1279, %1280 : vector<8x128xf32>
    %1282 = vector.broadcast %699 : vector<1x128xf32> to vector<8x128xf32>
    %1283 = arith.addf %1281, %1282 : vector<8x128xf32>
    %1284 = math.tanh %1283 : vector<8x128xf32>
    %1285 = arith.mulf %1256, %1284 : vector<8x128xf32>
    %1286 = arith.index_cast %1216 : i32 to index
    %c0_428 = arith.constant 0 : index
    %1287 = vector.load %arg14[%1286, %c0_428] : memref<64x128xf32, #tpu.memory_space<vmem>>, vector<8x128xf32>
    tpu.vector_store %arg14[%1286, %c0_428], %1285 {strides = array<i32>} : memref<64x128xf32, #tpu.memory_space<vmem>>, vector<8x128xf32>,
    %c8_i32_429 = arith.constant 8 : i32
    %c1_430 = arith.constant 1 : index
    %c0_431 = arith.constant 0 : index
    %c0_432 = arith.constant 0 : index
    %1288 = vector.load %arg12[%c1_430, %c0_431, %c0_432] : memref<2x8x128xf32, #tpu.memory_space<vmem>>, vector<1x8x128xf32>
    %1289 = vector.shape_cast %1288 : vector<1x8x128xf32> to vector<8x128xf32>
    %1290 = vector.shape_cast %1285 : vector<8x128xf32> to vector<1x8x128xf32>
    tpu.vector_store %arg12[%c1_430, %c0_431, %c0_432], %1290 {strides = array<i32>} : memref<2x8x128xf32, #tpu.memory_space<vmem>>, vector<1x8x128xf32>,
    %c1_433 = arith.constant 1 : index
    %c0_434 = arith.constant 0 : index
    %c0_435 = arith.constant 0 : index
    %1291 = vector.load %arg13[%c1_433, %c0_434, %c0_435] : memref<2x8x128xf32, #tpu.memory_space<vmem>>, vector<1x8x128xf32>
    %1292 = vector.shape_cast %1291 : vector<1x8x128xf32> to vector<8x128xf32>
    %1293 = vector.shape_cast %1283 : vector<8x128xf32> to vector<1x8x128xf32>
    tpu.vector_store %arg13[%c1_433, %c0_434, %c0_435], %1293 {strides = array<i32>} : memref<2x8x128xf32, #tpu.memory_space<vmem>>, vector<1x8x128xf32>,
    %c0_436 = arith.constant 0 : index
    %c0_437 = arith.constant 0 : index
    %1294 = vector.load %arg10[%c0_436, %c0_437] : memref<3x256xf32, #tpu.memory_space<vmem>>, vector<3x256xf32>
    %c0_438 = arith.constant 0 : index
    %c0_439 = arith.constant 0 : index
    %1295 = vector.load %arg14[%c0_438, %c0_439] : memref<64x128xf32, #tpu.memory_space<vmem>>, vector<64x128xf32>
    %1296 = arith.truncf %1295 : vector<64x128xf32> to vector<64x128xbf16>
    %c0_440 = arith.constant 0 : index
    %c0_441 = arith.constant 0 : index
    %1297 = vector.load %arg9[%c0_440, %c0_441] : memref<128x256xbf16, #tpu.memory_space<vmem>>, vector<128x256xbf16>
    %cst_442 = arith.constant dense<0.000000e+00> : vector<64x256xf32>
    %1298 = tpu.matmul %1296, %1297, %cst_442 {dimension_numbers = #tpu.dot_dimension_numbers<[1], [0], [0], [1], [0, 0, 1, 1], [], []>} : vector<64x128xbf16>, vector<128x256xbf16>, vector<64x256xf32> -> vector<64x256xf32>
    %1299 = vector.extract_strided_slice %1294 {offsets = [0, 0], sizes = [1, 256], strides = [1, 1]} : vector<3x256xf32> to vector<1x256xf32>
    %1300 = vector.broadcast %1299 : vector<1x256xf32> to vector<64x256xf32>
    %1301 = arith.addf %1298, %1300 : vector<64x256xf32>
    %1302 = vector.extract_strided_slice %1294 {offsets = [1, 0], sizes = [1, 256], strides = [1, 1]} : vector<3x256xf32> to vector<1x256xf32>
    %1303 = vector.extract_strided_slice %1294 {offsets = [2, 0], sizes = [1, 256], strides = [1, 1]} : vector<3x256xf32> to vector<1x256xf32>
    %cst_443 = arith.constant dense<0.000000e+00> : vector<64xf32>
    %1304 = vector.multi_reduction <add>, %1301, %cst_443 [1] : vector<64x256xf32> to vector<64xf32>
    %1305 = vector.shape_cast %1304 : vector<64xf32> to vector<64x1xf32>
    %cst_444 = arith.constant 2.560000e+02 : f32
    %1306 = vector.broadcast %cst_444 : f32 to vector<64x1xf32>
    %1307 = arith.divf %1305, %1306 : vector<64x1xf32>
    %1308 = arith.mulf %1301, %1301 : vector<64x256xf32>
    %cst_445 = arith.constant dense<0.000000e+00> : vector<64xf32>
    %1309 = vector.multi_reduction <add>, %1308, %cst_445 [1] : vector<64x256xf32> to vector<64xf32>
    %1310 = vector.shape_cast %1309 : vector<64xf32> to vector<64x1xf32>
    %cst_446 = arith.constant 2.560000e+02 : f32
    %1311 = vector.broadcast %cst_446 : f32 to vector<64x1xf32>
    %1312 = arith.divf %1310, %1311 : vector<64x1xf32>
    %1313 = arith.mulf %1307, %1307 : vector<64x1xf32>
    %1314 = arith.subf %1312, %1313 : vector<64x1xf32>
    %1315 = vector.broadcast %1307 : vector<64x1xf32> to vector<64x256xf32>
    %1316 = arith.subf %1301, %1315 : vector<64x256xf32>
    %cst_447 = arith.constant 9.99999974E-6 : f32
    %1317 = vector.broadcast %cst_447 : f32 to vector<64x1xf32>
    %1318 = arith.addf %1314, %1317 : vector<64x1xf32>
    %1319 = math.rsqrt %1318 : vector<64x1xf32>
    %1320 = vector.broadcast %1319 : vector<64x1xf32> to vector<64x256xf32>
    %1321 = arith.mulf %1316, %1320 : vector<64x256xf32>
    %1322 = vector.broadcast %1302 : vector<1x256xf32> to vector<64x256xf32>
    %1323 = arith.mulf %1321, %1322 : vector<64x256xf32>
    %1324 = vector.broadcast %1303 : vector<1x256xf32> to vector<64x256xf32>
    %1325 = arith.addf %1323, %1324 : vector<64x256xf32>
    %c0_448 = arith.constant 0 : index
    %c0_449 = arith.constant 0 : index
    %1326 = vector.load %arg11[%c0_448, %c0_449] : memref<64x256xf32, #tpu.memory_space<vmem>>, vector<64x256xf32>
    tpu.vector_store %arg11[%c0_448, %c0_449], %1325 {strides = array<i32>} : memref<64x256xf32, #tpu.memory_space<vmem>>, vector<64x256xf32>,
    return
  }
}

</mosaic_0001>

<llo_original>
// kernel: tpu_custom_call.1
$region0: #{tpu_custom_call.1}
  #allocation0 [shape = 'u32[]', space=smem, size = 0x4, offset = 0x4, fixed_abs, tag = 'smem constant byte address 0x4 - core index']
  #allocation1 [shape = 'u32[72,128]{1,0:T(1,128)}', space=vmem, size = 0x9000, scoped, tag = 'internal scratch']
  #allocation2 [shape = 'f32[64,128]{1,0:T(8,128)}', space=vmem, size = 0x8000, scoped, tag = 'scratch operand']
  #allocation3 [shape = 'f32[2,64,512]{2,1,0:T(8,128)}', space=vmem, size = 0x40000, scoped, tag = 'scratch operand']
  %s0 = inlined_call_operand.vmem [shape: s32[64,1], index: 0, kind: input, shape index: {}]
  %s1 = inlined_call_operand.vmem [shape: f32[16,128], index: 1, kind: input, shape index: {}]
  %s2 = inlined_call_operand.hbm [shape: f32[2,128], index: 2, kind: input, shape index: {}]
  %s3 = inlined_call_operand.hbm [shape: bf16[2,128,512], index: 3, kind: input, shape index: {}]
  %s4 = inlined_call_operand.hbm [shape: bf16[2,128,512], index: 4, kind: input, shape index: {}]
  %s5 = inlined_call_operand.vmem [shape: f32[2,2,512], index: 5, kind: input, shape index: {}]
  %s6 = inlined_call_operand.hbm [shape: f32[2,2,128], index: 6, kind: input, shape index: {}]
  %s7 = inlined_call_operand.vmem [shape: f32[2,8,128], index: 7, kind: input, shape index: {}]
  %s8 = inlined_call_operand.vmem [shape: f32[2,8,128], index: 8, kind: input, shape index: {}]
  %s9 = inlined_call_operand.hbm [shape: bf16[128,256], index: 9, kind: input, shape index: {}]
  %s10 = inlined_call_operand.vmem [shape: f32[3,256], index: 10, kind: input, shape index: {}]
  %s11 = inlined_call_operand.hbm [shape: f32[64,256], index: 11, kind: output, shape index: {0}]
  %s12 = inlined_call_operand.hbm [shape: f32[2,8,128], index: 12, kind: output, shape index: {1}]
  %s13 = inlined_call_operand.hbm [shape: f32[2,8,128], index: 13, kind: output, shape index: {2}]
  %14 = xla_tuple %s11, %s12, %s13
  %s15 = sld [smem:[#allocation0]]
  $region90: #{tpu_custom_call.1} parent=0
    _
  %s17 = ssub.s32 1, %s15
  %s18 = scalar_select 0, %s17, %s15
  $region1: #{tpu_custom_call.1} parent=0
    #allocation4 [shape = 'u8[1024]{0}', space=vmem, size = 0x400, scoped, tag = 'input window, operand 2, single buffered']
    #allocation5 [shape = 's32[1]{0}', space=sflag, size = 0x4, scoped, tag = 'scoped memory for tpu_custom_call.1']
    #allocation6 [shape = 's32[1]{0}', space=sflag, size = 0x4, scoped, tag = 'scoped memory for tpu_custom_call.1']
    #allocation7 [shape = 'u8[262144]{0}', space=vmem, size = 0x40000, scoped, tag = 'input window, operand 3, single buffered']
    #allocation8 [shape = 's32[1]{0}', space=sflag, size = 0x4, scoped, tag = 'scoped memory for tpu_custom_call.1']
    #allocation9 [shape = 'u8[262144]{0}', space=vmem, size = 0x40000, scoped, tag = 'input window, operand 4, single buffered']
    #allocation10 [shape = 'u8[2048]{0}', space=vmem, size = 0x800, scoped, tag = 'input window, operand 6, single buffered']
    #allocation11 [shape = 's32[1]{0}', space=sflag, size = 0x4, scoped, tag = 'scoped memory for tpu_custom_call.1']
    #allocation12 [shape = 'u8[65536]{0}', space=vmem, size = 0x10000, scoped, tag = 'input window, operand 9, single buffered']
    #allocation13 [shape = 'u8[65536]{0}', space=vmem, size = 0x10000, scoped, tag = 'output window, operand 0, single buffered']
    #allocation14 [shape = 'u8[8192]{0}', space=vmem, size = 0x2000, scoped, tag = 'output window, operand 1, single buffered']
    #allocation15 [shape = 's32[1]{0}', space=sflag, size = 0x4, scoped, tag = 'scoped memory for tpu_custom_call.1']
    #allocation16 [shape = 'u8[8192]{0}', space=vmem, size = 0x2000, scoped, tag = 'output window, operand 2, single buffered']
    %19 = vsyncpa [#allocation5], 0
    %20 = vsyncpa [#allocation8], 0
    %21 = vsyncpa [#allocation11], 0
    %22 = vsyncpa [#allocation6], 0
    %23 = vsyncpa [#allocation15], 0
    // Predicated region
    $region2: #{tpu_custom_call.1} parent=1 // pred_check
      _
    $region3: #{tpu_custom_call.1} parent=1 // pred_check_branch
      %25 = sbr.rel (0) target = $region5
    $region4: #{tpu_custom_call.1} parent=1 // pred_region
      _
    $region5: #{tpu_custom_call.1} parent=1 // pred_fallthru
      _
    // Predicated region
    $region6: #{tpu_custom_call.1} parent=1 // pred_check
      _
    $region7: #{tpu_custom_call.1} parent=1 // pred_check_branch
      %27 = sbr.rel (0) target = $region9
    $region8: #{tpu_custom_call.1} parent=1 // pred_region
      _
    $region9: #{tpu_custom_call.1} parent=1 // pred_fallthru
      _
    // Predicated region
    $region10: #{tpu_custom_call.1} parent=1 // pred_check
      _
    $region11: #{tpu_custom_call.1} parent=1 // pred_check_branch
      %29 = sbr.rel (0) target = $region13
    $region12: #{tpu_custom_call.1} parent=1 // pred_region
      %31 = vsyncadd [#allocation5], 0
      %s33 = sshll.u32 %s2, 4
      %s34 = int_to_ptr.hbm [resolvable:$true] %s33
      %s35 = sshll.u32 [#allocation4], 4
      %s36 = int_to_ptr.vmem [resolvable:$true] %s35
      %38 = dma.hbm_to_vmem [thread:$0]  %s34, 32, %s36, [#allocation5]
    $region13: #{tpu_custom_call.1} parent=1 // pred_fallthru
      _
    // Predicated region
    $region14: #{tpu_custom_call.1} parent=1 // pred_check
      _
    $region15: #{tpu_custom_call.1} parent=1 // pred_check_branch
      %40 = sbr.rel (0) target = $region17
    $region16: #{tpu_custom_call.1} parent=1 // pred_region
      %42 = vsyncadd [#allocation8], 0
      %s43 = sshll.u32 %s3, 4
      %s44 = int_to_ptr.hbm [resolvable:$true] %s43
      %s45 = sshll.u32 [#allocation7], 4
      %s46 = int_to_ptr.vmem [resolvable:$true] %s45
      %51 = dma.hbm_to_vmem [thread:$0]  %s44, 8192, %s46, [#allocation8], 256, 256, 16
    $region17: #{tpu_custom_call.1} parent=1 // pred_fallthru
      _
    // Predicated region
    $region18: #{tpu_custom_call.1} parent=1 // pred_check
      _
    $region19: #{tpu_custom_call.1} parent=1 // pred_check_branch
      %53 = sbr.rel (0) target = $region21
    $region20: #{tpu_custom_call.1} parent=1 // pred_region
      %55 = vsyncadd [#allocation8], 0
      %s56 = sshll.u32 %s4, 4
      %s57 = int_to_ptr.hbm [resolvable:$true] %s56
      %s58 = sshll.u32 [#allocation9], 4
      %s59 = int_to_ptr.vmem [resolvable:$true] %s58
      %64 = dma.hbm_to_vmem [thread:$0]  %s57, 8192, %s59, [#allocation8], 256, 256, 16
    $region21: #{tpu_custom_call.1} parent=1 // pred_fallthru
      _
    // Predicated region
    $region22: #{tpu_custom_call.1} parent=1 // pred_check
      _
    $region23: #{tpu_custom_call.1} parent=1 // pred_check_branch
      %66 = sbr.rel (0) target = $region25
    $region24: #{tpu_custom_call.1} parent=1 // pred_region
      _
    $region25: #{tpu_custom_call.1} parent=1 // pred_fallthru
      _
    // Predicated region
    $region26: #{tpu_custom_call.1} parent=1 // pred_check
      _
    $region27: #{tpu_custom_call.1} parent=1 // pred_check_branch
      %68 = sbr.rel (0) target = $region29
    $region28: #{tpu_custom_call.1} parent=1 // pred_region
      %70 = vsyncadd [#allocation11], 0
      %s71 = sshll.u32 %s6, 4
      %s72 = int_to_ptr.hbm [resolvable:$true] %s71
      %s73 = sshll.u32 [#allocation10], 4
      %s74 = int_to_ptr.vmem [resolvable:$true] %s73
      %79 = dma.hbm_to_vmem [thread:$0]  %s72, 64, %s74, [#allocation11], 32, 32, 2
    $region29: #{tpu_custom_call.1} parent=1 // pred_fallthru
      _
    // Predicated region
    $region30: #{tpu_custom_call.1} parent=1 // pred_check
      _
    $region31: #{tpu_custom_call.1} parent=1 // pred_check_branch
      %81 = sbr.rel (0) target = $region33
    $region32: #{tpu_custom_call.1} parent=1 // pred_region
      _
    $region33: #{tpu_custom_call.1} parent=1 // pred_fallthru
      _
    // Predicated region
    $region34: #{tpu_custom_call.1} parent=1 // pred_check
      _
    $region35: #{tpu_custom_call.1} parent=1 // pred_check_branch
      %83 = sbr.rel (0) target = $region37
    $region36: #{tpu_custom_call.1} parent=1 // pred_region
      _
    $region37: #{tpu_custom_call.1} parent=1 // pred_fallthru
      _
    // Predicated region
    $region38: #{tpu_custom_call.1} parent=1 // pred_check
      _
    $region39: #{tpu_custom_call.1} parent=1 // pred_check_branch
      %85 = sbr.rel (0) target = $region41
    $region40: #{tpu_custom_call.1} parent=1 // pred_region
      %87 = vsyncadd [#allocation11], 0
      %s88 = sshll.u32 %s9, 4
      %s89 = int_to_ptr.hbm [resolvable:$true] %s88
      %s90 = sshll.u32 [#allocation12], 4
      %s91 = int_to_ptr.vmem [resolvable:$true] %s90
      %96 = dma.hbm_to_vmem [thread:$0]  %s89, 2048, %s91, [#allocation11], 128, 128, 8
    $region41: #{tpu_custom_call.1} parent=1 // pred_fallthru
      _
    // Predicated region
    $region42: #{tpu_custom_call.1} parent=1 // pred_check
      _
    $region43: #{tpu_custom_call.1} parent=1 // pred_check_branch
      %98 = sbr.rel (0) target = $region45
    $region44: #{tpu_custom_call.1} parent=1 // pred_region
      _
    $region45: #{tpu_custom_call.1} parent=1 // pred_fallthru
      _
    // Predicated region
    $region46: #{tpu_custom_call.1} parent=1 // pred_check
      _
    $region47: #{tpu_custom_call.1} parent=1 // pred_check_branch
      %100 = sbr.rel (0) target = $region49
    $region48: #{tpu_custom_call.1} parent=1 // pred_region
      %102 = dma.done [#allocation5], 32
    $region49: #{tpu_custom_call.1} parent=1 // pred_fallthru
      _
    // Predicated region
    $region50: #{tpu_custom_call.1} parent=1 // pred_check
      _
    $region51: #{tpu_custom_call.1} parent=1 // pred_check_branch
      %104 = sbr.rel (0) target = $region53
    $region52: #{tpu_custom_call.1} parent=1 // pred_region
      %106 = dma.done [#allocation8], 8192
    $region53: #{tpu_custom_call.1} parent=1 // pred_fallthru
      _
    // Predicated region
    $region54: #{tpu_custom_call.1} parent=1 // pred_check
      _
    $region55: #{tpu_custom_call.1} parent=1 // pred_check_branch
      %108 = sbr.rel (0) target = $region57
    $region56: #{tpu_custom_call.1} parent=1 // pred_region
      %110 = dma.done [#allocation8], 8192
    $region57: #{tpu_custom_call.1} parent=1 // pred_fallthru
      _
    // Predicated region
    $region58: #{tpu_custom_call.1} parent=1 // pred_check
      _
    $region59: #{tpu_custom_call.1} parent=1 // pred_check_branch
      %112 = sbr.rel (0) target = $region61
    $region60: #{tpu_custom_call.1} parent=1 // pred_region
      %114 = dma.done [#allocation11], 64
    $region61: #{tpu_custom_call.1} parent=1 // pred_fallthru
      _
    // Predicated region
    $region62: #{tpu_custom_call.1} parent=1 // pred_check
      _
    $region63: #{tpu_custom_call.1} parent=1 // pred_check_branch
      %116 = sbr.rel (0) target = $region65
    $region64: #{tpu_custom_call.1} parent=1 // pred_region
      %118 = dma.done [#allocation11], 2048
    $region65: #{tpu_custom_call.1} parent=1 // pred_fallthru
      _
    %v119 = vld [vmem:[%s0] sm:$0xff]
    %v120 = vld [vmem:[%s0 + $0x8] sm:$0xff]
    %v121 = vld [vmem:[%s0 + $0x10] sm:$0xff]
    %v122 = vld [vmem:[%s0 + $0x18] sm:$0xff]
    %v123 = vld [vmem:[%s0 + $0x20] sm:$0xff]
    %v124 = vld [vmem:[%s0 + $0x28] sm:$0xff]
    %v125 = vld [vmem:[%s0 + $0x30] sm:$0xff]
    %v126 = vld [vmem:[%s0 + $0x38] sm:$0xff]
    %v127 = vlaneseq
    %v128 = vand.u32 %v127, 127
    %129 = vset.pattern.permute.xlu0 0
    %130 = vperm.xlu0 %129, %v119
    %v131 = vpop.permute.xlu0 %130
    %132 = vset.pattern.permute.xlu0 0
    %133 = vperm.xlu0 %132, %v120
    %v134 = vpop.permute.xlu0 %133
    %135 = vset.pattern.permute.xlu0 0
    %136 = vperm.xlu0 %135, %v121
    %v137 = vpop.permute.xlu0 %136
    %138 = vset.pattern.permute.xlu0 0
    %139 = vperm.xlu0 %138, %v122
    %v140 = vpop.permute.xlu0 %139
    %141 = vset.pattern.permute.xlu0 0
    %142 = vperm.xlu0 %141, %v123
    %v143 = vpop.permute.xlu0 %142
    %144 = vset.pattern.permute.xlu0 0
    %145 = vperm.xlu0 %144, %v124
    %v146 = vpop.permute.xlu0 %145
    %147 = vset.pattern.permute.xlu0 0
    %148 = vperm.xlu0 %147, %v125
    %v149 = vpop.permute.xlu0 %148
    %150 = vset.pattern.permute.xlu0 0
    %151 = vperm.xlu0 %150, %v126
    %v152 = vpop.permute.xlu0 %151
    %vm153 = vcmp.eq.s32.totalorder %v128, %v131
    %vm154 = vcmp.eq.s32.totalorder %v128, %v134
    %vm155 = vcmp.eq.s32.totalorder %v128, %v137
    %vm156 = vcmp.eq.s32.totalorder %v128, %v140
    %vm157 = vcmp.eq.s32.totalorder %v128, %v143
    %vm158 = vcmp.eq.s32.totalorder %v128, %v146
    %vm159 = vcmp.eq.s32.totalorder %v128, %v149
    %vm160 = vcmp.eq.s32.totalorder %v128, %v152
    %v161 = vsel %vm153, 1, 0
    %v162 = vsel %vm154, 1, 0
    %v163 = vsel %vm155, 1, 0
    %v164 = vsel %vm156, 1, 0
    %v165 = vsel %vm157, 1, 0
    %v166 = vsel %vm158, 1, 0
    %v167 = vsel %vm159, 1, 0
    %v168 = vsel %vm160, 1, 0
    %v169 = vcvt.s32.f32 %v161
    %v170 = vcvt.s32.f32 %v162
    %v171 = vcvt.s32.f32 %v163
    %v172 = vcvt.s32.f32 %v164
    %v173 = vcvt.s32.f32 %v165
    %v174 = vcvt.s32.f32 %v166
    %v175 = vcvt.s32.f32 %v167
    %v176 = vcvt.s32.f32 %v168
    %v177 = vld [vmem:[%s1] sm:$0xff]
    %v178 = vld [vmem:[%s1 + $0x8] sm:$0xff]
    %vm179 = vcmask 130048
    %v181 = vsel %vm179, %v169, 0
    %v184 = vsel %vm179, %v170, 0
    %v187 = vsel %vm179, %v171, 0
    %v190 = vsel %vm179, %v172, 0
    %v193 = vsel %vm179, %v173, 0
    %v196 = vsel %vm179, %v174, 0
    %v199 = vsel %vm179, %v175, 0
    %v202 = vsel %vm179, %v176, 0
    %204 = vmatpush.msra.mxu0 0.0
    %205 = vmatpush.msra.mxu0 0.0
    %206 = vmatpush.msra.mxu0 0.0
    %207 = vmatpush.msra.mxu0 0.0
    %208 = vmatpush.msra.mxu0 0.0
    %209 = vmatpush.msra.mxu0 0.0
    %210 = vmatpush.msra.mxu0 0.0
    %211 = vmatpush.msra.mxu0 0.0
    %212 = vmatpush.msra.mxu0 0.0
    %213 = vmatpush.msra.mxu0 0.0
    %214 = vmatpush.msra.mxu0 0.0
    %215 = vmatpush.msra.mxu0 0.0
    %216 = vmatpush.msra.mxu0 0.0
    %217 = vmatpush.msra.mxu0 0.0
    %218 = vmatpush.msra.mxu0 %v178
    %219 = vmatpush.msra.mxu0 %v177
    %220 = vmatmul.f32.gmra.mxu0 %v181
    %v221 = vpop.f32.mrf.mxu0
    %v222 = vadd.f32 0.0, %v221
    %223 = vmatmul.f32.gmra.mxu0 %v184
    %v224 = vpop.f32.mrf.mxu0
    %v225 = vadd.f32 0.0, %v224
    %226 = vmatmul.f32.gmra.mxu0 %v187
    %v227 = vpop.f32.mrf.mxu0
    %v228 = vadd.f32 0.0, %v227
    %229 = vmatmul.f32.gmra.mxu0 %v190
    %v230 = vpop.f32.mrf.mxu0
    %v231 = vadd.f32 0.0, %v230
    %232 = vmatmul.f32.gmra.mxu0 %v193
    %v233 = vpop.f32.mrf.mxu0
    %v234 = vadd.f32 0.0, %v233
    %235 = vmatmul.f32.gmra.mxu0 %v196
    %v236 = vpop.f32.mrf.mxu0
    %v237 = vadd.f32 0.0, %v236
    %238 = vmatmul.f32.gmra.mxu0 %v199
    %v239 = vpop.f32.mrf.mxu0
    %v240 = vadd.f32 0.0, %v239
    %241 = vmatmul.f32.gmra.mxu0 %v202
    %v242 = vpop.f32.mrf.mxu0
    %v243 = vadd.f32 0.0, %v242
    %244 = vdwg.mxu0
    %v245 = vld [vmem:[#allocation4] sm:$0x3]
    %246 = vadd.xlane.f32.xlu0 %v222
    %v247 = vpop.xlane.xlu0 %246
    %248 = vadd.xlane.f32.xlu0 %v225
    %v249 = vpop.xlane.xlu0 %248
    %250 = vadd.xlane.f32.xlu0 %v228
    %v251 = vpop.xlane.xlu0 %250
    %252 = vadd.xlane.f32.xlu0 %v231
    %v253 = vpop.xlane.xlu0 %252
    %254 = vadd.xlane.f32.xlu0 %v234
    %v255 = vpop.xlane.xlu0 %254
    %256 = vadd.xlane.f32.xlu0 %v237
    %v257 = vpop.xlane.xlu0 %256
    %258 = vadd.xlane.f32.xlu0 %v240
    %v259 = vpop.xlane.xlu0 %258
    %260 = vadd.xlane.f32.xlu0 %v243
    %v261 = vpop.xlane.xlu0 %260
    %v262 = vrcp.pop 128.0
    %v263 = vmul.f32 128.0, %v262
    %v264 = vsub.f32 1.0, %v263
    %v265 = vmul.f32 %v262, %v264
    %v266 = vadd.f32 %v262, %v265
    %vm267 = vweird.f32 %v262
    %v268 = vsel %vm267, %v262, %v266
    %v269 = vmul.f32 %v247, %v268
    %v270 = vmul.f32 %v249, %v268
    %v271 = vmul.f32 %v251, %v268
    %v272 = vmul.f32 %v253, %v268
    %v273 = vmul.f32 %v255, %v268
    %v274 = vmul.f32 %v257, %v268
    %v275 = vmul.f32 %v259, %v268
    %v276 = vmul.f32 %v261, %v268
    %v277 = vmul.f32 %v222, %v222
    %v278 = vmul.f32 %v225, %v225
    %v279 = vmul.f32 %v228, %v228
    %v280 = vmul.f32 %v231, %v231
    %v281 = vmul.f32 %v234, %v234
    %v282 = vmul.f32 %v237, %v237
    %v283 = vmul.f32 %v240, %v240
    %v284 = vmul.f32 %v243, %v243
    %285 = vadd.xlane.f32.xlu0 %v277
    %v286 = vpop.xlane.xlu0 %285
    %287 = vadd.xlane.f32.xlu0 %v278
    %v288 = vpop.xlane.xlu0 %287
    %289 = vadd.xlane.f32.xlu0 %v279
    %v290 = vpop.xlane.xlu0 %289
    %291 = vadd.xlane.f32.xlu0 %v280
    %v292 = vpop.xlane.xlu0 %291
    %293 = vadd.xlane.f32.xlu0 %v281
    %v294 = vpop.xlane.xlu0 %293
    %295 = vadd.xlane.f32.xlu0 %v282
    %v296 = vpop.xlane.xlu0 %295
    %297 = vadd.xlane.f32.xlu0 %v283
    %v298 = vpop.xlane.xlu0 %297
    %299 = vadd.xlane.f32.xlu0 %v284
    %v300 = vpop.xlane.xlu0 %299
    %v301 = vmul.f32 %v286, %v268
    %v302 = vmul.f32 %v288, %v268
    %v303 = vmul.f32 %v290, %v268
    %v304 = vmul.f32 %v292, %v268
    %v305 = vmul.f32 %v294, %v268
    %v306 = vmul.f32 %v296, %v268
    %v307 = vmul.f32 %v298, %v268
    %v308 = vmul.f32 %v300, %v268
    %v309 = vmul.f32 %v269, %v269
    %v310 = vmul.f32 %v270, %v270
    %v311 = vmul.f32 %v271, %v271
    %v312 = vmul.f32 %v272, %v272
    %v313 = vmul.f32 %v273, %v273
    %v314 = vmul.f32 %v274, %v274
    %v315 = vmul.f32 %v275, %v275
    %v316 = vmul.f32 %v276, %v276
    %v317 = vsub.f32 %v301, %v309
    %v318 = vsub.f32 %v302, %v310
    %v319 = vsub.f32 %v303, %v311
    %v320 = vsub.f32 %v304, %v312
    %v321 = vsub.f32 %v305, %v313
    %v322 = vsub.f32 %v306, %v314
    %v323 = vsub.f32 %v307, %v315
    %v324 = vsub.f32 %v308, %v316
    %v325 = vsub.f32 %v222, %v269
    %v326 = vsub.f32 %v225, %v270
    %v327 = vsub.f32 %v228, %v271
    %v328 = vsub.f32 %v231, %v272
    %v329 = vsub.f32 %v234, %v273
    %v330 = vsub.f32 %v237, %v274
    %v331 = vsub.f32 %v240, %v275
    %v332 = vsub.f32 %v243, %v276
    %v333 = vadd.f32 %v317, 1e-05
    %v334 = vadd.f32 %v318, 1e-05
    %v335 = vadd.f32 %v319, 1e-05
    %v336 = vadd.f32 %v320, 1e-05
    %v337 = vadd.f32 %v321, 1e-05
    %v338 = vadd.f32 %v322, 1e-05
    %v339 = vadd.f32 %v323, 1e-05
    %v340 = vadd.f32 %v324, 1e-05
    %v341 = vrsqrt.pop %v333
    %v342 = vmul.f32 %v341, %v333
    %v343 = vmul.f32 %v342, %v341
    %v344 = vmul.f32 0.5, %v343
    %v345 = vsub.f32 1.5, %v344
    %v346 = vmul.f32 %v341, %v345
    %vm347 = vweird.f32 %v333
    %vm348 = vweird.f32 %v341
    %vm349 = vmor %vm347, %vm348
    %v350 = vsel %vm349, %v341, %v346
    %v351 = vrsqrt.pop %v334
    %v352 = vmul.f32 %v351, %v334
    %v353 = vmul.f32 %v352, %v351
    %v354 = vmul.f32 0.5, %v353
    %v355 = vsub.f32 1.5, %v354
    %v356 = vmul.f32 %v351, %v355
    %vm357 = vweird.f32 %v334
    %vm358 = vweird.f32 %v351
    %vm359 = vmor %vm357, %vm358
    %v360 = vsel %vm359, %v351, %v356
    %v361 = vrsqrt.pop %v335
    %v362 = vmul.f32 %v361, %v335
    %v363 = vmul.f32 %v362, %v361
    %v364 = vmul.f32 0.5, %v363
    %v365 = vsub.f32 1.5, %v364
    %v366 = vmul.f32 %v361, %v365
    %vm367 = vweird.f32 %v335
    %vm368 = vweird.f32 %v361
    %vm369 = vmor %vm367, %vm368
    %v370 = vsel %vm369, %v361, %v366
    %v371 = vrsqrt.pop %v336
    %v372 = vmul.f32 %v371, %v336
    %v373 = vmul.f32 %v372, %v371
    %v374 = vmul.f32 0.5, %v373
    %v375 = vsub.f32 1.5, %v374
    %v376 = vmul.f32 %v371, %v375
    %vm377 = vweird.f32 %v336
    %vm378 = vweird.f32 %v371
    %vm379 = vmor %vm377, %vm378
    %v380 = vsel %vm379, %v371, %v376
    %v381 = vrsqrt.pop %v337
    %v382 = vmul.f32 %v381, %v337
    %v383 = vmul.f32 %v382, %v381
    %v384 = vmul.f32 0.5, %v383
    %v385 = vsub.f32 1.5, %v384
    %v386 = vmul.f32 %v381, %v385
    %vm387 = vweird.f32 %v337
    %vm388 = vweird.f32 %v381
    %vm389 = vmor %vm387, %vm388
    %v390 = vsel %vm389, %v381, %v386
    %v391 = vrsqrt.pop %v338
    %v392 = vmul.f32 %v391, %v338
    %v393 = vmul.f32 %v392, %v391
    %v394 = vmul.f32 0.5, %v393
    %v395 = vsub.f32 1.5, %v394
    %v396 = vmul.f32 %v391, %v395
    %vm397 = vweird.f32 %v338
    %vm398 = vweird.f32 %v391
    %vm399 = vmor %vm397, %vm398
    %v400 = vsel %vm399, %v391, %v396
    %v401 = vrsqrt.pop %v339
    %v402 = vmul.f32 %v401, %v339
    %v403 = vmul.f32 %v402, %v401
    %v404 = vmul.f32 0.5, %v403
    %v405 = vsub.f32 1.5, %v404
    %v406 = vmul.f32 %v401, %v405
    %vm407 = vweird.f32 %v339
    %vm408 = vweird.f32 %v401
    %vm409 = vmor %vm407, %vm408
    %v410 = vsel %vm409, %v401, %v406
    %v411 = vrsqrt.pop %v340
    %v412 = vmul.f32 %v411, %v340
    %v413 = vmul.f32 %v412, %v411
    %v414 = vmul.f32 0.5, %v413
    %v415 = vsub.f32 1.5, %v414
    %v416 = vmul.f32 %v411, %v415
    %vm417 = vweird.f32 %v340
    %vm418 = vweird.f32 %v411
    %vm419 = vmor %vm417, %vm418
    %v420 = vsel %vm419, %v411, %v416
    %v421 = vmul.f32 %v325, %v350
    %v422 = vmul.f32 %v326, %v360
    %v423 = vmul.f32 %v327, %v370
    %v424 = vmul.f32 %v328, %v380
    %v425 = vmul.f32 %v329, %v390
    %v426 = vmul.f32 %v330, %v400
    %v427 = vmul.f32 %v331, %v410
    %v428 = vmul.f32 %v332, %v420
    %v429 = vperm.slane %v245, 0
    %v430 = vmul.f32 %v421, %v429
    %v431 = vmul.f32 %v422, %v429
    %v432 = vmul.f32 %v423, %v429
    %v433 = vmul.f32 %v424, %v429
    %v434 = vmul.f32 %v425, %v429
    %v435 = vmul.f32 %v426, %v429
    %v436 = vmul.f32 %v427, %v429
    %v437 = vmul.f32 %v428, %v429
    %v438 = vperm.slane %v245, 1
    %v439 = vadd.f32 %v430, %v438
    %v440 = vadd.f32 %v431, %v438
    %v441 = vadd.f32 %v432, %v438
    %v442 = vadd.f32 %v433, %v438
    %v443 = vadd.f32 %v434, %v438
    %v444 = vadd.f32 %v435, %v438
    %v445 = vadd.f32 %v436, %v438
    %v446 = vadd.f32 %v437, %v438
    %447 = vst [vmem:[#allocation2] sm:$0xff] %v439
    %448 = vst [vmem:[#allocation2 + $0x8] sm:$0xff] %v440
    %449 = vst [vmem:[#allocation2 + $0x10] sm:$0xff] %v441
    %450 = vst [vmem:[#allocation2 + $0x18] sm:$0xff] %v442
    %451 = vst [vmem:[#allocation2 + $0x20] sm:$0xff] %v443
    %452 = vst [vmem:[#allocation2 + $0x28] sm:$0xff] %v444
    %453 = vst [vmem:[#allocation2 + $0x30] sm:$0xff] %v445
    %454 = vst [vmem:[#allocation2 + $0x38] sm:$0xff] %v446
    %v455 = vld [vmem:[#allocation2] sm:$0xff]
    %v456 = vld [vmem:[#allocation2 + $0x8] sm:$0xff]
    %v457 = vld [vmem:[#allocation2 + $0x10] sm:$0xff]
    %v458 = vld [vmem:[#allocation2 + $0x18] sm:$0xff]
    %v459 = vld [vmem:[#allocation2 + $0x20] sm:$0xff]
    %v460 = vld [vmem:[#allocation2 + $0x28] sm:$0xff]
    %v461 = vld [vmem:[#allocation2 + $0x30] sm:$0xff]
    %v462 = vld [vmem:[#allocation2 + $0x38] sm:$0xff]
    %v463 = vpack.c.bf16 %v456, %v455
    %v464 = vpack.c.bf16 %v458, %v457
    %v465 = vpack.c.bf16 %v460, %v459
    %v466 = vpack.c.bf16 %v462, %v461
    %v467 = vld [vmem:[#allocation7] sm:$0xff]
    %v468 = vld [vmem:[#allocation7 + $0x8] sm:$0xff]
    %v469 = vld [vmem:[#allocation7 + $0x10] sm:$0xff]
    %v470 = vld [vmem:[#allocation7 + $0x18] sm:$0xff]
    %v471 = vld [vmem:[#allocation7 + $0x20] sm:$0xff]
    %v472 = vld [vmem:[#allocation7 + $0x28] sm:$0xff]
    %v473 = vld [vmem:[#allocation7 + $0x30] sm:$0xff]
    %v474 = vld [vmem:[#allocation7 + $0x38] sm:$0xff]
    %v475 = vld [vmem:[#allocation7 + $0x40] sm:$0xff]
    %v476 = vld [vmem:[#allocation7 + $0x48] sm:$0xff]
    %v477 = vld [vmem:[#allocation7 + $0x50] sm:$0xff]
    %v478 = vld [vmem:[#allocation7 + $0x58] sm:$0xff]
    %v479 = vld [vmem:[#allocation7 + $0x60] sm:$0xff]
    %v480 = vld [vmem:[#allocation7 + $0x68] sm:$0xff]
    %v481 = vld [vmem:[#allocation7 + $0x70] sm:$0xff]
    %v482 = vld [vmem:[#allocation7 + $0x78] sm:$0xff]
    %v483 = vld [vmem:[#allocation7 + $0x80] sm:$0xff]
    %v484 = vld [vmem:[#allocation7 + $0x88] sm:$0xff]
    %v485 = vld [vmem:[#allocation7 + $0x90] sm:$0xff]
    %v486 = vld [vmem:[#allocation7 + $0x98] sm:$0xff]
    %v487 = vld [vmem:[#allocation7 + $0xa0] sm:$0xff]
    %v488 = vld [vmem:[#allocation7 + $0xa8] sm:$0xff]
    %v489 = vld [vmem:[#allocation7 + $0xb0] sm:$0xff]
    %v490 = vld [vmem:[#allocation7 + $0xb8] sm:$0xff]
    %v491 = vld [vmem:[#allocation7 + $0xc0] sm:$0xff]
    %v492 = vld [vmem:[#allocation7 + $0xc8] sm:$0xff]
    %v493 = vld [vmem:[#allocation7 + $0xd0] sm:$0xff]
    %v494 = vld [vmem:[#allocation7 + $0xd8] sm:$0xff]
    %v495 = vld [vmem:[#allocation7 + $0xe0] sm:$0xff]
    %v496 = vld [vmem:[#allocation7 + $0xe8] sm:$0xff]
    %v497 = vld [vmem:[#allocation7 + $0xf0] sm:$0xff]
    %v498 = vld [vmem:[#allocation7 + $0xf8] sm:$0xff]
    %v531 = vunpack.c.l.b16 %v467
    %v532 = vunpack.c.h.b16 %v467
    %v533 = vunpack.c.l.b16 %v468
    %v534 = vunpack.c.h.b16 %v468
    %v535 = vunpack.c.l.b16 %v469
    %v536 = vunpack.c.h.b16 %v469
    %v537 = vunpack.c.l.b16 %v470
    %v538 = vunpack.c.h.b16 %v470
    %v539 = vunpack.c.l.b16 %v471
    %v540 = vunpack.c.h.b16 %v471
    %v541 = vunpack.c.l.b16 %v472
    %v542 = vunpack.c.h.b16 %v472
    %v543 = vunpack.c.l.b16 %v473
    %v544 = vunpack.c.h.b16 %v473
    %v545 = vunpack.c.l.b16 %v474
    %v546 = vunpack.c.h.b16 %v474
    %v547 = vunpack.c.l.b16 %v475
    %v548 = vunpack.c.h.b16 %v475
    %v549 = vunpack.c.l.b16 %v476
    %v550 = vunpack.c.h.b16 %v476
    %v551 = vunpack.c.l.b16 %v477
    %v552 = vunpack.c.h.b16 %v477
    %v553 = vunpack.c.l.b16 %v478
    %v554 = vunpack.c.h.b16 %v478
    %v555 = vunpack.c.l.b16 %v479
    %v556 = vunpack.c.h.b16 %v479
    %v557 = vunpack.c.l.b16 %v480
    %v558 = vunpack.c.h.b16 %v480
    %v559 = vunpack.c.l.b16 %v481
    %v560 = vunpack.c.h.b16 %v481
    %v561 = vunpack.c.l.b16 %v482
    %v562 = vunpack.c.h.b16 %v482
    %v563 = vunpack.c.l.b16 %v483
    %v564 = vunpack.c.h.b16 %v483
    %v565 = vunpack.c.l.b16 %v484
    %v566 = vunpack.c.h.b16 %v484
    %v567 = vunpack.c.l.b16 %v485
    %v568 = vunpack.c.h.b16 %v485
    %v569 = vunpack.c.l.b16 %v486
    %v570 = vunpack.c.h.b16 %v486
    %v571 = vunpack.c.l.b16 %v487
    %v572 = vunpack.c.h.b16 %v487
    %v573 = vunpack.c.l.b16 %v488
    %v574 = vunpack.c.h.b16 %v488
    %v575 = vunpack.c.l.b16 %v489
    %v576 = vunpack.c.h.b16 %v489
    %v577 = vunpack.c.l.b16 %v490
    %v578 = vunpack.c.h.b16 %v490
    %v579 = vunpack.c.l.b16 %v491
    %v580 = vunpack.c.h.b16 %v491
    %v581 = vunpack.c.l.b16 %v492
    %v582 = vunpack.c.h.b16 %v492
    %v583 = vunpack.c.l.b16 %v493
    %v584 = vunpack.c.h.b16 %v493
    %v585 = vunpack.c.l.b16 %v494
    %v586 = vunpack.c.h.b16 %v494
    %v587 = vunpack.c.l.b16 %v495
    %v588 = vunpack.c.h.b16 %v495
    %v589 = vunpack.c.l.b16 %v496
    %v590 = vunpack.c.h.b16 %v496
    %v591 = vunpack.c.l.b16 %v497
    %v592 = vunpack.c.h.b16 %v497
    %v593 = vunpack.c.l.b16 %v498
    %v594 = vunpack.c.h.b16 %v498
    %v595 = vpack.c.b16 %v535, %v531
    %v596 = vpack.c.b16 %v536, %v532
    %v597 = vpack.c.b16 %v537, %v533
    %v598 = vpack.c.b16 %v538, %v534
    %v599 = vpack.c.b16 %v543, %v539
    %v600 = vpack.c.b16 %v544, %v540
    %v601 = vpack.c.b16 %v545, %v541
    %v602 = vpack.c.b16 %v546, %v542
    %v603 = vpack.c.b16 %v551, %v547
    %v604 = vpack.c.b16 %v552, %v548
    %v605 = vpack.c.b16 %v553, %v549
    %v606 = vpack.c.b16 %v554, %v550
    %v607 = vpack.c.b16 %v559, %v555
    %v608 = vpack.c.b16 %v560, %v556
    %v609 = vpack.c.b16 %v561, %v557
    %v610 = vpack.c.b16 %v562, %v558
    %v611 = vpack.c.b16 %v567, %v563
    %v612 = vpack.c.b16 %v568, %v564
    %v613 = vpack.c.b16 %v569, %v565
    %v614 = vpack.c.b16 %v570, %v566
    %v615 = vpack.c.b16 %v575, %v571
    %v616 = vpack.c.b16 %v576, %v572
    %v617 = vpack.c.b16 %v577, %v573
    %v618 = vpack.c.b16 %v578, %v574
    %v619 = vpack.c.b16 %v583, %v579
    %v620 = vpack.c.b16 %v584, %v580
    %v621 = vpack.c.b16 %v585, %v581
    %v622 = vpack.c.b16 %v586, %v582
    %v623 = vpack.c.b16 %v591, %v587
    %v624 = vpack.c.b16 %v592, %v588
    %v625 = vpack.c.b16 %v593, %v589
    %v626 = vpack.c.b16 %v594, %v590
    %659 = vmatpush.bf16.msra.mxu0 %v623
    %660 = vmatpush.bf16.msra.mxu0 %v619
    %661 = vmatpush.bf16.msra.mxu0 %v615
    %662 = vmatpush.bf16.msra.mxu0 %v611
    %663 = vmatpush.bf16.msra.mxu0 %v607
    %664 = vmatpush.bf16.msra.mxu0 %v603
    %665 = vmatpush.bf16.msra.mxu0 %v599
    %666 = vmatpush.bf16.msra.mxu0 %v595
    %667 = vmatmul.bf16.gmra.mxu0 %v463
    %v668 = vpop.f32.mrf.mxu0
    %v669 = vadd.f32 0.0, %v668
    %v670 = vpop.f32.mrf.mxu0
    %v671 = vadd.f32 0.0, %v670
    %672 = vmatmul.bf16.gmra.mxu0 %v464
    %v673 = vpop.f32.mrf.mxu0
    %v674 = vadd.f32 0.0, %v673
    %v675 = vpop.f32.mrf.mxu0
    %v676 = vadd.f32 0.0, %v675
    %677 = vmatmul.bf16.gmra.mxu0 %v465
    %v678 = vpop.f32.mrf.mxu0
    %v679 = vadd.f32 0.0, %v678
    %v680 = vpop.f32.mrf.mxu0
    %v681 = vadd.f32 0.0, %v680
    %682 = vmatmul.bf16.gmra.mxu0 %v466
    %v683 = vpop.f32.mrf.mxu0
    %v684 = vadd.f32 0.0, %v683
    %v685 = vpop.f32.mrf.mxu0
    %v686 = vadd.f32 0.0, %v685
    %687 = vdwg.mxu0
    %688 = vmatpush.bf16.msra.mxu0 %v624
    %689 = vmatpush.bf16.msra.mxu0 %v620
    %690 = vmatpush.bf16.msra.mxu0 %v616
    %691 = vmatpush.bf16.msra.mxu0 %v612
    %692 = vmatpush.bf16.msra.mxu0 %v608
    %693 = vmatpush.bf16.msra.mxu0 %v604
    %694 = vmatpush.bf16.msra.mxu0 %v600
    %695 = vmatpush.bf16.msra.mxu0 %v596
    %696 = vmatmul.bf16.gmra.mxu0 %v463
    %v697 = vpop.f32.mrf.mxu0
    %v698 = vadd.f32 0.0, %v697
    %v699 = vpop.f32.mrf.mxu0
    %v700 = vadd.f32 0.0, %v699
    %701 = vmatmul.bf16.gmra.mxu0 %v464
    %v702 = vpop.f32.mrf.mxu0
    %v703 = vadd.f32 0.0, %v702
    %v704 = vpop.f32.mrf.mxu0
    %v705 = vadd.f32 0.0, %v704
    %706 = vmatmul.bf16.gmra.mxu0 %v465
    %v707 = vpop.f32.mrf.mxu0
    %v708 = vadd.f32 0.0, %v707
    %v709 = vpop.f32.mrf.mxu0
    %v710 = vadd.f32 0.0, %v709
    %711 = vmatmul.bf16.gmra.mxu0 %v466
    %v712 = vpop.f32.mrf.mxu0
    %v713 = vadd.f32 0.0, %v712
    %v714 = vpop.f32.mrf.mxu0
    %v715 = vadd.f32 0.0, %v714
    %716 = vdwg.mxu0
    %717 = vmatpush.bf16.msra.mxu0 %v625
    %718 = vmatpush.bf16.msra.mxu0 %v621
    %719 = vmatpush.bf16.msra.mxu0 %v617
    %720 = vmatpush.bf16.msra.mxu0 %v613
    %721 = vmatpush.bf16.msra.mxu0 %v609
    %722 = vmatpush.bf16.msra.mxu0 %v605
    %723 = vmatpush.bf16.msra.mxu0 %v601
    %724 = vmatpush.bf16.msra.mxu0 %v597
    %725 = vmatmul.bf16.gmra.mxu0 %v463
    %v726 = vpop.f32.mrf.mxu0
    %v727 = vadd.f32 0.0, %v726
    %v728 = vpop.f32.mrf.mxu0
    %v729 = vadd.f32 0.0, %v728
    %730 = vmatmul.bf16.gmra.mxu0 %v464
    %v731 = vpop.f32.mrf.mxu0
    %v732 = vadd.f32 0.0, %v731
    %v733 = vpop.f32.mrf.mxu0
    %v734 = vadd.f32 0.0, %v733
    %735 = vmatmul.bf16.gmra.mxu0 %v465
    %v736 = vpop.f32.mrf.mxu0
    %v737 = vadd.f32 0.0, %v736
    %v738 = vpop.f32.mrf.mxu0
    %v739 = vadd.f32 0.0, %v738
    %740 = vmatmul.bf16.gmra.mxu0 %v466
    %v741 = vpop.f32.mrf.mxu0
    %v742 = vadd.f32 0.0, %v741
    %v743 = vpop.f32.mrf.mxu0
    %v744 = vadd.f32 0.0, %v743
    %745 = vdwg.mxu0
    %746 = vmatpush.bf16.msra.mxu0 %v626
    %747 = vmatpush.bf16.msra.mxu0 %v622
    %748 = vmatpush.bf16.msra.mxu0 %v618
    %749 = vmatpush.bf16.msra.mxu0 %v614
    %750 = vmatpush.bf16.msra.mxu0 %v610
    %751 = vmatpush.bf16.msra.mxu0 %v606
    %752 = vmatpush.bf16.msra.mxu0 %v602
    %753 = vmatpush.bf16.msra.mxu0 %v598
    %754 = vmatmul.bf16.gmra.mxu0 %v463
    %v755 = vpop.f32.mrf.mxu0
    %v756 = vadd.f32 0.0, %v755
    %v757 = vpop.f32.mrf.mxu0
    %v758 = vadd.f32 0.0, %v757
    %759 = vmatmul.bf16.gmra.mxu0 %v464
    %v760 = vpop.f32.mrf.mxu0
    %v761 = vadd.f32 0.0, %v760
    %v762 = vpop.f32.mrf.mxu0
    %v763 = vadd.f32 0.0, %v762
    %764 = vmatmul.bf16.gmra.mxu0 %v465
    %v765 = vpop.f32.mrf.mxu0
    %v766 = vadd.f32 0.0, %v765
    %v767 = vpop.f32.mrf.mxu0
    %v768 = vadd.f32 0.0, %v767
    %769 = vmatmul.bf16.gmra.mxu0 %v466
    %v770 = vpop.f32.mrf.mxu0
    %v771 = vadd.f32 0.0, %v770
    %v772 = vpop.f32.mrf.mxu0
    %v773 = vadd.f32 0.0, %v772
    %774 = vdwg.mxu0
    %775 = vst [vmem:[#allocation3] sm:$0xff] %v669
    %776 = vst [vmem:[#allocation3 + $0x8] sm:$0xff] %v698
    %777 = vst [vmem:[#allocation3 + $0x10] sm:$0xff] %v727
    %778 = vst [vmem:[#allocation3 + $0x18] sm:$0xff] %v756
    %779 = vst [vmem:[#allocation3 + $0x20] sm:$0xff] %v671
    %780 = vst [vmem:[#allocation3 + $0x28] sm:$0xff] %v700
    %781 = vst [vmem:[#allocation3 + $0x30] sm:$0xff] %v729
    %782 = vst [vmem:[#allocation3 + $0x38] sm:$0xff] %v758
    %783 = vst [vmem:[#allocation3 + $0x40] sm:$0xff] %v674
    %784 = vst [vmem:[#allocation3 + $0x48] sm:$0xff] %v703
    %785 = vst [vmem:[#allocation3 + $0x50] sm:$0xff] %v732
    %786 = vst [vmem:[#allocation3 + $0x58] sm:$0xff] %v761
    %787 = vst [vmem:[#allocation3 + $0x60] sm:$0xff] %v676
    %788 = vst [vmem:[#allocation3 + $0x68] sm:$0xff] %v705
    %789 = vst [vmem:[#allocation3 + $0x70] sm:$0xff] %v734
    %790 = vst [vmem:[#allocation3 + $0x78] sm:$0xff] %v763
    %791 = vst [vmem:[#allocation3 + $0x80] sm:$0xff] %v679
    %792 = vst [vmem:[#allocation3 + $0x88] sm:$0xff] %v708
    %793 = vst [vmem:[#allocation3 + $0x90] sm:$0xff] %v737
    %794 = vst [vmem:[#allocation3 + $0x98] sm:$0xff] %v766
    %795 = vst [vmem:[#allocation3 + $0xa0] sm:$0xff] %v681
    %796 = vst [vmem:[#allocation3 + $0xa8] sm:$0xff] %v710
    %797 = vst [vmem:[#allocation3 + $0xb0] sm:$0xff] %v739
    %798 = vst [vmem:[#allocation3 + $0xb8] sm:$0xff] %v768
    %799 = vst [vmem:[#allocation3 + $0xc0] sm:$0xff] %v684
    %800 = vst [vmem:[#allocation3 + $0xc8] sm:$0xff] %v713
    %801 = vst [vmem:[#allocation3 + $0xd0] sm:$0xff] %v742
    %802 = vst [vmem:[#allocation3 + $0xd8] sm:$0xff] %v771
    %803 = vst [vmem:[#allocation3 + $0xe0] sm:$0xff] %v686
    %804 = vst [vmem:[#allocation3 + $0xe8] sm:$0xff] %v715
    %805 = vst [vmem:[#allocation3 + $0xf0] sm:$0xff] %v744
    %806 = vst [vmem:[#allocation3 + $0xf8] sm:$0xff] %v773
    %v807 = vld [vmem:[%s5] sm:$0xff]
    %v808 = vld [vmem:[#allocation10] sm:$0x3]
    %v809 = vld [vmem:[%s7] sm:$0xff]
    %v810 = vld [vmem:[%s8] sm:$0xff]
    %s811 = smul.u32 0, 4
    %s812 = smul.addr %s811, 8
    %s813 = scalar_lea.vmem [#allocation3], %s812
    %v814 = vld [vmem:[%s813] sm:$0xff]
    %v815 = vld [vmem:[%s813 + $0x8] sm:$0xff]
    %v816 = vld [vmem:[%s813 + $0x10] sm:$0xff]
    %v817 = vld [vmem:[%s813 + $0x18] sm:$0xff]
    %v818 = vpack.c.bf16 %v809, %v809
    %v819 = vld [vmem:[#allocation9] sm:$0xff]
    %v820 = vld [vmem:[#allocation9 + $0x8] sm:$0xff]
    %v821 = vld [vmem:[#allocation9 + $0x10] sm:$0xff]
    %v822 = vld [vmem:[#allocation9 + $0x18] sm:$0xff]
    %v823 = vld [vmem:[#allocation9 + $0x20] sm:$0xff]
    %v824 = vld [vmem:[#allocation9 + $0x28] sm:$0xff]
    %v825 = vld [vmem:[#allocation9 + $0x30] sm:$0xff]
    %v826 = vld [vmem:[#allocation9 + $0x38] sm:$0xff]
    %v827 = vld [vmem:[#allocation9 + $0x40] sm:$0xff]
    %v828 = vld [vmem:[#allocation9 + $0x48] sm:$0xff]
    %v829 = vld [vmem:[#allocation9 + $0x50] sm:$0xff]
    %v830 = vld [vmem:[#allocation9 + $0x58] sm:$0xff]
    %v831 = vld [vmem:[#allocation9 + $0x60] sm:$0xff]
    %v832 = vld [vmem:[#allocation9 + $0x68] sm:$0xff]
    %v833 = vld [vmem:[#allocation9 + $0x70] sm:$0xff]
    %v834 = vld [vmem:[#allocation9 + $0x78] sm:$0xff]
    %v835 = vld [vmem:[#allocation9 + $0x80] sm:$0xff]
    %v836 = vld [vmem:[#allocation9 + $0x88] sm:$0xff]
    %v837 = vld [vmem:[#allocation9 + $0x90] sm:$0xff]
    %v838 = vld [vmem:[#allocation9 + $0x98] sm:$0xff]
    %v839 = vld [vmem:[#allocation9 + $0xa0] sm:$0xff]
    %v840 = vld [vmem:[#allocation9 + $0xa8] sm:$0xff]
    %v841 = vld [vmem:[#allocation9 + $0xb0] sm:$0xff]
    %v842 = vld [vmem:[#allocation9 + $0xb8] sm:$0xff]
    %v843 = vld [vmem:[#allocation9 + $0xc0] sm:$0xff]
    %v844 = vld [vmem:[#allocation9 + $0xc8] sm:$0xff]
    %v845 = vld [vmem:[#allocation9 + $0xd0] sm:$0xff]
    %v846 = vld [vmem:[#allocation9 + $0xd8] sm:$0xff]
    %v847 = vld [vmem:[#allocation9 + $0xe0] sm:$0xff]
    %v848 = vld [vmem:[#allocation9 + $0xe8] sm:$0xff]
    %v849 = vld [vmem:[#allocation9 + $0xf0] sm:$0xff]
    %v850 = vld [vmem:[#allocation9 + $0xf8] sm:$0xff]
    %v883 = vunpack.c.l.b16 %v819
    %v884 = vunpack.c.h.b16 %v819
    %v885 = vunpack.c.l.b16 %v820
    %v886 = vunpack.c.h.b16 %v820
    %v887 = vunpack.c.l.b16 %v821
    %v888 = vunpack.c.h.b16 %v821
    %v889 = vunpack.c.l.b16 %v822
    %v890 = vunpack.c.h.b16 %v822
    %v891 = vunpack.c.l.b16 %v823
    %v892 = vunpack.c.h.b16 %v823
    %v893 = vunpack.c.l.b16 %v824
    %v894 = vunpack.c.h.b16 %v824
    %v895 = vunpack.c.l.b16 %v825
    %v896 = vunpack.c.h.b16 %v825
    %v897 = vunpack.c.l.b16 %v826
    %v898 = vunpack.c.h.b16 %v826
    %v899 = vunpack.c.l.b16 %v827
    %v900 = vunpack.c.h.b16 %v827
    %v901 = vunpack.c.l.b16 %v828
    %v902 = vunpack.c.h.b16 %v828
    %v903 = vunpack.c.l.b16 %v829
    %v904 = vunpack.c.h.b16 %v829
    %v905 = vunpack.c.l.b16 %v830
    %v906 = vunpack.c.h.b16 %v830
    %v907 = vunpack.c.l.b16 %v831
    %v908 = vunpack.c.h.b16 %v831
    %v909 = vunpack.c.l.b16 %v832
    %v910 = vunpack.c.h.b16 %v832
    %v911 = vunpack.c.l.b16 %v833
    %v912 = vunpack.c.h.b16 %v833
    %v913 = vunpack.c.l.b16 %v834
    %v914 = vunpack.c.h.b16 %v834
    %v915 = vunpack.c.l.b16 %v835
    %v916 = vunpack.c.h.b16 %v835
    %v917 = vunpack.c.l.b16 %v836
    %v918 = vunpack.c.h.b16 %v836
    %v919 = vunpack.c.l.b16 %v837
    %v920 = vunpack.c.h.b16 %v837
    %v921 = vunpack.c.l.b16 %v838
    %v922 = vunpack.c.h.b16 %v838
    %v923 = vunpack.c.l.b16 %v839
    %v924 = vunpack.c.h.b16 %v839
    %v925 = vunpack.c.l.b16 %v840
    %v926 = vunpack.c.h.b16 %v840
    %v927 = vunpack.c.l.b16 %v841
    %v928 = vunpack.c.h.b16 %v841
    %v929 = vunpack.c.l.b16 %v842
    %v930 = vunpack.c.h.b16 %v842
    %v931 = vunpack.c.l.b16 %v843
    %v932 = vunpack.c.h.b16 %v843
    %v933 = vunpack.c.l.b16 %v844
    %v934 = vunpack.c.h.b16 %v844
    %v935 = vunpack.c.l.b16 %v845
    %v936 = vunpack.c.h.b16 %v845
    %v937 = vunpack.c.l.b16 %v846
    %v938 = vunpack.c.h.b16 %v846
    %v939 = vunpack.c.l.b16 %v847
    %v940 = vunpack.c.h.b16 %v847
    %v941 = vunpack.c.l.b16 %v848
    %v942 = vunpack.c.h.b16 %v848
    %v943 = vunpack.c.l.b16 %v849
    %v944 = vunpack.c.h.b16 %v849
    %v945 = vunpack.c.l.b16 %v850
    %v946 = vunpack.c.h.b16 %v850
    %v947 = vpack.c.b16 %v887, %v883
    %v948 = vpack.c.b16 %v888, %v884
    %v949 = vpack.c.b16 %v889, %v885
    %v950 = vpack.c.b16 %v890, %v886
    %v951 = vpack.c.b16 %v895, %v891
    %v952 = vpack.c.b16 %v896, %v892
    %v953 = vpack.c.b16 %v897, %v893
    %v954 = vpack.c.b16 %v898, %v894
    %v955 = vpack.c.b16 %v903, %v899
    %v956 = vpack.c.b16 %v904, %v900
    %v957 = vpack.c.b16 %v905, %v901
    %v958 = vpack.c.b16 %v906, %v902
    %v959 = vpack.c.b16 %v911, %v907
    %v960 = vpack.c.b16 %v912, %v908
    %v961 = vpack.c.b16 %v913, %v909
    %v962 = vpack.c.b16 %v914, %v910
    %v963 = vpack.c.b16 %v919, %v915
    %v964 = vpack.c.b16 %v920, %v916
    %v965 = vpack.c.b16 %v921, %v917
    %v966 = vpack.c.b16 %v922, %v918
    %v967 = vpack.c.b16 %v927, %v923
    %v968 = vpack.c.b16 %v928, %v924
    %v969 = vpack.c.b16 %v929, %v925
    %v970 = vpack.c.b16 %v930, %v926
    %v971 = vpack.c.b16 %v935, %v931
    %v972 = vpack.c.b16 %v936, %v932
    %v973 = vpack.c.b16 %v937, %v933
    %v974 = vpack.c.b16 %v938, %v934
    %v975 = vpack.c.b16 %v943, %v939
    %v976 = vpack.c.b16 %v944, %v940
    %v977 = vpack.c.b16 %v945, %v941
    %v978 = vpack.c.b16 %v946, %v942
    %1011 = vmatpush.bf16.msra.mxu0 %v975
    %1012 = vmatpush.bf16.msra.mxu0 %v971
    %1013 = vmatpush.bf16.msra.mxu0 %v967
    %1014 = vmatpush.bf16.msra.mxu0 %v963
    %1015 = vmatpush.bf16.msra.mxu0 %v959
    %1016 = vmatpush.bf16.msra.mxu0 %v955
    %1017 = vmatpush.bf16.msra.mxu0 %v951
    %1018 = vmatpush.bf16.msra.mxu0 %v947
    %1019 = vmatmul.bf16.gmra.mxu0 %v818
    %v1020 = vpop.f32.mrf.mxu0
    %v1021 = vadd.f32 0.0, %v1020
    %v1022 = vpop.f32.mrf.mxu0
    %1023 = vdwg.mxu0
    %1024 = vmatpush.bf16.msra.mxu0 %v976
    %1025 = vmatpush.bf16.msra.mxu0 %v972
    %1026 = vmatpush.bf16.msra.mxu0 %v968
    %1027 = vmatpush.bf16.msra.mxu0 %v964
    %1028 = vmatpush.bf16.msra.mxu0 %v960
    %1029 = vmatpush.bf16.msra.mxu0 %v956
    %1030 = vmatpush.bf16.msra.mxu0 %v952
    %1031 = vmatpush.bf16.msra.mxu0 %v948
    %1032 = vmatmul.bf16.gmra.mxu0 %v818
    %v1033 = vpop.f32.mrf.mxu0
    %v1034 = vadd.f32 0.0, %v1033
    %v1035 = vpop.f32.mrf.mxu0
    %1036 = vdwg.mxu0
    %1037 = vmatpush.bf16.msra.mxu0 %v977
    %1038 = vmatpush.bf16.msra.mxu0 %v973
    %1039 = vmatpush.bf16.msra.mxu0 %v969
    %1040 = vmatpush.bf16.msra.mxu0 %v965
    %1041 = vmatpush.bf16.msra.mxu0 %v961
    %1042 = vmatpush.bf16.msra.mxu0 %v957
    %1043 = vmatpush.bf16.msra.mxu0 %v953
    %1044 = vmatpush.bf16.msra.mxu0 %v949
    %1045 = vmatmul.bf16.gmra.mxu0 %v818
    %v1046 = vpop.f32.mrf.mxu0
    %v1047 = vadd.f32 0.0, %v1046
    %v1048 = vpop.f32.mrf.mxu0
    %1049 = vdwg.mxu0
    %1050 = vmatpush.bf16.msra.mxu0 %v978
    %1051 = vmatpush.bf16.msra.mxu0 %v974
    %1052 = vmatpush.bf16.msra.mxu0 %v970
    %1053 = vmatpush.bf16.msra.mxu0 %v966
    %1054 = vmatpush.bf16.msra.mxu0 %v962
    %1055 = vmatpush.bf16.msra.mxu0 %v958
    %1056 = vmatpush.bf16.msra.mxu0 %v954
    %1057 = vmatpush.bf16.msra.mxu0 %v950
    %1058 = vmatmul.bf16.gmra.mxu0 %v818
    %v1059 = vpop.f32.mrf.mxu0
    %v1060 = vadd.f32 0.0, %v1059
    %v1061 = vpop.f32.mrf.mxu0
    %1062 = vdwg.mxu0
    %v1063 = vadd.f32 %v814, %v1021
    %v1064 = vadd.f32 %v815, %v1034
    %v1065 = vadd.f32 %v816, %v1047
    %v1066 = vadd.f32 %v817, %v1060
    %v1067 = vadd.f32 %v1063, %v1064
    %v1068 = vadd.f32 %v1067, %v1065
    %v1069 = vadd.f32 %v1068, %v1066
    %1070 = vadd.xlane.f32.xlu0 %v1069
    %v1071 = vpop.xlane.xlu0 %1070
    %v1072 = vrcp.pop 512.0
    %v1073 = vmul.f32 512.0, %v1072
    %v1074 = vsub.f32 1.0, %v1073
    %v1075 = vmul.f32 %v1072, %v1074
    %v1076 = vadd.f32 %v1072, %v1075
    %vm1077 = vweird.f32 %v1072
    %v1078 = vsel %vm1077, %v1072, %v1076
    %v1079 = vmul.f32 %v1071, %v1078
    %v1080 = vmul.f32 %v1063, %v1063
    %v1081 = vmul.f32 %v1064, %v1064
    %v1082 = vmul.f32 %v1065, %v1065
    %v1083 = vmul.f32 %v1066, %v1066
    %v1084 = vadd.f32 %v1080, %v1081
    %v1085 = vadd.f32 %v1084, %v1082
    %v1086 = vadd.f32 %v1085, %v1083
    %1087 = vadd.xlane.f32.xlu0 %v1086
    %v1088 = vpop.xlane.xlu0 %1087
    %v1089 = vmul.f32 %v1088, %v1078
    %v1090 = vmul.f32 %v1079, %v1079
    %v1091 = vsub.f32 %v1089, %v1090
    %v1092 = vsub.f32 %v1063, %v1079
    %v1093 = vsub.f32 %v1064, %v1079
    %v1094 = vsub.f32 %v1065, %v1079
    %v1095 = vsub.f32 %v1066, %v1079
    %v1096 = vadd.f32 %v1091, 0.001
    %v1097 = vrsqrt.pop %v1096
    %v1098 = vmul.f32 %v1097, %v1096
    %v1099 = vmul.f32 %v1098, %v1097
    %v1100 = vmul.f32 0.5, %v1099
    %v1101 = vsub.f32 1.5, %v1100
    %v1102 = vmul.f32 %v1097, %v1101
    %vm1103 = vweird.f32 %v1096
    %vm1104 = vweird.f32 %v1097
    %vm1105 = vmor %vm1103, %vm1104
    %v1106 = vsel %vm1105, %v1097, %v1102
    %v1107 = vmul.f32 %v1092, %v1106
    %v1108 = vmul.f32 %v1093, %v1106
    %v1109 = vmul.f32 %v1094, %v1106
    %v1110 = vmul.f32 %v1095, %v1106
    %v1112 = vperm.slane %v807, 0
    %v1113 = vperm.slane %v807, 2
    %v1114 = vperm.slane %v807, 4
    %v1115 = vperm.slane %v807, 6
    %v1120 = vperm.slane %v1112, 0
    %v1121 = vperm.slane %v1113, 0
    %v1122 = vperm.slane %v1114, 0
    %v1123 = vperm.slane %v1115, 0
    %v1124 = vmul.f32 %v1107, %v1120
    %v1125 = vmul.f32 %v1108, %v1121
    %v1126 = vmul.f32 %v1109, %v1122
    %v1127 = vmul.f32 %v1110, %v1123
    %v1128 = vperm.slane %v807, 1
    %v1129 = vperm.slane %v807, 3
    %v1130 = vperm.slane %v807, 5
    %v1131 = vperm.slane %v807, 7
    %v1136 = vperm.slane %v1128, 1
    %v1137 = vperm.slane %v1129, 1
    %v1138 = vperm.slane %v1130, 1
    %v1139 = vperm.slane %v1131, 1
    %v1140 = vadd.f32 %v1124, %v1136
    %v1141 = vadd.f32 %v1125, %v1137
    %v1142 = vadd.f32 %v1126, %v1138
    %v1143 = vadd.f32 %v1127, %v1139
    %v1144 = vxor.u32 %v1140, 2147483648
    %v1145 = vxor.u32 %v1141, 2147483648
    %v1146 = vxor.u32 %v1142, 2147483648
    %v1147 = vmul.f32 %v1144, 1.442695
    %v1148 = vpow.pop %v1147
    %v1149 = vmul.f32 %v1145, 1.442695
    %v1150 = vpow.pop %v1149
    %v1151 = vmul.f32 %v1146, 1.442695
    %v1152 = vpow.pop %v1151
    %v1153 = vadd.f32 %v1148, 1.0
    %v1154 = vadd.f32 %v1150, 1.0
    %v1155 = vadd.f32 %v1152, 1.0
    %v1156 = vrcp.pop %v1153
    %v1157 = vmul.f32 %v1153, %v1156
    %v1158 = vsub.f32 1.0, %v1157
    %v1159 = vmul.f32 %v1156, %v1158
    %v1160 = vadd.f32 %v1156, %v1159
    %vm1161 = vweird.f32 %v1153
    %vm1162 = vweird.f32 %v1156
    %vm1163 = vmor %vm1161, %vm1162
    %v1164 = vsel %vm1163, %v1156, %v1160
    %v1165 = vand.u32 2147483647, %v1153
    %vm1166 = vcmp.eq.f32.partialorder %v1165, 8.507059e+37
    %v1167 = vand.u32 %v1153, 2147483648
    %v1168 = vor.u32 1.1754944e-38, %v1167
    %v1169 = vsel %vm1166, %v1168, %v1164
    %v1170 = vmul.f32 1.0, %v1169
    %v1171 = vrcp.pop %v1154
    %v1172 = vmul.f32 %v1154, %v1171
    %v1173 = vsub.f32 1.0, %v1172
    %v1174 = vmul.f32 %v1171, %v1173
    %v1175 = vadd.f32 %v1171, %v1174
    %vm1176 = vweird.f32 %v1154
    %vm1177 = vweird.f32 %v1171
    %vm1178 = vmor %vm1176, %vm1177
    %v1179 = vsel %vm1178, %v1171, %v1175
    %v1180 = vand.u32 2147483647, %v1154
    %vm1181 = vcmp.eq.f32.partialorder %v1180, 8.507059e+37
    %v1182 = vand.u32 %v1154, 2147483648
    %v1183 = vor.u32 1.1754944e-38, %v1182
    %v1184 = vsel %vm1181, %v1183, %v1179
    %v1185 = vmul.f32 1.0, %v1184
    %v1186 = vrcp.pop %v1155
    %v1187 = vmul.f32 %v1155, %v1186
    %v1188 = vsub.f32 1.0, %v1187
    %v1189 = vmul.f32 %v1186, %v1188
    %v1190 = vadd.f32 %v1186, %v1189
    %vm1191 = vweird.f32 %v1155
    %vm1192 = vweird.f32 %v1186
    %vm1193 = vmor %vm1191, %vm1192
    %v1194 = vsel %vm1193, %v1186, %v1190
    %v1195 = vand.u32 2147483647, %v1155
    %vm1196 = vcmp.eq.f32.partialorder %v1195, 8.507059e+37
    %v1197 = vand.u32 %v1155, 2147483648
    %v1198 = vor.u32 1.1754944e-38, %v1197
    %v1199 = vsel %vm1196, %v1198, %v1194
    %v1200 = vmul.f32 1.0, %v1199
    %v1201 = vtanh.pop %v1143
    %v1202 = vmul.f32 %v1185, %v810
    %v1203 = vmul.f32 %v1170, %v1201
    %v1204 = vadd.f32 %v1202, %v1203
    %1205 = vadd.xlane.f32.xlu0 %v1204
    %v1206 = vpop.xlane.xlu0 %1205
    %v1207 = vmul.f32 %v1206, %v268
    %v1208 = vmul.f32 %v1204, %v1204
    %1209 = vadd.xlane.f32.xlu0 %v1208
    %v1210 = vpop.xlane.xlu0 %1209
    %v1211 = vmul.f32 %v1210, %v268
    %v1212 = vmul.f32 %v1207, %v1207
    %v1213 = vsub.f32 %v1211, %v1212
    %v1214 = vsub.f32 %v1204, %v1207
    %v1215 = vadd.f32 %v1213, 0.001
    %v1216 = vrsqrt.pop %v1215
    %v1217 = vmul.f32 %v1216, %v1215
    %v1218 = vmul.f32 %v1217, %v1216
    %v1219 = vmul.f32 0.5, %v1218
    %v1220 = vsub.f32 1.5, %v1219
    %v1221 = vmul.f32 %v1216, %v1220
    %vm1222 = vweird.f32 %v1215
    %vm1223 = vweird.f32 %v1216
    %vm1224 = vmor %vm1222, %vm1223
    %v1225 = vsel %vm1224, %v1216, %v1221
    %v1226 = vmul.f32 %v1214, %v1225
    %v1227 = vperm.slane %v808, 0
    %v1228 = vmul.f32 %v1226, %v1227
    %v1229 = vperm.slane %v808, 1
    %v1230 = vadd.f32 %v1228, %v1229
    %v1231 = vtanh.pop %v1230
    %v1232 = vmul.f32 %v1200, %v1231
    %v1233 = vpack.c.bf16 %v1232, %v1232
    %s1234 = scalar_lea.vmem [#allocation7], 256
    %v1235 = vld [vmem:[%s1234] sm:$0xff]
    %v1236 = vld [vmem:[%s1234 + $0x8] sm:$0xff]
    %v1237 = vld [vmem:[%s1234 + $0x10] sm:$0xff]
    %v1238 = vld [vmem:[%s1234 + $0x18] sm:$0xff]
    %v1239 = vld [vmem:[%s1234 + $0x20] sm:$0xff]
    %v1240 = vld [vmem:[%s1234 + $0x28] sm:$0xff]
    %v1241 = vld [vmem:[%s1234 + $0x30] sm:$0xff]
    %v1242 = vld [vmem:[%s1234 + $0x38] sm:$0xff]
    %v1243 = vld [vmem:[%s1234 + $0x40] sm:$0xff]
    %v1244 = vld [vmem:[%s1234 + $0x48] sm:$0xff]
    %v1245 = vld [vmem:[%s1234 + $0x50] sm:$0xff]
    %v1246 = vld [vmem:[%s1234 + $0x58] sm:$0xff]
    %v1247 = vld [vmem:[%s1234 + $0x60] sm:$0xff]
    %v1248 = vld [vmem:[%s1234 + $0x68] sm:$0xff]
    %v1249 = vld [vmem:[%s1234 + $0x70] sm:$0xff]
    %v1250 = vld [vmem:[%s1234 + $0x78] sm:$0xff]
    %v1251 = vld [vmem:[%s1234 + $0x80] sm:$0xff]
    %v1252 = vld [vmem:[%s1234 + $0x88] sm:$0xff]
    %v1253 = vld [vmem:[%s1234 + $0x90] sm:$0xff]
    %v1254 = vld [vmem:[%s1234 + $0x98] sm:$0xff]
    %v1255 = vld [vmem:[%s1234 + $0xa0] sm:$0xff]
    %v1256 = vld [vmem:[%s1234 + $0xa8] sm:$0xff]
    %v1257 = vld [vmem:[%s1234 + $0xb0] sm:$0xff]
    %v1258 = vld [vmem:[%s1234 + $0xb8] sm:$0xff]
    %v1259 = vld [vmem:[%s1234 + $0xc0] sm:$0xff]
    %v1260 = vld [vmem:[%s1234 + $0xc8] sm:$0xff]
    %v1261 = vld [vmem:[%s1234 + $0xd0] sm:$0xff]
    %v1262 = vld [vmem:[%s1234 + $0xd8] sm:$0xff]
    %v1263 = vld [vmem:[%s1234 + $0xe0] sm:$0xff]
    %v1264 = vld [vmem:[%s1234 + $0xe8] sm:$0xff]
    %v1265 = vld [vmem:[%s1234 + $0xf0] sm:$0xff]
    %v1266 = vld [vmem:[%s1234 + $0xf8] sm:$0xff]
    %v1299 = vunpack.c.l.b16 %v1235
    %v1300 = vunpack.c.h.b16 %v1235
    %v1301 = vunpack.c.l.b16 %v1236
    %v1302 = vunpack.c.h.b16 %v1236
    %v1303 = vunpack.c.l.b16 %v1237
    %v1304 = vunpack.c.h.b16 %v1237
    %v1305 = vunpack.c.l.b16 %v1238
    %v1306 = vunpack.c.h.b16 %v1238
    %v1307 = vunpack.c.l.b16 %v1239
    %v1308 = vunpack.c.h.b16 %v1239
    %v1309 = vunpack.c.l.b16 %v1240
    %v1310 = vunpack.c.h.b16 %v1240
    %v1311 = vunpack.c.l.b16 %v1241
    %v1312 = vunpack.c.h.b16 %v1241
    %v1313 = vunpack.c.l.b16 %v1242
    %v1314 = vunpack.c.h.b16 %v1242
    %v1315 = vunpack.c.l.b16 %v1243
    %v1316 = vunpack.c.h.b16 %v1243
    %v1317 = vunpack.c.l.b16 %v1244
    %v1318 = vunpack.c.h.b16 %v1244
    %v1319 = vunpack.c.l.b16 %v1245
    %v1320 = vunpack.c.h.b16 %v1245
    %v1321 = vunpack.c.l.b16 %v1246
    %v1322 = vunpack.c.h.b16 %v1246
    %v1323 = vunpack.c.l.b16 %v1247
    %v1324 = vunpack.c.h.b16 %v1247
    %v1325 = vunpack.c.l.b16 %v1248
    %v1326 = vunpack.c.h.b16 %v1248
    %v1327 = vunpack.c.l.b16 %v1249
    %v1328 = vunpack.c.h.b16 %v1249
    %v1329 = vunpack.c.l.b16 %v1250
    %v1330 = vunpack.c.h.b16 %v1250
    %v1331 = vunpack.c.l.b16 %v1251
    %v1332 = vunpack.c.h.b16 %v1251
    %v1333 = vunpack.c.l.b16 %v1252
    %v1334 = vunpack.c.h.b16 %v1252
    %v1335 = vunpack.c.l.b16 %v1253
    %v1336 = vunpack.c.h.b16 %v1253
    %v1337 = vunpack.c.l.b16 %v1254
    %v1338 = vunpack.c.h.b16 %v1254
    %v1339 = vunpack.c.l.b16 %v1255
    %v1340 = vunpack.c.h.b16 %v1255
    %v1341 = vunpack.c.l.b16 %v1256
    %v1342 = vunpack.c.h.b16 %v1256
    %v1343 = vunpack.c.l.b16 %v1257
    %v1344 = vunpack.c.h.b16 %v1257
    %v1345 = vunpack.c.l.b16 %v1258
    %v1346 = vunpack.c.h.b16 %v1258
    %v1347 = vunpack.c.l.b16 %v1259
    %v1348 = vunpack.c.h.b16 %v1259
    %v1349 = vunpack.c.l.b16 %v1260
    %v1350 = vunpack.c.h.b16 %v1260
    %v1351 = vunpack.c.l.b16 %v1261
    %v1352 = vunpack.c.h.b16 %v1261
    %v1353 = vunpack.c.l.b16 %v1262
    %v1354 = vunpack.c.h.b16 %v1262
    %v1355 = vunpack.c.l.b16 %v1263
    %v1356 = vunpack.c.h.b16 %v1263
    %v1357 = vunpack.c.l.b16 %v1264
    %v1358 = vunpack.c.h.b16 %v1264
    %v1359 = vunpack.c.l.b16 %v1265
    %v1360 = vunpack.c.h.b16 %v1265
    %v1361 = vunpack.c.l.b16 %v1266
    %v1362 = vunpack.c.h.b16 %v1266
    %v1363 = vpack.c.b16 %v1303, %v1299
    %v1364 = vpack.c.b16 %v1304, %v1300
    %v1365 = vpack.c.b16 %v1305, %v1301
    %v1366 = vpack.c.b16 %v1306, %v1302
    %v1367 = vpack.c.b16 %v1311, %v1307
    %v1368 = vpack.c.b16 %v1312, %v1308
    %v1369 = vpack.c.b16 %v1313, %v1309
    %v1370 = vpack.c.b16 %v1314, %v1310
    %v1371 = vpack.c.b16 %v1319, %v1315
    %v1372 = vpack.c.b16 %v1320, %v1316
    %v1373 = vpack.c.b16 %v1321, %v1317
    %v1374 = vpack.c.b16 %v1322, %v1318
    %v1375 = vpack.c.b16 %v1327, %v1323
    %v1376 = vpack.c.b16 %v1328, %v1324
    %v1377 = vpack.c.b16 %v1329, %v1325
    %v1378 = vpack.c.b16 %v1330, %v1326
    %v1379 = vpack.c.b16 %v1335, %v1331
    %v1380 = vpack.c.b16 %v1336, %v1332
    %v1381 = vpack.c.b16 %v1337, %v1333
    %v1382 = vpack.c.b16 %v1338, %v1334
    %v1383 = vpack.c.b16 %v1343, %v1339
    %v1384 = vpack.c.b16 %v1344, %v1340
    %v1385 = vpack.c.b16 %v1345, %v1341
    %v1386 = vpack.c.b16 %v1346, %v1342
    %v1387 = vpack.c.b16 %v1351, %v1347
    %v1388 = vpack.c.b16 %v1352, %v1348
    %v1389 = vpack.c.b16 %v1353, %v1349
    %v1390 = vpack.c.b16 %v1354, %v1350
    %v1391 = vpack.c.b16 %v1359, %v1355
    %v1392 = vpack.c.b16 %v1360, %v1356
    %v1393 = vpack.c.b16 %v1361, %v1357
    %v1394 = vpack.c.b16 %v1362, %v1358
    %1427 = vmatpush.bf16.msra.mxu0 %v1391
    %1428 = vmatpush.bf16.msra.mxu0 %v1387
    %1429 = vmatpush.bf16.msra.mxu0 %v1383
    %1430 = vmatpush.bf16.msra.mxu0 %v1379
    %1431 = vmatpush.bf16.msra.mxu0 %v1375
    %1432 = vmatpush.bf16.msra.mxu0 %v1371
    %1433 = vmatpush.bf16.msra.mxu0 %v1367
    %1434 = vmatpush.bf16.msra.mxu0 %v1363
    %1435 = vmatmul.bf16.gmra.mxu0 %v1233
    %v1436 = vpop.f32.mrf.mxu0
    %v1437 = vadd.f32 0.0, %v1436
    %v1438 = vpop.f32.mrf.mxu0
    %1439 = vdwg.mxu0
    %1440 = vmatpush.bf16.msra.mxu0 %v1392
    %1441 = vmatpush.bf16.msra.mxu0 %v1388
    %1442 = vmatpush.bf16.msra.mxu0 %v1384
    %1443 = vmatpush.bf16.msra.mxu0 %v1380
    %1444 = vmatpush.bf16.msra.mxu0 %v1376
    %1445 = vmatpush.bf16.msra.mxu0 %v1372
    %1446 = vmatpush.bf16.msra.mxu0 %v1368
    %1447 = vmatpush.bf16.msra.mxu0 %v1364
    %1448 = vmatmul.bf16.gmra.mxu0 %v1233
    %v1449 = vpop.f32.mrf.mxu0
    %v1450 = vadd.f32 0.0, %v1449
    %v1451 = vpop.f32.mrf.mxu0
    %1452 = vdwg.mxu0
    %1453 = vmatpush.bf16.msra.mxu0 %v1393
    %1454 = vmatpush.bf16.msra.mxu0 %v1389
    %1455 = vmatpush.bf16.msra.mxu0 %v1385
    %1456 = vmatpush.bf16.msra.mxu0 %v1381
    %1457 = vmatpush.bf16.msra.mxu0 %v1377
    %1458 = vmatpush.bf16.msra.mxu0 %v1373
    %1459 = vmatpush.bf16.msra.mxu0 %v1369
    %1460 = vmatpush.bf16.msra.mxu0 %v1365
    %1461 = vmatmul.bf16.gmra.mxu0 %v1233
    %v1462 = vpop.f32.mrf.mxu0
    %v1463 = vadd.f32 0.0, %v1462
    %v1464 = vpop.f32.mrf.mxu0
    %1465 = vdwg.mxu0
    %1466 = vmatpush.bf16.msra.mxu0 %v1394
    %1467 = vmatpush.bf16.msra.mxu0 %v1390
    %1468 = vmatpush.bf16.msra.mxu0 %v1386
    %1469 = vmatpush.bf16.msra.mxu0 %v1382
    %1470 = vmatpush.bf16.msra.mxu0 %v1378
    %1471 = vmatpush.bf16.msra.mxu0 %v1374
    %1472 = vmatpush.bf16.msra.mxu0 %v1370
    %1473 = vmatpush.bf16.msra.mxu0 %v1366
    %1474 = vmatmul.bf16.gmra.mxu0 %v1233
    %v1475 = vpop.f32.mrf.mxu0
    %v1476 = vadd.f32 0.0, %v1475
    %v1477 = vpop.f32.mrf.mxu0
    %1478 = vdwg.mxu0
    %s1479 = scalar_lea.vmem [#allocation3], 256
    %s1480 = smul.addr %s811, 8
    %s1481 = scalar_lea.vmem %s1479, %s1480 [#allocation3]
    %1482 = vst [vmem:[%s1481] sm:$0xff] %v1437
    %1483 = vst [vmem:[%s1481 + $0x8] sm:$0xff] %v1450
    %1484 = vst [vmem:[%s1481 + $0x10] sm:$0xff] %v1463
    %1485 = vst [vmem:[%s1481 + $0x18] sm:$0xff] %v1476
    %s1486 = smul.u32 1, 4
    %s1487 = smul.addr %s1486, 8
    %s1488 = scalar_lea.vmem [#allocation3], %s1487
    %v1489 = vld [vmem:[%s1488] sm:$0xff]
    %v1490 = vld [vmem:[%s1488 + $0x8] sm:$0xff]
    %v1491 = vld [vmem:[%s1488 + $0x10] sm:$0xff]
    %v1492 = vld [vmem:[%s1488 + $0x18] sm:$0xff]
    %v1493 = vld [vmem:[#allocation9] sm:$0xff]
    %v1494 = vld [vmem:[#allocation9 + $0x8] sm:$0xff]
    %v1495 = vld [vmem:[#allocation9 + $0x10] sm:$0xff]
    %v1496 = vld [vmem:[#allocation9 + $0x18] sm:$0xff]
    %v1497 = vld [vmem:[#allocation9 + $0x20] sm:$0xff]
    %v1498 = vld [vmem:[#allocation9 + $0x28] sm:$0xff]
    %v1499 = vld [vmem:[#allocation9 + $0x30] sm:$0xff]
    %v1500 = vld [vmem:[#allocation9 + $0x38] sm:$0xff]
    %v1501 = vld [vmem:[#allocation9 + $0x40] sm:$0xff]
    %v1502 = vld [vmem:[#allocation9 + $0x48] sm:$0xff]
    %v1503 = vld [vmem:[#allocation9 + $0x50] sm:$0xff]
    %v1504 = vld [vmem:[#allocation9 + $0x58] sm:$0xff]
    %v1505 = vld [vmem:[#allocation9 + $0x60] sm:$0xff]
    %v1506 = vld [vmem:[#allocation9 + $0x68] sm:$0xff]
    %v1507 = vld [vmem:[#allocation9 + $0x70] sm:$0xff]
    %v1508 = vld [vmem:[#allocation9 + $0x78] sm:$0xff]
    %v1509 = vld [vmem:[#allocation9 + $0x80] sm:$0xff]
    %v1510 = vld [vmem:[#allocation9 + $0x88] sm:$0xff]
    %v1511 = vld [vmem:[#allocation9 + $0x90] sm:$0xff]
    %v1512 = vld [vmem:[#allocation9 + $0x98] sm:$0xff]
    %v1513 = vld [vmem:[#allocation9 + $0xa0] sm:$0xff]
    %v1514 = vld [vmem:[#allocation9 + $0xa8] sm:$0xff]
    %v1515 = vld [vmem:[#allocation9 + $0xb0] sm:$0xff]
    %v1516 = vld [vmem:[#allocation9 + $0xb8] sm:$0xff]
    %v1517 = vld [vmem:[#allocation9 + $0xc0] sm:$0xff]
    %v1518 = vld [vmem:[#allocation9 + $0xc8] sm:$0xff]
    %v1519 = vld [vmem:[#allocation9 + $0xd0] sm:$0xff]
    %v1520 = vld [vmem:[#allocation9 + $0xd8] sm:$0xff]
    %v1521 = vld [vmem:[#allocation9 + $0xe0] sm:$0xff]
    %v1522 = vld [vmem:[#allocation9 + $0xe8] sm:$0xff]
    %v1523 = vld [vmem:[#allocation9 + $0xf0] sm:$0xff]
    %v1524 = vld [vmem:[#allocation9 + $0xf8] sm:$0xff]
    %v1557 = vunpack.c.l.b16 %v1493
    %v1558 = vunpack.c.h.b16 %v1493
    %v1559 = vunpack.c.l.b16 %v1494
    %v1560 = vunpack.c.h.b16 %v1494
    %v1561 = vunpack.c.l.b16 %v1495
    %v1562 = vunpack.c.h.b16 %v1495
    %v1563 = vunpack.c.l.b16 %v1496
    %v1564 = vunpack.c.h.b16 %v1496
    %v1565 = vunpack.c.l.b16 %v1497
    %v1566 = vunpack.c.h.b16 %v1497
    %v1567 = vunpack.c.l.b16 %v1498
    %v1568 = vunpack.c.h.b16 %v1498
    %v1569 = vunpack.c.l.b16 %v1499
    %v1570 = vunpack.c.h.b16 %v1499
    %v1571 = vunpack.c.l.b16 %v1500
    %v1572 = vunpack.c.h.b16 %v1500
    %v1573 = vunpack.c.l.b16 %v1501
    %v1574 = vunpack.c.h.b16 %v1501
    %v1575 = vunpack.c.l.b16 %v1502
    %v1576 = vunpack.c.h.b16 %v1502
    %v1577 = vunpack.c.l.b16 %v1503
    %v1578 = vunpack.c.h.b16 %v1503
    %v1579 = vunpack.c.l.b16 %v1504
    %v1580 = vunpack.c.h.b16 %v1504
    %v1581 = vunpack.c.l.b16 %v1505
    %v1582 = vunpack.c.h.b16 %v1505
    %v1583 = vunpack.c.l.b16 %v1506
    %v1584 = vunpack.c.h.b16 %v1506
    %v1585 = vunpack.c.l.b16 %v1507
    %v1586 = vunpack.c.h.b16 %v1507
    %v1587 = vunpack.c.l.b16 %v1508
    %v1588 = vunpack.c.h.b16 %v1508
    %v1589 = vunpack.c.l.b16 %v1509
    %v1590 = vunpack.c.h.b16 %v1509
    %v1591 = vunpack.c.l.b16 %v1510
    %v1592 = vunpack.c.h.b16 %v1510
    %v1593 = vunpack.c.l.b16 %v1511
    %v1594 = vunpack.c.h.b16 %v1511
    %v1595 = vunpack.c.l.b16 %v1512
    %v1596 = vunpack.c.h.b16 %v1512
    %v1597 = vunpack.c.l.b16 %v1513
    %v1598 = vunpack.c.h.b16 %v1513
    %v1599 = vunpack.c.l.b16 %v1514
    %v1600 = vunpack.c.h.b16 %v1514
    %v1601 = vunpack.c.l.b16 %v1515
    %v1602 = vunpack.c.h.b16 %v1515
    %v1603 = vunpack.c.l.b16 %v1516
    %v1604 = vunpack.c.h.b16 %v1516
    %v1605 = vunpack.c.l.b16 %v1517
    %v1606 = vunpack.c.h.b16 %v1517
    %v1607 = vunpack.c.l.b16 %v1518
    %v1608 = vunpack.c.h.b16 %v1518
    %v1609 = vunpack.c.l.b16 %v1519
    %v1610 = vunpack.c.h.b16 %v1519
    %v1611 = vunpack.c.l.b16 %v1520
    %v1612 = vunpack.c.h.b16 %v1520
    %v1613 = vunpack.c.l.b16 %v1521
    %v1614 = vunpack.c.h.b16 %v1521
    %v1615 = vunpack.c.l.b16 %v1522
    %v1616 = vunpack.c.h.b16 %v1522
    %v1617 = vunpack.c.l.b16 %v1523
    %v1618 = vunpack.c.h.b16 %v1523
    %v1619 = vunpack.c.l.b16 %v1524
    %v1620 = vunpack.c.h.b16 %v1524
    %v1621 = vpack.c.b16 %v1561, %v1557
    %v1622 = vpack.c.b16 %v1562, %v1558
    %v1623 = vpack.c.b16 %v1563, %v1559
    %v1624 = vpack.c.b16 %v1564, %v1560
    %v1625 = vpack.c.b16 %v1569, %v1565
    %v1626 = vpack.c.b16 %v1570, %v1566
    %v1627 = vpack.c.b16 %v1571, %v1567
    %v1628 = vpack.c.b16 %v1572, %v1568
    %v1629 = vpack.c.b16 %v1577, %v1573
    %v1630 = vpack.c.b16 %v1578, %v1574
    %v1631 = vpack.c.b16 %v1579, %v1575
    %v1632 = vpack.c.b16 %v1580, %v1576
    %v1633 = vpack.c.b16 %v1585, %v1581
    %v1634 = vpack.c.b16 %v1586, %v1582
    %v1635 = vpack.c.b16 %v1587, %v1583
    %v1636 = vpack.c.b16 %v1588, %v1584
    %v1637 = vpack.c.b16 %v1593, %v1589
    %v1638 = vpack.c.b16 %v1594, %v1590
    %v1639 = vpack.c.b16 %v1595, %v1591
    %v1640 = vpack.c.b16 %v1596, %v1592
    %v1641 = vpack.c.b16 %v1601, %v1597
    %v1642 = vpack.c.b16 %v1602, %v1598
    %v1643 = vpack.c.b16 %v1603, %v1599
    %v1644 = vpack.c.b16 %v1604, %v1600
    %v1645 = vpack.c.b16 %v1609, %v1605
    %v1646 = vpack.c.b16 %v1610, %v1606
    %v1647 = vpack.c.b16 %v1611, %v1607
    %v1648 = vpack.c.b16 %v1612, %v1608
    %v1649 = vpack.c.b16 %v1617, %v1613
    %v1650 = vpack.c.b16 %v1618, %v1614
    %v1651 = vpack.c.b16 %v1619, %v1615
    %v1652 = vpack.c.b16 %v1620, %v1616
    %1685 = vmatpush.bf16.msra.mxu0 %v1649
    %1686 = vmatpush.bf16.msra.mxu0 %v1645
    %1687 = vmatpush.bf16.msra.mxu0 %v1641
    %1688 = vmatpush.bf16.msra.mxu0 %v1637
    %1689 = vmatpush.bf16.msra.mxu0 %v1633
    %1690 = vmatpush.bf16.msra.mxu0 %v1629
    %1691 = vmatpush.bf16.msra.mxu0 %v1625
    %1692 = vmatpush.bf16.msra.mxu0 %v1621
    %1693 = vmatmul.bf16.gmra.mxu0 %v1233
    %v1694 = vpop.f32.mrf.mxu0
    %v1695 = vadd.f32 0.0, %v1694
    %v1696 = vpop.f32.mrf.mxu0
    %1697 = vdwg.mxu0
    %1698 = vmatpush.bf16.msra.mxu0 %v1650
    %1699 = vmatpush.bf16.msra.mxu0 %v1646
    %1700 = vmatpush.bf16.msra.mxu0 %v1642
    %1701 = vmatpush.bf16.msra.mxu0 %v1638
    %1702 = vmatpush.bf16.msra.mxu0 %v1634
    %1703 = vmatpush.bf16.msra.mxu0 %v1630
    %1704 = vmatpush.bf16.msra.mxu0 %v1626
    %1705 = vmatpush.bf16.msra.mxu0 %v1622
    %1706 = vmatmul.bf16.gmra.mxu0 %v1233
    %v1707 = vpop.f32.mrf.mxu0
    %v1708 = vadd.f32 0.0, %v1707
    %v1709 = vpop.f32.mrf.mxu0
    %1710 = vdwg.mxu0
    %1711 = vmatpush.bf16.msra.mxu0 %v1651
    %1712 = vmatpush.bf16.msra.mxu0 %v1647
    %1713 = vmatpush.bf16.msra.mxu0 %v1643
    %1714 = vmatpush.bf16.msra.mxu0 %v1639
    %1715 = vmatpush.bf16.msra.mxu0 %v1635
    %1716 = vmatpush.bf16.msra.mxu0 %v1631
    %1717 = vmatpush.bf16.msra.mxu0 %v1627
    %1718 = vmatpush.bf16.msra.mxu0 %v1623
    %1719 = vmatmul.bf16.gmra.mxu0 %v1233
    %v1720 = vpop.f32.mrf.mxu0
    %v1721 = vadd.f32 0.0, %v1720
    %v1722 = vpop.f32.mrf.mxu0
    %1723 = vdwg.mxu0
    %1724 = vmatpush.bf16.msra.mxu0 %v1652
    %1725 = vmatpush.bf16.msra.mxu0 %v1648
    %1726 = vmatpush.bf16.msra.mxu0 %v1644
    %1727 = vmatpush.bf16.msra.mxu0 %v1640
    %1728 = vmatpush.bf16.msra.mxu0 %v1636
    %1729 = vmatpush.bf16.msra.mxu0 %v1632
    %1730 = vmatpush.bf16.msra.mxu0 %v1628
    %1731 = vmatpush.bf16.msra.mxu0 %v1624
    %1732 = vmatmul.bf16.gmra.mxu0 %v1233
    %v1733 = vpop.f32.mrf.mxu0
    %v1734 = vadd.f32 0.0, %v1733
    %v1735 = vpop.f32.mrf.mxu0
    %1736 = vdwg.mxu0
    %v1737 = vadd.f32 %v1489, %v1695
    %v1738 = vadd.f32 %v1490, %v1708
    %v1739 = vadd.f32 %v1491, %v1721
    %v1740 = vadd.f32 %v1492, %v1734
    %v1741 = vadd.f32 %v1737, %v1738
    %v1742 = vadd.f32 %v1741, %v1739
    %v1743 = vadd.f32 %v1742, %v1740
    %1744 = vadd.xlane.f32.xlu0 %v1743
    %v1745 = vpop.xlane.xlu0 %1744
    %v1746 = vmul.f32 %v1745, %v1078
    %v1747 = vmul.f32 %v1737, %v1737
    %v1748 = vmul.f32 %v1738, %v1738
    %v1749 = vmul.f32 %v1739, %v1739
    %v1750 = vmul.f32 %v1740, %v1740
    %v1751 = vadd.f32 %v1747, %v1748
    %v1752 = vadd.f32 %v1751, %v1749
    %v1753 = vadd.f32 %v1752, %v1750
    %1754 = vadd.xlane.f32.xlu0 %v1753
    %v1755 = vpop.xlane.xlu0 %1754
    %v1756 = vmul.f32 %v1755, %v1078
    %v1757 = vmul.f32 %v1746, %v1746
    %v1758 = vsub.f32 %v1756, %v1757
    %v1759 = vsub.f32 %v1737, %v1746
    %v1760 = vsub.f32 %v1738, %v1746
    %v1761 = vsub.f32 %v1739, %v1746
    %v1762 = vsub.f32 %v1740, %v1746
    %v1763 = vadd.f32 %v1758, 0.001
    %v1764 = vrsqrt.pop %v1763
    %v1765 = vmul.f32 %v1764, %v1763
    %v1766 = vmul.f32 %v1765, %v1764
    %v1767 = vmul.f32 0.5, %v1766
    %v1768 = vsub.f32 1.5, %v1767
    %v1769 = vmul.f32 %v1764, %v1768
    %vm1770 = vweird.f32 %v1763
    %vm1771 = vweird.f32 %v1764
    %vm1772 = vmor %vm1770, %vm1771
    %v1773 = vsel %vm1772, %v1764, %v1769
    %v1774 = vmul.f32 %v1759, %v1773
    %v1775 = vmul.f32 %v1760, %v1773
    %v1776 = vmul.f32 %v1761, %v1773
    %v1777 = vmul.f32 %v1762, %v1773
    %v1778 = vmul.f32 %v1774, %v1120
    %v1779 = vmul.f32 %v1775, %v1121
    %v1780 = vmul.f32 %v1776, %v1122
    %v1781 = vmul.f32 %v1777, %v1123
    %v1782 = vadd.f32 %v1778, %v1136
    %v1783 = vadd.f32 %v1779, %v1137
    %v1784 = vadd.f32 %v1780, %v1138
    %v1785 = vadd.f32 %v1781, %v1139
    %v1786 = vxor.u32 %v1782, 2147483648
    %v1787 = vxor.u32 %v1783, 2147483648
    %v1788 = vxor.u32 %v1784, 2147483648
    %v1789 = vmul.f32 %v1786, 1.442695
    %v1790 = vpow.pop %v1789
    %v1791 = vmul.f32 %v1787, 1.442695
    %v1792 = vpow.pop %v1791
    %v1793 = vmul.f32 %v1788, 1.442695
    %v1794 = vpow.pop %v1793
    %v1795 = vadd.f32 %v1790, 1.0
    %v1796 = vadd.f32 %v1792, 1.0
    %v1797 = vadd.f32 %v1794, 1.0
    %v1798 = vrcp.pop %v1795
    %v1799 = vmul.f32 %v1795, %v1798
    %v1800 = vsub.f32 1.0, %v1799
    %v1801 = vmul.f32 %v1798, %v1800
    %v1802 = vadd.f32 %v1798, %v1801
    %vm1803 = vweird.f32 %v1795
    %vm1804 = vweird.f32 %v1798
    %vm1805 = vmor %vm1803, %vm1804
    %v1806 = vsel %vm1805, %v1798, %v1802
    %v1807 = vand.u32 2147483647, %v1795
    %vm1808 = vcmp.eq.f32.partialorder %v1807, 8.507059e+37
    %v1809 = vand.u32 %v1795, 2147483648
    %v1810 = vor.u32 1.1754944e-38, %v1809
    %v1811 = vsel %vm1808, %v1810, %v1806
    %v1812 = vmul.f32 1.0, %v1811
    %v1813 = vrcp.pop %v1796
    %v1814 = vmul.f32 %v1796, %v1813
    %v1815 = vsub.f32 1.0, %v1814
    %v1816 = vmul.f32 %v1813, %v1815
    %v1817 = vadd.f32 %v1813, %v1816
    %vm1818 = vweird.f32 %v1796
    %vm1819 = vweird.f32 %v1813
    %vm1820 = vmor %vm1818, %vm1819
    %v1821 = vsel %vm1820, %v1813, %v1817
    %v1822 = vand.u32 2147483647, %v1796
    %vm1823 = vcmp.eq.f32.partialorder %v1822, 8.507059e+37
    %v1824 = vand.u32 %v1796, 2147483648
    %v1825 = vor.u32 1.1754944e-38, %v1824
    %v1826 = vsel %vm1823, %v1825, %v1821
    %v1827 = vmul.f32 1.0, %v1826
    %v1828 = vrcp.pop %v1797
    %v1829 = vmul.f32 %v1797, %v1828
    %v1830 = vsub.f32 1.0, %v1829
    %v1831 = vmul.f32 %v1828, %v1830
    %v1832 = vadd.f32 %v1828, %v1831
    %vm1833 = vweird.f32 %v1797
    %vm1834 = vweird.f32 %v1828
    %vm1835 = vmor %vm1833, %vm1834
    %v1836 = vsel %vm1835, %v1828, %v1832
    %v1837 = vand.u32 2147483647, %v1797
    %vm1838 = vcmp.eq.f32.partialorder %v1837, 8.507059e+37
    %v1839 = vand.u32 %v1797, 2147483648
    %v1840 = vor.u32 1.1754944e-38, %v1839
    %v1841 = vsel %vm1838, %v1840, %v1836
    %v1842 = vmul.f32 1.0, %v1841
    %v1843 = vtanh.pop %v1785
    %v1844 = vmul.f32 %v1827, %v1230
    %v1845 = vmul.f32 %v1812, %v1843
    %v1846 = vadd.f32 %v1844, %v1845
    %1847 = vadd.xlane.f32.xlu0 %v1846
    %v1848 = vpop.xlane.xlu0 %1847
    %v1849 = vmul.f32 %v1848, %v268
    %v1850 = vmul.f32 %v1846, %v1846
    %1851 = vadd.xlane.f32.xlu0 %v1850
    %v1852 = vpop.xlane.xlu0 %1851
    %v1853 = vmul.f32 %v1852, %v268
    %v1854 = vmul.f32 %v1849, %v1849
    %v1855 = vsub.f32 %v1853, %v1854
    %v1856 = vsub.f32 %v1846, %v1849
    %v1857 = vadd.f32 %v1855, 0.001
    %v1858 = vrsqrt.pop %v1857
    %v1859 = vmul.f32 %v1858, %v1857
    %v1860 = vmul.f32 %v1859, %v1858
    %v1861 = vmul.f32 0.5, %v1860
    %v1862 = vsub.f32 1.5, %v1861
    %v1863 = vmul.f32 %v1858, %v1862
    %vm1864 = vweird.f32 %v1857
    %vm1865 = vweird.f32 %v1858
    %vm1866 = vmor %vm1864, %vm1865
    %v1867 = vsel %vm1866, %v1858, %v1863
    %v1868 = vmul.f32 %v1856, %v1867
    %v1869 = vmul.f32 %v1868, %v1227
    %v1870 = vadd.f32 %v1869, %v1229
    %v1871 = vtanh.pop %v1870
    %v1872 = vmul.f32 %v1842, %v1871
    %v1873 = vpack.c.bf16 %v1872, %v1872
    %v1874 = vld [vmem:[%s1234] sm:$0xff]
    %v1875 = vld [vmem:[%s1234 + $0x8] sm:$0xff]
    %v1876 = vld [vmem:[%s1234 + $0x10] sm:$0xff]
    %v1877 = vld [vmem:[%s1234 + $0x18] sm:$0xff]
    %v1878 = vld [vmem:[%s1234 + $0x20] sm:$0xff]
    %v1879 = vld [vmem:[%s1234 + $0x28] sm:$0xff]
    %v1880 = vld [vmem:[%s1234 + $0x30] sm:$0xff]
    %v1881 = vld [vmem:[%s1234 + $0x38] sm:$0xff]
    %v1882 = vld [vmem:[%s1234 + $0x40] sm:$0xff]
    %v1883 = vld [vmem:[%s1234 + $0x48] sm:$0xff]
    %v1884 = vld [vmem:[%s1234 + $0x50] sm:$0xff]
    %v1885 = vld [vmem:[%s1234 + $0x58] sm:$0xff]
    %v1886 = vld [vmem:[%s1234 + $0x60] sm:$0xff]
    %v1887 = vld [vmem:[%s1234 + $0x68] sm:$0xff]
    %v1888 = vld [vmem:[%s1234 + $0x70] sm:$0xff]
    %v1889 = vld [vmem:[%s1234 + $0x78] sm:$0xff]
    %v1890 = vld [vmem:[%s1234 + $0x80] sm:$0xff]
    %v1891 = vld [vmem:[%s1234 + $0x88] sm:$0xff]
    %v1892 = vld [vmem:[%s1234 + $0x90] sm:$0xff]
    %v1893 = vld [vmem:[%s1234 + $0x98] sm:$0xff]
    %v1894 = vld [vmem:[%s1234 + $0xa0] sm:$0xff]
    %v1895 = vld [vmem:[%s1234 + $0xa8] sm:$0xff]
    %v1896 = vld [vmem:[%s1234 + $0xb0] sm:$0xff]
    %v1897 = vld [vmem:[%s1234 + $0xb8] sm:$0xff]
    %v1898 = vld [vmem:[%s1234 + $0xc0] sm:$0xff]
    %v1899 = vld [vmem:[%s1234 + $0xc8] sm:$0xff]
    %v1900 = vld [vmem:[%s1234 + $0xd0] sm:$0xff]
    %v1901 = vld [vmem:[%s1234 + $0xd8] sm:$0xff]
    %v1902 = vld [vmem:[%s1234 + $0xe0] sm:$0xff]
    %v1903 = vld [vmem:[%s1234 + $0xe8] sm:$0xff]
    %v1904 = vld [vmem:[%s1234 + $0xf0] sm:$0xff]
    %v1905 = vld [vmem:[%s1234 + $0xf8] sm:$0xff]
    %v1938 = vunpack.c.l.b16 %v1874
    %v1939 = vunpack.c.h.b16 %v1874
    %v1940 = vunpack.c.l.b16 %v1875
    %v1941 = vunpack.c.h.b16 %v1875
    %v1942 = vunpack.c.l.b16 %v1876
    %v1943 = vunpack.c.h.b16 %v1876
    %v1944 = vunpack.c.l.b16 %v1877
    %v1945 = vunpack.c.h.b16 %v1877
    %v1946 = vunpack.c.l.b16 %v1878
    %v1947 = vunpack.c.h.b16 %v1878
    %v1948 = vunpack.c.l.b16 %v1879
    %v1949 = vunpack.c.h.b16 %v1879
    %v1950 = vunpack.c.l.b16 %v1880
    %v1951 = vunpack.c.h.b16 %v1880
    %v1952 = vunpack.c.l.b16 %v1881
    %v1953 = vunpack.c.h.b16 %v1881
    %v1954 = vunpack.c.l.b16 %v1882
    %v1955 = vunpack.c.h.b16 %v1882
    %v1956 = vunpack.c.l.b16 %v1883
    %v1957 = vunpack.c.h.b16 %v1883
    %v1958 = vunpack.c.l.b16 %v1884
    %v1959 = vunpack.c.h.b16 %v1884
    %v1960 = vunpack.c.l.b16 %v1885
    %v1961 = vunpack.c.h.b16 %v1885
    %v1962 = vunpack.c.l.b16 %v1886
    %v1963 = vunpack.c.h.b16 %v1886
    %v1964 = vunpack.c.l.b16 %v1887
    %v1965 = vunpack.c.h.b16 %v1887
    %v1966 = vunpack.c.l.b16 %v1888
    %v1967 = vunpack.c.h.b16 %v1888
    %v1968 = vunpack.c.l.b16 %v1889
    %v1969 = vunpack.c.h.b16 %v1889
    %v1970 = vunpack.c.l.b16 %v1890
    %v1971 = vunpack.c.h.b16 %v1890
    %v1972 = vunpack.c.l.b16 %v1891
    %v1973 = vunpack.c.h.b16 %v1891
    %v1974 = vunpack.c.l.b16 %v1892
    %v1975 = vunpack.c.h.b16 %v1892
    %v1976 = vunpack.c.l.b16 %v1893
    %v1977 = vunpack.c.h.b16 %v1893
    %v1978 = vunpack.c.l.b16 %v1894
    %v1979 = vunpack.c.h.b16 %v1894
    %v1980 = vunpack.c.l.b16 %v1895
    %v1981 = vunpack.c.h.b16 %v1895
    %v1982 = vunpack.c.l.b16 %v1896
    %v1983 = vunpack.c.h.b16 %v1896
    %v1984 = vunpack.c.l.b16 %v1897
    %v1985 = vunpack.c.h.b16 %v1897
    %v1986 = vunpack.c.l.b16 %v1898
    %v1987 = vunpack.c.h.b16 %v1898
    %v1988 = vunpack.c.l.b16 %v1899
    %v1989 = vunpack.c.h.b16 %v1899
    %v1990 = vunpack.c.l.b16 %v1900
    %v1991 = vunpack.c.h.b16 %v1900
    %v1992 = vunpack.c.l.b16 %v1901
    %v1993 = vunpack.c.h.b16 %v1901
    %v1994 = vunpack.c.l.b16 %v1902
    %v1995 = vunpack.c.h.b16 %v1902
    %v1996 = vunpack.c.l.b16 %v1903
    %v1997 = vunpack.c.h.b16 %v1903
    %v1998 = vunpack.c.l.b16 %v1904
    %v1999 = vunpack.c.h.b16 %v1904
    %v2000 = vunpack.c.l.b16 %v1905
    %v2001 = vunpack.c.h.b16 %v1905
    %v2002 = vpack.c.b16 %v1942, %v1938
    %v2003 = vpack.c.b16 %v1943, %v1939
    %v2004 = vpack.c.b16 %v1944, %v1940
    %v2005 = vpack.c.b16 %v1945, %v1941
    %v2006 = vpack.c.b16 %v1950, %v1946
    %v2007 = vpack.c.b16 %v1951, %v1947
    %v2008 = vpack.c.b16 %v1952, %v1948
    %v2009 = vpack.c.b16 %v1953, %v1949
    %v2010 = vpack.c.b16 %v1958, %v1954
    %v2011 = vpack.c.b16 %v1959, %v1955
    %v2012 = vpack.c.b16 %v1960, %v1956
    %v2013 = vpack.c.b16 %v1961, %v1957
    %v2014 = vpack.c.b16 %v1966, %v1962
    %v2015 = vpack.c.b16 %v1967, %v1963
    %v2016 = vpack.c.b16 %v1968, %v1964
    %v2017 = vpack.c.b16 %v1969, %v1965
    %v2018 = vpack.c.b16 %v1974, %v1970
    %v2019 = vpack.c.b16 %v1975, %v1971
    %v2020 = vpack.c.b16 %v1976, %v1972
    %v2021 = vpack.c.b16 %v1977, %v1973
    %v2022 = vpack.c.b16 %v1982, %v1978
    %v2023 = vpack.c.b16 %v1983, %v1979
    %v2024 = vpack.c.b16 %v1984, %v1980
    %v2025 = vpack.c.b16 %v1985, %v1981
    %v2026 = vpack.c.b16 %v1990, %v1986
    %v2027 = vpack.c.b16 %v1991, %v1987
    %v2028 = vpack.c.b16 %v1992, %v1988
    %v2029 = vpack.c.b16 %v1993, %v1989
    %v2030 = vpack.c.b16 %v1998, %v1994
    %v2031 = vpack.c.b16 %v1999, %v1995
    %v2032 = vpack.c.b16 %v2000, %v1996
    %v2033 = vpack.c.b16 %v2001, %v1997
    %2066 = vmatpush.bf16.msra.mxu0 %v2030
    %2067 = vmatpush.bf16.msra.mxu0 %v2026
    %2068 = vmatpush.bf16.msra.mxu0 %v2022
    %2069 = vmatpush.bf16.msra.mxu0 %v2018
    %2070 = vmatpush.bf16.msra.mxu0 %v2014
    %2071 = vmatpush.bf16.msra.mxu0 %v2010
    %2072 = vmatpush.bf16.msra.mxu0 %v2006
    %2073 = vmatpush.bf16.msra.mxu0 %v2002
    %2074 = vmatmul.bf16.gmra.mxu0 %v1873
    %v2075 = vpop.f32.mrf.mxu0
    %v2076 = vadd.f32 0.0, %v2075
    %v2077 = vpop.f32.mrf.mxu0
    %2078 = vdwg.mxu0
    %2079 = vmatpush.bf16.msra.mxu0 %v2031
    %2080 = vmatpush.bf16.msra.mxu0 %v2027
    %2081 = vmatpush.bf16.msra.mxu0 %v2023
    %2082 = vmatpush.bf16.msra.mxu0 %v2019
    %2083 = vmatpush.bf16.msra.mxu0 %v2015
    %2084 = vmatpush.bf16.msra.mxu0 %v2011
    %2085 = vmatpush.bf16.msra.mxu0 %v2007
    %2086 = vmatpush.bf16.msra.mxu0 %v2003
    %2087 = vmatmul.bf16.gmra.mxu0 %v1873
    %v2088 = vpop.f32.mrf.mxu0
    %v2089 = vadd.f32 0.0, %v2088
    %v2090 = vpop.f32.mrf.mxu0
    %2091 = vdwg.mxu0
    %2092 = vmatpush.bf16.msra.mxu0 %v2032
    %2093 = vmatpush.bf16.msra.mxu0 %v2028
    %2094 = vmatpush.bf16.msra.mxu0 %v2024
    %2095 = vmatpush.bf16.msra.mxu0 %v2020
    %2096 = vmatpush.bf16.msra.mxu0 %v2016
    %2097 = vmatpush.bf16.msra.mxu0 %v2012
    %2098 = vmatpush.bf16.msra.mxu0 %v2008
    %2099 = vmatpush.bf16.msra.mxu0 %v2004
    %2100 = vmatmul.bf16.gmra.mxu0 %v1873
    %v2101 = vpop.f32.mrf.mxu0
    %v2102 = vadd.f32 0.0, %v2101
    %v2103 = vpop.f32.mrf.mxu0
    %2104 = vdwg.mxu0
    %2105 = vmatpush.bf16.msra.mxu0 %v2033
    %2106 = vmatpush.bf16.msra.mxu0 %v2029
    %2107 = vmatpush.bf16.msra.mxu0 %v2025
    %2108 = vmatpush.bf16.msra.mxu0 %v2021
    %2109 = vmatpush.bf16.msra.mxu0 %v2017
    %2110 = vmatpush.bf16.msra.mxu0 %v2013
    %2111 = vmatpush.bf16.msra.mxu0 %v2009
    %2112 = vmatpush.bf16.msra.mxu0 %v2005
    %2113 = vmatmul.bf16.gmra.mxu0 %v1873
    %v2114 = vpop.f32.mrf.mxu0
    %v2115 = vadd.f32 0.0, %v2114
    %v2116 = vpop.f32.mrf.mxu0
    %2117 = vdwg.mxu0
    %s2118 = smul.addr %s1486, 8
    %s2119 = scalar_lea.vmem %s1479, %s2118 [#allocation3]
    %2120 = vst [vmem:[%s2119] sm:$0xff] %v2076
    %2121 = vst [vmem:[%s2119 + $0x8] sm:$0xff] %v2089
    %2122 = vst [vmem:[%s2119 + $0x10] sm:$0xff] %v2102
    %2123 = vst [vmem:[%s2119 + $0x18] sm:$0xff] %v2115
    %s2124 = smul.u32 2, 4
    %s2125 = smul.addr %s2124, 8
    %s2126 = scalar_lea.vmem [#allocation3], %s2125
    %v2127 = vld [vmem:[%s2126] sm:$0xff]
    %v2128 = vld [vmem:[%s2126 + $0x8] sm:$0xff]
    %v2129 = vld [vmem:[%s2126 + $0x10] sm:$0xff]
    %v2130 = vld [vmem:[%s2126 + $0x18] sm:$0xff]
    %v2131 = vld [vmem:[#allocation9] sm:$0xff]
    %v2132 = vld [vmem:[#allocation9 + $0x8] sm:$0xff]
    %v2133 = vld [vmem:[#allocation9 + $0x10] sm:$0xff]
    %v2134 = vld [vmem:[#allocation9 + $0x18] sm:$0xff]
    %v2135 = vld [vmem:[#allocation9 + $0x20] sm:$0xff]
    %v2136 = vld [vmem:[#allocation9 + $0x28] sm:$0xff]
    %v2137 = vld [vmem:[#allocation9 + $0x30] sm:$0xff]
    %v2138 = vld [vmem:[#allocation9 + $0x38] sm:$0xff]
    %v2139 = vld [vmem:[#allocation9 + $0x40] sm:$0xff]
    %v2140 = vld [vmem:[#allocation9 + $0x48] sm:$0xff]
    %v2141 = vld [vmem:[#allocation9 + $0x50] sm:$0xff]
    %v2142 = vld [vmem:[#allocation9 + $0x58] sm:$0xff]
    %v2143 = vld [vmem:[#allocation9 + $0x60] sm:$0xff]
    %v2144 = vld [vmem:[#allocation9 + $0x68] sm:$0xff]
    %v2145 = vld [vmem:[#allocation9 + $0x70] sm:$0xff]
    %v2146 = vld [vmem:[#allocation9 + $0x78] sm:$0xff]
    %v2147 = vld [vmem:[#allocation9 + $0x80] sm:$0xff]
    %v2148 = vld [vmem:[#allocation9 + $0x88] sm:$0xff]
    %v2149 = vld [vmem:[#allocation9 + $0x90] sm:$0xff]
    %v2150 = vld [vmem:[#allocation9 + $0x98] sm:$0xff]
    %v2151 = vld [vmem:[#allocation9 + $0xa0] sm:$0xff]
    %v2152 = vld [vmem:[#allocation9 + $0xa8] sm:$0xff]
    %v2153 = vld [vmem:[#allocation9 + $0xb0] sm:$0xff]
    %v2154 = vld [vmem:[#allocation9 + $0xb8] sm:$0xff]
    %v2155 = vld [vmem:[#allocation9 + $0xc0] sm:$0xff]
    %v2156 = vld [vmem:[#allocation9 + $0xc8] sm:$0xff]
    %v2157 = vld [vmem:[#allocation9 + $0xd0] sm:$0xff]
    %v2158 = vld [vmem:[#allocation9 + $0xd8] sm:$0xff]
    %v2159 = vld [vmem:[#allocation9 + $0xe0] sm:$0xff]
    %v2160 = vld [vmem:[#allocation9 + $0xe8] sm:$0xff]
    %v2161 = vld [vmem:[#allocation9 + $0xf0] sm:$0xff]
    %v2162 = vld [vmem:[#allocation9 + $0xf8] sm:$0xff]
    %v2195 = vunpack.c.l.b16 %v2131
    %v2196 = vunpack.c.h.b16 %v2131
    %v2197 = vunpack.c.l.b16 %v2132
    %v2198 = vunpack.c.h.b16 %v2132
    %v2199 = vunpack.c.l.b16 %v2133
    %v2200 = vunpack.c.h.b16 %v2133
    %v2201 = vunpack.c.l.b16 %v2134
    %v2202 = vunpack.c.h.b16 %v2134
    %v2203 = vunpack.c.l.b16 %v2135
    %v2204 = vunpack.c.h.b16 %v2135
    %v2205 = vunpack.c.l.b16 %v2136
    %v2206 = vunpack.c.h.b16 %v2136
    %v2207 = vunpack.c.l.b16 %v2137
    %v2208 = vunpack.c.h.b16 %v2137
    %v2209 = vunpack.c.l.b16 %v2138
    %v2210 = vunpack.c.h.b16 %v2138
    %v2211 = vunpack.c.l.b16 %v2139
    %v2212 = vunpack.c.h.b16 %v2139
    %v2213 = vunpack.c.l.b16 %v2140
    %v2214 = vunpack.c.h.b16 %v2140
    %v2215 = vunpack.c.l.b16 %v2141
    %v2216 = vunpack.c.h.b16 %v2141
    %v2217 = vunpack.c.l.b16 %v2142
    %v2218 = vunpack.c.h.b16 %v2142
    %v2219 = vunpack.c.l.b16 %v2143
    %v2220 = vunpack.c.h.b16 %v2143
    %v2221 = vunpack.c.l.b16 %v2144
    %v2222 = vunpack.c.h.b16 %v2144
    %v2223 = vunpack.c.l.b16 %v2145
    %v2224 = vunpack.c.h.b16 %v2145
    %v2225 = vunpack.c.l.b16 %v2146
    %v2226 = vunpack.c.h.b16 %v2146
    %v2227 = vunpack.c.l.b16 %v2147
    %v2228 = vunpack.c.h.b16 %v2147
    %v2229 = vunpack.c.l.b16 %v2148
    %v2230 = vunpack.c.h.b16 %v2148
    %v2231 = vunpack.c.l.b16 %v2149
    %v2232 = vunpack.c.h.b16 %v2149
    %v2233 = vunpack.c.l.b16 %v2150
    %v2234 = vunpack.c.h.b16 %v2150
    %v2235 = vunpack.c.l.b16 %v2151
    %v2236 = vunpack.c.h.b16 %v2151
    %v2237 = vunpack.c.l.b16 %v2152
    %v2238 = vunpack.c.h.b16 %v2152
    %v2239 = vunpack.c.l.b16 %v2153
    %v2240 = vunpack.c.h.b16 %v2153
    %v2241 = vunpack.c.l.b16 %v2154
    %v2242 = vunpack.c.h.b16 %v2154
    %v2243 = vunpack.c.l.b16 %v2155
    %v2244 = vunpack.c.h.b16 %v2155
    %v2245 = vunpack.c.l.b16 %v2156
    %v2246 = vunpack.c.h.b16 %v2156
    %v2247 = vunpack.c.l.b16 %v2157
    %v2248 = vunpack.c.h.b16 %v2157
    %v2249 = vunpack.c.l.b16 %v2158
    %v2250 = vunpack.c.h.b16 %v2158
    %v2251 = vunpack.c.l.b16 %v2159
    %v2252 = vunpack.c.h.b16 %v2159
    %v2253 = vunpack.c.l.b16 %v2160
    %v2254 = vunpack.c.h.b16 %v2160
    %v2255 = vunpack.c.l.b16 %v2161
    %v2256 = vunpack.c.h.b16 %v2161
    %v2257 = vunpack.c.l.b16 %v2162
    %v2258 = vunpack.c.h.b16 %v2162
    %v2259 = vpack.c.b16 %v2199, %v2195
    %v2260 = vpack.c.b16 %v2200, %v2196
    %v2261 = vpack.c.b16 %v2201, %v2197
    %v2262 = vpack.c.b16 %v2202, %v2198
    %v2263 = vpack.c.b16 %v2207, %v2203
    %v2264 = vpack.c.b16 %v2208, %v2204
    %v2265 = vpack.c.b16 %v2209, %v2205
    %v2266 = vpack.c.b16 %v2210, %v2206
    %v2267 = vpack.c.b16 %v2215, %v2211
    %v2268 = vpack.c.b16 %v2216, %v2212
    %v2269 = vpack.c.b16 %v2217, %v2213
    %v2270 = vpack.c.b16 %v2218, %v2214
    %v2271 = vpack.c.b16 %v2223, %v2219
    %v2272 = vpack.c.b16 %v2224, %v2220
    %v2273 = vpack.c.b16 %v2225, %v2221
    %v2274 = vpack.c.b16 %v2226, %v2222
    %v2275 = vpack.c.b16 %v2231, %v2227
    %v2276 = vpack.c.b16 %v2232, %v2228
    %v2277 = vpack.c.b16 %v2233, %v2229
    %v2278 = vpack.c.b16 %v2234, %v2230
    %v2279 = vpack.c.b16 %v2239, %v2235
    %v2280 = vpack.c.b16 %v2240, %v2236
    %v2281 = vpack.c.b16 %v2241, %v2237
    %v2282 = vpack.c.b16 %v2242, %v2238
    %v2283 = vpack.c.b16 %v2247, %v2243
    %v2284 = vpack.c.b16 %v2248, %v2244
    %v2285 = vpack.c.b16 %v2249, %v2245
    %v2286 = vpack.c.b16 %v2250, %v2246
    %v2287 = vpack.c.b16 %v2255, %v2251
    %v2288 = vpack.c.b16 %v2256, %v2252
    %v2289 = vpack.c.b16 %v2257, %v2253
    %v2290 = vpack.c.b16 %v2258, %v2254
    %2323 = vmatpush.bf16.msra.mxu0 %v2287
    %2324 = vmatpush.bf16.msra.mxu0 %v2283
    %2325 = vmatpush.bf16.msra.mxu0 %v2279
    %2326 = vmatpush.bf16.msra.mxu0 %v2275
    %2327 = vmatpush.bf16.msra.mxu0 %v2271
    %2328 = vmatpush.bf16.msra.mxu0 %v2267
    %2329 = vmatpush.bf16.msra.mxu0 %v2263
    %2330 = vmatpush.bf16.msra.mxu0 %v2259
    %2331 = vmatmul.bf16.gmra.mxu0 %v1873
    %v2332 = vpop.f32.mrf.mxu0
    %v2333 = vadd.f32 0.0, %v2332
    %v2334 = vpop.f32.mrf.mxu0
    %2335 = vdwg.mxu0
    %2336 = vmatpush.bf16.msra.mxu0 %v2288
    %2337 = vmatpush.bf16.msra.mxu0 %v2284
    %2338 = vmatpush.bf16.msra.mxu0 %v2280
    %2339 = vmatpush.bf16.msra.mxu0 %v2276
    %2340 = vmatpush.bf16.msra.mxu0 %v2272
    %2341 = vmatpush.bf16.msra.mxu0 %v2268
    %2342 = vmatpush.bf16.msra.mxu0 %v2264
    %2343 = vmatpush.bf16.msra.mxu0 %v2260
    %2344 = vmatmul.bf16.gmra.mxu0 %v1873
    %v2345 = vpop.f32.mrf.mxu0
    %v2346 = vadd.f32 0.0, %v2345
    %v2347 = vpop.f32.mrf.mxu0
    %2348 = vdwg.mxu0
    %2349 = vmatpush.bf16.msra.mxu0 %v2289
    %2350 = vmatpush.bf16.msra.mxu0 %v2285
    %2351 = vmatpush.bf16.msra.mxu0 %v2281
    %2352 = vmatpush.bf16.msra.mxu0 %v2277
    %2353 = vmatpush.bf16.msra.mxu0 %v2273
    %2354 = vmatpush.bf16.msra.mxu0 %v2269
    %2355 = vmatpush.bf16.msra.mxu0 %v2265
    %2356 = vmatpush.bf16.msra.mxu0 %v2261
    %2357 = vmatmul.bf16.gmra.mxu0 %v1873
    %v2358 = vpop.f32.mrf.mxu0
    %v2359 = vadd.f32 0.0, %v2358
    %v2360 = vpop.f32.mrf.mxu0
    %2361 = vdwg.mxu0
    %2362 = vmatpush.bf16.msra.mxu0 %v2290
    %2363 = vmatpush.bf16.msra.mxu0 %v2286
    %2364 = vmatpush.bf16.msra.mxu0 %v2282
    %2365 = vmatpush.bf16.msra.mxu0 %v2278
    %2366 = vmatpush.bf16.msra.mxu0 %v2274
    %2367 = vmatpush.bf16.msra.mxu0 %v2270
    %2368 = vmatpush.bf16.msra.mxu0 %v2266
    %2369 = vmatpush.bf16.msra.mxu0 %v2262
    %2370 = vmatmul.bf16.gmra.mxu0 %v1873
    %v2371 = vpop.f32.mrf.mxu0
    %v2372 = vadd.f32 0.0, %v2371
    %v2373 = vpop.f32.mrf.mxu0
    %2374 = vdwg.mxu0
    %v2375 = vadd.f32 %v2127, %v2333
    %v2376 = vadd.f32 %v2128, %v2346
    %v2377 = vadd.f32 %v2129, %v2359
    %v2378 = vadd.f32 %v2130, %v2372
    %v2379 = vadd.f32 %v2375, %v2376
    %v2380 = vadd.f32 %v2379, %v2377
    %v2381 = vadd.f32 %v2380, %v2378
    %2382 = vadd.xlane.f32.xlu0 %v2381
    %v2383 = vpop.xlane.xlu0 %2382
    %v2384 = vmul.f32 %v2383, %v1078
    %v2385 = vmul.f32 %v2375, %v2375
    %v2386 = vmul.f32 %v2376, %v2376
    %v2387 = vmul.f32 %v2377, %v2377
    %v2388 = vmul.f32 %v2378, %v2378
    %v2389 = vadd.f32 %v2385, %v2386
    %v2390 = vadd.f32 %v2389, %v2387
    %v2391 = vadd.f32 %v2390, %v2388
    %2392 = vadd.xlane.f32.xlu0 %v2391
    %v2393 = vpop.xlane.xlu0 %2392
    %v2394 = vmul.f32 %v2393, %v1078
    %v2395 = vmul.f32 %v2384, %v2384
    %v2396 = vsub.f32 %v2394, %v2395
    %v2397 = vsub.f32 %v2375, %v2384
    %v2398 = vsub.f32 %v2376, %v2384
    %v2399 = vsub.f32 %v2377, %v2384
    %v2400 = vsub.f32 %v2378, %v2384
    %v2401 = vadd.f32 %v2396, 0.001
    %v2402 = vrsqrt.pop %v2401
    %v2403 = vmul.f32 %v2402, %v2401
    %v2404 = vmul.f32 %v2403, %v2402
    %v2405 = vmul.f32 0.5, %v2404
    %v2406 = vsub.f32 1.5, %v2405
    %v2407 = vmul.f32 %v2402, %v2406
    %vm2408 = vweird.f32 %v2401
    %vm2409 = vweird.f32 %v2402
    %vm2410 = vmor %vm2408, %vm2409
    %v2411 = vsel %vm2410, %v2402, %v2407
    %v2412 = vmul.f32 %v2397, %v2411
    %v2413 = vmul.f32 %v2398, %v2411
    %v2414 = vmul.f32 %v2399, %v2411
    %v2415 = vmul.f32 %v2400, %v2411
    %v2416 = vmul.f32 %v2412, %v1120
    %v2417 = vmul.f32 %v2413, %v1121
    %v2418 = vmul.f32 %v2414, %v1122
    %v2419 = vmul.f32 %v2415, %v1123
    %v2420 = vadd.f32 %v2416, %v1136
    %v2421 = vadd.f32 %v2417, %v1137
    %v2422 = vadd.f32 %v2418, %v1138
    %v2423 = vadd.f32 %v2419, %v1139
    %v2424 = vxor.u32 %v2420, 2147483648
    %v2425 = vxor.u32 %v2421, 2147483648
    %v2426 = vxor.u32 %v2422, 2147483648
    %v2427 = vmul.f32 %v2424, 1.442695
    %v2428 = vpow.pop %v2427
    %v2429 = vmul.f32 %v2425, 1.442695
    %v2430 = vpow.pop %v2429
    %v2431 = vmul.f32 %v2426, 1.442695
    %v2432 = vpow.pop %v2431
    %v2433 = vadd.f32 %v2428, 1.0
    %v2434 = vadd.f32 %v2430, 1.0
    %v2435 = vadd.f32 %v2432, 1.0
    %v2436 = vrcp.pop %v2433
    %v2437 = vmul.f32 %v2433, %v2436
    %v2438 = vsub.f32 1.0, %v2437
    %v2439 = vmul.f32 %v2436, %v2438
    %v2440 = vadd.f32 %v2436, %v2439
    %vm2441 = vweird.f32 %v2433
    %vm2442 = vweird.f32 %v2436
    %vm2443 = vmor %vm2441, %vm2442
    %v2444 = vsel %vm2443, %v2436, %v2440
    %v2445 = vand.u32 2147483647, %v2433
    %vm2446 = vcmp.eq.f32.partialorder %v2445, 8.507059e+37
    %v2447 = vand.u32 %v2433, 2147483648
    %v2448 = vor.u32 1.1754944e-38, %v2447
    %v2449 = vsel %vm2446, %v2448, %v2444
    %v2450 = vmul.f32 1.0, %v2449
    %v2451 = vrcp.pop %v2434
    %v2452 = vmul.f32 %v2434, %v2451
    %v2453 = vsub.f32 1.0, %v2452
    %v2454 = vmul.f32 %v2451, %v2453
    %v2455 = vadd.f32 %v2451, %v2454
    %vm2456 = vweird.f32 %v2434
    %vm2457 = vweird.f32 %v2451
    %vm2458 = vmor %vm2456, %vm2457
    %v2459 = vsel %vm2458, %v2451, %v2455
    %v2460 = vand.u32 2147483647, %v2434
    %vm2461 = vcmp.eq.f32.partialorder %v2460, 8.507059e+37
    %v2462 = vand.u32 %v2434, 2147483648
    %v2463 = vor.u32 1.1754944e-38, %v2462
    %v2464 = vsel %vm2461, %v2463, %v2459
    %v2465 = vmul.f32 1.0, %v2464
    %v2466 = vrcp.pop %v2435
    %v2467 = vmul.f32 %v2435, %v2466
    %v2468 = vsub.f32 1.0, %v2467
    %v2469 = vmul.f32 %v2466, %v2468
    %v2470 = vadd.f32 %v2466, %v2469
    %vm2471 = vweird.f32 %v2435
    %vm2472 = vweird.f32 %v2466
    %vm2473 = vmor %vm2471, %vm2472
    %v2474 = vsel %vm2473, %v2466, %v2470
    %v2475 = vand.u32 2147483647, %v2435
    %vm2476 = vcmp.eq.f32.partialorder %v2475, 8.507059e+37
    %v2477 = vand.u32 %v2435, 2147483648
    %v2478 = vor.u32 1.1754944e-38, %v2477
    %v2479 = vsel %vm2476, %v2478, %v2474
    %v2480 = vmul.f32 1.0, %v2479
    %v2481 = vtanh.pop %v2423
    %v2482 = vmul.f32 %v2465, %v1870
    %v2483 = vmul.f32 %v2450, %v2481
    %v2484 = vadd.f32 %v2482, %v2483
    %2485 = vadd.xlane.f32.xlu0 %v2484
    %v2486 = vpop.xlane.xlu0 %2485
    %v2487 = vmul.f32 %v2486, %v268
    %v2488 = vmul.f32 %v2484, %v2484
    %2489 = vadd.xlane.f32.xlu0 %v2488
    %v2490 = vpop.xlane.xlu0 %2489
    %v2491 = vmul.f32 %v2490, %v268
    %v2492 = vmul.f32 %v2487, %v2487
    %v2493 = vsub.f32 %v2491, %v2492
    %v2494 = vsub.f32 %v2484, %v2487
    %v2495 = vadd.f32 %v2493, 0.001
    %v2496 = vrsqrt.pop %v2495
    %v2497 = vmul.f32 %v2496, %v2495
    %v2498 = vmul.f32 %v2497, %v2496
    %v2499 = vmul.f32 0.5, %v2498
    %v2500 = vsub.f32 1.5, %v2499
    %v2501 = vmul.f32 %v2496, %v2500
    %vm2502 = vweird.f32 %v2495
    %vm2503 = vweird.f32 %v2496
    %vm2504 = vmor %vm2502, %vm2503
    %v2505 = vsel %vm2504, %v2496, %v2501
    %v2506 = vmul.f32 %v2494, %v2505
    %v2507 = vmul.f32 %v2506, %v1227
    %v2508 = vadd.f32 %v2507, %v1229
    %v2509 = vtanh.pop %v2508
    %v2510 = vmul.f32 %v2480, %v2509
    %v2511 = vpack.c.bf16 %v2510, %v2510
    %v2512 = vld [vmem:[%s1234] sm:$0xff]
    %v2513 = vld [vmem:[%s1234 + $0x8] sm:$0xff]
    %v2514 = vld [vmem:[%s1234 + $0x10] sm:$0xff]
    %v2515 = vld [vmem:[%s1234 + $0x18] sm:$0xff]
    %v2516 = vld [vmem:[%s1234 + $0x20] sm:$0xff]
    %v2517 = vld [vmem:[%s1234 + $0x28] sm:$0xff]
    %v2518 = vld [vmem:[%s1234 + $0x30] sm:$0xff]
    %v2519 = vld [vmem:[%s1234 + $0x38] sm:$0xff]
    %v2520 = vld [vmem:[%s1234 + $0x40] sm:$0xff]
    %v2521 = vld [vmem:[%s1234 + $0x48] sm:$0xff]
    %v2522 = vld [vmem:[%s1234 + $0x50] sm:$0xff]
    %v2523 = vld [vmem:[%s1234 + $0x58] sm:$0xff]
    %v2524 = vld [vmem:[%s1234 + $0x60] sm:$0xff]
    %v2525 = vld [vmem:[%s1234 + $0x68] sm:$0xff]
    %v2526 = vld [vmem:[%s1234 + $0x70] sm:$0xff]
    %v2527 = vld [vmem:[%s1234 + $0x78] sm:$0xff]
    %v2528 = vld [vmem:[%s1234 + $0x80] sm:$0xff]
    %v2529 = vld [vmem:[%s1234 + $0x88] sm:$0xff]
    %v2530 = vld [vmem:[%s1234 + $0x90] sm:$0xff]
    %v2531 = vld [vmem:[%s1234 + $0x98] sm:$0xff]
    %v2532 = vld [vmem:[%s1234 + $0xa0] sm:$0xff]
    %v2533 = vld [vmem:[%s1234 + $0xa8] sm:$0xff]
    %v2534 = vld [vmem:[%s1234 + $0xb0] sm:$0xff]
    %v2535 = vld [vmem:[%s1234 + $0xb8] sm:$0xff]
    %v2536 = vld [vmem:[%s1234 + $0xc0] sm:$0xff]
    %v2537 = vld [vmem:[%s1234 + $0xc8] sm:$0xff]
    %v2538 = vld [vmem:[%s1234 + $0xd0] sm:$0xff]
    %v2539 = vld [vmem:[%s1234 + $0xd8] sm:$0xff]
    %v2540 = vld [vmem:[%s1234 + $0xe0] sm:$0xff]
    %v2541 = vld [vmem:[%s1234 + $0xe8] sm:$0xff]
    %v2542 = vld [vmem:[%s1234 + $0xf0] sm:$0xff]
    %v2543 = vld [vmem:[%s1234 + $0xf8] sm:$0xff]
    %v2576 = vunpack.c.l.b16 %v2512
    %v2577 = vunpack.c.h.b16 %v2512
    %v2578 = vunpack.c.l.b16 %v2513
    %v2579 = vunpack.c.h.b16 %v2513
    %v2580 = vunpack.c.l.b16 %v2514
    %v2581 = vunpack.c.h.b16 %v2514
    %v2582 = vunpack.c.l.b16 %v2515
    %v2583 = vunpack.c.h.b16 %v2515
    %v2584 = vunpack.c.l.b16 %v2516
    %v2585 = vunpack.c.h.b16 %v2516
    %v2586 = vunpack.c.l.b16 %v2517
    %v2587 = vunpack.c.h.b16 %v2517
    %v2588 = vunpack.c.l.b16 %v2518
    %v2589 = vunpack.c.h.b16 %v2518
    %v2590 = vunpack.c.l.b16 %v2519
    %v2591 = vunpack.c.h.b16 %v2519
    %v2592 = vunpack.c.l.b16 %v2520
    %v2593 = vunpack.c.h.b16 %v2520
    %v2594 = vunpack.c.l.b16 %v2521
    %v2595 = vunpack.c.h.b16 %v2521
    %v2596 = vunpack.c.l.b16 %v2522
    %v2597 = vunpack.c.h.b16 %v2522
    %v2598 = vunpack.c.l.b16 %v2523
    %v2599 = vunpack.c.h.b16 %v2523
    %v2600 = vunpack.c.l.b16 %v2524
    %v2601 = vunpack.c.h.b16 %v2524
    %v2602 = vunpack.c.l.b16 %v2525
    %v2603 = vunpack.c.h.b16 %v2525
    %v2604 = vunpack.c.l.b16 %v2526
    %v2605 = vunpack.c.h.b16 %v2526
    %v2606 = vunpack.c.l.b16 %v2527
    %v2607 = vunpack.c.h.b16 %v2527
    %v2608 = vunpack.c.l.b16 %v2528
    %v2609 = vunpack.c.h.b16 %v2528
    %v2610 = vunpack.c.l.b16 %v2529
    %v2611 = vunpack.c.h.b16 %v2529
    %v2612 = vunpack.c.l.b16 %v2530
    %v2613 = vunpack.c.h.b16 %v2530
    %v2614 = vunpack.c.l.b16 %v2531
    %v2615 = vunpack.c.h.b16 %v2531
    %v2616 = vunpack.c.l.b16 %v2532
    %v2617 = vunpack.c.h.b16 %v2532
    %v2618 = vunpack.c.l.b16 %v2533
    %v2619 = vunpack.c.h.b16 %v2533
    %v2620 = vunpack.c.l.b16 %v2534
    %v2621 = vunpack.c.h.b16 %v2534
    %v2622 = vunpack.c.l.b16 %v2535
    %v2623 = vunpack.c.h.b16 %v2535
    %v2624 = vunpack.c.l.b16 %v2536
    %v2625 = vunpack.c.h.b16 %v2536
    %v2626 = vunpack.c.l.b16 %v2537
    %v2627 = vunpack.c.h.b16 %v2537
    %v2628 = vunpack.c.l.b16 %v2538
    %v2629 = vunpack.c.h.b16 %v2538
    %v2630 = vunpack.c.l.b16 %v2539
    %v2631 = vunpack.c.h.b16 %v2539
    %v2632 = vunpack.c.l.b16 %v2540
    %v2633 = vunpack.c.h.b16 %v2540
    %v2634 = vunpack.c.l.b16 %v2541
    %v2635 = vunpack.c.h.b16 %v2541
    %v2636 = vunpack.c.l.b16 %v2542
    %v2637 = vunpack.c.h.b16 %v2542
    %v2638 = vunpack.c.l.b16 %v2543
    %v2639 = vunpack.c.h.b16 %v2543
    %v2640 = vpack.c.b16 %v2580, %v2576
    %v2641 = vpack.c.b16 %v2581, %v2577
    %v2642 = vpack.c.b16 %v2582, %v2578
    %v2643 = vpack.c.b16 %v2583, %v2579
    %v2644 = vpack.c.b16 %v2588, %v2584
    %v2645 = vpack.c.b16 %v2589, %v2585
    %v2646 = vpack.c.b16 %v2590, %v2586
    %v2647 = vpack.c.b16 %v2591, %v2587
    %v2648 = vpack.c.b16 %v2596, %v2592
    %v2649 = vpack.c.b16 %v2597, %v2593
    %v2650 = vpack.c.b16 %v2598, %v2594
    %v2651 = vpack.c.b16 %v2599, %v2595
    %v2652 = vpack.c.b16 %v2604, %v2600
    %v2653 = vpack.c.b16 %v2605, %v2601
    %v2654 = vpack.c.b16 %v2606, %v2602
    %v2655 = vpack.c.b16 %v2607, %v2603
    %v2656 = vpack.c.b16 %v2612, %v2608
    %v2657 = vpack.c.b16 %v2613, %v2609
    %v2658 = vpack.c.b16 %v2614, %v2610
    %v2659 = vpack.c.b16 %v2615, %v2611
    %v2660 = vpack.c.b16 %v2620, %v2616
    %v2661 = vpack.c.b16 %v2621, %v2617
    %v2662 = vpack.c.b16 %v2622, %v2618
    %v2663 = vpack.c.b16 %v2623, %v2619
    %v2664 = vpack.c.b16 %v2628, %v2624
    %v2665 = vpack.c.b16 %v2629, %v2625
    %v2666 = vpack.c.b16 %v2630, %v2626
    %v2667 = vpack.c.b16 %v2631, %v2627
    %v2668 = vpack.c.b16 %v2636, %v2632
    %v2669 = vpack.c.b16 %v2637, %v2633
    %v2670 = vpack.c.b16 %v2638, %v2634
    %v2671 = vpack.c.b16 %v2639, %v2635
    %2704 = vmatpush.bf16.msra.mxu0 %v2668
    %2705 = vmatpush.bf16.msra.mxu0 %v2664
    %2706 = vmatpush.bf16.msra.mxu0 %v2660
    %2707 = vmatpush.bf16.msra.mxu0 %v2656
    %2708 = vmatpush.bf16.msra.mxu0 %v2652
    %2709 = vmatpush.bf16.msra.mxu0 %v2648
    %2710 = vmatpush.bf16.msra.mxu0 %v2644
    %2711 = vmatpush.bf16.msra.mxu0 %v2640
    %2712 = vmatmul.bf16.gmra.mxu0 %v2511
    %v2713 = vpop.f32.mrf.mxu0
    %v2714 = vadd.f32 0.0, %v2713
    %v2715 = vpop.f32.mrf.mxu0
    %2716 = vdwg.mxu0
    %2717 = vmatpush.bf16.msra.mxu0 %v2669
    %2718 = vmatpush.bf16.msra.mxu0 %v2665
    %2719 = vmatpush.bf16.msra.mxu0 %v2661
    %2720 = vmatpush.bf16.msra.mxu0 %v2657
    %2721 = vmatpush.bf16.msra.mxu0 %v2653
    %2722 = vmatpush.bf16.msra.mxu0 %v2649
    %2723 = vmatpush.bf16.msra.mxu0 %v2645
    %2724 = vmatpush.bf16.msra.mxu0 %v2641
    %2725 = vmatmul.bf16.gmra.mxu0 %v2511
    %v2726 = vpop.f32.mrf.mxu0
    %v2727 = vadd.f32 0.0, %v2726
    %v2728 = vpop.f32.mrf.mxu0
    %2729 = vdwg.mxu0
    %2730 = vmatpush.bf16.msra.mxu0 %v2670
    %2731 = vmatpush.bf16.msra.mxu0 %v2666
    %2732 = vmatpush.bf16.msra.mxu0 %v2662
    %2733 = vmatpush.bf16.msra.mxu0 %v2658
    %2734 = vmatpush.bf16.msra.mxu0 %v2654
    %2735 = vmatpush.bf16.msra.mxu0 %v2650
    %2736 = vmatpush.bf16.msra.mxu0 %v2646
    %2737 = vmatpush.bf16.msra.mxu0 %v2642
    %2738 = vmatmul.bf16.gmra.mxu0 %v2511
    %v2739 = vpop.f32.mrf.mxu0
    %v2740 = vadd.f32 0.0, %v2739
    %v2741 = vpop.f32.mrf.mxu0
    %2742 = vdwg.mxu0
    %2743 = vmatpush.bf16.msra.mxu0 %v2671
    %2744 = vmatpush.bf16.msra.mxu0 %v2667
    %2745 = vmatpush.bf16.msra.mxu0 %v2663
    %2746 = vmatpush.bf16.msra.mxu0 %v2659
    %2747 = vmatpush.bf16.msra.mxu0 %v2655
    %2748 = vmatpush.bf16.msra.mxu0 %v2651
    %2749 = vmatpush.bf16.msra.mxu0 %v2647
    %2750 = vmatpush.bf16.msra.mxu0 %v2643
    %2751 = vmatmul.bf16.gmra.mxu0 %v2511
    %v2752 = vpop.f32.mrf.mxu0
    %v2753 = vadd.f32 0.0, %v2752
    %v2754 = vpop.f32.mrf.mxu0
    %2755 = vdwg.mxu0
    %s2756 = smul.addr %s2124, 8
    %s2757 = scalar_lea.vmem %s1479, %s2756 [#allocation3]
    %2758 = vst [vmem:[%s2757] sm:$0xff] %v2714
    %2759 = vst [vmem:[%s2757 + $0x8] sm:$0xff] %v2727
    %2760 = vst [vmem:[%s2757 + $0x10] sm:$0xff] %v2740
    %2761 = vst [vmem:[%s2757 + $0x18] sm:$0xff] %v2753
    %s2762 = smul.u32 3, 4
    %s2763 = smul.addr %s2762, 8
    %s2764 = scalar_lea.vmem [#allocation3], %s2763
    %v2765 = vld [vmem:[%s2764] sm:$0xff]
    %v2766 = vld [vmem:[%s2764 + $0x8] sm:$0xff]
    %v2767 = vld [vmem:[%s2764 + $0x10] sm:$0xff]
    %v2768 = vld [vmem:[%s2764 + $0x18] sm:$0xff]
    %v2769 = vld [vmem:[#allocation9] sm:$0xff]
    %v2770 = vld [vmem:[#allocation9 + $0x8] sm:$0xff]
    %v2771 = vld [vmem:[#allocation9 + $0x10] sm:$0xff]
    %v2772 = vld [vmem:[#allocation9 + $0x18] sm:$0xff]
    %v2773 = vld [vmem:[#allocation9 + $0x20] sm:$0xff]
    %v2774 = vld [vmem:[#allocation9 + $0x28] sm:$0xff]
    %v2775 = vld [vmem:[#allocation9 + $0x30] sm:$0xff]
    %v2776 = vld [vmem:[#allocation9 + $0x38] sm:$0xff]
    %v2777 = vld [vmem:[#allocation9 + $0x40] sm:$0xff]
    %v2778 = vld [vmem:[#allocation9 + $0x48] sm:$0xff]
    %v2779 = vld [vmem:[#allocation9 + $0x50] sm:$0xff]
    %v2780 = vld [vmem:[#allocation9 + $0x58] sm:$0xff]
    %v2781 = vld [vmem:[#allocation9 + $0x60] sm:$0xff]
    %v2782 = vld [vmem:[#allocation9 + $0x68] sm:$0xff]
    %v2783 = vld [vmem:[#allocation9 + $0x70] sm:$0xff]
    %v2784 = vld [vmem:[#allocation9 + $0x78] sm:$0xff]
    %v2785 = vld [vmem:[#allocation9 + $0x80] sm:$0xff]
    %v2786 = vld [vmem:[#allocation9 + $0x88] sm:$0xff]
    %v2787 = vld [vmem:[#allocation9 + $0x90] sm:$0xff]
    %v2788 = vld [vmem:[#allocation9 + $0x98] sm:$0xff]
    %v2789 = vld [vmem:[#allocation9 + $0xa0] sm:$0xff]
    %v2790 = vld [vmem:[#allocation9 + $0xa8] sm:$0xff]
    %v2791 = vld [vmem:[#allocation9 + $0xb0] sm:$0xff]
    %v2792 = vld [vmem:[#allocation9 + $0xb8] sm:$0xff]
    %v2793 = vld [vmem:[#allocation9 + $0xc0] sm:$0xff]
    %v2794 = vld [vmem:[#allocation9 + $0xc8] sm:$0xff]
    %v2795 = vld [vmem:[#allocation9 + $0xd0] sm:$0xff]
    %v2796 = vld [vmem:[#allocation9 + $0xd8] sm:$0xff]
    %v2797 = vld [vmem:[#allocation9 + $0xe0] sm:$0xff]
    %v2798 = vld [vmem:[#allocation9 + $0xe8] sm:$0xff]
    %v2799 = vld [vmem:[#allocation9 + $0xf0] sm:$0xff]
    %v2800 = vld [vmem:[#allocation9 + $0xf8] sm:$0xff]
    %v2833 = vunpack.c.l.b16 %v2769
    %v2834 = vunpack.c.h.b16 %v2769
    %v2835 = vunpack.c.l.b16 %v2770
    %v2836 = vunpack.c.h.b16 %v2770
    %v2837 = vunpack.c.l.b16 %v2771
    %v2838 = vunpack.c.h.b16 %v2771
    %v2839 = vunpack.c.l.b16 %v2772
    %v2840 = vunpack.c.h.b16 %v2772
    %v2841 = vunpack.c.l.b16 %v2773
    %v2842 = vunpack.c.h.b16 %v2773
    %v2843 = vunpack.c.l.b16 %v2774
    %v2844 = vunpack.c.h.b16 %v2774
    %v2845 = vunpack.c.l.b16 %v2775
    %v2846 = vunpack.c.h.b16 %v2775
    %v2847 = vunpack.c.l.b16 %v2776
    %v2848 = vunpack.c.h.b16 %v2776
    %v2849 = vunpack.c.l.b16 %v2777
    %v2850 = vunpack.c.h.b16 %v2777
    %v2851 = vunpack.c.l.b16 %v2778
    %v2852 = vunpack.c.h.b16 %v2778
    %v2853 = vunpack.c.l.b16 %v2779
    %v2854 = vunpack.c.h.b16 %v2779
    %v2855 = vunpack.c.l.b16 %v2780
    %v2856 = vunpack.c.h.b16 %v2780
    %v2857 = vunpack.c.l.b16 %v2781
    %v2858 = vunpack.c.h.b16 %v2781
    %v2859 = vunpack.c.l.b16 %v2782
    %v2860 = vunpack.c.h.b16 %v2782
    %v2861 = vunpack.c.l.b16 %v2783
    %v2862 = vunpack.c.h.b16 %v2783
    %v2863 = vunpack.c.l.b16 %v2784
    %v2864 = vunpack.c.h.b16 %v2784
    %v2865 = vunpack.c.l.b16 %v2785
    %v2866 = vunpack.c.h.b16 %v2785
    %v2867 = vunpack.c.l.b16 %v2786
    %v2868 = vunpack.c.h.b16 %v2786
    %v2869 = vunpack.c.l.b16 %v2787
    %v2870 = vunpack.c.h.b16 %v2787
    %v2871 = vunpack.c.l.b16 %v2788
    %v2872 = vunpack.c.h.b16 %v2788
    %v2873 = vunpack.c.l.b16 %v2789
    %v2874 = vunpack.c.h.b16 %v2789
    %v2875 = vunpack.c.l.b16 %v2790
    %v2876 = vunpack.c.h.b16 %v2790
    %v2877 = vunpack.c.l.b16 %v2791
    %v2878 = vunpack.c.h.b16 %v2791
    %v2879 = vunpack.c.l.b16 %v2792
    %v2880 = vunpack.c.h.b16 %v2792
    %v2881 = vunpack.c.l.b16 %v2793
    %v2882 = vunpack.c.h.b16 %v2793
    %v2883 = vunpack.c.l.b16 %v2794
    %v2884 = vunpack.c.h.b16 %v2794
    %v2885 = vunpack.c.l.b16 %v2795
    %v2886 = vunpack.c.h.b16 %v2795
    %v2887 = vunpack.c.l.b16 %v2796
    %v2888 = vunpack.c.h.b16 %v2796
    %v2889 = vunpack.c.l.b16 %v2797
    %v2890 = vunpack.c.h.b16 %v2797
    %v2891 = vunpack.c.l.b16 %v2798
    %v2892 = vunpack.c.h.b16 %v2798
    %v2893 = vunpack.c.l.b16 %v2799
    %v2894 = vunpack.c.h.b16 %v2799
    %v2895 = vunpack.c.l.b16 %v2800
    %v2896 = vunpack.c.h.b16 %v2800
    %v2897 = vpack.c.b16 %v2837, %v2833
    %v2898 = vpack.c.b16 %v2838, %v2834
    %v2899 = vpack.c.b16 %v2839, %v2835
    %v2900 = vpack.c.b16 %v2840, %v2836
    %v2901 = vpack.c.b16 %v2845, %v2841
    %v2902 = vpack.c.b16 %v2846, %v2842
    %v2903 = vpack.c.b16 %v2847, %v2843
    %v2904 = vpack.c.b16 %v2848, %v2844
    %v2905 = vpack.c.b16 %v2853, %v2849
    %v2906 = vpack.c.b16 %v2854, %v2850
    %v2907 = vpack.c.b16 %v2855, %v2851
    %v2908 = vpack.c.b16 %v2856, %v2852
    %v2909 = vpack.c.b16 %v2861, %v2857
    %v2910 = vpack.c.b16 %v2862, %v2858
    %v2911 = vpack.c.b16 %v2863, %v2859
    %v2912 = vpack.c.b16 %v2864, %v2860
    %v2913 = vpack.c.b16 %v2869, %v2865
    %v2914 = vpack.c.b16 %v2870, %v2866
    %v2915 = vpack.c.b16 %v2871, %v2867
    %v2916 = vpack.c.b16 %v2872, %v2868
    %v2917 = vpack.c.b16 %v2877, %v2873
    %v2918 = vpack.c.b16 %v2878, %v2874
    %v2919 = vpack.c.b16 %v2879, %v2875
    %v2920 = vpack.c.b16 %v2880, %v2876
    %v2921 = vpack.c.b16 %v2885, %v2881
    %v2922 = vpack.c.b16 %v2886, %v2882
    %v2923 = vpack.c.b16 %v2887, %v2883
    %v2924 = vpack.c.b16 %v2888, %v2884
    %v2925 = vpack.c.b16 %v2893, %v2889
    %v2926 = vpack.c.b16 %v2894, %v2890
    %v2927 = vpack.c.b16 %v2895, %v2891
    %v2928 = vpack.c.b16 %v2896, %v2892
    %2961 = vmatpush.bf16.msra.mxu0 %v2925
    %2962 = vmatpush.bf16.msra.mxu0 %v2921
    %2963 = vmatpush.bf16.msra.mxu0 %v2917
    %2964 = vmatpush.bf16.msra.mxu0 %v2913
    %2965 = vmatpush.bf16.msra.mxu0 %v2909
    %2966 = vmatpush.bf16.msra.mxu0 %v2905
    %2967 = vmatpush.bf16.msra.mxu0 %v2901
    %2968 = vmatpush.bf16.msra.mxu0 %v2897
    %2969 = vmatmul.bf16.gmra.mxu0 %v2511
    %v2970 = vpop.f32.mrf.mxu0
    %v2971 = vadd.f32 0.0, %v2970
    %v2972 = vpop.f32.mrf.mxu0
    %2973 = vdwg.mxu0
    %2974 = vmatpush.bf16.msra.mxu0 %v2926
    %2975 = vmatpush.bf16.msra.mxu0 %v2922
    %2976 = vmatpush.bf16.msra.mxu0 %v2918
    %2977 = vmatpush.bf16.msra.mxu0 %v2914
    %2978 = vmatpush.bf16.msra.mxu0 %v2910
    %2979 = vmatpush.bf16.msra.mxu0 %v2906
    %2980 = vmatpush.bf16.msra.mxu0 %v2902
    %2981 = vmatpush.bf16.msra.mxu0 %v2898
    %2982 = vmatmul.bf16.gmra.mxu0 %v2511
    %v2983 = vpop.f32.mrf.mxu0
    %v2984 = vadd.f32 0.0, %v2983
    %v2985 = vpop.f32.mrf.mxu0
    %2986 = vdwg.mxu0
    %2987 = vmatpush.bf16.msra.mxu0 %v2927
    %2988 = vmatpush.bf16.msra.mxu0 %v2923
    %2989 = vmatpush.bf16.msra.mxu0 %v2919
    %2990 = vmatpush.bf16.msra.mxu0 %v2915
    %2991 = vmatpush.bf16.msra.mxu0 %v2911
    %2992 = vmatpush.bf16.msra.mxu0 %v2907
    %2993 = vmatpush.bf16.msra.mxu0 %v2903
    %2994 = vmatpush.bf16.msra.mxu0 %v2899
    %2995 = vmatmul.bf16.gmra.mxu0 %v2511
    %v2996 = vpop.f32.mrf.mxu0
    %v2997 = vadd.f32 0.0, %v2996
    %v2998 = vpop.f32.mrf.mxu0
    %2999 = vdwg.mxu0
    %3000 = vmatpush.bf16.msra.mxu0 %v2928
    %3001 = vmatpush.bf16.msra.mxu0 %v2924
    %3002 = vmatpush.bf16.msra.mxu0 %v2920
    %3003 = vmatpush.bf16.msra.mxu0 %v2916
    %3004 = vmatpush.bf16.msra.mxu0 %v2912
    %3005 = vmatpush.bf16.msra.mxu0 %v2908
    %3006 = vmatpush.bf16.msra.mxu0 %v2904
    %3007 = vmatpush.bf16.msra.mxu0 %v2900
    %3008 = vmatmul.bf16.gmra.mxu0 %v2511
    %v3009 = vpop.f32.mrf.mxu0
    %v3010 = vadd.f32 0.0, %v3009
    %v3011 = vpop.f32.mrf.mxu0
    %3012 = vdwg.mxu0
    %v3013 = vadd.f32 %v2765, %v2971
    %v3014 = vadd.f32 %v2766, %v2984
    %v3015 = vadd.f32 %v2767, %v2997
    %v3016 = vadd.f32 %v2768, %v3010
    %v3017 = vadd.f32 %v3013, %v3014
    %v3018 = vadd.f32 %v3017, %v3015
    %v3019 = vadd.f32 %v3018, %v3016
    %3020 = vadd.xlane.f32.xlu0 %v3019
    %v3021 = vpop.xlane.xlu0 %3020
    %v3022 = vmul.f32 %v3021, %v1078
    %v3023 = vmul.f32 %v3013, %v3013
    %v3024 = vmul.f32 %v3014, %v3014
    %v3025 = vmul.f32 %v3015, %v3015
    %v3026 = vmul.f32 %v3016, %v3016
    %v3027 = vadd.f32 %v3023, %v3024
    %v3028 = vadd.f32 %v3027, %v3025
    %v3029 = vadd.f32 %v3028, %v3026
    %3030 = vadd.xlane.f32.xlu0 %v3029
    %v3031 = vpop.xlane.xlu0 %3030
    %v3032 = vmul.f32 %v3031, %v1078
    %v3033 = vmul.f32 %v3022, %v3022
    %v3034 = vsub.f32 %v3032, %v3033
    %v3035 = vsub.f32 %v3013, %v3022
    %v3036 = vsub.f32 %v3014, %v3022
    %v3037 = vsub.f32 %v3015, %v3022
    %v3038 = vsub.f32 %v3016, %v3022
    %v3039 = vadd.f32 %v3034, 0.001
    %v3040 = vrsqrt.pop %v3039
    %v3041 = vmul.f32 %v3040, %v3039
    %v3042 = vmul.f32 %v3041, %v3040
    %v3043 = vmul.f32 0.5, %v3042
    %v3044 = vsub.f32 1.5, %v3043
    %v3045 = vmul.f32 %v3040, %v3044
    %vm3046 = vweird.f32 %v3039
    %vm3047 = vweird.f32 %v3040
    %vm3048 = vmor %vm3046, %vm3047
    %v3049 = vsel %vm3048, %v3040, %v3045
    %v3050 = vmul.f32 %v3035, %v3049
    %v3051 = vmul.f32 %v3036, %v3049
    %v3052 = vmul.f32 %v3037, %v3049
    %v3053 = vmul.f32 %v3038, %v3049
    %v3054 = vmul.f32 %v3050, %v1120
    %v3055 = vmul.f32 %v3051, %v1121
    %v3056 = vmul.f32 %v3052, %v1122
    %v3057 = vmul.f32 %v3053, %v1123
    %v3058 = vadd.f32 %v3054, %v1136
    %v3059 = vadd.f32 %v3055, %v1137
    %v3060 = vadd.f32 %v3056, %v1138
    %v3061 = vadd.f32 %v3057, %v1139
    %v3062 = vxor.u32 %v3058, 2147483648
    %v3063 = vxor.u32 %v3059, 2147483648
    %v3064 = vxor.u32 %v3060, 2147483648
    %v3065 = vmul.f32 %v3062, 1.442695
    %v3066 = vpow.pop %v3065
    %v3067 = vmul.f32 %v3063, 1.442695
    %v3068 = vpow.pop %v3067
    %v3069 = vmul.f32 %v3064, 1.442695
    %v3070 = vpow.pop %v3069
    %v3071 = vadd.f32 %v3066, 1.0
    %v3072 = vadd.f32 %v3068, 1.0
    %v3073 = vadd.f32 %v3070, 1.0
    %v3074 = vrcp.pop %v3071
    %v3075 = vmul.f32 %v3071, %v3074
    %v3076 = vsub.f32 1.0, %v3075
    %v3077 = vmul.f32 %v3074, %v3076
    %v3078 = vadd.f32 %v3074, %v3077
    %vm3079 = vweird.f32 %v3071
    %vm3080 = vweird.f32 %v3074
    %vm3081 = vmor %vm3079, %vm3080
    %v3082 = vsel %vm3081, %v3074, %v3078
    %v3083 = vand.u32 2147483647, %v3071
    %vm3084 = vcmp.eq.f32.partialorder %v3083, 8.507059e+37
    %v3085 = vand.u32 %v3071, 2147483648
    %v3086 = vor.u32 1.1754944e-38, %v3085
    %v3087 = vsel %vm3084, %v3086, %v3082
    %v3088 = vmul.f32 1.0, %v3087
    %v3089 = vrcp.pop %v3072
    %v3090 = vmul.f32 %v3072, %v3089
    %v3091 = vsub.f32 1.0, %v3090
    %v3092 = vmul.f32 %v3089, %v3091
    %v3093 = vadd.f32 %v3089, %v3092
    %vm3094 = vweird.f32 %v3072
    %vm3095 = vweird.f32 %v3089
    %vm3096 = vmor %vm3094, %vm3095
    %v3097 = vsel %vm3096, %v3089, %v3093
    %v3098 = vand.u32 2147483647, %v3072
    %vm3099 = vcmp.eq.f32.partialorder %v3098, 8.507059e+37
    %v3100 = vand.u32 %v3072, 2147483648
    %v3101 = vor.u32 1.1754944e-38, %v3100
    %v3102 = vsel %vm3099, %v3101, %v3097
    %v3103 = vmul.f32 1.0, %v3102
    %v3104 = vrcp.pop %v3073
    %v3105 = vmul.f32 %v3073, %v3104
    %v3106 = vsub.f32 1.0, %v3105
    %v3107 = vmul.f32 %v3104, %v3106
    %v3108 = vadd.f32 %v3104, %v3107
    %vm3109 = vweird.f32 %v3073
    %vm3110 = vweird.f32 %v3104
    %vm3111 = vmor %vm3109, %vm3110
    %v3112 = vsel %vm3111, %v3104, %v3108
    %v3113 = vand.u32 2147483647, %v3073
    %vm3114 = vcmp.eq.f32.partialorder %v3113, 8.507059e+37
    %v3115 = vand.u32 %v3073, 2147483648
    %v3116 = vor.u32 1.1754944e-38, %v3115
    %v3117 = vsel %vm3114, %v3116, %v3112
    %v3118 = vmul.f32 1.0, %v3117
    %v3119 = vtanh.pop %v3061
    %v3120 = vmul.f32 %v3103, %v2508
    %v3121 = vmul.f32 %v3088, %v3119
    %v3122 = vadd.f32 %v3120, %v3121
    %3123 = vadd.xlane.f32.xlu0 %v3122
    %v3124 = vpop.xlane.xlu0 %3123
    %v3125 = vmul.f32 %v3124, %v268
    %v3126 = vmul.f32 %v3122, %v3122
    %3127 = vadd.xlane.f32.xlu0 %v3126
    %v3128 = vpop.xlane.xlu0 %3127
    %v3129 = vmul.f32 %v3128, %v268
    %v3130 = vmul.f32 %v3125, %v3125
    %v3131 = vsub.f32 %v3129, %v3130
    %v3132 = vsub.f32 %v3122, %v3125
    %v3133 = vadd.f32 %v3131, 0.001
    %v3134 = vrsqrt.pop %v3133
    %v3135 = vmul.f32 %v3134, %v3133
    %v3136 = vmul.f32 %v3135, %v3134
    %v3137 = vmul.f32 0.5, %v3136
    %v3138 = vsub.f32 1.5, %v3137
    %v3139 = vmul.f32 %v3134, %v3138
    %vm3140 = vweird.f32 %v3133
    %vm3141 = vweird.f32 %v3134
    %vm3142 = vmor %vm3140, %vm3141
    %v3143 = vsel %vm3142, %v3134, %v3139
    %v3144 = vmul.f32 %v3132, %v3143
    %v3145 = vmul.f32 %v3144, %v1227
    %v3146 = vadd.f32 %v3145, %v1229
    %v3147 = vtanh.pop %v3146
    %v3148 = vmul.f32 %v3118, %v3147
    %v3149 = vpack.c.bf16 %v3148, %v3148
    %v3150 = vld [vmem:[%s1234] sm:$0xff]
    %v3151 = vld [vmem:[%s1234 + $0x8] sm:$0xff]
    %v3152 = vld [vmem:[%s1234 + $0x10] sm:$0xff]
    %v3153 = vld [vmem:[%s1234 + $0x18] sm:$0xff]
    %v3154 = vld [vmem:[%s1234 + $0x20] sm:$0xff]
    %v3155 = vld [vmem:[%s1234 + $0x28] sm:$0xff]
    %v3156 = vld [vmem:[%s1234 + $0x30] sm:$0xff]
    %v3157 = vld [vmem:[%s1234 + $0x38] sm:$0xff]
    %v3158 = vld [vmem:[%s1234 + $0x40] sm:$0xff]
    %v3159 = vld [vmem:[%s1234 + $0x48] sm:$0xff]
    %v3160 = vld [vmem:[%s1234 + $0x50] sm:$0xff]
    %v3161 = vld [vmem:[%s1234 + $0x58] sm:$0xff]
    %v3162 = vld [vmem:[%s1234 + $0x60] sm:$0xff]
    %v3163 = vld [vmem:[%s1234 + $0x68] sm:$0xff]
    %v3164 = vld [vmem:[%s1234 + $0x70] sm:$0xff]
    %v3165 = vld [vmem:[%s1234 + $0x78] sm:$0xff]
    %v3166 = vld [vmem:[%s1234 + $0x80] sm:$0xff]
    %v3167 = vld [vmem:[%s1234 + $0x88] sm:$0xff]
    %v3168 = vld [vmem:[%s1234 + $0x90] sm:$0xff]
    %v3169 = vld [vmem:[%s1234 + $0x98] sm:$0xff]
    %v3170 = vld [vmem:[%s1234 + $0xa0] sm:$0xff]
    %v3171 = vld [vmem:[%s1234 + $0xa8] sm:$0xff]
    %v3172 = vld [vmem:[%s1234 + $0xb0] sm:$0xff]
    %v3173 = vld [vmem:[%s1234 + $0xb8] sm:$0xff]
    %v3174 = vld [vmem:[%s1234 + $0xc0] sm:$0xff]
    %v3175 = vld [vmem:[%s1234 + $0xc8] sm:$0xff]
    %v3176 = vld [vmem:[%s1234 + $0xd0] sm:$0xff]
    %v3177 = vld [vmem:[%s1234 + $0xd8] sm:$0xff]
    %v3178 = vld [vmem:[%s1234 + $0xe0] sm:$0xff]
    %v3179 = vld [vmem:[%s1234 + $0xe8] sm:$0xff]
    %v3180 = vld [vmem:[%s1234 + $0xf0] sm:$0xff]
    %v3181 = vld [vmem:[%s1234 + $0xf8] sm:$0xff]
    %v3214 = vunpack.c.l.b16 %v3150
    %v3215 = vunpack.c.h.b16 %v3150
    %v3216 = vunpack.c.l.b16 %v3151
    %v3217 = vunpack.c.h.b16 %v3151
    %v3218 = vunpack.c.l.b16 %v3152
    %v3219 = vunpack.c.h.b16 %v3152
    %v3220 = vunpack.c.l.b16 %v3153
    %v3221 = vunpack.c.h.b16 %v3153
    %v3222 = vunpack.c.l.b16 %v3154
    %v3223 = vunpack.c.h.b16 %v3154
    %v3224 = vunpack.c.l.b16 %v3155
    %v3225 = vunpack.c.h.b16 %v3155
    %v3226 = vunpack.c.l.b16 %v3156
    %v3227 = vunpack.c.h.b16 %v3156
    %v3228 = vunpack.c.l.b16 %v3157
    %v3229 = vunpack.c.h.b16 %v3157
    %v3230 = vunpack.c.l.b16 %v3158
    %v3231 = vunpack.c.h.b16 %v3158
    %v3232 = vunpack.c.l.b16 %v3159
    %v3233 = vunpack.c.h.b16 %v3159
    %v3234 = vunpack.c.l.b16 %v3160
    %v3235 = vunpack.c.h.b16 %v3160
    %v3236 = vunpack.c.l.b16 %v3161
    %v3237 = vunpack.c.h.b16 %v3161
    %v3238 = vunpack.c.l.b16 %v3162
    %v3239 = vunpack.c.h.b16 %v3162
    %v3240 = vunpack.c.l.b16 %v3163
    %v3241 = vunpack.c.h.b16 %v3163
    %v3242 = vunpack.c.l.b16 %v3164
    %v3243 = vunpack.c.h.b16 %v3164
    %v3244 = vunpack.c.l.b16 %v3165
    %v3245 = vunpack.c.h.b16 %v3165
    %v3246 = vunpack.c.l.b16 %v3166
    %v3247 = vunpack.c.h.b16 %v3166
    %v3248 = vunpack.c.l.b16 %v3167
    %v3249 = vunpack.c.h.b16 %v3167
    %v3250 = vunpack.c.l.b16 %v3168
    %v3251 = vunpack.c.h.b16 %v3168
    %v3252 = vunpack.c.l.b16 %v3169
    %v3253 = vunpack.c.h.b16 %v3169
    %v3254 = vunpack.c.l.b16 %v3170
    %v3255 = vunpack.c.h.b16 %v3170
    %v3256 = vunpack.c.l.b16 %v3171
    %v3257 = vunpack.c.h.b16 %v3171
    %v3258 = vunpack.c.l.b16 %v3172
    %v3259 = vunpack.c.h.b16 %v3172
    %v3260 = vunpack.c.l.b16 %v3173
    %v3261 = vunpack.c.h.b16 %v3173
    %v3262 = vunpack.c.l.b16 %v3174
    %v3263 = vunpack.c.h.b16 %v3174
    %v3264 = vunpack.c.l.b16 %v3175
    %v3265 = vunpack.c.h.b16 %v3175
    %v3266 = vunpack.c.l.b16 %v3176
    %v3267 = vunpack.c.h.b16 %v3176
    %v3268 = vunpack.c.l.b16 %v3177
    %v3269 = vunpack.c.h.b16 %v3177
    %v3270 = vunpack.c.l.b16 %v3178
    %v3271 = vunpack.c.h.b16 %v3178
    %v3272 = vunpack.c.l.b16 %v3179
    %v3273 = vunpack.c.h.b16 %v3179
    %v3274 = vunpack.c.l.b16 %v3180
    %v3275 = vunpack.c.h.b16 %v3180
    %v3276 = vunpack.c.l.b16 %v3181
    %v3277 = vunpack.c.h.b16 %v3181
    %v3278 = vpack.c.b16 %v3218, %v3214
    %v3279 = vpack.c.b16 %v3219, %v3215
    %v3280 = vpack.c.b16 %v3220, %v3216
    %v3281 = vpack.c.b16 %v3221, %v3217
    %v3282 = vpack.c.b16 %v3226, %v3222
    %v3283 = vpack.c.b16 %v3227, %v3223
    %v3284 = vpack.c.b16 %v3228, %v3224
    %v3285 = vpack.c.b16 %v3229, %v3225
    %v3286 = vpack.c.b16 %v3234, %v3230
    %v3287 = vpack.c.b16 %v3235, %v3231
    %v3288 = vpack.c.b16 %v3236, %v3232
    %v3289 = vpack.c.b16 %v3237, %v3233
    %v3290 = vpack.c.b16 %v3242, %v3238
    %v3291 = vpack.c.b16 %v3243, %v3239
    %v3292 = vpack.c.b16 %v3244, %v3240
    %v3293 = vpack.c.b16 %v3245, %v3241
    %v3294 = vpack.c.b16 %v3250, %v3246
    %v3295 = vpack.c.b16 %v3251, %v3247
    %v3296 = vpack.c.b16 %v3252, %v3248
    %v3297 = vpack.c.b16 %v3253, %v3249
    %v3298 = vpack.c.b16 %v3258, %v3254
    %v3299 = vpack.c.b16 %v3259, %v3255
    %v3300 = vpack.c.b16 %v3260, %v3256
    %v3301 = vpack.c.b16 %v3261, %v3257
    %v3302 = vpack.c.b16 %v3266, %v3262
    %v3303 = vpack.c.b16 %v3267, %v3263
    %v3304 = vpack.c.b16 %v3268, %v3264
    %v3305 = vpack.c.b16 %v3269, %v3265
    %v3306 = vpack.c.b16 %v3274, %v3270
    %v3307 = vpack.c.b16 %v3275, %v3271
    %v3308 = vpack.c.b16 %v3276, %v3272
    %v3309 = vpack.c.b16 %v3277, %v3273
    %3342 = vmatpush.bf16.msra.mxu0 %v3306
    %3343 = vmatpush.bf16.msra.mxu0 %v3302
    %3344 = vmatpush.bf16.msra.mxu0 %v3298
    %3345 = vmatpush.bf16.msra.mxu0 %v3294
    %3346 = vmatpush.bf16.msra.mxu0 %v3290
    %3347 = vmatpush.bf16.msra.mxu0 %v3286
    %3348 = vmatpush.bf16.msra.mxu0 %v3282
    %3349 = vmatpush.bf16.msra.mxu0 %v3278
    %3350 = vmatmul.bf16.gmra.mxu0 %v3149
    %v3351 = vpop.f32.mrf.mxu0
    %v3352 = vadd.f32 0.0, %v3351
    %v3353 = vpop.f32.mrf.mxu0
    %3354 = vdwg.mxu0
    %3355 = vmatpush.bf16.msra.mxu0 %v3307
    %3356 = vmatpush.bf16.msra.mxu0 %v3303
    %3357 = vmatpush.bf16.msra.mxu0 %v3299
    %3358 = vmatpush.bf16.msra.mxu0 %v3295
    %3359 = vmatpush.bf16.msra.mxu0 %v3291
    %3360 = vmatpush.bf16.msra.mxu0 %v3287
    %3361 = vmatpush.bf16.msra.mxu0 %v3283
    %3362 = vmatpush.bf16.msra.mxu0 %v3279
    %3363 = vmatmul.bf16.gmra.mxu0 %v3149
    %v3364 = vpop.f32.mrf.mxu0
    %v3365 = vadd.f32 0.0, %v3364
    %v3366 = vpop.f32.mrf.mxu0
    %3367 = vdwg.mxu0
    %3368 = vmatpush.bf16.msra.mxu0 %v3308
    %3369 = vmatpush.bf16.msra.mxu0 %v3304
    %3370 = vmatpush.bf16.msra.mxu0 %v3300
    %3371 = vmatpush.bf16.msra.mxu0 %v3296
    %3372 = vmatpush.bf16.msra.mxu0 %v3292
    %3373 = vmatpush.bf16.msra.mxu0 %v3288
    %3374 = vmatpush.bf16.msra.mxu0 %v3284
    %3375 = vmatpush.bf16.msra.mxu0 %v3280
    %3376 = vmatmul.bf16.gmra.mxu0 %v3149
    %v3377 = vpop.f32.mrf.mxu0
    %v3378 = vadd.f32 0.0, %v3377
    %v3379 = vpop.f32.mrf.mxu0
    %3380 = vdwg.mxu0
    %3381 = vmatpush.bf16.msra.mxu0 %v3309
    %3382 = vmatpush.bf16.msra.mxu0 %v3305
    %3383 = vmatpush.bf16.msra.mxu0 %v3301
    %3384 = vmatpush.bf16.msra.mxu0 %v3297
    %3385 = vmatpush.bf16.msra.mxu0 %v3293
    %3386 = vmatpush.bf16.msra.mxu0 %v3289
    %3387 = vmatpush.bf16.msra.mxu0 %v3285
    %3388 = vmatpush.bf16.msra.mxu0 %v3281
    %3389 = vmatmul.bf16.gmra.mxu0 %v3149
    %v3390 = vpop.f32.mrf.mxu0
    %v3391 = vadd.f32 0.0, %v3390
    %v3392 = vpop.f32.mrf.mxu0
    %3393 = vdwg.mxu0
    %s3394 = smul.addr %s2762, 8
    %s3395 = scalar_lea.vmem %s1479, %s3394 [#allocation3]
    %3396 = vst [vmem:[%s3395] sm:$0xff] %v3352
    %3397 = vst [vmem:[%s3395 + $0x8] sm:$0xff] %v3365
    %3398 = vst [vmem:[%s3395 + $0x10] sm:$0xff] %v3378
    %3399 = vst [vmem:[%s3395 + $0x18] sm:$0xff] %v3391
    %s3400 = smul.u32 4, 4
    %s3401 = smul.addr %s3400, 8
    %s3402 = scalar_lea.vmem [#allocation3], %s3401
    %v3403 = vld [vmem:[%s3402] sm:$0xff]
    %v3404 = vld [vmem:[%s3402 + $0x8] sm:$0xff]
    %v3405 = vld [vmem:[%s3402 + $0x10] sm:$0xff]
    %v3406 = vld [vmem:[%s3402 + $0x18] sm:$0xff]
    %v3407 = vld [vmem:[#allocation9] sm:$0xff]
    %v3408 = vld [vmem:[#allocation9 + $0x8] sm:$0xff]
    %v3409 = vld [vmem:[#allocation9 + $0x10] sm:$0xff]
    %v3410 = vld [vmem:[#allocation9 + $0x18] sm:$0xff]
    %v3411 = vld [vmem:[#allocation9 + $0x20] sm:$0xff]
    %v3412 = vld [vmem:[#allocation9 + $0x28] sm:$0xff]
    %v3413 = vld [vmem:[#allocation9 + $0x30] sm:$0xff]
    %v3414 = vld [vmem:[#allocation9 + $0x38] sm:$0xff]
    %v3415 = vld [vmem:[#allocation9 + $0x40] sm:$0xff]
    %v3416 = vld [vmem:[#allocation9 + $0x48] sm:$0xff]
    %v3417 = vld [vmem:[#allocation9 + $0x50] sm:$0xff]
    %v3418 = vld [vmem:[#allocation9 + $0x58] sm:$0xff]
    %v3419 = vld [vmem:[#allocation9 + $0x60] sm:$0xff]
    %v3420 = vld [vmem:[#allocation9 + $0x68] sm:$0xff]
    %v3421 = vld [vmem:[#allocation9 + $0x70] sm:$0xff]
    %v3422 = vld [vmem:[#allocation9 + $0x78] sm:$0xff]
    %v3423 = vld [vmem:[#allocation9 + $0x80] sm:$0xff]
    %v3424 = vld [vmem:[#allocation9 + $0x88] sm:$0xff]
    %v3425 = vld [vmem:[#allocation9 + $0x90] sm:$0xff]
    %v3426 = vld [vmem:[#allocation9 + $0x98] sm:$0xff]
    %v3427 = vld [vmem:[#allocation9 + $0xa0] sm:$0xff]
    %v3428 = vld [vmem:[#allocation9 + $0xa8] sm:$0xff]
    %v3429 = vld [vmem:[#allocation9 + $0xb0] sm:$0xff]
    %v3430 = vld [vmem:[#allocation9 + $0xb8] sm:$0xff]
    %v3431 = vld [vmem:[#allocation9 + $0xc0] sm:$0xff]
    %v3432 = vld [vmem:[#allocation9 + $0xc8] sm:$0xff]
    %v3433 = vld [vmem:[#allocation9 + $0xd0] sm:$0xff]
    %v3434 = vld [vmem:[#allocation9 + $0xd8] sm:$0xff]
    %v3435 = vld [vmem:[#allocation9 + $0xe0] sm:$0xff]
    %v3436 = vld [vmem:[#allocation9 + $0xe8] sm:$0xff]
    %v3437 = vld [vmem:[#allocation9 + $0xf0] sm:$0xff]
    %v3438 = vld [vmem:[#allocation9 + $0xf8] sm:$0xff]
    %v3471 = vunpack.c.l.b16 %v3407
    %v3472 = vunpack.c.h.b16 %v3407
    %v3473 = vunpack.c.l.b16 %v3408
    %v3474 = vunpack.c.h.b16 %v3408
    %v3475 = vunpack.c.l.b16 %v3409
    %v3476 = vunpack.c.h.b16 %v3409
    %v3477 = vunpack.c.l.b16 %v3410
    %v3478 = vunpack.c.h.b16 %v3410
    %v3479 = vunpack.c.l.b16 %v3411
    %v3480 = vunpack.c.h.b16 %v3411
    %v3481 = vunpack.c.l.b16 %v3412
    %v3482 = vunpack.c.h.b16 %v3412
    %v3483 = vunpack.c.l.b16 %v3413
    %v3484 = vunpack.c.h.b16 %v3413
    %v3485 = vunpack.c.l.b16 %v3414
    %v3486 = vunpack.c.h.b16 %v3414
    %v3487 = vunpack.c.l.b16 %v3415
    %v3488 = vunpack.c.h.b16 %v3415
    %v3489 = vunpack.c.l.b16 %v3416
    %v3490 = vunpack.c.h.b16 %v3416
    %v3491 = vunpack.c.l.b16 %v3417
    %v3492 = vunpack.c.h.b16 %v3417
    %v3493 = vunpack.c.l.b16 %v3418
    %v3494 = vunpack.c.h.b16 %v3418
    %v3495 = vunpack.c.l.b16 %v3419
    %v3496 = vunpack.c.h.b16 %v3419
    %v3497 = vunpack.c.l.b16 %v3420
    %v3498 = vunpack.c.h.b16 %v3420
    %v3499 = vunpack.c.l.b16 %v3421
    %v3500 = vunpack.c.h.b16 %v3421
    %v3501 = vunpack.c.l.b16 %v3422
    %v3502 = vunpack.c.h.b16 %v3422
    %v3503 = vunpack.c.l.b16 %v3423
    %v3504 = vunpack.c.h.b16 %v3423
    %v3505 = vunpack.c.l.b16 %v3424
    %v3506 = vunpack.c.h.b16 %v3424
    %v3507 = vunpack.c.l.b16 %v3425
    %v3508 = vunpack.c.h.b16 %v3425
    %v3509 = vunpack.c.l.b16 %v3426
    %v3510 = vunpack.c.h.b16 %v3426
    %v3511 = vunpack.c.l.b16 %v3427
    %v3512 = vunpack.c.h.b16 %v3427
    %v3513 = vunpack.c.l.b16 %v3428
    %v3514 = vunpack.c.h.b16 %v3428
    %v3515 = vunpack.c.l.b16 %v3429
    %v3516 = vunpack.c.h.b16 %v3429
    %v3517 = vunpack.c.l.b16 %v3430
    %v3518 = vunpack.c.h.b16 %v3430
    %v3519 = vunpack.c.l.b16 %v3431
    %v3520 = vunpack.c.h.b16 %v3431
    %v3521 = vunpack.c.l.b16 %v3432
    %v3522 = vunpack.c.h.b16 %v3432
    %v3523 = vunpack.c.l.b16 %v3433
    %v3524 = vunpack.c.h.b16 %v3433
    %v3525 = vunpack.c.l.b16 %v3434
    %v3526 = vunpack.c.h.b16 %v3434
    %v3527 = vunpack.c.l.b16 %v3435
    %v3528 = vunpack.c.h.b16 %v3435
    %v3529 = vunpack.c.l.b16 %v3436
    %v3530 = vunpack.c.h.b16 %v3436
    %v3531 = vunpack.c.l.b16 %v3437
    %v3532 = vunpack.c.h.b16 %v3437
    %v3533 = vunpack.c.l.b16 %v3438
    %v3534 = vunpack.c.h.b16 %v3438
    %v3535 = vpack.c.b16 %v3475, %v3471
    %v3536 = vpack.c.b16 %v3476, %v3472
    %v3537 = vpack.c.b16 %v3477, %v3473
    %v3538 = vpack.c.b16 %v3478, %v3474
    %v3539 = vpack.c.b16 %v3483, %v3479
    %v3540 = vpack.c.b16 %v3484, %v3480
    %v3541 = vpack.c.b16 %v3485, %v3481
    %v3542 = vpack.c.b16 %v3486, %v3482
    %v3543 = vpack.c.b16 %v3491, %v3487
    %v3544 = vpack.c.b16 %v3492, %v3488
    %v3545 = vpack.c.b16 %v3493, %v3489
    %v3546 = vpack.c.b16 %v3494, %v3490
    %v3547 = vpack.c.b16 %v3499, %v3495
    %v3548 = vpack.c.b16 %v3500, %v3496
    %v3549 = vpack.c.b16 %v3501, %v3497
    %v3550 = vpack.c.b16 %v3502, %v3498
    %v3551 = vpack.c.b16 %v3507, %v3503
    %v3552 = vpack.c.b16 %v3508, %v3504
    %v3553 = vpack.c.b16 %v3509, %v3505
    %v3554 = vpack.c.b16 %v3510, %v3506
    %v3555 = vpack.c.b16 %v3515, %v3511
    %v3556 = vpack.c.b16 %v3516, %v3512
    %v3557 = vpack.c.b16 %v3517, %v3513
    %v3558 = vpack.c.b16 %v3518, %v3514
    %v3559 = vpack.c.b16 %v3523, %v3519
    %v3560 = vpack.c.b16 %v3524, %v3520
    %v3561 = vpack.c.b16 %v3525, %v3521
    %v3562 = vpack.c.b16 %v3526, %v3522
    %v3563 = vpack.c.b16 %v3531, %v3527
    %v3564 = vpack.c.b16 %v3532, %v3528
    %v3565 = vpack.c.b16 %v3533, %v3529
    %v3566 = vpack.c.b16 %v3534, %v3530
    %3599 = vmatpush.bf16.msra.mxu0 %v3563
    %3600 = vmatpush.bf16.msra.mxu0 %v3559
    %3601 = vmatpush.bf16.msra.mxu0 %v3555
    %3602 = vmatpush.bf16.msra.mxu0 %v3551
    %3603 = vmatpush.bf16.msra.mxu0 %v3547
    %3604 = vmatpush.bf16.msra.mxu0 %v3543
    %3605 = vmatpush.bf16.msra.mxu0 %v3539
    %3606 = vmatpush.bf16.msra.mxu0 %v3535
    %3607 = vmatmul.bf16.gmra.mxu0 %v3149
    %v3608 = vpop.f32.mrf.mxu0
    %v3609 = vadd.f32 0.0, %v3608
    %v3610 = vpop.f32.mrf.mxu0
    %3611 = vdwg.mxu0
    %3612 = vmatpush.bf16.msra.mxu0 %v3564
    %3613 = vmatpush.bf16.msra.mxu0 %v3560
    %3614 = vmatpush.bf16.msra.mxu0 %v3556
    %3615 = vmatpush.bf16.msra.mxu0 %v3552
    %3616 = vmatpush.bf16.msra.mxu0 %v3548
    %3617 = vmatpush.bf16.msra.mxu0 %v3544
    %3618 = vmatpush.bf16.msra.mxu0 %v3540
    %3619 = vmatpush.bf16.msra.mxu0 %v3536
    %3620 = vmatmul.bf16.gmra.mxu0 %v3149
    %v3621 = vpop.f32.mrf.mxu0
    %v3622 = vadd.f32 0.0, %v3621
    %v3623 = vpop.f32.mrf.mxu0
    %3624 = vdwg.mxu0
    %3625 = vmatpush.bf16.msra.mxu0 %v3565
    %3626 = vmatpush.bf16.msra.mxu0 %v3561
    %3627 = vmatpush.bf16.msra.mxu0 %v3557
    %3628 = vmatpush.bf16.msra.mxu0 %v3553
    %3629 = vmatpush.bf16.msra.mxu0 %v3549
    %3630 = vmatpush.bf16.msra.mxu0 %v3545
    %3631 = vmatpush.bf16.msra.mxu0 %v3541
    %3632 = vmatpush.bf16.msra.mxu0 %v3537
    %3633 = vmatmul.bf16.gmra.mxu0 %v3149
    %v3634 = vpop.f32.mrf.mxu0
    %v3635 = vadd.f32 0.0, %v3634
    %v3636 = vpop.f32.mrf.mxu0
    %3637 = vdwg.mxu0
    %3638 = vmatpush.bf16.msra.mxu0 %v3566
    %3639 = vmatpush.bf16.msra.mxu0 %v3562
    %3640 = vmatpush.bf16.msra.mxu0 %v3558
    %3641 = vmatpush.bf16.msra.mxu0 %v3554
    %3642 = vmatpush.bf16.msra.mxu0 %v3550
    %3643 = vmatpush.bf16.msra.mxu0 %v3546
    %3644 = vmatpush.bf16.msra.mxu0 %v3542
    %3645 = vmatpush.bf16.msra.mxu0 %v3538
    %3646 = vmatmul.bf16.gmra.mxu0 %v3149
    %v3647 = vpop.f32.mrf.mxu0
    %v3648 = vadd.f32 0.0, %v3647
    %v3649 = vpop.f32.mrf.mxu0
    %3650 = vdwg.mxu0
    %v3651 = vadd.f32 %v3403, %v3609
    %v3652 = vadd.f32 %v3404, %v3622
    %v3653 = vadd.f32 %v3405, %v3635
    %v3654 = vadd.f32 %v3406, %v3648
    %v3655 = vadd.f32 %v3651, %v3652
    %v3656 = vadd.f32 %v3655, %v3653
    %v3657 = vadd.f32 %v3656, %v3654
    %3658 = vadd.xlane.f32.xlu0 %v3657
    %v3659 = vpop.xlane.xlu0 %3658
    %v3660 = vmul.f32 %v3659, %v1078
    %v3661 = vmul.f32 %v3651, %v3651
    %v3662 = vmul.f32 %v3652, %v3652
    %v3663 = vmul.f32 %v3653, %v3653
    %v3664 = vmul.f32 %v3654, %v3654
    %v3665 = vadd.f32 %v3661, %v3662
    %v3666 = vadd.f32 %v3665, %v3663
    %v3667 = vadd.f32 %v3666, %v3664
    %3668 = vadd.xlane.f32.xlu0 %v3667
    %v3669 = vpop.xlane.xlu0 %3668
    %v3670 = vmul.f32 %v3669, %v1078
    %v3671 = vmul.f32 %v3660, %v3660
    %v3672 = vsub.f32 %v3670, %v3671
    %v3673 = vsub.f32 %v3651, %v3660
    %v3674 = vsub.f32 %v3652, %v3660
    %v3675 = vsub.f32 %v3653, %v3660
    %v3676 = vsub.f32 %v3654, %v3660
    %v3677 = vadd.f32 %v3672, 0.001
    %v3678 = vrsqrt.pop %v3677
    %v3679 = vmul.f32 %v3678, %v3677
    %v3680 = vmul.f32 %v3679, %v3678
    %v3681 = vmul.f32 0.5, %v3680
    %v3682 = vsub.f32 1.5, %v3681
    %v3683 = vmul.f32 %v3678, %v3682
    %vm3684 = vweird.f32 %v3677
    %vm3685 = vweird.f32 %v3678
    %vm3686 = vmor %vm3684, %vm3685
    %v3687 = vsel %vm3686, %v3678, %v3683
    %v3688 = vmul.f32 %v3673, %v3687
    %v3689 = vmul.f32 %v3674, %v3687
    %v3690 = vmul.f32 %v3675, %v3687
    %v3691 = vmul.f32 %v3676, %v3687
    %v3692 = vmul.f32 %v3688, %v1120
    %v3693 = vmul.f32 %v3689, %v1121
    %v3694 = vmul.f32 %v3690, %v1122
    %v3695 = vmul.f32 %v3691, %v1123
    %v3696 = vadd.f32 %v3692, %v1136
    %v3697 = vadd.f32 %v3693, %v1137
    %v3698 = vadd.f32 %v3694, %v1138
    %v3699 = vadd.f32 %v3695, %v1139
    %v3700 = vxor.u32 %v3696, 2147483648
    %v3701 = vxor.u32 %v3697, 2147483648
    %v3702 = vxor.u32 %v3698, 2147483648
    %v3703 = vmul.f32 %v3700, 1.442695
    %v3704 = vpow.pop %v3703
    %v3705 = vmul.f32 %v3701, 1.442695
    %v3706 = vpow.pop %v3705
    %v3707 = vmul.f32 %v3702, 1.442695
    %v3708 = vpow.pop %v3707
    %v3709 = vadd.f32 %v3704, 1.0
    %v3710 = vadd.f32 %v3706, 1.0
    %v3711 = vadd.f32 %v3708, 1.0
    %v3712 = vrcp.pop %v3709
    %v3713 = vmul.f32 %v3709, %v3712
    %v3714 = vsub.f32 1.0, %v3713
    %v3715 = vmul.f32 %v3712, %v3714
    %v3716 = vadd.f32 %v3712, %v3715
    %vm3717 = vweird.f32 %v3709
    %vm3718 = vweird.f32 %v3712
    %vm3719 = vmor %vm3717, %vm3718
    %v3720 = vsel %vm3719, %v3712, %v3716
    %v3721 = vand.u32 2147483647, %v3709
    %vm3722 = vcmp.eq.f32.partialorder %v3721, 8.507059e+37
    %v3723 = vand.u32 %v3709, 2147483648
    %v3724 = vor.u32 1.1754944e-38, %v3723
    %v3725 = vsel %vm3722, %v3724, %v3720
    %v3726 = vmul.f32 1.0, %v3725
    %v3727 = vrcp.pop %v3710
    %v3728 = vmul.f32 %v3710, %v3727
    %v3729 = vsub.f32 1.0, %v3728
    %v3730 = vmul.f32 %v3727, %v3729
    %v3731 = vadd.f32 %v3727, %v3730
    %vm3732 = vweird.f32 %v3710
    %vm3733 = vweird.f32 %v3727
    %vm3734 = vmor %vm3732, %vm3733
    %v3735 = vsel %vm3734, %v3727, %v3731
    %v3736 = vand.u32 2147483647, %v3710
    %vm3737 = vcmp.eq.f32.partialorder %v3736, 8.507059e+37
    %v3738 = vand.u32 %v3710, 2147483648
    %v3739 = vor.u32 1.1754944e-38, %v3738
    %v3740 = vsel %vm3737, %v3739, %v3735
    %v3741 = vmul.f32 1.0, %v3740
    %v3742 = vrcp.pop %v3711
    %v3743 = vmul.f32 %v3711, %v3742
    %v3744 = vsub.f32 1.0, %v3743
    %v3745 = vmul.f32 %v3742, %v3744
    %v3746 = vadd.f32 %v3742, %v3745
    %vm3747 = vweird.f32 %v3711
    %vm3748 = vweird.f32 %v3742
    %vm3749 = vmor %vm3747, %vm3748
    %v3750 = vsel %vm3749, %v3742, %v3746
    %v3751 = vand.u32 2147483647, %v3711
    %vm3752 = vcmp.eq.f32.partialorder %v3751, 8.507059e+37
    %v3753 = vand.u32 %v3711, 2147483648
    %v3754 = vor.u32 1.1754944e-38, %v3753
    %v3755 = vsel %vm3752, %v3754, %v3750
    %v3756 = vmul.f32 1.0, %v3755
    %v3757 = vtanh.pop %v3699
    %v3758 = vmul.f32 %v3741, %v3146
    %v3759 = vmul.f32 %v3726, %v3757
    %v3760 = vadd.f32 %v3758, %v3759
    %3761 = vadd.xlane.f32.xlu0 %v3760
    %v3762 = vpop.xlane.xlu0 %3761
    %v3763 = vmul.f32 %v3762, %v268
    %v3764 = vmul.f32 %v3760, %v3760
    %3765 = vadd.xlane.f32.xlu0 %v3764
    %v3766 = vpop.xlane.xlu0 %3765
    %v3767 = vmul.f32 %v3766, %v268
    %v3768 = vmul.f32 %v3763, %v3763
    %v3769 = vsub.f32 %v3767, %v3768
    %v3770 = vsub.f32 %v3760, %v3763
    %v3771 = vadd.f32 %v3769, 0.001
    %v3772 = vrsqrt.pop %v3771
    %v3773 = vmul.f32 %v3772, %v3771
    %v3774 = vmul.f32 %v3773, %v3772
    %v3775 = vmul.f32 0.5, %v3774
    %v3776 = vsub.f32 1.5, %v3775
    %v3777 = vmul.f32 %v3772, %v3776
    %vm3778 = vweird.f32 %v3771
    %vm3779 = vweird.f32 %v3772
    %vm3780 = vmor %vm3778, %vm3779
    %v3781 = vsel %vm3780, %v3772, %v3777
    %v3782 = vmul.f32 %v3770, %v3781
    %v3783 = vmul.f32 %v3782, %v1227
    %v3784 = vadd.f32 %v3783, %v1229
    %v3785 = vtanh.pop %v3784
    %v3786 = vmul.f32 %v3756, %v3785
    %v3787 = vpack.c.bf16 %v3786, %v3786
    %v3788 = vld [vmem:[%s1234] sm:$0xff]
    %v3789 = vld [vmem:[%s1234 + $0x8] sm:$0xff]
    %v3790 = vld [vmem:[%s1234 + $0x10] sm:$0xff]
    %v3791 = vld [vmem:[%s1234 + $0x18] sm:$0xff]
    %v3792 = vld [vmem:[%s1234 + $0x20] sm:$0xff]
    %v3793 = vld [vmem:[%s1234 + $0x28] sm:$0xff]
    %v3794 = vld [vmem:[%s1234 + $0x30] sm:$0xff]
    %v3795 = vld [vmem:[%s1234 + $0x38] sm:$0xff]
    %v3796 = vld [vmem:[%s1234 + $0x40] sm:$0xff]
    %v3797 = vld [vmem:[%s1234 + $0x48] sm:$0xff]
    %v3798 = vld [vmem:[%s1234 + $0x50] sm:$0xff]
    %v3799 = vld [vmem:[%s1234 + $0x58] sm:$0xff]
    %v3800 = vld [vmem:[%s1234 + $0x60] sm:$0xff]
    %v3801 = vld [vmem:[%s1234 + $0x68] sm:$0xff]
    %v3802 = vld [vmem:[%s1234 + $0x70] sm:$0xff]
    %v3803 = vld [vmem:[%s1234 + $0x78] sm:$0xff]
    %v3804 = vld [vmem:[%s1234 + $0x80] sm:$0xff]
    %v3805 = vld [vmem:[%s1234 + $0x88] sm:$0xff]
    %v3806 = vld [vmem:[%s1234 + $0x90] sm:$0xff]
    %v3807 = vld [vmem:[%s1234 + $0x98] sm:$0xff]
    %v3808 = vld [vmem:[%s1234 + $0xa0] sm:$0xff]
    %v3809 = vld [vmem:[%s1234 + $0xa8] sm:$0xff]
    %v3810 = vld [vmem:[%s1234 + $0xb0] sm:$0xff]
    %v3811 = vld [vmem:[%s1234 + $0xb8] sm:$0xff]
    %v3812 = vld [vmem:[%s1234 + $0xc0] sm:$0xff]
    %v3813 = vld [vmem:[%s1234 + $0xc8] sm:$0xff]
    %v3814 = vld [vmem:[%s1234 + $0xd0] sm:$0xff]
    %v3815 = vld [vmem:[%s1234 + $0xd8] sm:$0xff]
    %v3816 = vld [vmem:[%s1234 + $0xe0] sm:$0xff]
    %v3817 = vld [vmem:[%s1234 + $0xe8] sm:$0xff]
    %v3818 = vld [vmem:[%s1234 + $0xf0] sm:$0xff]
    %v3819 = vld [vmem:[%s1234 + $0xf8] sm:$0xff]
    %v3852 = vunpack.c.l.b16 %v3788
    %v3853 = vunpack.c.h.b16 %v3788
    %v3854 = vunpack.c.l.b16 %v3789
    %v3855 = vunpack.c.h.b16 %v3789
    %v3856 = vunpack.c.l.b16 %v3790
    %v3857 = vunpack.c.h.b16 %v3790
    %v3858 = vunpack.c.l.b16 %v3791
    %v3859 = vunpack.c.h.b16 %v3791
    %v3860 = vunpack.c.l.b16 %v3792
    %v3861 = vunpack.c.h.b16 %v3792
    %v3862 = vunpack.c.l.b16 %v3793
    %v3863 = vunpack.c.h.b16 %v3793
    %v3864 = vunpack.c.l.b16 %v3794
    %v3865 = vunpack.c.h.b16 %v3794
    %v3866 = vunpack.c.l.b16 %v3795
    %v3867 = vunpack.c.h.b16 %v3795
    %v3868 = vunpack.c.l.b16 %v3796
    %v3869 = vunpack.c.h.b16 %v3796
    %v3870 = vunpack.c.l.b16 %v3797
    %v3871 = vunpack.c.h.b16 %v3797
    %v3872 = vunpack.c.l.b16 %v3798
    %v3873 = vunpack.c.h.b16 %v3798
    %v3874 = vunpack.c.l.b16 %v3799
    %v3875 = vunpack.c.h.b16 %v3799
    %v3876 = vunpack.c.l.b16 %v3800
    %v3877 = vunpack.c.h.b16 %v3800
    %v3878 = vunpack.c.l.b16 %v3801
    %v3879 = vunpack.c.h.b16 %v3801
    %v3880 = vunpack.c.l.b16 %v3802
    %v3881 = vunpack.c.h.b16 %v3802
    %v3882 = vunpack.c.l.b16 %v3803
    %v3883 = vunpack.c.h.b16 %v3803
    %v3884 = vunpack.c.l.b16 %v3804
    %v3885 = vunpack.c.h.b16 %v3804
    %v3886 = vunpack.c.l.b16 %v3805
    %v3887 = vunpack.c.h.b16 %v3805
    %v3888 = vunpack.c.l.b16 %v3806
    %v3889 = vunpack.c.h.b16 %v3806
    %v3890 = vunpack.c.l.b16 %v3807
    %v3891 = vunpack.c.h.b16 %v3807
    %v3892 = vunpack.c.l.b16 %v3808
    %v3893 = vunpack.c.h.b16 %v3808
    %v3894 = vunpack.c.l.b16 %v3809
    %v3895 = vunpack.c.h.b16 %v3809
    %v3896 = vunpack.c.l.b16 %v3810
    %v3897 = vunpack.c.h.b16 %v3810
    %v3898 = vunpack.c.l.b16 %v3811
    %v3899 = vunpack.c.h.b16 %v3811
    %v3900 = vunpack.c.l.b16 %v3812
    %v3901 = vunpack.c.h.b16 %v3812
    %v3902 = vunpack.c.l.b16 %v3813
    %v3903 = vunpack.c.h.b16 %v3813
    %v3904 = vunpack.c.l.b16 %v3814
    %v3905 = vunpack.c.h.b16 %v3814
    %v3906 = vunpack.c.l.b16 %v3815
    %v3907 = vunpack.c.h.b16 %v3815
    %v3908 = vunpack.c.l.b16 %v3816
    %v3909 = vunpack.c.h.b16 %v3816
    %v3910 = vunpack.c.l.b16 %v3817
    %v3911 = vunpack.c.h.b16 %v3817
    %v3912 = vunpack.c.l.b16 %v3818
    %v3913 = vunpack.c.h.b16 %v3818
    %v3914 = vunpack.c.l.b16 %v3819
    %v3915 = vunpack.c.h.b16 %v3819
    %v3916 = vpack.c.b16 %v3856, %v3852
    %v3917 = vpack.c.b16 %v3857, %v3853
    %v3918 = vpack.c.b16 %v3858, %v3854
    %v3919 = vpack.c.b16 %v3859, %v3855
    %v3920 = vpack.c.b16 %v3864, %v3860
    %v3921 = vpack.c.b16 %v3865, %v3861
    %v3922 = vpack.c.b16 %v3866, %v3862
    %v3923 = vpack.c.b16 %v3867, %v3863
    %v3924 = vpack.c.b16 %v3872, %v3868
    %v3925 = vpack.c.b16 %v3873, %v3869
    %v3926 = vpack.c.b16 %v3874, %v3870
    %v3927 = vpack.c.b16 %v3875, %v3871
    %v3928 = vpack.c.b16 %v3880, %v3876
    %v3929 = vpack.c.b16 %v3881, %v3877
    %v3930 = vpack.c.b16 %v3882, %v3878
    %v3931 = vpack.c.b16 %v3883, %v3879
    %v3932 = vpack.c.b16 %v3888, %v3884
    %v3933 = vpack.c.b16 %v3889, %v3885
    %v3934 = vpack.c.b16 %v3890, %v3886
    %v3935 = vpack.c.b16 %v3891, %v3887
    %v3936 = vpack.c.b16 %v3896, %v3892
    %v3937 = vpack.c.b16 %v3897, %v3893
    %v3938 = vpack.c.b16 %v3898, %v3894
    %v3939 = vpack.c.b16 %v3899, %v3895
    %v3940 = vpack.c.b16 %v3904, %v3900
    %v3941 = vpack.c.b16 %v3905, %v3901
    %v3942 = vpack.c.b16 %v3906, %v3902
    %v3943 = vpack.c.b16 %v3907, %v3903
    %v3944 = vpack.c.b16 %v3912, %v3908
    %v3945 = vpack.c.b16 %v3913, %v3909
    %v3946 = vpack.c.b16 %v3914, %v3910
    %v3947 = vpack.c.b16 %v3915, %v3911
    %3980 = vmatpush.bf16.msra.mxu0 %v3944
    %3981 = vmatpush.bf16.msra.mxu0 %v3940
    %3982 = vmatpush.bf16.msra.mxu0 %v3936
    %3983 = vmatpush.bf16.msra.mxu0 %v3932
    %3984 = vmatpush.bf16.msra.mxu0 %v3928
    %3985 = vmatpush.bf16.msra.mxu0 %v3924
    %3986 = vmatpush.bf16.msra.mxu0 %v3920
    %3987 = vmatpush.bf16.msra.mxu0 %v3916
    %3988 = vmatmul.bf16.gmra.mxu0 %v3787
    %v3989 = vpop.f32.mrf.mxu0
    %v3990 = vadd.f32 0.0, %v3989
    %v3991 = vpop.f32.mrf.mxu0
    %3992 = vdwg.mxu0
    %3993 = vmatpush.bf16.msra.mxu0 %v3945
    %3994 = vmatpush.bf16.msra.mxu0 %v3941
    %3995 = vmatpush.bf16.msra.mxu0 %v3937
    %3996 = vmatpush.bf16.msra.mxu0 %v3933
    %3997 = vmatpush.bf16.msra.mxu0 %v3929
    %3998 = vmatpush.bf16.msra.mxu0 %v3925
    %3999 = vmatpush.bf16.msra.mxu0 %v3921
    %4000 = vmatpush.bf16.msra.mxu0 %v3917
    %4001 = vmatmul.bf16.gmra.mxu0 %v3787
    %v4002 = vpop.f32.mrf.mxu0
    %v4003 = vadd.f32 0.0, %v4002
    %v4004 = vpop.f32.mrf.mxu0
    %4005 = vdwg.mxu0
    %4006 = vmatpush.bf16.msra.mxu0 %v3946
    %4007 = vmatpush.bf16.msra.mxu0 %v3942
    %4008 = vmatpush.bf16.msra.mxu0 %v3938
    %4009 = vmatpush.bf16.msra.mxu0 %v3934
    %4010 = vmatpush.bf16.msra.mxu0 %v3930
    %4011 = vmatpush.bf16.msra.mxu0 %v3926
    %4012 = vmatpush.bf16.msra.mxu0 %v3922
    %4013 = vmatpush.bf16.msra.mxu0 %v3918
    %4014 = vmatmul.bf16.gmra.mxu0 %v3787
    %v4015 = vpop.f32.mrf.mxu0
    %v4016 = vadd.f32 0.0, %v4015
    %v4017 = vpop.f32.mrf.mxu0
    %4018 = vdwg.mxu0
    %4019 = vmatpush.bf16.msra.mxu0 %v3947
    %4020 = vmatpush.bf16.msra.mxu0 %v3943
    %4021 = vmatpush.bf16.msra.mxu0 %v3939
    %4022 = vmatpush.bf16.msra.mxu0 %v3935
    %4023 = vmatpush.bf16.msra.mxu0 %v3931
    %4024 = vmatpush.bf16.msra.mxu0 %v3927
    %4025 = vmatpush.bf16.msra.mxu0 %v3923
    %4026 = vmatpush.bf16.msra.mxu0 %v3919
    %4027 = vmatmul.bf16.gmra.mxu0 %v3787
    %v4028 = vpop.f32.mrf.mxu0
    %v4029 = vadd.f32 0.0, %v4028
    %v4030 = vpop.f32.mrf.mxu0
    %4031 = vdwg.mxu0
    %s4032 = smul.addr %s3400, 8
    %s4033 = scalar_lea.vmem %s1479, %s4032 [#allocation3]
    %4034 = vst [vmem:[%s4033] sm:$0xff] %v3990
    %4035 = vst [vmem:[%s4033 + $0x8] sm:$0xff] %v4003
    %4036 = vst [vmem:[%s4033 + $0x10] sm:$0xff] %v4016
    %4037 = vst [vmem:[%s4033 + $0x18] sm:$0xff] %v4029
    %s4038 = smul.u32 5, 4
    %s4039 = smul.addr %s4038, 8
    %s4040 = scalar_lea.vmem [#allocation3], %s4039
    %v4041 = vld [vmem:[%s4040] sm:$0xff]
    %v4042 = vld [vmem:[%s4040 + $0x8] sm:$0xff]
    %v4043 = vld [vmem:[%s4040 + $0x10] sm:$0xff]
    %v4044 = vld [vmem:[%s4040 + $0x18] sm:$0xff]
    %v4045 = vld [vmem:[#allocation9] sm:$0xff]
    %v4046 = vld [vmem:[#allocation9 + $0x8] sm:$0xff]
    %v4047 = vld [vmem:[#allocation9 + $0x10] sm:$0xff]
    %v4048 = vld [vmem:[#allocation9 + $0x18] sm:$0xff]
    %v4049 = vld [vmem:[#allocation9 + $0x20] sm:$0xff]
    %v4050 = vld [vmem:[#allocation9 + $0x28] sm:$0xff]
    %v4051 = vld [vmem:[#allocation9 + $0x30] sm:$0xff]
    %v4052 = vld [vmem:[#allocation9 + $0x38] sm:$0xff]
    %v4053 = vld [vmem:[#allocation9 + $0x40] sm:$0xff]
    %v4054 = vld [vmem:[#allocation9 + $0x48] sm:$0xff]
    %v4055 = vld [vmem:[#allocation9 + $0x50] sm:$0xff]
    %v4056 = vld [vmem:[#allocation9 + $0x58] sm:$0xff]
    %v4057 = vld [vmem:[#allocation9 + $0x60] sm:$0xff]
    %v4058 = vld [vmem:[#allocation9 + $0x68] sm:$0xff]
    %v4059 = vld [vmem:[#allocation9 + $0x70] sm:$0xff]
    %v4060 = vld [vmem:[#allocation9 + $0x78] sm:$0xff]
    %v4061 = vld [vmem:[#allocation9 + $0x80] sm:$0xff]
    %v4062 = vld [vmem:[#allocation9 + $0x88] sm:$0xff]
    %v4063 = vld [vmem:[#allocation9 + $0x90] sm:$0xff]
    %v4064 = vld [vmem:[#allocation9 + $0x98] sm:$0xff]
    %v4065 = vld [vmem:[#allocation9 + $0xa0] sm:$0xff]
    %v4066 = vld [vmem:[#allocation9 + $0xa8] sm:$0xff]
    %v4067 = vld [vmem:[#allocation9 + $0xb0] sm:$0xff]
    %v4068 = vld [vmem:[#allocation9 + $0xb8] sm:$0xff]
    %v4069 = vld [vmem:[#allocation9 + $0xc0] sm:$0xff]
    %v4070 = vld [vmem:[#allocation9 + $0xc8] sm:$0xff]
    %v4071 = vld [vmem:[#allocation9 + $0xd0] sm:$0xff]
    %v4072 = vld [vmem:[#allocation9 + $0xd8] sm:$0xff]
    %v4073 = vld [vmem:[#allocation9 + $0xe0] sm:$0xff]
    %v4074 = vld [vmem:[#allocation9 + $0xe8] sm:$0xff]
    %v4075 = vld [vmem:[#allocation9 + $0xf0] sm:$0xff]
    %v4076 = vld [vmem:[#allocation9 + $0xf8] sm:$0xff]
    %v4109 = vunpack.c.l.b16 %v4045
    %v4110 = vunpack.c.h.b16 %v4045
    %v4111 = vunpack.c.l.b16 %v4046
    %v4112 = vunpack.c.h.b16 %v4046
    %v4113 = vunpack.c.l.b16 %v4047
    %v4114 = vunpack.c.h.b16 %v4047
    %v4115 = vunpack.c.l.b16 %v4048
    %v4116 = vunpack.c.h.b16 %v4048
    %v4117 = vunpack.c.l.b16 %v4049
    %v4118 = vunpack.c.h.b16 %v4049
    %v4119 = vunpack.c.l.b16 %v4050
    %v4120 = vunpack.c.h.b16 %v4050
    %v4121 = vunpack.c.l.b16 %v4051
    %v4122 = vunpack.c.h.b16 %v4051
    %v4123 = vunpack.c.l.b16 %v4052
    %v4124 = vunpack.c.h.b16 %v4052
    %v4125 = vunpack.c.l.b16 %v4053
    %v4126 = vunpack.c.h.b16 %v4053
    %v4127 = vunpack.c.l.b16 %v4054
    %v4128 = vunpack.c.h.b16 %v4054
    %v4129 = vunpack.c.l.b16 %v4055
    %v4130 = vunpack.c.h.b16 %v4055
    %v4131 = vunpack.c.l.b16 %v4056
    %v4132 = vunpack.c.h.b16 %v4056
    %v4133 = vunpack.c.l.b16 %v4057
    %v4134 = vunpack.c.h.b16 %v4057
    %v4135 = vunpack.c.l.b16 %v4058
    %v4136 = vunpack.c.h.b16 %v4058
    %v4137 = vunpack.c.l.b16 %v4059
    %v4138 = vunpack.c.h.b16 %v4059
    %v4139 = vunpack.c.l.b16 %v4060
    %v4140 = vunpack.c.h.b16 %v4060
    %v4141 = vunpack.c.l.b16 %v4061
    %v4142 = vunpack.c.h.b16 %v4061
    %v4143 = vunpack.c.l.b16 %v4062
    %v4144 = vunpack.c.h.b16 %v4062
    %v4145 = vunpack.c.l.b16 %v4063
    %v4146 = vunpack.c.h.b16 %v4063
    %v4147 = vunpack.c.l.b16 %v4064
    %v4148 = vunpack.c.h.b16 %v4064
    %v4149 = vunpack.c.l.b16 %v4065
    %v4150 = vunpack.c.h.b16 %v4065
    %v4151 = vunpack.c.l.b16 %v4066
    %v4152 = vunpack.c.h.b16 %v4066
    %v4153 = vunpack.c.l.b16 %v4067
    %v4154 = vunpack.c.h.b16 %v4067
    %v4155 = vunpack.c.l.b16 %v4068
    %v4156 = vunpack.c.h.b16 %v4068
    %v4157 = vunpack.c.l.b16 %v4069
    %v4158 = vunpack.c.h.b16 %v4069
    %v4159 = vunpack.c.l.b16 %v4070
    %v4160 = vunpack.c.h.b16 %v4070
    %v4161 = vunpack.c.l.b16 %v4071
    %v4162 = vunpack.c.h.b16 %v4071
    %v4163 = vunpack.c.l.b16 %v4072
    %v4164 = vunpack.c.h.b16 %v4072
    %v4165 = vunpack.c.l.b16 %v4073
    %v4166 = vunpack.c.h.b16 %v4073
    %v4167 = vunpack.c.l.b16 %v4074
    %v4168 = vunpack.c.h.b16 %v4074
    %v4169 = vunpack.c.l.b16 %v4075
    %v4170 = vunpack.c.h.b16 %v4075
    %v4171 = vunpack.c.l.b16 %v4076
    %v4172 = vunpack.c.h.b16 %v4076
    %v4173 = vpack.c.b16 %v4113, %v4109
    %v4174 = vpack.c.b16 %v4114, %v4110
    %v4175 = vpack.c.b16 %v4115, %v4111
    %v4176 = vpack.c.b16 %v4116, %v4112
    %v4177 = vpack.c.b16 %v4121, %v4117
    %v4178 = vpack.c.b16 %v4122, %v4118
    %v4179 = vpack.c.b16 %v4123, %v4119
    %v4180 = vpack.c.b16 %v4124, %v4120
    %v4181 = vpack.c.b16 %v4129, %v4125
    %v4182 = vpack.c.b16 %v4130, %v4126
    %v4183 = vpack.c.b16 %v4131, %v4127
    %v4184 = vpack.c.b16 %v4132, %v4128
    %v4185 = vpack.c.b16 %v4137, %v4133
    %v4186 = vpack.c.b16 %v4138, %v4134
    %v4187 = vpack.c.b16 %v4139, %v4135
    %v4188 = vpack.c.b16 %v4140, %v4136
    %v4189 = vpack.c.b16 %v4145, %v4141
    %v4190 = vpack.c.b16 %v4146, %v4142
    %v4191 = vpack.c.b16 %v4147, %v4143
    %v4192 = vpack.c.b16 %v4148, %v4144
    %v4193 = vpack.c.b16 %v4153, %v4149
    %v4194 = vpack.c.b16 %v4154, %v4150
    %v4195 = vpack.c.b16 %v4155, %v4151
    %v4196 = vpack.c.b16 %v4156, %v4152
    %v4197 = vpack.c.b16 %v4161, %v4157
    %v4198 = vpack.c.b16 %v4162, %v4158
    %v4199 = vpack.c.b16 %v4163, %v4159
    %v4200 = vpack.c.b16 %v4164, %v4160
    %v4201 = vpack.c.b16 %v4169, %v4165
    %v4202 = vpack.c.b16 %v4170, %v4166
    %v4203 = vpack.c.b16 %v4171, %v4167
    %v4204 = vpack.c.b16 %v4172, %v4168
    %4237 = vmatpush.bf16.msra.mxu0 %v4201
    %4238 = vmatpush.bf16.msra.mxu0 %v4197
    %4239 = vmatpush.bf16.msra.mxu0 %v4193
    %4240 = vmatpush.bf16.msra.mxu0 %v4189
    %4241 = vmatpush.bf16.msra.mxu0 %v4185
    %4242 = vmatpush.bf16.msra.mxu0 %v4181
    %4243 = vmatpush.bf16.msra.mxu0 %v4177
    %4244 = vmatpush.bf16.msra.mxu0 %v4173
    %4245 = vmatmul.bf16.gmra.mxu0 %v3787
    %v4246 = vpop.f32.mrf.mxu0
    %v4247 = vadd.f32 0.0, %v4246
    %v4248 = vpop.f32.mrf.mxu0
    %4249 = vdwg.mxu0
    %4250 = vmatpush.bf16.msra.mxu0 %v4202
    %4251 = vmatpush.bf16.msra.mxu0 %v4198
    %4252 = vmatpush.bf16.msra.mxu0 %v4194
    %4253 = vmatpush.bf16.msra.mxu0 %v4190
    %4254 = vmatpush.bf16.msra.mxu0 %v4186
    %4255 = vmatpush.bf16.msra.mxu0 %v4182
    %4256 = vmatpush.bf16.msra.mxu0 %v4178
    %4257 = vmatpush.bf16.msra.mxu0 %v4174
    %4258 = vmatmul.bf16.gmra.mxu0 %v3787
    %v4259 = vpop.f32.mrf.mxu0
    %v4260 = vadd.f32 0.0, %v4259
    %v4261 = vpop.f32.mrf.mxu0
    %4262 = vdwg.mxu0
    %4263 = vmatpush.bf16.msra.mxu0 %v4203
    %4264 = vmatpush.bf16.msra.mxu0 %v4199
    %4265 = vmatpush.bf16.msra.mxu0 %v4195
    %4266 = vmatpush.bf16.msra.mxu0 %v4191
    %4267 = vmatpush.bf16.msra.mxu0 %v4187
    %4268 = vmatpush.bf16.msra.mxu0 %v4183
    %4269 = vmatpush.bf16.msra.mxu0 %v4179
    %4270 = vmatpush.bf16.msra.mxu0 %v4175
    %4271 = vmatmul.bf16.gmra.mxu0 %v3787
    %v4272 = vpop.f32.mrf.mxu0
    %v4273 = vadd.f32 0.0, %v4272
    %v4274 = vpop.f32.mrf.mxu0
    %4275 = vdwg.mxu0
    %4276 = vmatpush.bf16.msra.mxu0 %v4204
    %4277 = vmatpush.bf16.msra.mxu0 %v4200
    %4278 = vmatpush.bf16.msra.mxu0 %v4196
    %4279 = vmatpush.bf16.msra.mxu0 %v4192
    %4280 = vmatpush.bf16.msra.mxu0 %v4188
    %4281 = vmatpush.bf16.msra.mxu0 %v4184
    %4282 = vmatpush.bf16.msra.mxu0 %v4180
    %4283 = vmatpush.bf16.msra.mxu0 %v4176
    %4284 = vmatmul.bf16.gmra.mxu0 %v3787
    %v4285 = vpop.f32.mrf.mxu0
    %v4286 = vadd.f32 0.0, %v4285
    %v4287 = vpop.f32.mrf.mxu0
    %4288 = vdwg.mxu0
    %v4289 = vadd.f32 %v4041, %v4247
    %v4290 = vadd.f32 %v4042, %v4260
    %v4291 = vadd.f32 %v4043, %v4273
    %v4292 = vadd.f32 %v4044, %v4286
    %v4293 = vadd.f32 %v4289, %v4290
    %v4294 = vadd.f32 %v4293, %v4291
    %v4295 = vadd.f32 %v4294, %v4292
    %4296 = vadd.xlane.f32.xlu0 %v4295
    %v4297 = vpop.xlane.xlu0 %4296
    %v4298 = vmul.f32 %v4297, %v1078
    %v4299 = vmul.f32 %v4289, %v4289
    %v4300 = vmul.f32 %v4290, %v4290
    %v4301 = vmul.f32 %v4291, %v4291
    %v4302 = vmul.f32 %v4292, %v4292
    %v4303 = vadd.f32 %v4299, %v4300
    %v4304 = vadd.f32 %v4303, %v4301
    %v4305 = vadd.f32 %v4304, %v4302
    %4306 = vadd.xlane.f32.xlu0 %v4305
    %v4307 = vpop.xlane.xlu0 %4306
    %v4308 = vmul.f32 %v4307, %v1078
    %v4309 = vmul.f32 %v4298, %v4298
    %v4310 = vsub.f32 %v4308, %v4309
    %v4311 = vsub.f32 %v4289, %v4298
    %v4312 = vsub.f32 %v4290, %v4298
    %v4313 = vsub.f32 %v4291, %v4298
    %v4314 = vsub.f32 %v4292, %v4298
    %v4315 = vadd.f32 %v4310, 0.001
    %v4316 = vrsqrt.pop %v4315
    %v4317 = vmul.f32 %v4316, %v4315
    %v4318 = vmul.f32 %v4317, %v4316
    %v4319 = vmul.f32 0.5, %v4318
    %v4320 = vsub.f32 1.5, %v4319
    %v4321 = vmul.f32 %v4316, %v4320
    %vm4322 = vweird.f32 %v4315
    %vm4323 = vweird.f32 %v4316
    %vm4324 = vmor %vm4322, %vm4323
    %v4325 = vsel %vm4324, %v4316, %v4321
    %v4326 = vmul.f32 %v4311, %v4325
    %v4327 = vmul.f32 %v4312, %v4325
    %v4328 = vmul.f32 %v4313, %v4325
    %v4329 = vmul.f32 %v4314, %v4325
    %v4330 = vmul.f32 %v4326, %v1120
    %v4331 = vmul.f32 %v4327, %v1121
    %v4332 = vmul.f32 %v4328, %v1122
    %v4333 = vmul.f32 %v4329, %v1123
    %v4334 = vadd.f32 %v4330, %v1136
    %v4335 = vadd.f32 %v4331, %v1137
    %v4336 = vadd.f32 %v4332, %v1138
    %v4337 = vadd.f32 %v4333, %v1139
    %v4338 = vxor.u32 %v4334, 2147483648
    %v4339 = vxor.u32 %v4335, 2147483648
    %v4340 = vxor.u32 %v4336, 2147483648
    %v4341 = vmul.f32 %v4338, 1.442695
    %v4342 = vpow.pop %v4341
    %v4343 = vmul.f32 %v4339, 1.442695
    %v4344 = vpow.pop %v4343
    %v4345 = vmul.f32 %v4340, 1.442695
    %v4346 = vpow.pop %v4345
    %v4347 = vadd.f32 %v4342, 1.0
    %v4348 = vadd.f32 %v4344, 1.0
    %v4349 = vadd.f32 %v4346, 1.0
    %v4350 = vrcp.pop %v4347
    %v4351 = vmul.f32 %v4347, %v4350
    %v4352 = vsub.f32 1.0, %v4351
    %v4353 = vmul.f32 %v4350, %v4352
    %v4354 = vadd.f32 %v4350, %v4353
    %vm4355 = vweird.f32 %v4347
    %vm4356 = vweird.f32 %v4350
    %vm4357 = vmor %vm4355, %vm4356
    %v4358 = vsel %vm4357, %v4350, %v4354
    %v4359 = vand.u32 2147483647, %v4347
    %vm4360 = vcmp.eq.f32.partialorder %v4359, 8.507059e+37
    %v4361 = vand.u32 %v4347, 2147483648
    %v4362 = vor.u32 1.1754944e-38, %v4361
    %v4363 = vsel %vm4360, %v4362, %v4358
    %v4364 = vmul.f32 1.0, %v4363
    %v4365 = vrcp.pop %v4348
    %v4366 = vmul.f32 %v4348, %v4365
    %v4367 = vsub.f32 1.0, %v4366
    %v4368 = vmul.f32 %v4365, %v4367
    %v4369 = vadd.f32 %v4365, %v4368
    %vm4370 = vweird.f32 %v4348
    %vm4371 = vweird.f32 %v4365
    %vm4372 = vmor %vm4370, %vm4371
    %v4373 = vsel %vm4372, %v4365, %v4369
    %v4374 = vand.u32 2147483647, %v4348
    %vm4375 = vcmp.eq.f32.partialorder %v4374, 8.507059e+37
    %v4376 = vand.u32 %v4348, 2147483648
    %v4377 = vor.u32 1.1754944e-38, %v4376
    %v4378 = vsel %vm4375, %v4377, %v4373
    %v4379 = vmul.f32 1.0, %v4378
    %v4380 = vrcp.pop %v4349
    %v4381 = vmul.f32 %v4349, %v4380
    %v4382 = vsub.f32 1.0, %v4381
    %v4383 = vmul.f32 %v4380, %v4382
    %v4384 = vadd.f32 %v4380, %v4383
    %vm4385 = vweird.f32 %v4349
    %vm4386 = vweird.f32 %v4380
    %vm4387 = vmor %vm4385, %vm4386
    %v4388 = vsel %vm4387, %v4380, %v4384
    %v4389 = vand.u32 2147483647, %v4349
    %vm4390 = vcmp.eq.f32.partialorder %v4389, 8.507059e+37
    %v4391 = vand.u32 %v4349, 2147483648
    %v4392 = vor.u32 1.1754944e-38, %v4391
    %v4393 = vsel %vm4390, %v4392, %v4388
    %v4394 = vmul.f32 1.0, %v4393
    %v4395 = vtanh.pop %v4337
    %v4396 = vmul.f32 %v4379, %v3784
    %v4397 = vmul.f32 %v4364, %v4395
    %v4398 = vadd.f32 %v4396, %v4397
    %4399 = vadd.xlane.f32.xlu0 %v4398
    %v4400 = vpop.xlane.xlu0 %4399
    %v4401 = vmul.f32 %v4400, %v268
    %v4402 = vmul.f32 %v4398, %v4398
    %4403 = vadd.xlane.f32.xlu0 %v4402
    %v4404 = vpop.xlane.xlu0 %4403
    %v4405 = vmul.f32 %v4404, %v268
    %v4406 = vmul.f32 %v4401, %v4401
    %v4407 = vsub.f32 %v4405, %v4406
    %v4408 = vsub.f32 %v4398, %v4401
    %v4409 = vadd.f32 %v4407, 0.001
    %v4410 = vrsqrt.pop %v4409
    %v4411 = vmul.f32 %v4410, %v4409
    %v4412 = vmul.f32 %v4411, %v4410
    %v4413 = vmul.f32 0.5, %v4412
    %v4414 = vsub.f32 1.5, %v4413
    %v4415 = vmul.f32 %v4410, %v4414
    %vm4416 = vweird.f32 %v4409
    %vm4417 = vweird.f32 %v4410
    %vm4418 = vmor %vm4416, %vm4417
    %v4419 = vsel %vm4418, %v4410, %v4415
    %v4420 = vmul.f32 %v4408, %v4419
    %v4421 = vmul.f32 %v4420, %v1227
    %v4422 = vadd.f32 %v4421, %v1229
    %v4423 = vtanh.pop %v4422
    %v4424 = vmul.f32 %v4394, %v4423
    %v4425 = vpack.c.bf16 %v4424, %v4424
    %v4426 = vld [vmem:[%s1234] sm:$0xff]
    %v4427 = vld [vmem:[%s1234 + $0x8] sm:$0xff]
    %v4428 = vld [vmem:[%s1234 + $0x10] sm:$0xff]
    %v4429 = vld [vmem:[%s1234 + $0x18] sm:$0xff]
    %v4430 = vld [vmem:[%s1234 + $0x20] sm:$0xff]
    %v4431 = vld [vmem:[%s1234 + $0x28] sm:$0xff]
    %v4432 = vld [vmem:[%s1234 + $0x30] sm:$0xff]
    %v4433 = vld [vmem:[%s1234 + $0x38] sm:$0xff]
    %v4434 = vld [vmem:[%s1234 + $0x40] sm:$0xff]
    %v4435 = vld [vmem:[%s1234 + $0x48] sm:$0xff]
    %v4436 = vld [vmem:[%s1234 + $0x50] sm:$0xff]
    %v4437 = vld [vmem:[%s1234 + $0x58] sm:$0xff]
    %v4438 = vld [vmem:[%s1234 + $0x60] sm:$0xff]
    %v4439 = vld [vmem:[%s1234 + $0x68] sm:$0xff]
    %v4440 = vld [vmem:[%s1234 + $0x70] sm:$0xff]
    %v4441 = vld [vmem:[%s1234 + $0x78] sm:$0xff]
    %v4442 = vld [vmem:[%s1234 + $0x80] sm:$0xff]
    %v4443 = vld [vmem:[%s1234 + $0x88] sm:$0xff]
    %v4444 = vld [vmem:[%s1234 + $0x90] sm:$0xff]
    %v4445 = vld [vmem:[%s1234 + $0x98] sm:$0xff]
    %v4446 = vld [vmem:[%s1234 + $0xa0] sm:$0xff]
    %v4447 = vld [vmem:[%s1234 + $0xa8] sm:$0xff]
    %v4448 = vld [vmem:[%s1234 + $0xb0] sm:$0xff]
    %v4449 = vld [vmem:[%s1234 + $0xb8] sm:$0xff]
    %v4450 = vld [vmem:[%s1234 + $0xc0] sm:$0xff]
    %v4451 = vld [vmem:[%s1234 + $0xc8] sm:$0xff]
    %v4452 = vld [vmem:[%s1234 + $0xd0] sm:$0xff]
    %v4453 = vld [vmem:[%s1234 + $0xd8] sm:$0xff]
    %v4454 = vld [vmem:[%s1234 + $0xe0] sm:$0xff]
    %v4455 = vld [vmem:[%s1234 + $0xe8] sm:$0xff]
    %v4456 = vld [vmem:[%s1234 + $0xf0] sm:$0xff]
    %v4457 = vld [vmem:[%s1234 + $0xf8] sm:$0xff]
    %v4490 = vunpack.c.l.b16 %v4426
    %v4491 = vunpack.c.h.b16 %v4426
    %v4492 = vunpack.c.l.b16 %v4427
    %v4493 = vunpack.c.h.b16 %v4427
    %v4494 = vunpack.c.l.b16 %v4428
    %v4495 = vunpack.c.h.b16 %v4428
    %v4496 = vunpack.c.l.b16 %v4429
    %v4497 = vunpack.c.h.b16 %v4429
    %v4498 = vunpack.c.l.b16 %v4430
    %v4499 = vunpack.c.h.b16 %v4430
    %v4500 = vunpack.c.l.b16 %v4431
    %v4501 = vunpack.c.h.b16 %v4431
    %v4502 = vunpack.c.l.b16 %v4432
    %v4503 = vunpack.c.h.b16 %v4432
    %v4504 = vunpack.c.l.b16 %v4433
    %v4505 = vunpack.c.h.b16 %v4433
    %v4506 = vunpack.c.l.b16 %v4434
    %v4507 = vunpack.c.h.b16 %v4434
    %v4508 = vunpack.c.l.b16 %v4435
    %v4509 = vunpack.c.h.b16 %v4435
    %v4510 = vunpack.c.l.b16 %v4436
    %v4511 = vunpack.c.h.b16 %v4436
    %v4512 = vunpack.c.l.b16 %v4437
    %v4513 = vunpack.c.h.b16 %v4437
    %v4514 = vunpack.c.l.b16 %v4438
    %v4515 = vunpack.c.h.b16 %v4438
    %v4516 = vunpack.c.l.b16 %v4439
    %v4517 = vunpack.c.h.b16 %v4439
    %v4518 = vunpack.c.l.b16 %v4440
    %v4519 = vunpack.c.h.b16 %v4440
    %v4520 = vunpack.c.l.b16 %v4441
    %v4521 = vunpack.c.h.b16 %v4441
    %v4522 = vunpack.c.l.b16 %v4442
    %v4523 = vunpack.c.h.b16 %v4442
    %v4524 = vunpack.c.l.b16 %v4443
    %v4525 = vunpack.c.h.b16 %v4443
    %v4526 = vunpack.c.l.b16 %v4444
    %v4527 = vunpack.c.h.b16 %v4444
    %v4528 = vunpack.c.l.b16 %v4445
    %v4529 = vunpack.c.h.b16 %v4445
    %v4530 = vunpack.c.l.b16 %v4446
    %v4531 = vunpack.c.h.b16 %v4446
    %v4532 = vunpack.c.l.b16 %v4447
    %v4533 = vunpack.c.h.b16 %v4447
    %v4534 = vunpack.c.l.b16 %v4448
    %v4535 = vunpack.c.h.b16 %v4448
    %v4536 = vunpack.c.l.b16 %v4449
    %v4537 = vunpack.c.h.b16 %v4449
    %v4538 = vunpack.c.l.b16 %v4450
    %v4539 = vunpack.c.h.b16 %v4450
    %v4540 = vunpack.c.l.b16 %v4451
    %v4541 = vunpack.c.h.b16 %v4451
    %v4542 = vunpack.c.l.b16 %v4452
    %v4543 = vunpack.c.h.b16 %v4452
    %v4544 = vunpack.c.l.b16 %v4453
    %v4545 = vunpack.c.h.b16 %v4453
    %v4546 = vunpack.c.l.b16 %v4454
    %v4547 = vunpack.c.h.b16 %v4454
    %v4548 = vunpack.c.l.b16 %v4455
    %v4549 = vunpack.c.h.b16 %v4455
    %v4550 = vunpack.c.l.b16 %v4456
    %v4551 = vunpack.c.h.b16 %v4456
    %v4552 = vunpack.c.l.b16 %v4457
    %v4553 = vunpack.c.h.b16 %v4457
    %v4554 = vpack.c.b16 %v4494, %v4490
    %v4555 = vpack.c.b16 %v4495, %v4491
    %v4556 = vpack.c.b16 %v4496, %v4492
    %v4557 = vpack.c.b16 %v4497, %v4493
    %v4558 = vpack.c.b16 %v4502, %v4498
    %v4559 = vpack.c.b16 %v4503, %v4499
    %v4560 = vpack.c.b16 %v4504, %v4500
    %v4561 = vpack.c.b16 %v4505, %v4501
    %v4562 = vpack.c.b16 %v4510, %v4506
    %v4563 = vpack.c.b16 %v4511, %v4507
    %v4564 = vpack.c.b16 %v4512, %v4508
    %v4565 = vpack.c.b16 %v4513, %v4509
    %v4566 = vpack.c.b16 %v4518, %v4514
    %v4567 = vpack.c.b16 %v4519, %v4515
    %v4568 = vpack.c.b16 %v4520, %v4516
    %v4569 = vpack.c.b16 %v4521, %v4517
    %v4570 = vpack.c.b16 %v4526, %v4522
    %v4571 = vpack.c.b16 %v4527, %v4523
    %v4572 = vpack.c.b16 %v4528, %v4524
    %v4573 = vpack.c.b16 %v4529, %v4525
    %v4574 = vpack.c.b16 %v4534, %v4530
    %v4575 = vpack.c.b16 %v4535, %v4531
    %v4576 = vpack.c.b16 %v4536, %v4532
    %v4577 = vpack.c.b16 %v4537, %v4533
    %v4578 = vpack.c.b16 %v4542, %v4538
    %v4579 = vpack.c.b16 %v4543, %v4539
    %v4580 = vpack.c.b16 %v4544, %v4540
    %v4581 = vpack.c.b16 %v4545, %v4541
    %v4582 = vpack.c.b16 %v4550, %v4546
    %v4583 = vpack.c.b16 %v4551, %v4547
    %v4584 = vpack.c.b16 %v4552, %v4548
    %v4585 = vpack.c.b16 %v4553, %v4549
    %4618 = vmatpush.bf16.msra.mxu0 %v4582
    %4619 = vmatpush.bf16.msra.mxu0 %v4578
    %4620 = vmatpush.bf16.msra.mxu0 %v4574
    %4621 = vmatpush.bf16.msra.mxu0 %v4570
    %4622 = vmatpush.bf16.msra.mxu0 %v4566
    %4623 = vmatpush.bf16.msra.mxu0 %v4562
    %4624 = vmatpush.bf16.msra.mxu0 %v4558
    %4625 = vmatpush.bf16.msra.mxu0 %v4554
    %4626 = vmatmul.bf16.gmra.mxu0 %v4425
    %v4627 = vpop.f32.mrf.mxu0
    %v4628 = vadd.f32 0.0, %v4627
    %v4629 = vpop.f32.mrf.mxu0
    %4630 = vdwg.mxu0
    %4631 = vmatpush.bf16.msra.mxu0 %v4583
    %4632 = vmatpush.bf16.msra.mxu0 %v4579
    %4633 = vmatpush.bf16.msra.mxu0 %v4575
    %4634 = vmatpush.bf16.msra.mxu0 %v4571
    %4635 = vmatpush.bf16.msra.mxu0 %v4567
    %4636 = vmatpush.bf16.msra.mxu0 %v4563
    %4637 = vmatpush.bf16.msra.mxu0 %v4559
    %4638 = vmatpush.bf16.msra.mxu0 %v4555
    %4639 = vmatmul.bf16.gmra.mxu0 %v4425
    %v4640 = vpop.f32.mrf.mxu0
    %v4641 = vadd.f32 0.0, %v4640
    %v4642 = vpop.f32.mrf.mxu0
    %4643 = vdwg.mxu0
    %4644 = vmatpush.bf16.msra.mxu0 %v4584
    %4645 = vmatpush.bf16.msra.mxu0 %v4580
    %4646 = vmatpush.bf16.msra.mxu0 %v4576
    %4647 = vmatpush.bf16.msra.mxu0 %v4572
    %4648 = vmatpush.bf16.msra.mxu0 %v4568
    %4649 = vmatpush.bf16.msra.mxu0 %v4564
    %4650 = vmatpush.bf16.msra.mxu0 %v4560
    %4651 = vmatpush.bf16.msra.mxu0 %v4556
    %4652 = vmatmul.bf16.gmra.mxu0 %v4425
    %v4653 = vpop.f32.mrf.mxu0
    %v4654 = vadd.f32 0.0, %v4653
    %v4655 = vpop.f32.mrf.mxu0
    %4656 = vdwg.mxu0
    %4657 = vmatpush.bf16.msra.mxu0 %v4585
    %4658 = vmatpush.bf16.msra.mxu0 %v4581
    %4659 = vmatpush.bf16.msra.mxu0 %v4577
    %4660 = vmatpush.bf16.msra.mxu0 %v4573
    %4661 = vmatpush.bf16.msra.mxu0 %v4569
    %4662 = vmatpush.bf16.msra.mxu0 %v4565
    %4663 = vmatpush.bf16.msra.mxu0 %v4561
    %4664 = vmatpush.bf16.msra.mxu0 %v4557
    %4665 = vmatmul.bf16.gmra.mxu0 %v4425
    %v4666 = vpop.f32.mrf.mxu0
    %v4667 = vadd.f32 0.0, %v4666
    %v4668 = vpop.f32.mrf.mxu0
    %4669 = vdwg.mxu0
    %s4670 = smul.addr %s4038, 8
    %s4671 = scalar_lea.vmem %s1479, %s4670 [#allocation3]
    %4672 = vst [vmem:[%s4671] sm:$0xff] %v4628
    %4673 = vst [vmem:[%s4671 + $0x8] sm:$0xff] %v4641
    %4674 = vst [vmem:[%s4671 + $0x10] sm:$0xff] %v4654
    %4675 = vst [vmem:[%s4671 + $0x18] sm:$0xff] %v4667
    %s4676 = smul.u32 6, 4
    %s4677 = smul.addr %s4676, 8
    %s4678 = scalar_lea.vmem [#allocation3], %s4677
    %v4679 = vld [vmem:[%s4678] sm:$0xff]
    %v4680 = vld [vmem:[%s4678 + $0x8] sm:$0xff]
    %v4681 = vld [vmem:[%s4678 + $0x10] sm:$0xff]
    %v4682 = vld [vmem:[%s4678 + $0x18] sm:$0xff]
    %v4683 = vld [vmem:[#allocation9] sm:$0xff]
    %v4684 = vld [vmem:[#allocation9 + $0x8] sm:$0xff]
    %v4685 = vld [vmem:[#allocation9 + $0x10] sm:$0xff]
    %v4686 = vld [vmem:[#allocation9 + $0x18] sm:$0xff]
    %v4687 = vld [vmem:[#allocation9 + $0x20] sm:$0xff]
    %v4688 = vld [vmem:[#allocation9 + $0x28] sm:$0xff]
    %v4689 = vld [vmem:[#allocation9 + $0x30] sm:$0xff]
    %v4690 = vld [vmem:[#allocation9 + $0x38] sm:$0xff]
    %v4691 = vld [vmem:[#allocation9 + $0x40] sm:$0xff]
    %v4692 = vld [vmem:[#allocation9 + $0x48] sm:$0xff]
    %v4693 = vld [vmem:[#allocation9 + $0x50] sm:$0xff]
    %v4694 = vld [vmem:[#allocation9 + $0x58] sm:$0xff]
    %v4695 = vld [vmem:[#allocation9 + $0x60] sm:$0xff]
    %v4696 = vld [vmem:[#allocation9 + $0x68] sm:$0xff]
    %v4697 = vld [vmem:[#allocation9 + $0x70] sm:$0xff]
    %v4698 = vld [vmem:[#allocation9 + $0x78] sm:$0xff]
    %v4699 = vld [vmem:[#allocation9 + $0x80] sm:$0xff]
    %v4700 = vld [vmem:[#allocation9 + $0x88] sm:$0xff]
    %v4701 = vld [vmem:[#allocation9 + $0x90] sm:$0xff]
    %v4702 = vld [vmem:[#allocation9 + $0x98] sm:$0xff]
    %v4703 = vld [vmem:[#allocation9 + $0xa0] sm:$0xff]
    %v4704 = vld [vmem:[#allocation9 + $0xa8] sm:$0xff]
    %v4705 = vld [vmem:[#allocation9 + $0xb0] sm:$0xff]
    %v4706 = vld [vmem:[#allocation9 + $0xb8] sm:$0xff]
    %v4707 = vld [vmem:[#allocation9 + $0xc0] sm:$0xff]
    %v4708 = vld [vmem:[#allocation9 + $0xc8] sm:$0xff]
    %v4709 = vld [vmem:[#allocation9 + $0xd0] sm:$0xff]
    %v4710 = vld [vmem:[#allocation9 + $0xd8] sm:$0xff]
    %v4711 = vld [vmem:[#allocation9 + $0xe0] sm:$0xff]
    %v4712 = vld [vmem:[#allocation9 + $0xe8] sm:$0xff]
    %v4713 = vld [vmem:[#allocation9 + $0xf0] sm:$0xff]
    %v4714 = vld [vmem:[#allocation9 + $0xf8] sm:$0xff]
    %v4747 = vunpack.c.l.b16 %v4683
    %v4748 = vunpack.c.h.b16 %v4683
    %v4749 = vunpack.c.l.b16 %v4684
    %v4750 = vunpack.c.h.b16 %v4684
    %v4751 = vunpack.c.l.b16 %v4685
    %v4752 = vunpack.c.h.b16 %v4685
    %v4753 = vunpack.c.l.b16 %v4686
    %v4754 = vunpack.c.h.b16 %v4686
    %v4755 = vunpack.c.l.b16 %v4687
    %v4756 = vunpack.c.h.b16 %v4687
    %v4757 = vunpack.c.l.b16 %v4688
    %v4758 = vunpack.c.h.b16 %v4688
    %v4759 = vunpack.c.l.b16 %v4689
    %v4760 = vunpack.c.h.b16 %v4689
    %v4761 = vunpack.c.l.b16 %v4690
    %v4762 = vunpack.c.h.b16 %v4690
    %v4763 = vunpack.c.l.b16 %v4691
    %v4764 = vunpack.c.h.b16 %v4691
    %v4765 = vunpack.c.l.b16 %v4692
    %v4766 = vunpack.c.h.b16 %v4692
    %v4767 = vunpack.c.l.b16 %v4693
    %v4768 = vunpack.c.h.b16 %v4693
    %v4769 = vunpack.c.l.b16 %v4694
    %v4770 = vunpack.c.h.b16 %v4694
    %v4771 = vunpack.c.l.b16 %v4695
    %v4772 = vunpack.c.h.b16 %v4695
    %v4773 = vunpack.c.l.b16 %v4696
    %v4774 = vunpack.c.h.b16 %v4696
    %v4775 = vunpack.c.l.b16 %v4697
    %v4776 = vunpack.c.h.b16 %v4697
    %v4777 = vunpack.c.l.b16 %v4698
    %v4778 = vunpack.c.h.b16 %v4698
    %v4779 = vunpack.c.l.b16 %v4699
    %v4780 = vunpack.c.h.b16 %v4699
    %v4781 = vunpack.c.l.b16 %v4700
    %v4782 = vunpack.c.h.b16 %v4700
    %v4783 = vunpack.c.l.b16 %v4701
    %v4784 = vunpack.c.h.b16 %v4701
    %v4785 = vunpack.c.l.b16 %v4702
    %v4786 = vunpack.c.h.b16 %v4702
    %v4787 = vunpack.c.l.b16 %v4703
    %v4788 = vunpack.c.h.b16 %v4703
    %v4789 = vunpack.c.l.b16 %v4704
    %v4790 = vunpack.c.h.b16 %v4704
    %v4791 = vunpack.c.l.b16 %v4705
    %v4792 = vunpack.c.h.b16 %v4705
    %v4793 = vunpack.c.l.b16 %v4706
    %v4794 = vunpack.c.h.b16 %v4706
    %v4795 = vunpack.c.l.b16 %v4707
    %v4796 = vunpack.c.h.b16 %v4707
    %v4797 = vunpack.c.l.b16 %v4708
    %v4798 = vunpack.c.h.b16 %v4708
    %v4799 = vunpack.c.l.b16 %v4709
    %v4800 = vunpack.c.h.b16 %v4709
    %v4801 = vunpack.c.l.b16 %v4710
    %v4802 = vunpack.c.h.b16 %v4710
    %v4803 = vunpack.c.l.b16 %v4711
    %v4804 = vunpack.c.h.b16 %v4711
    %v4805 = vunpack.c.l.b16 %v4712
    %v4806 = vunpack.c.h.b16 %v4712
    %v4807 = vunpack.c.l.b16 %v4713
    %v4808 = vunpack.c.h.b16 %v4713
    %v4809 = vunpack.c.l.b16 %v4714
    %v4810 = vunpack.c.h.b16 %v4714
    %v4811 = vpack.c.b16 %v4751, %v4747
    %v4812 = vpack.c.b16 %v4752, %v4748
    %v4813 = vpack.c.b16 %v4753, %v4749
    %v4814 = vpack.c.b16 %v4754, %v4750
    %v4815 = vpack.c.b16 %v4759, %v4755
    %v4816 = vpack.c.b16 %v4760, %v4756
    %v4817 = vpack.c.b16 %v4761, %v4757
    %v4818 = vpack.c.b16 %v4762, %v4758
    %v4819 = vpack.c.b16 %v4767, %v4763
    %v4820 = vpack.c.b16 %v4768, %v4764
    %v4821 = vpack.c.b16 %v4769, %v4765
    %v4822 = vpack.c.b16 %v4770, %v4766
    %v4823 = vpack.c.b16 %v4775, %v4771
    %v4824 = vpack.c.b16 %v4776, %v4772
    %v4825 = vpack.c.b16 %v4777, %v4773
    %v4826 = vpack.c.b16 %v4778, %v4774
    %v4827 = vpack.c.b16 %v4783, %v4779
    %v4828 = vpack.c.b16 %v4784, %v4780
    %v4829 = vpack.c.b16 %v4785, %v4781
    %v4830 = vpack.c.b16 %v4786, %v4782
    %v4831 = vpack.c.b16 %v4791, %v4787
    %v4832 = vpack.c.b16 %v4792, %v4788
    %v4833 = vpack.c.b16 %v4793, %v4789
    %v4834 = vpack.c.b16 %v4794, %v4790
    %v4835 = vpack.c.b16 %v4799, %v4795
    %v4836 = vpack.c.b16 %v4800, %v4796
    %v4837 = vpack.c.b16 %v4801, %v4797
    %v4838 = vpack.c.b16 %v4802, %v4798
    %v4839 = vpack.c.b16 %v4807, %v4803
    %v4840 = vpack.c.b16 %v4808, %v4804
    %v4841 = vpack.c.b16 %v4809, %v4805
    %v4842 = vpack.c.b16 %v4810, %v4806
    %4875 = vmatpush.bf16.msra.mxu0 %v4839
    %4876 = vmatpush.bf16.msra.mxu0 %v4835
    %4877 = vmatpush.bf16.msra.mxu0 %v4831
    %4878 = vmatpush.bf16.msra.mxu0 %v4827
    %4879 = vmatpush.bf16.msra.mxu0 %v4823
    %4880 = vmatpush.bf16.msra.mxu0 %v4819
    %4881 = vmatpush.bf16.msra.mxu0 %v4815
    %4882 = vmatpush.bf16.msra.mxu0 %v4811
    %4883 = vmatmul.bf16.gmra.mxu0 %v4425
    %v4884 = vpop.f32.mrf.mxu0
    %v4885 = vadd.f32 0.0, %v4884
    %v4886 = vpop.f32.mrf.mxu0
    %4887 = vdwg.mxu0
    %4888 = vmatpush.bf16.msra.mxu0 %v4840
    %4889 = vmatpush.bf16.msra.mxu0 %v4836
    %4890 = vmatpush.bf16.msra.mxu0 %v4832
    %4891 = vmatpush.bf16.msra.mxu0 %v4828
    %4892 = vmatpush.bf16.msra.mxu0 %v4824
    %4893 = vmatpush.bf16.msra.mxu0 %v4820
    %4894 = vmatpush.bf16.msra.mxu0 %v4816
    %4895 = vmatpush.bf16.msra.mxu0 %v4812
    %4896 = vmatmul.bf16.gmra.mxu0 %v4425
    %v4897 = vpop.f32.mrf.mxu0
    %v4898 = vadd.f32 0.0, %v4897
    %v4899 = vpop.f32.mrf.mxu0
    %4900 = vdwg.mxu0
    %4901 = vmatpush.bf16.msra.mxu0 %v4841
    %4902 = vmatpush.bf16.msra.mxu0 %v4837
    %4903 = vmatpush.bf16.msra.mxu0 %v4833
    %4904 = vmatpush.bf16.msra.mxu0 %v4829
    %4905 = vmatpush.bf16.msra.mxu0 %v4825
    %4906 = vmatpush.bf16.msra.mxu0 %v4821
    %4907 = vmatpush.bf16.msra.mxu0 %v4817
    %4908 = vmatpush.bf16.msra.mxu0 %v4813
    %4909 = vmatmul.bf16.gmra.mxu0 %v4425
    %v4910 = vpop.f32.mrf.mxu0
    %v4911 = vadd.f32 0.0, %v4910
    %v4912 = vpop.f32.mrf.mxu0
    %4913 = vdwg.mxu0
    %4914 = vmatpush.bf16.msra.mxu0 %v4842
    %4915 = vmatpush.bf16.msra.mxu0 %v4838
    %4916 = vmatpush.bf16.msra.mxu0 %v4834
    %4917 = vmatpush.bf16.msra.mxu0 %v4830
    %4918 = vmatpush.bf16.msra.mxu0 %v4826
    %4919 = vmatpush.bf16.msra.mxu0 %v4822
    %4920 = vmatpush.bf16.msra.mxu0 %v4818
    %4921 = vmatpush.bf16.msra.mxu0 %v4814
    %4922 = vmatmul.bf16.gmra.mxu0 %v4425
    %v4923 = vpop.f32.mrf.mxu0
    %v4924 = vadd.f32 0.0, %v4923
    %v4925 = vpop.f32.mrf.mxu0
    %4926 = vdwg.mxu0
    %v4927 = vadd.f32 %v4679, %v4885
    %v4928 = vadd.f32 %v4680, %v4898
    %v4929 = vadd.f32 %v4681, %v4911
    %v4930 = vadd.f32 %v4682, %v4924
    %v4931 = vadd.f32 %v4927, %v4928
    %v4932 = vadd.f32 %v4931, %v4929
    %v4933 = vadd.f32 %v4932, %v4930
    %4934 = vadd.xlane.f32.xlu0 %v4933
    %v4935 = vpop.xlane.xlu0 %4934
    %v4936 = vmul.f32 %v4935, %v1078
    %v4937 = vmul.f32 %v4927, %v4927
    %v4938 = vmul.f32 %v4928, %v4928
    %v4939 = vmul.f32 %v4929, %v4929
    %v4940 = vmul.f32 %v4930, %v4930
    %v4941 = vadd.f32 %v4937, %v4938
    %v4942 = vadd.f32 %v4941, %v4939
    %v4943 = vadd.f32 %v4942, %v4940
    %4944 = vadd.xlane.f32.xlu0 %v4943
    %v4945 = vpop.xlane.xlu0 %4944
    %v4946 = vmul.f32 %v4945, %v1078
    %v4947 = vmul.f32 %v4936, %v4936
    %v4948 = vsub.f32 %v4946, %v4947
    %v4949 = vsub.f32 %v4927, %v4936
    %v4950 = vsub.f32 %v4928, %v4936
    %v4951 = vsub.f32 %v4929, %v4936
    %v4952 = vsub.f32 %v4930, %v4936
    %v4953 = vadd.f32 %v4948, 0.001
    %v4954 = vrsqrt.pop %v4953
    %v4955 = vmul.f32 %v4954, %v4953
    %v4956 = vmul.f32 %v4955, %v4954
    %v4957 = vmul.f32 0.5, %v4956
    %v4958 = vsub.f32 1.5, %v4957
    %v4959 = vmul.f32 %v4954, %v4958
    %vm4960 = vweird.f32 %v4953
    %vm4961 = vweird.f32 %v4954
    %vm4962 = vmor %vm4960, %vm4961
    %v4963 = vsel %vm4962, %v4954, %v4959
    %v4964 = vmul.f32 %v4949, %v4963
    %v4965 = vmul.f32 %v4950, %v4963
    %v4966 = vmul.f32 %v4951, %v4963
    %v4967 = vmul.f32 %v4952, %v4963
    %v4968 = vmul.f32 %v4964, %v1120
    %v4969 = vmul.f32 %v4965, %v1121
    %v4970 = vmul.f32 %v4966, %v1122
    %v4971 = vmul.f32 %v4967, %v1123
    %v4972 = vadd.f32 %v4968, %v1136
    %v4973 = vadd.f32 %v4969, %v1137
    %v4974 = vadd.f32 %v4970, %v1138
    %v4975 = vadd.f32 %v4971, %v1139
    %v4976 = vxor.u32 %v4972, 2147483648
    %v4977 = vxor.u32 %v4973, 2147483648
    %v4978 = vxor.u32 %v4974, 2147483648
    %v4979 = vmul.f32 %v4976, 1.442695
    %v4980 = vpow.pop %v4979
    %v4981 = vmul.f32 %v4977, 1.442695
    %v4982 = vpow.pop %v4981
    %v4983 = vmul.f32 %v4978, 1.442695
    %v4984 = vpow.pop %v4983
    %v4985 = vadd.f32 %v4980, 1.0
    %v4986 = vadd.f32 %v4982, 1.0
    %v4987 = vadd.f32 %v4984, 1.0
    %v4988 = vrcp.pop %v4985
    %v4989 = vmul.f32 %v4985, %v4988
    %v4990 = vsub.f32 1.0, %v4989
    %v4991 = vmul.f32 %v4988, %v4990
    %v4992 = vadd.f32 %v4988, %v4991
    %vm4993 = vweird.f32 %v4985
    %vm4994 = vweird.f32 %v4988
    %vm4995 = vmor %vm4993, %vm4994
    %v4996 = vsel %vm4995, %v4988, %v4992
    %v4997 = vand.u32 2147483647, %v4985
    %vm4998 = vcmp.eq.f32.partialorder %v4997, 8.507059e+37
    %v4999 = vand.u32 %v4985, 2147483648
    %v5000 = vor.u32 1.1754944e-38, %v4999
    %v5001 = vsel %vm4998, %v5000, %v4996
    %v5002 = vmul.f32 1.0, %v5001
    %v5003 = vrcp.pop %v4986
    %v5004 = vmul.f32 %v4986, %v5003
    %v5005 = vsub.f32 1.0, %v5004
    %v5006 = vmul.f32 %v5003, %v5005
    %v5007 = vadd.f32 %v5003, %v5006
    %vm5008 = vweird.f32 %v4986
    %vm5009 = vweird.f32 %v5003
    %vm5010 = vmor %vm5008, %vm5009
    %v5011 = vsel %vm5010, %v5003, %v5007
    %v5012 = vand.u32 2147483647, %v4986
    %vm5013 = vcmp.eq.f32.partialorder %v5012, 8.507059e+37
    %v5014 = vand.u32 %v4986, 2147483648
    %v5015 = vor.u32 1.1754944e-38, %v5014
    %v5016 = vsel %vm5013, %v5015, %v5011
    %v5017 = vmul.f32 1.0, %v5016
    %v5018 = vrcp.pop %v4987
    %v5019 = vmul.f32 %v4987, %v5018
    %v5020 = vsub.f32 1.0, %v5019
    %v5021 = vmul.f32 %v5018, %v5020
    %v5022 = vadd.f32 %v5018, %v5021
    %vm5023 = vweird.f32 %v4987
    %vm5024 = vweird.f32 %v5018
    %vm5025 = vmor %vm5023, %vm5024
    %v5026 = vsel %vm5025, %v5018, %v5022
    %v5027 = vand.u32 2147483647, %v4987
    %vm5028 = vcmp.eq.f32.partialorder %v5027, 8.507059e+37
    %v5029 = vand.u32 %v4987, 2147483648
    %v5030 = vor.u32 1.1754944e-38, %v5029
    %v5031 = vsel %vm5028, %v5030, %v5026
    %v5032 = vmul.f32 1.0, %v5031
    %v5033 = vtanh.pop %v4975
    %v5034 = vmul.f32 %v5017, %v4422
    %v5035 = vmul.f32 %v5002, %v5033
    %v5036 = vadd.f32 %v5034, %v5035
    %5037 = vadd.xlane.f32.xlu0 %v5036
    %v5038 = vpop.xlane.xlu0 %5037
    %v5039 = vmul.f32 %v5038, %v268
    %v5040 = vmul.f32 %v5036, %v5036
    %5041 = vadd.xlane.f32.xlu0 %v5040
    %v5042 = vpop.xlane.xlu0 %5041
    %v5043 = vmul.f32 %v5042, %v268
    %v5044 = vmul.f32 %v5039, %v5039
    %v5045 = vsub.f32 %v5043, %v5044
    %v5046 = vsub.f32 %v5036, %v5039
    %v5047 = vadd.f32 %v5045, 0.001
    %v5048 = vrsqrt.pop %v5047
    %v5049 = vmul.f32 %v5048, %v5047
    %v5050 = vmul.f32 %v5049, %v5048
    %v5051 = vmul.f32 0.5, %v5050
    %v5052 = vsub.f32 1.5, %v5051
    %v5053 = vmul.f32 %v5048, %v5052
    %vm5054 = vweird.f32 %v5047
    %vm5055 = vweird.f32 %v5048
    %vm5056 = vmor %vm5054, %vm5055
    %v5057 = vsel %vm5056, %v5048, %v5053
    %v5058 = vmul.f32 %v5046, %v5057
    %v5059 = vmul.f32 %v5058, %v1227
    %v5060 = vadd.f32 %v5059, %v1229
    %v5061 = vtanh.pop %v5060
    %v5062 = vmul.f32 %v5032, %v5061
    %v5063 = vpack.c.bf16 %v5062, %v5062
    %v5064 = vld [vmem:[%s1234] sm:$0xff]
    %v5065 = vld [vmem:[%s1234 + $0x8] sm:$0xff]
    %v5066 = vld [vmem:[%s1234 + $0x10] sm:$0xff]
    %v5067 = vld [vmem:[%s1234 + $0x18] sm:$0xff]
    %v5068 = vld [vmem:[%s1234 + $0x20] sm:$0xff]
    %v5069 = vld [vmem:[%s1234 + $0x28] sm:$0xff]
    %v5070 = vld [vmem:[%s1234 + $0x30] sm:$0xff]
    %v5071 = vld [vmem:[%s1234 + $0x38] sm:$0xff]
    %v5072 = vld [vmem:[%s1234 + $0x40] sm:$0xff]
    %v5073 = vld [vmem:[%s1234 + $0x48] sm:$0xff]
    %v5074 = vld [vmem:[%s1234 + $0x50] sm:$0xff]
    %v5075 = vld [vmem:[%s1234 + $0x58] sm:$0xff]
    %v5076 = vld [vmem:[%s1234 + $0x60] sm:$0xff]
    %v5077 = vld [vmem:[%s1234 + $0x68] sm:$0xff]
    %v5078 = vld [vmem:[%s1234 + $0x70] sm:$0xff]
    %v5079 = vld [vmem:[%s1234 + $0x78] sm:$0xff]
    %v5080 = vld [vmem:[%s1234 + $0x80] sm:$0xff]
    %v5081 = vld [vmem:[%s1234 + $0x88] sm:$0xff]
    %v5082 = vld [vmem:[%s1234 + $0x90] sm:$0xff]
    %v5083 = vld [vmem:[%s1234 + $0x98] sm:$0xff]
    %v5084 = vld [vmem:[%s1234 + $0xa0] sm:$0xff]
    %v5085 = vld [vmem:[%s1234 + $0xa8] sm:$0xff]
    %v5086 = vld [vmem:[%s1234 + $0xb0] sm:$0xff]
    %v5087 = vld [vmem:[%s1234 + $0xb8] sm:$0xff]
    %v5088 = vld [vmem:[%s1234 + $0xc0] sm:$0xff]
    %v5089 = vld [vmem:[%s1234 + $0xc8] sm:$0xff]
    %v5090 = vld [vmem:[%s1234 + $0xd0] sm:$0xff]
    %v5091 = vld [vmem:[%s1234 + $0xd8] sm:$0xff]
    %v5092 = vld [vmem:[%s1234 + $0xe0] sm:$0xff]
    %v5093 = vld [vmem:[%s1234 + $0xe8] sm:$0xff]
    %v5094 = vld [vmem:[%s1234 + $0xf0] sm:$0xff]
    %v5095 = vld [vmem:[%s1234 + $0xf8] sm:$0xff]
    %v5128 = vunpack.c.l.b16 %v5064
    %v5129 = vunpack.c.h.b16 %v5064
    %v5130 = vunpack.c.l.b16 %v5065
    %v5131 = vunpack.c.h.b16 %v5065
    %v5132 = vunpack.c.l.b16 %v5066
    %v5133 = vunpack.c.h.b16 %v5066
    %v5134 = vunpack.c.l.b16 %v5067
    %v5135 = vunpack.c.h.b16 %v5067
    %v5136 = vunpack.c.l.b16 %v5068
    %v5137 = vunpack.c.h.b16 %v5068
    %v5138 = vunpack.c.l.b16 %v5069
    %v5139 = vunpack.c.h.b16 %v5069
    %v5140 = vunpack.c.l.b16 %v5070
    %v5141 = vunpack.c.h.b16 %v5070
    %v5142 = vunpack.c.l.b16 %v5071
    %v5143 = vunpack.c.h.b16 %v5071
    %v5144 = vunpack.c.l.b16 %v5072
    %v5145 = vunpack.c.h.b16 %v5072
    %v5146 = vunpack.c.l.b16 %v5073
    %v5147 = vunpack.c.h.b16 %v5073
    %v5148 = vunpack.c.l.b16 %v5074
    %v5149 = vunpack.c.h.b16 %v5074
    %v5150 = vunpack.c.l.b16 %v5075
    %v5151 = vunpack.c.h.b16 %v5075
    %v5152 = vunpack.c.l.b16 %v5076
    %v5153 = vunpack.c.h.b16 %v5076
    %v5154 = vunpack.c.l.b16 %v5077
    %v5155 = vunpack.c.h.b16 %v5077
    %v5156 = vunpack.c.l.b16 %v5078
    %v5157 = vunpack.c.h.b16 %v5078
    %v5158 = vunpack.c.l.b16 %v5079
    %v5159 = vunpack.c.h.b16 %v5079
    %v5160 = vunpack.c.l.b16 %v5080
    %v5161 = vunpack.c.h.b16 %v5080
    %v5162 = vunpack.c.l.b16 %v5081
    %v5163 = vunpack.c.h.b16 %v5081
    %v5164 = vunpack.c.l.b16 %v5082
    %v5165 = vunpack.c.h.b16 %v5082
    %v5166 = vunpack.c.l.b16 %v5083
    %v5167 = vunpack.c.h.b16 %v5083
    %v5168 = vunpack.c.l.b16 %v5084
    %v5169 = vunpack.c.h.b16 %v5084
    %v5170 = vunpack.c.l.b16 %v5085
    %v5171 = vunpack.c.h.b16 %v5085
    %v5172 = vunpack.c.l.b16 %v5086
    %v5173 = vunpack.c.h.b16 %v5086
    %v5174 = vunpack.c.l.b16 %v5087
    %v5175 = vunpack.c.h.b16 %v5087
    %v5176 = vunpack.c.l.b16 %v5088
    %v5177 = vunpack.c.h.b16 %v5088
    %v5178 = vunpack.c.l.b16 %v5089
    %v5179 = vunpack.c.h.b16 %v5089
    %v5180 = vunpack.c.l.b16 %v5090
    %v5181 = vunpack.c.h.b16 %v5090
    %v5182 = vunpack.c.l.b16 %v5091
    %v5183 = vunpack.c.h.b16 %v5091
    %v5184 = vunpack.c.l.b16 %v5092
    %v5185 = vunpack.c.h.b16 %v5092
    %v5186 = vunpack.c.l.b16 %v5093
    %v5187 = vunpack.c.h.b16 %v5093
    %v5188 = vunpack.c.l.b16 %v5094
    %v5189 = vunpack.c.h.b16 %v5094
    %v5190 = vunpack.c.l.b16 %v5095
    %v5191 = vunpack.c.h.b16 %v5095
    %v5192 = vpack.c.b16 %v5132, %v5128
    %v5193 = vpack.c.b16 %v5133, %v5129
    %v5194 = vpack.c.b16 %v5134, %v5130
    %v5195 = vpack.c.b16 %v5135, %v5131
    %v5196 = vpack.c.b16 %v5140, %v5136
    %v5197 = vpack.c.b16 %v5141, %v5137
    %v5198 = vpack.c.b16 %v5142, %v5138
    %v5199 = vpack.c.b16 %v5143, %v5139
    %v5200 = vpack.c.b16 %v5148, %v5144
    %v5201 = vpack.c.b16 %v5149, %v5145
    %v5202 = vpack.c.b16 %v5150, %v5146
    %v5203 = vpack.c.b16 %v5151, %v5147
    %v5204 = vpack.c.b16 %v5156, %v5152
    %v5205 = vpack.c.b16 %v5157, %v5153
    %v5206 = vpack.c.b16 %v5158, %v5154
    %v5207 = vpack.c.b16 %v5159, %v5155
    %v5208 = vpack.c.b16 %v5164, %v5160
    %v5209 = vpack.c.b16 %v5165, %v5161
    %v5210 = vpack.c.b16 %v5166, %v5162
    %v5211 = vpack.c.b16 %v5167, %v5163
    %v5212 = vpack.c.b16 %v5172, %v5168
    %v5213 = vpack.c.b16 %v5173, %v5169
    %v5214 = vpack.c.b16 %v5174, %v5170
    %v5215 = vpack.c.b16 %v5175, %v5171
    %v5216 = vpack.c.b16 %v5180, %v5176
    %v5217 = vpack.c.b16 %v5181, %v5177
    %v5218 = vpack.c.b16 %v5182, %v5178
    %v5219 = vpack.c.b16 %v5183, %v5179
    %v5220 = vpack.c.b16 %v5188, %v5184
    %v5221 = vpack.c.b16 %v5189, %v5185
    %v5222 = vpack.c.b16 %v5190, %v5186
    %v5223 = vpack.c.b16 %v5191, %v5187
    %5256 = vmatpush.bf16.msra.mxu0 %v5220
    %5257 = vmatpush.bf16.msra.mxu0 %v5216
    %5258 = vmatpush.bf16.msra.mxu0 %v5212
    %5259 = vmatpush.bf16.msra.mxu0 %v5208
    %5260 = vmatpush.bf16.msra.mxu0 %v5204
    %5261 = vmatpush.bf16.msra.mxu0 %v5200
    %5262 = vmatpush.bf16.msra.mxu0 %v5196
    %5263 = vmatpush.bf16.msra.mxu0 %v5192
    %5264 = vmatmul.bf16.gmra.mxu0 %v5063
    %v5265 = vpop.f32.mrf.mxu0
    %v5266 = vadd.f32 0.0, %v5265
    %v5267 = vpop.f32.mrf.mxu0
    %5268 = vdwg.mxu0
    %5269 = vmatpush.bf16.msra.mxu0 %v5221
    %5270 = vmatpush.bf16.msra.mxu0 %v5217
    %5271 = vmatpush.bf16.msra.mxu0 %v5213
    %5272 = vmatpush.bf16.msra.mxu0 %v5209
    %5273 = vmatpush.bf16.msra.mxu0 %v5205
    %5274 = vmatpush.bf16.msra.mxu0 %v5201
    %5275 = vmatpush.bf16.msra.mxu0 %v5197
    %5276 = vmatpush.bf16.msra.mxu0 %v5193
    %5277 = vmatmul.bf16.gmra.mxu0 %v5063
    %v5278 = vpop.f32.mrf.mxu0
    %v5279 = vadd.f32 0.0, %v5278
    %v5280 = vpop.f32.mrf.mxu0
    %5281 = vdwg.mxu0
    %5282 = vmatpush.bf16.msra.mxu0 %v5222
    %5283 = vmatpush.bf16.msra.mxu0 %v5218
    %5284 = vmatpush.bf16.msra.mxu0 %v5214
    %5285 = vmatpush.bf16.msra.mxu0 %v5210
    %5286 = vmatpush.bf16.msra.mxu0 %v5206
    %5287 = vmatpush.bf16.msra.mxu0 %v5202
    %5288 = vmatpush.bf16.msra.mxu0 %v5198
    %5289 = vmatpush.bf16.msra.mxu0 %v5194
    %5290 = vmatmul.bf16.gmra.mxu0 %v5063
    %v5291 = vpop.f32.mrf.mxu0
    %v5292 = vadd.f32 0.0, %v5291
    %v5293 = vpop.f32.mrf.mxu0
    %5294 = vdwg.mxu0
    %5295 = vmatpush.bf16.msra.mxu0 %v5223
    %5296 = vmatpush.bf16.msra.mxu0 %v5219
    %5297 = vmatpush.bf16.msra.mxu0 %v5215
    %5298 = vmatpush.bf16.msra.mxu0 %v5211
    %5299 = vmatpush.bf16.msra.mxu0 %v5207
    %5300 = vmatpush.bf16.msra.mxu0 %v5203
    %5301 = vmatpush.bf16.msra.mxu0 %v5199
    %5302 = vmatpush.bf16.msra.mxu0 %v5195
    %5303 = vmatmul.bf16.gmra.mxu0 %v5063
    %v5304 = vpop.f32.mrf.mxu0
    %v5305 = vadd.f32 0.0, %v5304
    %v5306 = vpop.f32.mrf.mxu0
    %5307 = vdwg.mxu0
    %s5308 = smul.addr %s4676, 8
    %s5309 = scalar_lea.vmem %s1479, %s5308 [#allocation3]
    %5310 = vst [vmem:[%s5309] sm:$0xff] %v5266
    %5311 = vst [vmem:[%s5309 + $0x8] sm:$0xff] %v5279
    %5312 = vst [vmem:[%s5309 + $0x10] sm:$0xff] %v5292
    %5313 = vst [vmem:[%s5309 + $0x18] sm:$0xff] %v5305
    %s5314 = smul.u32 7, 4
    %s5315 = smul.addr %s5314, 8
    %s5316 = scalar_lea.vmem [#allocation3], %s5315
    %v5317 = vld [vmem:[%s5316] sm:$0xff]
    %v5318 = vld [vmem:[%s5316 + $0x8] sm:$0xff]
    %v5319 = vld [vmem:[%s5316 + $0x10] sm:$0xff]
    %v5320 = vld [vmem:[%s5316 + $0x18] sm:$0xff]
    %v5321 = vld [vmem:[#allocation9] sm:$0xff]
    %v5322 = vld [vmem:[#allocation9 + $0x8] sm:$0xff]
    %v5323 = vld [vmem:[#allocation9 + $0x10] sm:$0xff]
    %v5324 = vld [vmem:[#allocation9 + $0x18] sm:$0xff]
    %v5325 = vld [vmem:[#allocation9 + $0x20] sm:$0xff]
    %v5326 = vld [vmem:[#allocation9 + $0x28] sm:$0xff]
    %v5327 = vld [vmem:[#allocation9 + $0x30] sm:$0xff]
    %v5328 = vld [vmem:[#allocation9 + $0x38] sm:$0xff]
    %v5329 = vld [vmem:[#allocation9 + $0x40] sm:$0xff]
    %v5330 = vld [vmem:[#allocation9 + $0x48] sm:$0xff]
    %v5331 = vld [vmem:[#allocation9 + $0x50] sm:$0xff]
    %v5332 = vld [vmem:[#allocation9 + $0x58] sm:$0xff]
    %v5333 = vld [vmem:[#allocation9 + $0x60] sm:$0xff]
    %v5334 = vld [vmem:[#allocation9 + $0x68] sm:$0xff]
    %v5335 = vld [vmem:[#allocation9 + $0x70] sm:$0xff]
    %v5336 = vld [vmem:[#allocation9 + $0x78] sm:$0xff]
    %v5337 = vld [vmem:[#allocation9 + $0x80] sm:$0xff]
    %v5338 = vld [vmem:[#allocation9 + $0x88] sm:$0xff]
    %v5339 = vld [vmem:[#allocation9 + $0x90] sm:$0xff]
    %v5340 = vld [vmem:[#allocation9 + $0x98] sm:$0xff]
    %v5341 = vld [vmem:[#allocation9 + $0xa0] sm:$0xff]
    %v5342 = vld [vmem:[#allocation9 + $0xa8] sm:$0xff]
    %v5343 = vld [vmem:[#allocation9 + $0xb0] sm:$0xff]
    %v5344 = vld [vmem:[#allocation9 + $0xb8] sm:$0xff]
    %v5345 = vld [vmem:[#allocation9 + $0xc0] sm:$0xff]
    %v5346 = vld [vmem:[#allocation9 + $0xc8] sm:$0xff]
    %v5347 = vld [vmem:[#allocation9 + $0xd0] sm:$0xff]
    %v5348 = vld [vmem:[#allocation9 + $0xd8] sm:$0xff]
    %v5349 = vld [vmem:[#allocation9 + $0xe0] sm:$0xff]
    %v5350 = vld [vmem:[#allocation9 + $0xe8] sm:$0xff]
    %v5351 = vld [vmem:[#allocation9 + $0xf0] sm:$0xff]
    %v5352 = vld [vmem:[#allocation9 + $0xf8] sm:$0xff]
    %v5385 = vunpack.c.l.b16 %v5321
    %v5386 = vunpack.c.h.b16 %v5321
    %v5387 = vunpack.c.l.b16 %v5322
    %v5388 = vunpack.c.h.b16 %v5322
    %v5389 = vunpack.c.l.b16 %v5323
    %v5390 = vunpack.c.h.b16 %v5323
    %v5391 = vunpack.c.l.b16 %v5324
    %v5392 = vunpack.c.h.b16 %v5324
    %v5393 = vunpack.c.l.b16 %v5325
    %v5394 = vunpack.c.h.b16 %v5325
    %v5395 = vunpack.c.l.b16 %v5326
    %v5396 = vunpack.c.h.b16 %v5326
    %v5397 = vunpack.c.l.b16 %v5327
    %v5398 = vunpack.c.h.b16 %v5327
    %v5399 = vunpack.c.l.b16 %v5328
    %v5400 = vunpack.c.h.b16 %v5328
    %v5401 = vunpack.c.l.b16 %v5329
    %v5402 = vunpack.c.h.b16 %v5329
    %v5403 = vunpack.c.l.b16 %v5330
    %v5404 = vunpack.c.h.b16 %v5330
    %v5405 = vunpack.c.l.b16 %v5331
    %v5406 = vunpack.c.h.b16 %v5331
    %v5407 = vunpack.c.l.b16 %v5332
    %v5408 = vunpack.c.h.b16 %v5332
    %v5409 = vunpack.c.l.b16 %v5333
    %v5410 = vunpack.c.h.b16 %v5333
    %v5411 = vunpack.c.l.b16 %v5334
    %v5412 = vunpack.c.h.b16 %v5334
    %v5413 = vunpack.c.l.b16 %v5335
    %v5414 = vunpack.c.h.b16 %v5335
    %v5415 = vunpack.c.l.b16 %v5336
    %v5416 = vunpack.c.h.b16 %v5336
    %v5417 = vunpack.c.l.b16 %v5337
    %v5418 = vunpack.c.h.b16 %v5337
    %v5419 = vunpack.c.l.b16 %v5338
    %v5420 = vunpack.c.h.b16 %v5338
    %v5421 = vunpack.c.l.b16 %v5339
    %v5422 = vunpack.c.h.b16 %v5339
    %v5423 = vunpack.c.l.b16 %v5340
    %v5424 = vunpack.c.h.b16 %v5340
    %v5425 = vunpack.c.l.b16 %v5341
    %v5426 = vunpack.c.h.b16 %v5341
    %v5427 = vunpack.c.l.b16 %v5342
    %v5428 = vunpack.c.h.b16 %v5342
    %v5429 = vunpack.c.l.b16 %v5343
    %v5430 = vunpack.c.h.b16 %v5343
    %v5431 = vunpack.c.l.b16 %v5344
    %v5432 = vunpack.c.h.b16 %v5344
    %v5433 = vunpack.c.l.b16 %v5345
    %v5434 = vunpack.c.h.b16 %v5345
    %v5435 = vunpack.c.l.b16 %v5346
    %v5436 = vunpack.c.h.b16 %v5346
    %v5437 = vunpack.c.l.b16 %v5347
    %v5438 = vunpack.c.h.b16 %v5347
    %v5439 = vunpack.c.l.b16 %v5348
    %v5440 = vunpack.c.h.b16 %v5348
    %v5441 = vunpack.c.l.b16 %v5349
    %v5442 = vunpack.c.h.b16 %v5349
    %v5443 = vunpack.c.l.b16 %v5350
    %v5444 = vunpack.c.h.b16 %v5350
    %v5445 = vunpack.c.l.b16 %v5351
    %v5446 = vunpack.c.h.b16 %v5351
    %v5447 = vunpack.c.l.b16 %v5352
    %v5448 = vunpack.c.h.b16 %v5352
    %v5449 = vpack.c.b16 %v5389, %v5385
    %v5450 = vpack.c.b16 %v5390, %v5386
    %v5451 = vpack.c.b16 %v5391, %v5387
    %v5452 = vpack.c.b16 %v5392, %v5388
    %v5453 = vpack.c.b16 %v5397, %v5393
    %v5454 = vpack.c.b16 %v5398, %v5394
    %v5455 = vpack.c.b16 %v5399, %v5395
    %v5456 = vpack.c.b16 %v5400, %v5396
    %v5457 = vpack.c.b16 %v5405, %v5401
    %v5458 = vpack.c.b16 %v5406, %v5402
    %v5459 = vpack.c.b16 %v5407, %v5403
    %v5460 = vpack.c.b16 %v5408, %v5404
    %v5461 = vpack.c.b16 %v5413, %v5409
    %v5462 = vpack.c.b16 %v5414, %v5410
    %v5463 = vpack.c.b16 %v5415, %v5411
    %v5464 = vpack.c.b16 %v5416, %v5412
    %v5465 = vpack.c.b16 %v5421, %v5417
    %v5466 = vpack.c.b16 %v5422, %v5418
    %v5467 = vpack.c.b16 %v5423, %v5419
    %v5468 = vpack.c.b16 %v5424, %v5420
    %v5469 = vpack.c.b16 %v5429, %v5425
    %v5470 = vpack.c.b16 %v5430, %v5426
    %v5471 = vpack.c.b16 %v5431, %v5427
    %v5472 = vpack.c.b16 %v5432, %v5428
    %v5473 = vpack.c.b16 %v5437, %v5433
    %v5474 = vpack.c.b16 %v5438, %v5434
    %v5475 = vpack.c.b16 %v5439, %v5435
    %v5476 = vpack.c.b16 %v5440, %v5436
    %v5477 = vpack.c.b16 %v5445, %v5441
    %v5478 = vpack.c.b16 %v5446, %v5442
    %v5479 = vpack.c.b16 %v5447, %v5443
    %v5480 = vpack.c.b16 %v5448, %v5444
    %5513 = vmatpush.bf16.msra.mxu0 %v5477
    %5514 = vmatpush.bf16.msra.mxu0 %v5473
    %5515 = vmatpush.bf16.msra.mxu0 %v5469
    %5516 = vmatpush.bf16.msra.mxu0 %v5465
    %5517 = vmatpush.bf16.msra.mxu0 %v5461
    %5518 = vmatpush.bf16.msra.mxu0 %v5457
    %5519 = vmatpush.bf16.msra.mxu0 %v5453
    %5520 = vmatpush.bf16.msra.mxu0 %v5449
    %5521 = vmatmul.bf16.gmra.mxu0 %v5063
    %v5522 = vpop.f32.mrf.mxu0
    %v5523 = vadd.f32 0.0, %v5522
    %v5524 = vpop.f32.mrf.mxu0
    %5525 = vdwg.mxu0
    %5526 = vmatpush.bf16.msra.mxu0 %v5478
    %5527 = vmatpush.bf16.msra.mxu0 %v5474
    %5528 = vmatpush.bf16.msra.mxu0 %v5470
    %5529 = vmatpush.bf16.msra.mxu0 %v5466
    %5530 = vmatpush.bf16.msra.mxu0 %v5462
    %5531 = vmatpush.bf16.msra.mxu0 %v5458
    %5532 = vmatpush.bf16.msra.mxu0 %v5454
    %5533 = vmatpush.bf16.msra.mxu0 %v5450
    %5534 = vmatmul.bf16.gmra.mxu0 %v5063
    %v5535 = vpop.f32.mrf.mxu0
    %v5536 = vadd.f32 0.0, %v5535
    %v5537 = vpop.f32.mrf.mxu0
    %5538 = vdwg.mxu0
    %5539 = vmatpush.bf16.msra.mxu0 %v5479
    %5540 = vmatpush.bf16.msra.mxu0 %v5475
    %5541 = vmatpush.bf16.msra.mxu0 %v5471
    %5542 = vmatpush.bf16.msra.mxu0 %v5467
    %5543 = vmatpush.bf16.msra.mxu0 %v5463
    %5544 = vmatpush.bf16.msra.mxu0 %v5459
    %5545 = vmatpush.bf16.msra.mxu0 %v5455
    %5546 = vmatpush.bf16.msra.mxu0 %v5451
    %5547 = vmatmul.bf16.gmra.mxu0 %v5063
    %v5548 = vpop.f32.mrf.mxu0
    %v5549 = vadd.f32 0.0, %v5548
    %v5550 = vpop.f32.mrf.mxu0
    %5551 = vdwg.mxu0
    %5552 = vmatpush.bf16.msra.mxu0 %v5480
    %5553 = vmatpush.bf16.msra.mxu0 %v5476
    %5554 = vmatpush.bf16.msra.mxu0 %v5472
    %5555 = vmatpush.bf16.msra.mxu0 %v5468
    %5556 = vmatpush.bf16.msra.mxu0 %v5464
    %5557 = vmatpush.bf16.msra.mxu0 %v5460
    %5558 = vmatpush.bf16.msra.mxu0 %v5456
    %5559 = vmatpush.bf16.msra.mxu0 %v5452
    %5560 = vmatmul.bf16.gmra.mxu0 %v5063
    %v5561 = vpop.f32.mrf.mxu0
    %v5562 = vadd.f32 0.0, %v5561
    %v5563 = vpop.f32.mrf.mxu0
    %5564 = vdwg.mxu0
    %v5565 = vadd.f32 %v5317, %v5523
    %v5566 = vadd.f32 %v5318, %v5536
    %v5567 = vadd.f32 %v5319, %v5549
    %v5568 = vadd.f32 %v5320, %v5562
    %v5569 = vadd.f32 %v5565, %v5566
    %v5570 = vadd.f32 %v5569, %v5567
    %v5571 = vadd.f32 %v5570, %v5568
    %5572 = vadd.xlane.f32.xlu0 %v5571
    %v5573 = vpop.xlane.xlu0 %5572
    %v5574 = vmul.f32 %v5573, %v1078
    %v5575 = vmul.f32 %v5565, %v5565
    %v5576 = vmul.f32 %v5566, %v5566
    %v5577 = vmul.f32 %v5567, %v5567
    %v5578 = vmul.f32 %v5568, %v5568
    %v5579 = vadd.f32 %v5575, %v5576
    %v5580 = vadd.f32 %v5579, %v5577
    %v5581 = vadd.f32 %v5580, %v5578
    %5582 = vadd.xlane.f32.xlu0 %v5581
    %v5583 = vpop.xlane.xlu0 %5582
    %v5584 = vmul.f32 %v5583, %v1078
    %v5585 = vmul.f32 %v5574, %v5574
    %v5586 = vsub.f32 %v5584, %v5585
    %v5587 = vsub.f32 %v5565, %v5574
    %v5588 = vsub.f32 %v5566, %v5574
    %v5589 = vsub.f32 %v5567, %v5574
    %v5590 = vsub.f32 %v5568, %v5574
    %v5591 = vadd.f32 %v5586, 0.001
    %v5592 = vrsqrt.pop %v5591
    %v5593 = vmul.f32 %v5592, %v5591
    %v5594 = vmul.f32 %v5593, %v5592
    %v5595 = vmul.f32 0.5, %v5594
    %v5596 = vsub.f32 1.5, %v5595
    %v5597 = vmul.f32 %v5592, %v5596
    %vm5598 = vweird.f32 %v5591
    %vm5599 = vweird.f32 %v5592
    %vm5600 = vmor %vm5598, %vm5599
    %v5601 = vsel %vm5600, %v5592, %v5597
    %v5602 = vmul.f32 %v5587, %v5601
    %v5603 = vmul.f32 %v5588, %v5601
    %v5604 = vmul.f32 %v5589, %v5601
    %v5605 = vmul.f32 %v5590, %v5601
    %v5606 = vmul.f32 %v5602, %v1120
    %v5607 = vmul.f32 %v5603, %v1121
    %v5608 = vmul.f32 %v5604, %v1122
    %v5609 = vmul.f32 %v5605, %v1123
    %v5610 = vadd.f32 %v5606, %v1136
    %v5611 = vadd.f32 %v5607, %v1137
    %v5612 = vadd.f32 %v5608, %v1138
    %v5613 = vadd.f32 %v5609, %v1139
    %v5614 = vxor.u32 %v5610, 2147483648
    %v5615 = vxor.u32 %v5611, 2147483648
    %v5616 = vxor.u32 %v5612, 2147483648
    %v5617 = vmul.f32 %v5614, 1.442695
    %v5618 = vpow.pop %v5617
    %v5619 = vmul.f32 %v5615, 1.442695
    %v5620 = vpow.pop %v5619
    %v5621 = vmul.f32 %v5616, 1.442695
    %v5622 = vpow.pop %v5621
    %v5623 = vadd.f32 %v5618, 1.0
    %v5624 = vadd.f32 %v5620, 1.0
    %v5625 = vadd.f32 %v5622, 1.0
    %v5626 = vrcp.pop %v5623
    %v5627 = vmul.f32 %v5623, %v5626
    %v5628 = vsub.f32 1.0, %v5627
    %v5629 = vmul.f32 %v5626, %v5628
    %v5630 = vadd.f32 %v5626, %v5629
    %vm5631 = vweird.f32 %v5623
    %vm5632 = vweird.f32 %v5626
    %vm5633 = vmor %vm5631, %vm5632
    %v5634 = vsel %vm5633, %v5626, %v5630
    %v5635 = vand.u32 2147483647, %v5623
    %vm5636 = vcmp.eq.f32.partialorder %v5635, 8.507059e+37
    %v5637 = vand.u32 %v5623, 2147483648
    %v5638 = vor.u32 1.1754944e-38, %v5637
    %v5639 = vsel %vm5636, %v5638, %v5634
    %v5640 = vmul.f32 1.0, %v5639
    %v5641 = vrcp.pop %v5624
    %v5642 = vmul.f32 %v5624, %v5641
    %v5643 = vsub.f32 1.0, %v5642
    %v5644 = vmul.f32 %v5641, %v5643
    %v5645 = vadd.f32 %v5641, %v5644
    %vm5646 = vweird.f32 %v5624
    %vm5647 = vweird.f32 %v5641
    %vm5648 = vmor %vm5646, %vm5647
    %v5649 = vsel %vm5648, %v5641, %v5645
    %v5650 = vand.u32 2147483647, %v5624
    %vm5651 = vcmp.eq.f32.partialorder %v5650, 8.507059e+37
    %v5652 = vand.u32 %v5624, 2147483648
    %v5653 = vor.u32 1.1754944e-38, %v5652
    %v5654 = vsel %vm5651, %v5653, %v5649
    %v5655 = vmul.f32 1.0, %v5654
    %v5656 = vrcp.pop %v5625
    %v5657 = vmul.f32 %v5625, %v5656
    %v5658 = vsub.f32 1.0, %v5657
    %v5659 = vmul.f32 %v5656, %v5658
    %v5660 = vadd.f32 %v5656, %v5659
    %vm5661 = vweird.f32 %v5625
    %vm5662 = vweird.f32 %v5656
    %vm5663 = vmor %vm5661, %vm5662
    %v5664 = vsel %vm5663, %v5656, %v5660
    %v5665 = vand.u32 2147483647, %v5625
    %vm5666 = vcmp.eq.f32.partialorder %v5665, 8.507059e+37
    %v5667 = vand.u32 %v5625, 2147483648
    %v5668 = vor.u32 1.1754944e-38, %v5667
    %v5669 = vsel %vm5666, %v5668, %v5664
    %v5670 = vmul.f32 1.0, %v5669
    %v5671 = vtanh.pop %v5613
    %v5672 = vmul.f32 %v5655, %v5060
    %v5673 = vmul.f32 %v5640, %v5671
    %v5674 = vadd.f32 %v5672, %v5673
    %5675 = vadd.xlane.f32.xlu0 %v5674
    %v5676 = vpop.xlane.xlu0 %5675
    %v5677 = vmul.f32 %v5676, %v268
    %v5678 = vmul.f32 %v5674, %v5674
    %5679 = vadd.xlane.f32.xlu0 %v5678
    %v5680 = vpop.xlane.xlu0 %5679
    %v5681 = vmul.f32 %v5680, %v268
    %v5682 = vmul.f32 %v5677, %v5677
    %v5683 = vsub.f32 %v5681, %v5682
    %v5684 = vsub.f32 %v5674, %v5677
    %v5685 = vadd.f32 %v5683, 0.001
    %v5686 = vrsqrt.pop %v5685
    %v5687 = vmul.f32 %v5686, %v5685
    %v5688 = vmul.f32 %v5687, %v5686
    %v5689 = vmul.f32 0.5, %v5688
    %v5690 = vsub.f32 1.5, %v5689
    %v5691 = vmul.f32 %v5686, %v5690
    %vm5692 = vweird.f32 %v5685
    %vm5693 = vweird.f32 %v5686
    %vm5694 = vmor %vm5692, %vm5693
    %v5695 = vsel %vm5694, %v5686, %v5691
    %v5696 = vmul.f32 %v5684, %v5695
    %v5697 = vmul.f32 %v5696, %v1227
    %v5698 = vadd.f32 %v5697, %v1229
    %v5699 = vtanh.pop %v5698
    %v5700 = vmul.f32 %v5670, %v5699
    %v5701 = vpack.c.bf16 %v5700, %v5700
    %v5702 = vld [vmem:[%s1234] sm:$0xff]
    %v5703 = vld [vmem:[%s1234 + $0x8] sm:$0xff]
    %v5704 = vld [vmem:[%s1234 + $0x10] sm:$0xff]
    %v5705 = vld [vmem:[%s1234 + $0x18] sm:$0xff]
    %v5706 = vld [vmem:[%s1234 + $0x20] sm:$0xff]
    %v5707 = vld [vmem:[%s1234 + $0x28] sm:$0xff]
    %v5708 = vld [vmem:[%s1234 + $0x30] sm:$0xff]
    %v5709 = vld [vmem:[%s1234 + $0x38] sm:$0xff]
    %v5710 = vld [vmem:[%s1234 + $0x40] sm:$0xff]
    %v5711 = vld [vmem:[%s1234 + $0x48] sm:$0xff]
    %v5712 = vld [vmem:[%s1234 + $0x50] sm:$0xff]
    %v5713 = vld [vmem:[%s1234 + $0x58] sm:$0xff]
    %v5714 = vld [vmem:[%s1234 + $0x60] sm:$0xff]
    %v5715 = vld [vmem:[%s1234 + $0x68] sm:$0xff]
    %v5716 = vld [vmem:[%s1234 + $0x70] sm:$0xff]
    %v5717 = vld [vmem:[%s1234 + $0x78] sm:$0xff]
    %v5718 = vld [vmem:[%s1234 + $0x80] sm:$0xff]
    %v5719 = vld [vmem:[%s1234 + $0x88] sm:$0xff]
    %v5720 = vld [vmem:[%s1234 + $0x90] sm:$0xff]
    %v5721 = vld [vmem:[%s1234 + $0x98] sm:$0xff]
    %v5722 = vld [vmem:[%s1234 + $0xa0] sm:$0xff]
    %v5723 = vld [vmem:[%s1234 + $0xa8] sm:$0xff]
    %v5724 = vld [vmem:[%s1234 + $0xb0] sm:$0xff]
    %v5725 = vld [vmem:[%s1234 + $0xb8] sm:$0xff]
    %v5726 = vld [vmem:[%s1234 + $0xc0] sm:$0xff]
    %v5727 = vld [vmem:[%s1234 + $0xc8] sm:$0xff]
    %v5728 = vld [vmem:[%s1234 + $0xd0] sm:$0xff]
    %v5729 = vld [vmem:[%s1234 + $0xd8] sm:$0xff]
    %v5730 = vld [vmem:[%s1234 + $0xe0] sm:$0xff]
    %v5731 = vld [vmem:[%s1234 + $0xe8] sm:$0xff]
    %v5732 = vld [vmem:[%s1234 + $0xf0] sm:$0xff]
    %v5733 = vld [vmem:[%s1234 + $0xf8] sm:$0xff]
    %v5766 = vunpack.c.l.b16 %v5702
    %v5767 = vunpack.c.h.b16 %v5702
    %v5768 = vunpack.c.l.b16 %v5703
    %v5769 = vunpack.c.h.b16 %v5703
    %v5770 = vunpack.c.l.b16 %v5704
    %v5771 = vunpack.c.h.b16 %v5704
    %v5772 = vunpack.c.l.b16 %v5705
    %v5773 = vunpack.c.h.b16 %v5705
    %v5774 = vunpack.c.l.b16 %v5706
    %v5775 = vunpack.c.h.b16 %v5706
    %v5776 = vunpack.c.l.b16 %v5707
    %v5777 = vunpack.c.h.b16 %v5707
    %v5778 = vunpack.c.l.b16 %v5708
    %v5779 = vunpack.c.h.b16 %v5708
    %v5780 = vunpack.c.l.b16 %v5709
    %v5781 = vunpack.c.h.b16 %v5709
    %v5782 = vunpack.c.l.b16 %v5710
    %v5783 = vunpack.c.h.b16 %v5710
    %v5784 = vunpack.c.l.b16 %v5711
    %v5785 = vunpack.c.h.b16 %v5711
    %v5786 = vunpack.c.l.b16 %v5712
    %v5787 = vunpack.c.h.b16 %v5712
    %v5788 = vunpack.c.l.b16 %v5713
    %v5789 = vunpack.c.h.b16 %v5713
    %v5790 = vunpack.c.l.b16 %v5714
    %v5791 = vunpack.c.h.b16 %v5714
    %v5792 = vunpack.c.l.b16 %v5715
    %v5793 = vunpack.c.h.b16 %v5715
    %v5794 = vunpack.c.l.b16 %v5716
    %v5795 = vunpack.c.h.b16 %v5716
    %v5796 = vunpack.c.l.b16 %v5717
    %v5797 = vunpack.c.h.b16 %v5717
    %v5798 = vunpack.c.l.b16 %v5718
    %v5799 = vunpack.c.h.b16 %v5718
    %v5800 = vunpack.c.l.b16 %v5719
    %v5801 = vunpack.c.h.b16 %v5719
    %v5802 = vunpack.c.l.b16 %v5720
    %v5803 = vunpack.c.h.b16 %v5720
    %v5804 = vunpack.c.l.b16 %v5721
    %v5805 = vunpack.c.h.b16 %v5721
    %v5806 = vunpack.c.l.b16 %v5722
    %v5807 = vunpack.c.h.b16 %v5722
    %v5808 = vunpack.c.l.b16 %v5723
    %v5809 = vunpack.c.h.b16 %v5723
    %v5810 = vunpack.c.l.b16 %v5724
    %v5811 = vunpack.c.h.b16 %v5724
    %v5812 = vunpack.c.l.b16 %v5725
    %v5813 = vunpack.c.h.b16 %v5725
    %v5814 = vunpack.c.l.b16 %v5726
    %v5815 = vunpack.c.h.b16 %v5726
    %v5816 = vunpack.c.l.b16 %v5727
    %v5817 = vunpack.c.h.b16 %v5727
    %v5818 = vunpack.c.l.b16 %v5728
    %v5819 = vunpack.c.h.b16 %v5728
    %v5820 = vunpack.c.l.b16 %v5729
    %v5821 = vunpack.c.h.b16 %v5729
    %v5822 = vunpack.c.l.b16 %v5730
    %v5823 = vunpack.c.h.b16 %v5730
    %v5824 = vunpack.c.l.b16 %v5731
    %v5825 = vunpack.c.h.b16 %v5731
    %v5826 = vunpack.c.l.b16 %v5732
    %v5827 = vunpack.c.h.b16 %v5732
    %v5828 = vunpack.c.l.b16 %v5733
    %v5829 = vunpack.c.h.b16 %v5733
    %v5830 = vpack.c.b16 %v5770, %v5766
    %v5831 = vpack.c.b16 %v5771, %v5767
    %v5832 = vpack.c.b16 %v5772, %v5768
    %v5833 = vpack.c.b16 %v5773, %v5769
    %v5834 = vpack.c.b16 %v5778, %v5774
    %v5835 = vpack.c.b16 %v5779, %v5775
    %v5836 = vpack.c.b16 %v5780, %v5776
    %v5837 = vpack.c.b16 %v5781, %v5777
    %v5838 = vpack.c.b16 %v5786, %v5782
    %v5839 = vpack.c.b16 %v5787, %v5783
    %v5840 = vpack.c.b16 %v5788, %v5784
    %v5841 = vpack.c.b16 %v5789, %v5785
    %v5842 = vpack.c.b16 %v5794, %v5790
    %v5843 = vpack.c.b16 %v5795, %v5791
    %v5844 = vpack.c.b16 %v5796, %v5792
    %v5845 = vpack.c.b16 %v5797, %v5793
    %v5846 = vpack.c.b16 %v5802, %v5798
    %v5847 = vpack.c.b16 %v5803, %v5799
    %v5848 = vpack.c.b16 %v5804, %v5800
    %v5849 = vpack.c.b16 %v5805, %v5801
    %v5850 = vpack.c.b16 %v5810, %v5806
    %v5851 = vpack.c.b16 %v5811, %v5807
    %v5852 = vpack.c.b16 %v5812, %v5808
    %v5853 = vpack.c.b16 %v5813, %v5809
    %v5854 = vpack.c.b16 %v5818, %v5814
    %v5855 = vpack.c.b16 %v5819, %v5815
    %v5856 = vpack.c.b16 %v5820, %v5816
    %v5857 = vpack.c.b16 %v5821, %v5817
    %v5858 = vpack.c.b16 %v5826, %v5822
    %v5859 = vpack.c.b16 %v5827, %v5823
    %v5860 = vpack.c.b16 %v5828, %v5824
    %v5861 = vpack.c.b16 %v5829, %v5825
    %5894 = vmatpush.bf16.msra.mxu0 %v5858
    %5895 = vmatpush.bf16.msra.mxu0 %v5854
    %5896 = vmatpush.bf16.msra.mxu0 %v5850
    %5897 = vmatpush.bf16.msra.mxu0 %v5846
    %5898 = vmatpush.bf16.msra.mxu0 %v5842
    %5899 = vmatpush.bf16.msra.mxu0 %v5838
    %5900 = vmatpush.bf16.msra.mxu0 %v5834
    %5901 = vmatpush.bf16.msra.mxu0 %v5830
    %5902 = vmatmul.bf16.gmra.mxu0 %v5701
    %v5903 = vpop.f32.mrf.mxu0
    %v5904 = vadd.f32 0.0, %v5903
    %v5905 = vpop.f32.mrf.mxu0
    %5906 = vdwg.mxu0
    %5907 = vmatpush.bf16.msra.mxu0 %v5859
    %5908 = vmatpush.bf16.msra.mxu0 %v5855
    %5909 = vmatpush.bf16.msra.mxu0 %v5851
    %5910 = vmatpush.bf16.msra.mxu0 %v5847
    %5911 = vmatpush.bf16.msra.mxu0 %v5843
    %5912 = vmatpush.bf16.msra.mxu0 %v5839
    %5913 = vmatpush.bf16.msra.mxu0 %v5835
    %5914 = vmatpush.bf16.msra.mxu0 %v5831
    %5915 = vmatmul.bf16.gmra.mxu0 %v5701
    %v5916 = vpop.f32.mrf.mxu0
    %v5917 = vadd.f32 0.0, %v5916
    %v5918 = vpop.f32.mrf.mxu0
    %5919 = vdwg.mxu0
    %5920 = vmatpush.bf16.msra.mxu0 %v5860
    %5921 = vmatpush.bf16.msra.mxu0 %v5856
    %5922 = vmatpush.bf16.msra.mxu0 %v5852
    %5923 = vmatpush.bf16.msra.mxu0 %v5848
    %5924 = vmatpush.bf16.msra.mxu0 %v5844
    %5925 = vmatpush.bf16.msra.mxu0 %v5840
    %5926 = vmatpush.bf16.msra.mxu0 %v5836
    %5927 = vmatpush.bf16.msra.mxu0 %v5832
    %5928 = vmatmul.bf16.gmra.mxu0 %v5701
    %v5929 = vpop.f32.mrf.mxu0
    %v5930 = vadd.f32 0.0, %v5929
    %v5931 = vpop.f32.mrf.mxu0
    %5932 = vdwg.mxu0
    %5933 = vmatpush.bf16.msra.mxu0 %v5861
    %5934 = vmatpush.bf16.msra.mxu0 %v5857
    %5935 = vmatpush.bf16.msra.mxu0 %v5853
    %5936 = vmatpush.bf16.msra.mxu0 %v5849
    %5937 = vmatpush.bf16.msra.mxu0 %v5845
    %5938 = vmatpush.bf16.msra.mxu0 %v5841
    %5939 = vmatpush.bf16.msra.mxu0 %v5837
    %5940 = vmatpush.bf16.msra.mxu0 %v5833
    %5941 = vmatmul.bf16.gmra.mxu0 %v5701
    %v5942 = vpop.f32.mrf.mxu0
    %v5943 = vadd.f32 0.0, %v5942
    %v5944 = vpop.f32.mrf.mxu0
    %5945 = vdwg.mxu0
    %s5946 = smul.addr %s5314, 8
    %s5947 = scalar_lea.vmem %s1479, %s5946 [#allocation3]
    %5948 = vst [vmem:[%s5947] sm:$0xff] %v5904
    %5949 = vst [vmem:[%s5947 + $0x8] sm:$0xff] %v5917
    %5950 = vst [vmem:[%s5947 + $0x10] sm:$0xff] %v5930
    %5951 = vst [vmem:[%s5947 + $0x18] sm:$0xff] %v5943
    %5952 = vst [vmem:[#allocation14] sm:$0xff] %v5700
    %5953 = vst [vmem:[#allocation16] sm:$0xff] %v5698
    %s5954 = scalar_lea.vmem %s5, 8
    %v5955 = vld [vmem:[%s5954] sm:$0xff]
    %s5956 = scalar_lea.vmem [#allocation10], 2
    %v5957 = vld [vmem:[%s5956] sm:$0x3]
    %s5958 = scalar_lea.vmem %s7, 8
    %v5959 = vld [vmem:[%s5958] sm:$0xff]
    %s5960 = scalar_lea.vmem %s8, 8
    %v5961 = vld [vmem:[%s5960] sm:$0xff]
    %v5962 = vld [vmem:[%s1481] sm:$0xff]
    %v5963 = vld [vmem:[%s1481 + $0x8] sm:$0xff]
    %v5964 = vld [vmem:[%s1481 + $0x10] sm:$0xff]
    %v5965 = vld [vmem:[%s1481 + $0x18] sm:$0xff]
    %v5966 = vpack.c.bf16 %v5959, %v5959
    %s5967 = scalar_lea.vmem [#allocation9], 256
    %v5968 = vld [vmem:[%s5967] sm:$0xff]
    %v5969 = vld [vmem:[%s5967 + $0x8] sm:$0xff]
    %v5970 = vld [vmem:[%s5967 + $0x10] sm:$0xff]
    %v5971 = vld [vmem:[%s5967 + $0x18] sm:$0xff]
    %v5972 = vld [vmem:[%s5967 + $0x20] sm:$0xff]
    %v5973 = vld [vmem:[%s5967 + $0x28] sm:$0xff]
    %v5974 = vld [vmem:[%s5967 + $0x30] sm:$0xff]
    %v5975 = vld [vmem:[%s5967 + $0x38] sm:$0xff]
    %v5976 = vld [vmem:[%s5967 + $0x40] sm:$0xff]
    %v5977 = vld [vmem:[%s5967 + $0x48] sm:$0xff]
    %v5978 = vld [vmem:[%s5967 + $0x50] sm:$0xff]
    %v5979 = vld [vmem:[%s5967 + $0x58] sm:$0xff]
    %v5980 = vld [vmem:[%s5967 + $0x60] sm:$0xff]
    %v5981 = vld [vmem:[%s5967 + $0x68] sm:$0xff]
    %v5982 = vld [vmem:[%s5967 + $0x70] sm:$0xff]
    %v5983 = vld [vmem:[%s5967 + $0x78] sm:$0xff]
    %v5984 = vld [vmem:[%s5967 + $0x80] sm:$0xff]
    %v5985 = vld [vmem:[%s5967 + $0x88] sm:$0xff]
    %v5986 = vld [vmem:[%s5967 + $0x90] sm:$0xff]
    %v5987 = vld [vmem:[%s5967 + $0x98] sm:$0xff]
    %v5988 = vld [vmem:[%s5967 + $0xa0] sm:$0xff]
    %v5989 = vld [vmem:[%s5967 + $0xa8] sm:$0xff]
    %v5990 = vld [vmem:[%s5967 + $0xb0] sm:$0xff]
    %v5991 = vld [vmem:[%s5967 + $0xb8] sm:$0xff]
    %v5992 = vld [vmem:[%s5967 + $0xc0] sm:$0xff]
    %v5993 = vld [vmem:[%s5967 + $0xc8] sm:$0xff]
    %v5994 = vld [vmem:[%s5967 + $0xd0] sm:$0xff]
    %v5995 = vld [vmem:[%s5967 + $0xd8] sm:$0xff]
    %v5996 = vld [vmem:[%s5967 + $0xe0] sm:$0xff]
    %v5997 = vld [vmem:[%s5967 + $0xe8] sm:$0xff]
    %v5998 = vld [vmem:[%s5967 + $0xf0] sm:$0xff]
    %v5999 = vld [vmem:[%s5967 + $0xf8] sm:$0xff]
    %v6032 = vunpack.c.l.b16 %v5968
    %v6033 = vunpack.c.h.b16 %v5968
    %v6034 = vunpack.c.l.b16 %v5969
    %v6035 = vunpack.c.h.b16 %v5969
    %v6036 = vunpack.c.l.b16 %v5970
    %v6037 = vunpack.c.h.b16 %v5970
    %v6038 = vunpack.c.l.b16 %v5971
    %v6039 = vunpack.c.h.b16 %v5971
    %v6040 = vunpack.c.l.b16 %v5972
    %v6041 = vunpack.c.h.b16 %v5972
    %v6042 = vunpack.c.l.b16 %v5973
    %v6043 = vunpack.c.h.b16 %v5973
    %v6044 = vunpack.c.l.b16 %v5974
    %v6045 = vunpack.c.h.b16 %v5974
    %v6046 = vunpack.c.l.b16 %v5975
    %v6047 = vunpack.c.h.b16 %v5975
    %v6048 = vunpack.c.l.b16 %v5976
    %v6049 = vunpack.c.h.b16 %v5976
    %v6050 = vunpack.c.l.b16 %v5977
    %v6051 = vunpack.c.h.b16 %v5977
    %v6052 = vunpack.c.l.b16 %v5978
    %v6053 = vunpack.c.h.b16 %v5978
    %v6054 = vunpack.c.l.b16 %v5979
    %v6055 = vunpack.c.h.b16 %v5979
    %v6056 = vunpack.c.l.b16 %v5980
    %v6057 = vunpack.c.h.b16 %v5980
    %v6058 = vunpack.c.l.b16 %v5981
    %v6059 = vunpack.c.h.b16 %v5981
    %v6060 = vunpack.c.l.b16 %v5982
    %v6061 = vunpack.c.h.b16 %v5982
    %v6062 = vunpack.c.l.b16 %v5983
    %v6063 = vunpack.c.h.b16 %v5983
    %v6064 = vunpack.c.l.b16 %v5984
    %v6065 = vunpack.c.h.b16 %v5984
    %v6066 = vunpack.c.l.b16 %v5985
    %v6067 = vunpack.c.h.b16 %v5985
    %v6068 = vunpack.c.l.b16 %v5986
    %v6069 = vunpack.c.h.b16 %v5986
    %v6070 = vunpack.c.l.b16 %v5987
    %v6071 = vunpack.c.h.b16 %v5987
    %v6072 = vunpack.c.l.b16 %v5988
    %v6073 = vunpack.c.h.b16 %v5988
    %v6074 = vunpack.c.l.b16 %v5989
    %v6075 = vunpack.c.h.b16 %v5989
    %v6076 = vunpack.c.l.b16 %v5990
    %v6077 = vunpack.c.h.b16 %v5990
    %v6078 = vunpack.c.l.b16 %v5991
    %v6079 = vunpack.c.h.b16 %v5991
    %v6080 = vunpack.c.l.b16 %v5992
    %v6081 = vunpack.c.h.b16 %v5992
    %v6082 = vunpack.c.l.b16 %v5993
    %v6083 = vunpack.c.h.b16 %v5993
    %v6084 = vunpack.c.l.b16 %v5994
    %v6085 = vunpack.c.h.b16 %v5994
    %v6086 = vunpack.c.l.b16 %v5995
    %v6087 = vunpack.c.h.b16 %v5995
    %v6088 = vunpack.c.l.b16 %v5996
    %v6089 = vunpack.c.h.b16 %v5996
    %v6090 = vunpack.c.l.b16 %v5997
    %v6091 = vunpack.c.h.b16 %v5997
    %v6092 = vunpack.c.l.b16 %v5998
    %v6093 = vunpack.c.h.b16 %v5998
    %v6094 = vunpack.c.l.b16 %v5999
    %v6095 = vunpack.c.h.b16 %v5999
    %v6096 = vpack.c.b16 %v6036, %v6032
    %v6097 = vpack.c.b16 %v6037, %v6033
    %v6098 = vpack.c.b16 %v6038, %v6034
    %v6099 = vpack.c.b16 %v6039, %v6035
    %v6100 = vpack.c.b16 %v6044, %v6040
    %v6101 = vpack.c.b16 %v6045, %v6041
    %v6102 = vpack.c.b16 %v6046, %v6042
    %v6103 = vpack.c.b16 %v6047, %v6043
    %v6104 = vpack.c.b16 %v6052, %v6048
    %v6105 = vpack.c.b16 %v6053, %v6049
    %v6106 = vpack.c.b16 %v6054, %v6050
    %v6107 = vpack.c.b16 %v6055, %v6051
    %v6108 = vpack.c.b16 %v6060, %v6056
    %v6109 = vpack.c.b16 %v6061, %v6057
    %v6110 = vpack.c.b16 %v6062, %v6058
    %v6111 = vpack.c.b16 %v6063, %v6059
    %v6112 = vpack.c.b16 %v6068, %v6064
    %v6113 = vpack.c.b16 %v6069, %v6065
    %v6114 = vpack.c.b16 %v6070, %v6066
    %v6115 = vpack.c.b16 %v6071, %v6067
    %v6116 = vpack.c.b16 %v6076, %v6072
    %v6117 = vpack.c.b16 %v6077, %v6073
    %v6118 = vpack.c.b16 %v6078, %v6074
    %v6119 = vpack.c.b16 %v6079, %v6075
    %v6120 = vpack.c.b16 %v6084, %v6080
    %v6121 = vpack.c.b16 %v6085, %v6081
    %v6122 = vpack.c.b16 %v6086, %v6082
    %v6123 = vpack.c.b16 %v6087, %v6083
    %v6124 = vpack.c.b16 %v6092, %v6088
    %v6125 = vpack.c.b16 %v6093, %v6089
    %v6126 = vpack.c.b16 %v6094, %v6090
    %v6127 = vpack.c.b16 %v6095, %v6091
    %6160 = vmatpush.bf16.msra.mxu0 %v6124
    %6161 = vmatpush.bf16.msra.mxu0 %v6120
    %6162 = vmatpush.bf16.msra.mxu0 %v6116
    %6163 = vmatpush.bf16.msra.mxu0 %v6112
    %6164 = vmatpush.bf16.msra.mxu0 %v6108
    %6165 = vmatpush.bf16.msra.mxu0 %v6104
    %6166 = vmatpush.bf16.msra.mxu0 %v6100
    %6167 = vmatpush.bf16.msra.mxu0 %v6096
    %6168 = vmatmul.bf16.gmra.mxu0 %v5966
    %v6169 = vpop.f32.mrf.mxu0
    %v6170 = vadd.f32 0.0, %v6169
    %v6171 = vpop.f32.mrf.mxu0
    %6172 = vdwg.mxu0
    %6173 = vmatpush.bf16.msra.mxu0 %v6125
    %6174 = vmatpush.bf16.msra.mxu0 %v6121
    %6175 = vmatpush.bf16.msra.mxu0 %v6117
    %6176 = vmatpush.bf16.msra.mxu0 %v6113
    %6177 = vmatpush.bf16.msra.mxu0 %v6109
    %6178 = vmatpush.bf16.msra.mxu0 %v6105
    %6179 = vmatpush.bf16.msra.mxu0 %v6101
    %6180 = vmatpush.bf16.msra.mxu0 %v6097
    %6181 = vmatmul.bf16.gmra.mxu0 %v5966
    %v6182 = vpop.f32.mrf.mxu0
    %v6183 = vadd.f32 0.0, %v6182
    %v6184 = vpop.f32.mrf.mxu0
    %6185 = vdwg.mxu0
    %6186 = vmatpush.bf16.msra.mxu0 %v6126
    %6187 = vmatpush.bf16.msra.mxu0 %v6122
    %6188 = vmatpush.bf16.msra.mxu0 %v6118
    %6189 = vmatpush.bf16.msra.mxu0 %v6114
    %6190 = vmatpush.bf16.msra.mxu0 %v6110
    %6191 = vmatpush.bf16.msra.mxu0 %v6106
    %6192 = vmatpush.bf16.msra.mxu0 %v6102
    %6193 = vmatpush.bf16.msra.mxu0 %v6098
    %6194 = vmatmul.bf16.gmra.mxu0 %v5966
    %v6195 = vpop.f32.mrf.mxu0
    %v6196 = vadd.f32 0.0, %v6195
    %v6197 = vpop.f32.mrf.mxu0
    %6198 = vdwg.mxu0
    %6199 = vmatpush.bf16.msra.mxu0 %v6127
    %6200 = vmatpush.bf16.msra.mxu0 %v6123
    %6201 = vmatpush.bf16.msra.mxu0 %v6119
    %6202 = vmatpush.bf16.msra.mxu0 %v6115
    %6203 = vmatpush.bf16.msra.mxu0 %v6111
    %6204 = vmatpush.bf16.msra.mxu0 %v6107
    %6205 = vmatpush.bf16.msra.mxu0 %v6103
    %6206 = vmatpush.bf16.msra.mxu0 %v6099
    %6207 = vmatmul.bf16.gmra.mxu0 %v5966
    %v6208 = vpop.f32.mrf.mxu0
    %v6209 = vadd.f32 0.0, %v6208
    %v6210 = vpop.f32.mrf.mxu0
    %6211 = vdwg.mxu0
    %v6212 = vadd.f32 %v5962, %v6170
    %v6213 = vadd.f32 %v5963, %v6183
    %v6214 = vadd.f32 %v5964, %v6196
    %v6215 = vadd.f32 %v5965, %v6209
    %v6216 = vadd.f32 %v6212, %v6213
    %v6217 = vadd.f32 %v6216, %v6214
    %v6218 = vadd.f32 %v6217, %v6215
    %6219 = vadd.xlane.f32.xlu0 %v6218
    %v6220 = vpop.xlane.xlu0 %6219
    %v6221 = vmul.f32 %v6220, %v1078
    %v6222 = vmul.f32 %v6212, %v6212
    %v6223 = vmul.f32 %v6213, %v6213
    %v6224 = vmul.f32 %v6214, %v6214
    %v6225 = vmul.f32 %v6215, %v6215
    %v6226 = vadd.f32 %v6222, %v6223
    %v6227 = vadd.f32 %v6226, %v6224
    %v6228 = vadd.f32 %v6227, %v6225
    %6229 = vadd.xlane.f32.xlu0 %v6228
    %v6230 = vpop.xlane.xlu0 %6229
    %v6231 = vmul.f32 %v6230, %v1078
    %v6232 = vmul.f32 %v6221, %v6221
    %v6233 = vsub.f32 %v6231, %v6232
    %v6234 = vsub.f32 %v6212, %v6221
    %v6235 = vsub.f32 %v6213, %v6221
    %v6236 = vsub.f32 %v6214, %v6221
    %v6237 = vsub.f32 %v6215, %v6221
    %v6238 = vadd.f32 %v6233, 0.001
    %v6239 = vrsqrt.pop %v6238
    %v6240 = vmul.f32 %v6239, %v6238
    %v6241 = vmul.f32 %v6240, %v6239
    %v6242 = vmul.f32 0.5, %v6241
    %v6243 = vsub.f32 1.5, %v6242
    %v6244 = vmul.f32 %v6239, %v6243
    %vm6245 = vweird.f32 %v6238
    %vm6246 = vweird.f32 %v6239
    %vm6247 = vmor %vm6245, %vm6246
    %v6248 = vsel %vm6247, %v6239, %v6244
    %v6249 = vmul.f32 %v6234, %v6248
    %v6250 = vmul.f32 %v6235, %v6248
    %v6251 = vmul.f32 %v6236, %v6248
    %v6252 = vmul.f32 %v6237, %v6248
    %v6254 = vperm.slane %v5955, 0
    %v6255 = vperm.slane %v5955, 2
    %v6256 = vperm.slane %v5955, 4
    %v6257 = vperm.slane %v5955, 6
    %v6262 = vperm.slane %v6254, 0
    %v6263 = vperm.slane %v6255, 0
    %v6264 = vperm.slane %v6256, 0
    %v6265 = vperm.slane %v6257, 0
    %v6266 = vmul.f32 %v6249, %v6262
    %v6267 = vmul.f32 %v6250, %v6263
    %v6268 = vmul.f32 %v6251, %v6264
    %v6269 = vmul.f32 %v6252, %v6265
    %v6270 = vperm.slane %v5955, 1
    %v6271 = vperm.slane %v5955, 3
    %v6272 = vperm.slane %v5955, 5
    %v6273 = vperm.slane %v5955, 7
    %v6278 = vperm.slane %v6270, 1
    %v6279 = vperm.slane %v6271, 1
    %v6280 = vperm.slane %v6272, 1
    %v6281 = vperm.slane %v6273, 1
    %v6282 = vadd.f32 %v6266, %v6278
    %v6283 = vadd.f32 %v6267, %v6279
    %v6284 = vadd.f32 %v6268, %v6280
    %v6285 = vadd.f32 %v6269, %v6281
    %v6286 = vxor.u32 %v6282, 2147483648
    %v6287 = vxor.u32 %v6283, 2147483648
    %v6288 = vxor.u32 %v6284, 2147483648
    %v6289 = vmul.f32 %v6286, 1.442695
    %v6290 = vpow.pop %v6289
    %v6291 = vmul.f32 %v6287, 1.442695
    %v6292 = vpow.pop %v6291
    %v6293 = vmul.f32 %v6288, 1.442695
    %v6294 = vpow.pop %v6293
    %v6295 = vadd.f32 %v6290, 1.0
    %v6296 = vadd.f32 %v6292, 1.0
    %v6297 = vadd.f32 %v6294, 1.0
    %v6298 = vrcp.pop %v6295
    %v6299 = vmul.f32 %v6295, %v6298
    %v6300 = vsub.f32 1.0, %v6299
    %v6301 = vmul.f32 %v6298, %v6300
    %v6302 = vadd.f32 %v6298, %v6301
    %vm6303 = vweird.f32 %v6295
    %vm6304 = vweird.f32 %v6298
    %vm6305 = vmor %vm6303, %vm6304
    %v6306 = vsel %vm6305, %v6298, %v6302
    %v6307 = vand.u32 2147483647, %v6295
    %vm6308 = vcmp.eq.f32.partialorder %v6307, 8.507059e+37
    %v6309 = vand.u32 %v6295, 2147483648
    %v6310 = vor.u32 1.1754944e-38, %v6309
    %v6311 = vsel %vm6308, %v6310, %v6306
    %v6312 = vmul.f32 1.0, %v6311
    %v6313 = vrcp.pop %v6296
    %v6314 = vmul.f32 %v6296, %v6313
    %v6315 = vsub.f32 1.0, %v6314
    %v6316 = vmul.f32 %v6313, %v6315
    %v6317 = vadd.f32 %v6313, %v6316
    %vm6318 = vweird.f32 %v6296
    %vm6319 = vweird.f32 %v6313
    %vm6320 = vmor %vm6318, %vm6319
    %v6321 = vsel %vm6320, %v6313, %v6317
    %v6322 = vand.u32 2147483647, %v6296
    %vm6323 = vcmp.eq.f32.partialorder %v6322, 8.507059e+37
    %v6324 = vand.u32 %v6296, 2147483648
    %v6325 = vor.u32 1.1754944e-38, %v6324
    %v6326 = vsel %vm6323, %v6325, %v6321
    %v6327 = vmul.f32 1.0, %v6326
    %v6328 = vrcp.pop %v6297
    %v6329 = vmul.f32 %v6297, %v6328
    %v6330 = vsub.f32 1.0, %v6329
    %v6331 = vmul.f32 %v6328, %v6330
    %v6332 = vadd.f32 %v6328, %v6331
    %vm6333 = vweird.f32 %v6297
    %vm6334 = vweird.f32 %v6328
    %vm6335 = vmor %vm6333, %vm6334
    %v6336 = vsel %vm6335, %v6328, %v6332
    %v6337 = vand.u32 2147483647, %v6297
    %vm6338 = vcmp.eq.f32.partialorder %v6337, 8.507059e+37
    %v6339 = vand.u32 %v6297, 2147483648
    %v6340 = vor.u32 1.1754944e-38, %v6339
    %v6341 = vsel %vm6338, %v6340, %v6336
    %v6342 = vmul.f32 1.0, %v6341
    %v6343 = vtanh.pop %v6285
    %v6344 = vmul.f32 %v6327, %v5961
    %v6345 = vmul.f32 %v6312, %v6343
    %v6346 = vadd.f32 %v6344, %v6345
    %6347 = vadd.xlane.f32.xlu0 %v6346
    %v6348 = vpop.xlane.xlu0 %6347
    %v6349 = vmul.f32 %v6348, %v268
    %v6350 = vmul.f32 %v6346, %v6346
    %6351 = vadd.xlane.f32.xlu0 %v6350
    %v6352 = vpop.xlane.xlu0 %6351
    %v6353 = vmul.f32 %v6352, %v268
    %v6354 = vmul.f32 %v6349, %v6349
    %v6355 = vsub.f32 %v6353, %v6354
    %v6356 = vsub.f32 %v6346, %v6349
    %v6357 = vadd.f32 %v6355, 0.001
    %v6358 = vrsqrt.pop %v6357
    %v6359 = vmul.f32 %v6358, %v6357
    %v6360 = vmul.f32 %v6359, %v6358
    %v6361 = vmul.f32 0.5, %v6360
    %v6362 = vsub.f32 1.5, %v6361
    %v6363 = vmul.f32 %v6358, %v6362
    %vm6364 = vweird.f32 %v6357
    %vm6365 = vweird.f32 %v6358
    %vm6366 = vmor %vm6364, %vm6365
    %v6367 = vsel %vm6366, %v6358, %v6363
    %v6368 = vmul.f32 %v6356, %v6367
    %v6369 = vperm.slane %v5957, 0
    %v6370 = vmul.f32 %v6368, %v6369
    %v6371 = vperm.slane %v5957, 1
    %v6372 = vadd.f32 %v6370, %v6371
    %v6373 = vtanh.pop %v6372
    %v6374 = vmul.f32 %v6342, %v6373
    %6375 = vst [vmem:[#allocation2] sm:$0xff] %v6374
    %v6376 = vld [vmem:[%s2119] sm:$0xff]
    %v6377 = vld [vmem:[%s2119 + $0x8] sm:$0xff]
    %v6378 = vld [vmem:[%s2119 + $0x10] sm:$0xff]
    %v6379 = vld [vmem:[%s2119 + $0x18] sm:$0xff]
    %v6380 = vpack.c.bf16 %v6374, %v6374
    %v6381 = vld [vmem:[%s5967] sm:$0xff]
    %v6382 = vld [vmem:[%s5967 + $0x8] sm:$0xff]
    %v6383 = vld [vmem:[%s5967 + $0x10] sm:$0xff]
    %v6384 = vld [vmem:[%s5967 + $0x18] sm:$0xff]
    %v6385 = vld [vmem:[%s5967 + $0x20] sm:$0xff]
    %v6386 = vld [vmem:[%s5967 + $0x28] sm:$0xff]
    %v6387 = vld [vmem:[%s5967 + $0x30] sm:$0xff]
    %v6388 = vld [vmem:[%s5967 + $0x38] sm:$0xff]
    %v6389 = vld [vmem:[%s5967 + $0x40] sm:$0xff]
    %v6390 = vld [vmem:[%s5967 + $0x48] sm:$0xff]
    %v6391 = vld [vmem:[%s5967 + $0x50] sm:$0xff]
    %v6392 = vld [vmem:[%s5967 + $0x58] sm:$0xff]
    %v6393 = vld [vmem:[%s5967 + $0x60] sm:$0xff]
    %v6394 = vld [vmem:[%s5967 + $0x68] sm:$0xff]
    %v6395 = vld [vmem:[%s5967 + $0x70] sm:$0xff]
    %v6396 = vld [vmem:[%s5967 + $0x78] sm:$0xff]
    %v6397 = vld [vmem:[%s5967 + $0x80] sm:$0xff]
    %v6398 = vld [vmem:[%s5967 + $0x88] sm:$0xff]
    %v6399 = vld [vmem:[%s5967 + $0x90] sm:$0xff]
    %v6400 = vld [vmem:[%s5967 + $0x98] sm:$0xff]
    %v6401 = vld [vmem:[%s5967 + $0xa0] sm:$0xff]
    %v6402 = vld [vmem:[%s5967 + $0xa8] sm:$0xff]
    %v6403 = vld [vmem:[%s5967 + $0xb0] sm:$0xff]
    %v6404 = vld [vmem:[%s5967 + $0xb8] sm:$0xff]
    %v6405 = vld [vmem:[%s5967 + $0xc0] sm:$0xff]
    %v6406 = vld [vmem:[%s5967 + $0xc8] sm:$0xff]
    %v6407 = vld [vmem:[%s5967 + $0xd0] sm:$0xff]
    %v6408 = vld [vmem:[%s5967 + $0xd8] sm:$0xff]
    %v6409 = vld [vmem:[%s5967 + $0xe0] sm:$0xff]
    %v6410 = vld [vmem:[%s5967 + $0xe8] sm:$0xff]
    %v6411 = vld [vmem:[%s5967 + $0xf0] sm:$0xff]
    %v6412 = vld [vmem:[%s5967 + $0xf8] sm:$0xff]
    %v6445 = vunpack.c.l.b16 %v6381
    %v6446 = vunpack.c.h.b16 %v6381
    %v6447 = vunpack.c.l.b16 %v6382
    %v6448 = vunpack.c.h.b16 %v6382
    %v6449 = vunpack.c.l.b16 %v6383
    %v6450 = vunpack.c.h.b16 %v6383
    %v6451 = vunpack.c.l.b16 %v6384
    %v6452 = vunpack.c.h.b16 %v6384
    %v6453 = vunpack.c.l.b16 %v6385
    %v6454 = vunpack.c.h.b16 %v6385
    %v6455 = vunpack.c.l.b16 %v6386
    %v6456 = vunpack.c.h.b16 %v6386
    %v6457 = vunpack.c.l.b16 %v6387
    %v6458 = vunpack.c.h.b16 %v6387
    %v6459 = vunpack.c.l.b16 %v6388
    %v6460 = vunpack.c.h.b16 %v6388
    %v6461 = vunpack.c.l.b16 %v6389
    %v6462 = vunpack.c.h.b16 %v6389
    %v6463 = vunpack.c.l.b16 %v6390
    %v6464 = vunpack.c.h.b16 %v6390
    %v6465 = vunpack.c.l.b16 %v6391
    %v6466 = vunpack.c.h.b16 %v6391
    %v6467 = vunpack.c.l.b16 %v6392
    %v6468 = vunpack.c.h.b16 %v6392
    %v6469 = vunpack.c.l.b16 %v6393
    %v6470 = vunpack.c.h.b16 %v6393
    %v6471 = vunpack.c.l.b16 %v6394
    %v6472 = vunpack.c.h.b16 %v6394
    %v6473 = vunpack.c.l.b16 %v6395
    %v6474 = vunpack.c.h.b16 %v6395
    %v6475 = vunpack.c.l.b16 %v6396
    %v6476 = vunpack.c.h.b16 %v6396
    %v6477 = vunpack.c.l.b16 %v6397
    %v6478 = vunpack.c.h.b16 %v6397
    %v6479 = vunpack.c.l.b16 %v6398
    %v6480 = vunpack.c.h.b16 %v6398
    %v6481 = vunpack.c.l.b16 %v6399
    %v6482 = vunpack.c.h.b16 %v6399
    %v6483 = vunpack.c.l.b16 %v6400
    %v6484 = vunpack.c.h.b16 %v6400
    %v6485 = vunpack.c.l.b16 %v6401
    %v6486 = vunpack.c.h.b16 %v6401
    %v6487 = vunpack.c.l.b16 %v6402
    %v6488 = vunpack.c.h.b16 %v6402
    %v6489 = vunpack.c.l.b16 %v6403
    %v6490 = vunpack.c.h.b16 %v6403
    %v6491 = vunpack.c.l.b16 %v6404
    %v6492 = vunpack.c.h.b16 %v6404
    %v6493 = vunpack.c.l.b16 %v6405
    %v6494 = vunpack.c.h.b16 %v6405
    %v6495 = vunpack.c.l.b16 %v6406
    %v6496 = vunpack.c.h.b16 %v6406
    %v6497 = vunpack.c.l.b16 %v6407
    %v6498 = vunpack.c.h.b16 %v6407
    %v6499 = vunpack.c.l.b16 %v6408
    %v6500 = vunpack.c.h.b16 %v6408
    %v6501 = vunpack.c.l.b16 %v6409
    %v6502 = vunpack.c.h.b16 %v6409
    %v6503 = vunpack.c.l.b16 %v6410
    %v6504 = vunpack.c.h.b16 %v6410
    %v6505 = vunpack.c.l.b16 %v6411
    %v6506 = vunpack.c.h.b16 %v6411
    %v6507 = vunpack.c.l.b16 %v6412
    %v6508 = vunpack.c.h.b16 %v6412
    %v6509 = vpack.c.b16 %v6449, %v6445
    %v6510 = vpack.c.b16 %v6450, %v6446
    %v6511 = vpack.c.b16 %v6451, %v6447
    %v6512 = vpack.c.b16 %v6452, %v6448
    %v6513 = vpack.c.b16 %v6457, %v6453
    %v6514 = vpack.c.b16 %v6458, %v6454
    %v6515 = vpack.c.b16 %v6459, %v6455
    %v6516 = vpack.c.b16 %v6460, %v6456
    %v6517 = vpack.c.b16 %v6465, %v6461
    %v6518 = vpack.c.b16 %v6466, %v6462
    %v6519 = vpack.c.b16 %v6467, %v6463
    %v6520 = vpack.c.b16 %v6468, %v6464
    %v6521 = vpack.c.b16 %v6473, %v6469
    %v6522 = vpack.c.b16 %v6474, %v6470
    %v6523 = vpack.c.b16 %v6475, %v6471
    %v6524 = vpack.c.b16 %v6476, %v6472
    %v6525 = vpack.c.b16 %v6481, %v6477
    %v6526 = vpack.c.b16 %v6482, %v6478
    %v6527 = vpack.c.b16 %v6483, %v6479
    %v6528 = vpack.c.b16 %v6484, %v6480
    %v6529 = vpack.c.b16 %v6489, %v6485
    %v6530 = vpack.c.b16 %v6490, %v6486
    %v6531 = vpack.c.b16 %v6491, %v6487
    %v6532 = vpack.c.b16 %v6492, %v6488
    %v6533 = vpack.c.b16 %v6497, %v6493
    %v6534 = vpack.c.b16 %v6498, %v6494
    %v6535 = vpack.c.b16 %v6499, %v6495
    %v6536 = vpack.c.b16 %v6500, %v6496
    %v6537 = vpack.c.b16 %v6505, %v6501
    %v6538 = vpack.c.b16 %v6506, %v6502
    %v6539 = vpack.c.b16 %v6507, %v6503
    %v6540 = vpack.c.b16 %v6508, %v6504
    %6573 = vmatpush.bf16.msra.mxu0 %v6537
    %6574 = vmatpush.bf16.msra.mxu0 %v6533
    %6575 = vmatpush.bf16.msra.mxu0 %v6529
    %6576 = vmatpush.bf16.msra.mxu0 %v6525
    %6577 = vmatpush.bf16.msra.mxu0 %v6521
    %6578 = vmatpush.bf16.msra.mxu0 %v6517
    %6579 = vmatpush.bf16.msra.mxu0 %v6513
    %6580 = vmatpush.bf16.msra.mxu0 %v6509
    %6581 = vmatmul.bf16.gmra.mxu0 %v6380
    %v6582 = vpop.f32.mrf.mxu0
    %v6583 = vadd.f32 0.0, %v6582
    %v6584 = vpop.f32.mrf.mxu0
    %6585 = vdwg.mxu0
    %6586 = vmatpush.bf16.msra.mxu0 %v6538
    %6587 = vmatpush.bf16.msra.mxu0 %v6534
    %6588 = vmatpush.bf16.msra.mxu0 %v6530
    %6589 = vmatpush.bf16.msra.mxu0 %v6526
    %6590 = vmatpush.bf16.msra.mxu0 %v6522
    %6591 = vmatpush.bf16.msra.mxu0 %v6518
    %6592 = vmatpush.bf16.msra.mxu0 %v6514
    %6593 = vmatpush.bf16.msra.mxu0 %v6510
    %6594 = vmatmul.bf16.gmra.mxu0 %v6380
    %v6595 = vpop.f32.mrf.mxu0
    %v6596 = vadd.f32 0.0, %v6595
    %v6597 = vpop.f32.mrf.mxu0
    %6598 = vdwg.mxu0
    %6599 = vmatpush.bf16.msra.mxu0 %v6539
    %6600 = vmatpush.bf16.msra.mxu0 %v6535
    %6601 = vmatpush.bf16.msra.mxu0 %v6531
    %6602 = vmatpush.bf16.msra.mxu0 %v6527
    %6603 = vmatpush.bf16.msra.mxu0 %v6523
    %6604 = vmatpush.bf16.msra.mxu0 %v6519
    %6605 = vmatpush.bf16.msra.mxu0 %v6515
    %6606 = vmatpush.bf16.msra.mxu0 %v6511
    %6607 = vmatmul.bf16.gmra.mxu0 %v6380
    %v6608 = vpop.f32.mrf.mxu0
    %v6609 = vadd.f32 0.0, %v6608
    %v6610 = vpop.f32.mrf.mxu0
    %6611 = vdwg.mxu0
    %6612 = vmatpush.bf16.msra.mxu0 %v6540
    %6613 = vmatpush.bf16.msra.mxu0 %v6536
    %6614 = vmatpush.bf16.msra.mxu0 %v6532
    %6615 = vmatpush.bf16.msra.mxu0 %v6528
    %6616 = vmatpush.bf16.msra.mxu0 %v6524
    %6617 = vmatpush.bf16.msra.mxu0 %v6520
    %6618 = vmatpush.bf16.msra.mxu0 %v6516
    %6619 = vmatpush.bf16.msra.mxu0 %v6512
    %6620 = vmatmul.bf16.gmra.mxu0 %v6380
    %v6621 = vpop.f32.mrf.mxu0
    %v6622 = vadd.f32 0.0, %v6621
    %v6623 = vpop.f32.mrf.mxu0
    %6624 = vdwg.mxu0
    %v6625 = vadd.f32 %v6376, %v6583
    %v6626 = vadd.f32 %v6377, %v6596
    %v6627 = vadd.f32 %v6378, %v6609
    %v6628 = vadd.f32 %v6379, %v6622
    %v6629 = vadd.f32 %v6625, %v6626
    %v6630 = vadd.f32 %v6629, %v6627
    %v6631 = vadd.f32 %v6630, %v6628
    %6632 = vadd.xlane.f32.xlu0 %v6631
    %v6633 = vpop.xlane.xlu0 %6632
    %v6634 = vmul.f32 %v6633, %v1078
    %v6635 = vmul.f32 %v6625, %v6625
    %v6636 = vmul.f32 %v6626, %v6626
    %v6637 = vmul.f32 %v6627, %v6627
    %v6638 = vmul.f32 %v6628, %v6628
    %v6639 = vadd.f32 %v6635, %v6636
    %v6640 = vadd.f32 %v6639, %v6637
    %v6641 = vadd.f32 %v6640, %v6638
    %6642 = vadd.xlane.f32.xlu0 %v6641
    %v6643 = vpop.xlane.xlu0 %6642
    %v6644 = vmul.f32 %v6643, %v1078
    %v6645 = vmul.f32 %v6634, %v6634
    %v6646 = vsub.f32 %v6644, %v6645
    %v6647 = vsub.f32 %v6625, %v6634
    %v6648 = vsub.f32 %v6626, %v6634
    %v6649 = vsub.f32 %v6627, %v6634
    %v6650 = vsub.f32 %v6628, %v6634
    %v6651 = vadd.f32 %v6646, 0.001
    %v6652 = vrsqrt.pop %v6651
    %v6653 = vmul.f32 %v6652, %v6651
    %v6654 = vmul.f32 %v6653, %v6652
    %v6655 = vmul.f32 0.5, %v6654
    %v6656 = vsub.f32 1.5, %v6655
    %v6657 = vmul.f32 %v6652, %v6656
    %vm6658 = vweird.f32 %v6651
    %vm6659 = vweird.f32 %v6652
    %vm6660 = vmor %vm6658, %vm6659
    %v6661 = vsel %vm6660, %v6652, %v6657
    %v6662 = vmul.f32 %v6647, %v6661
    %v6663 = vmul.f32 %v6648, %v6661
    %v6664 = vmul.f32 %v6649, %v6661
    %v6665 = vmul.f32 %v6650, %v6661
    %v6666 = vmul.f32 %v6662, %v6262
    %v6667 = vmul.f32 %v6663, %v6263
    %v6668 = vmul.f32 %v6664, %v6264
    %v6669 = vmul.f32 %v6665, %v6265
    %v6670 = vadd.f32 %v6666, %v6278
    %v6671 = vadd.f32 %v6667, %v6279
    %v6672 = vadd.f32 %v6668, %v6280
    %v6673 = vadd.f32 %v6669, %v6281
    %v6674 = vxor.u32 %v6670, 2147483648
    %v6675 = vxor.u32 %v6671, 2147483648
    %v6676 = vxor.u32 %v6672, 2147483648
    %v6677 = vmul.f32 %v6674, 1.442695
    %v6678 = vpow.pop %v6677
    %v6679 = vmul.f32 %v6675, 1.442695
    %v6680 = vpow.pop %v6679
    %v6681 = vmul.f32 %v6676, 1.442695
    %v6682 = vpow.pop %v6681
    %v6683 = vadd.f32 %v6678, 1.0
    %v6684 = vadd.f32 %v6680, 1.0
    %v6685 = vadd.f32 %v6682, 1.0
    %v6686 = vrcp.pop %v6683
    %v6687 = vmul.f32 %v6683, %v6686
    %v6688 = vsub.f32 1.0, %v6687
    %v6689 = vmul.f32 %v6686, %v6688
    %v6690 = vadd.f32 %v6686, %v6689
    %vm6691 = vweird.f32 %v6683
    %vm6692 = vweird.f32 %v6686
    %vm6693 = vmor %vm6691, %vm6692
    %v6694 = vsel %vm6693, %v6686, %v6690
    %v6695 = vand.u32 2147483647, %v6683
    %vm6696 = vcmp.eq.f32.partialorder %v6695, 8.507059e+37
    %v6697 = vand.u32 %v6683, 2147483648
    %v6698 = vor.u32 1.1754944e-38, %v6697
    %v6699 = vsel %vm6696, %v6698, %v6694
    %v6700 = vmul.f32 1.0, %v6699
    %v6701 = vrcp.pop %v6684
    %v6702 = vmul.f32 %v6684, %v6701
    %v6703 = vsub.f32 1.0, %v6702
    %v6704 = vmul.f32 %v6701, %v6703
    %v6705 = vadd.f32 %v6701, %v6704
    %vm6706 = vweird.f32 %v6684
    %vm6707 = vweird.f32 %v6701
    %vm6708 = vmor %vm6706, %vm6707
    %v6709 = vsel %vm6708, %v6701, %v6705
    %v6710 = vand.u32 2147483647, %v6684
    %vm6711 = vcmp.eq.f32.partialorder %v6710, 8.507059e+37
    %v6712 = vand.u32 %v6684, 2147483648
    %v6713 = vor.u32 1.1754944e-38, %v6712
    %v6714 = vsel %vm6711, %v6713, %v6709
    %v6715 = vmul.f32 1.0, %v6714
    %v6716 = vrcp.pop %v6685
    %v6717 = vmul.f32 %v6685, %v6716
    %v6718 = vsub.f32 1.0, %v6717
    %v6719 = vmul.f32 %v6716, %v6718
    %v6720 = vadd.f32 %v6716, %v6719
    %vm6721 = vweird.f32 %v6685
    %vm6722 = vweird.f32 %v6716
    %vm6723 = vmor %vm6721, %vm6722
    %v6724 = vsel %vm6723, %v6716, %v6720
    %v6725 = vand.u32 2147483647, %v6685
    %vm6726 = vcmp.eq.f32.partialorder %v6725, 8.507059e+37
    %v6727 = vand.u32 %v6685, 2147483648
    %v6728 = vor.u32 1.1754944e-38, %v6727
    %v6729 = vsel %vm6726, %v6728, %v6724
    %v6730 = vmul.f32 1.0, %v6729
    %v6731 = vtanh.pop %v6673
    %v6732 = vmul.f32 %v6715, %v6372
    %v6733 = vmul.f32 %v6700, %v6731
    %v6734 = vadd.f32 %v6732, %v6733
    %6735 = vadd.xlane.f32.xlu0 %v6734
    %v6736 = vpop.xlane.xlu0 %6735
    %v6737 = vmul.f32 %v6736, %v268
    %v6738 = vmul.f32 %v6734, %v6734
    %6739 = vadd.xlane.f32.xlu0 %v6738
    %v6740 = vpop.xlane.xlu0 %6739
    %v6741 = vmul.f32 %v6740, %v268
    %v6742 = vmul.f32 %v6737, %v6737
    %v6743 = vsub.f32 %v6741, %v6742
    %v6744 = vsub.f32 %v6734, %v6737
    %v6745 = vadd.f32 %v6743, 0.001
    %v6746 = vrsqrt.pop %v6745
    %v6747 = vmul.f32 %v6746, %v6745
    %v6748 = vmul.f32 %v6747, %v6746
    %v6749 = vmul.f32 0.5, %v6748
    %v6750 = vsub.f32 1.5, %v6749
    %v6751 = vmul.f32 %v6746, %v6750
    %vm6752 = vweird.f32 %v6745
    %vm6753 = vweird.f32 %v6746
    %vm6754 = vmor %vm6752, %vm6753
    %v6755 = vsel %vm6754, %v6746, %v6751
    %v6756 = vmul.f32 %v6744, %v6755
    %v6757 = vmul.f32 %v6756, %v6369
    %v6758 = vadd.f32 %v6757, %v6371
    %v6759 = vtanh.pop %v6758
    %v6760 = vmul.f32 %v6730, %v6759
    %s6761 = scalar_lea.vmem [#allocation2], 8
    %6762 = vst [vmem:[%s6761] sm:$0xff] %v6760
    %v6763 = vld [vmem:[%s2757] sm:$0xff]
    %v6764 = vld [vmem:[%s2757 + $0x8] sm:$0xff]
    %v6765 = vld [vmem:[%s2757 + $0x10] sm:$0xff]
    %v6766 = vld [vmem:[%s2757 + $0x18] sm:$0xff]
    %v6767 = vpack.c.bf16 %v6760, %v6760
    %v6768 = vld [vmem:[%s5967] sm:$0xff]
    %v6769 = vld [vmem:[%s5967 + $0x8] sm:$0xff]
    %v6770 = vld [vmem:[%s5967 + $0x10] sm:$0xff]
    %v6771 = vld [vmem:[%s5967 + $0x18] sm:$0xff]
    %v6772 = vld [vmem:[%s5967 + $0x20] sm:$0xff]
    %v6773 = vld [vmem:[%s5967 + $0x28] sm:$0xff]
    %v6774 = vld [vmem:[%s5967 + $0x30] sm:$0xff]
    %v6775 = vld [vmem:[%s5967 + $0x38] sm:$0xff]
    %v6776 = vld [vmem:[%s5967 + $0x40] sm:$0xff]
    %v6777 = vld [vmem:[%s5967 + $0x48] sm:$0xff]
    %v6778 = vld [vmem:[%s5967 + $0x50] sm:$0xff]
    %v6779 = vld [vmem:[%s5967 + $0x58] sm:$0xff]
    %v6780 = vld [vmem:[%s5967 + $0x60] sm:$0xff]
    %v6781 = vld [vmem:[%s5967 + $0x68] sm:$0xff]
    %v6782 = vld [vmem:[%s5967 + $0x70] sm:$0xff]
    %v6783 = vld [vmem:[%s5967 + $0x78] sm:$0xff]
    %v6784 = vld [vmem:[%s5967 + $0x80] sm:$0xff]
    %v6785 = vld [vmem:[%s5967 + $0x88] sm:$0xff]
    %v6786 = vld [vmem:[%s5967 + $0x90] sm:$0xff]
    %v6787 = vld [vmem:[%s5967 + $0x98] sm:$0xff]
    %v6788 = vld [vmem:[%s5967 + $0xa0] sm:$0xff]
    %v6789 = vld [vmem:[%s5967 + $0xa8] sm:$0xff]
    %v6790 = vld [vmem:[%s5967 + $0xb0] sm:$0xff]
    %v6791 = vld [vmem:[%s5967 + $0xb8] sm:$0xff]
    %v6792 = vld [vmem:[%s5967 + $0xc0] sm:$0xff]
    %v6793 = vld [vmem:[%s5967 + $0xc8] sm:$0xff]
    %v6794 = vld [vmem:[%s5967 + $0xd0] sm:$0xff]
    %v6795 = vld [vmem:[%s5967 + $0xd8] sm:$0xff]
    %v6796 = vld [vmem:[%s5967 + $0xe0] sm:$0xff]
    %v6797 = vld [vmem:[%s5967 + $0xe8] sm:$0xff]
    %v6798 = vld [vmem:[%s5967 + $0xf0] sm:$0xff]
    %v6799 = vld [vmem:[%s5967 + $0xf8] sm:$0xff]
    %v6832 = vunpack.c.l.b16 %v6768
    %v6833 = vunpack.c.h.b16 %v6768
    %v6834 = vunpack.c.l.b16 %v6769
    %v6835 = vunpack.c.h.b16 %v6769
    %v6836 = vunpack.c.l.b16 %v6770
    %v6837 = vunpack.c.h.b16 %v6770
    %v6838 = vunpack.c.l.b16 %v6771
    %v6839 = vunpack.c.h.b16 %v6771
    %v6840 = vunpack.c.l.b16 %v6772
    %v6841 = vunpack.c.h.b16 %v6772
    %v6842 = vunpack.c.l.b16 %v6773
    %v6843 = vunpack.c.h.b16 %v6773
    %v6844 = vunpack.c.l.b16 %v6774
    %v6845 = vunpack.c.h.b16 %v6774
    %v6846 = vunpack.c.l.b16 %v6775
    %v6847 = vunpack.c.h.b16 %v6775
    %v6848 = vunpack.c.l.b16 %v6776
    %v6849 = vunpack.c.h.b16 %v6776
    %v6850 = vunpack.c.l.b16 %v6777
    %v6851 = vunpack.c.h.b16 %v6777
    %v6852 = vunpack.c.l.b16 %v6778
    %v6853 = vunpack.c.h.b16 %v6778
    %v6854 = vunpack.c.l.b16 %v6779
    %v6855 = vunpack.c.h.b16 %v6779
    %v6856 = vunpack.c.l.b16 %v6780
    %v6857 = vunpack.c.h.b16 %v6780
    %v6858 = vunpack.c.l.b16 %v6781
    %v6859 = vunpack.c.h.b16 %v6781
    %v6860 = vunpack.c.l.b16 %v6782
    %v6861 = vunpack.c.h.b16 %v6782
    %v6862 = vunpack.c.l.b16 %v6783
    %v6863 = vunpack.c.h.b16 %v6783
    %v6864 = vunpack.c.l.b16 %v6784
    %v6865 = vunpack.c.h.b16 %v6784
    %v6866 = vunpack.c.l.b16 %v6785
    %v6867 = vunpack.c.h.b16 %v6785
    %v6868 = vunpack.c.l.b16 %v6786
    %v6869 = vunpack.c.h.b16 %v6786
    %v6870 = vunpack.c.l.b16 %v6787
    %v6871 = vunpack.c.h.b16 %v6787
    %v6872 = vunpack.c.l.b16 %v6788
    %v6873 = vunpack.c.h.b16 %v6788
    %v6874 = vunpack.c.l.b16 %v6789
    %v6875 = vunpack.c.h.b16 %v6789
    %v6876 = vunpack.c.l.b16 %v6790
    %v6877 = vunpack.c.h.b16 %v6790
    %v6878 = vunpack.c.l.b16 %v6791
    %v6879 = vunpack.c.h.b16 %v6791
    %v6880 = vunpack.c.l.b16 %v6792
    %v6881 = vunpack.c.h.b16 %v6792
    %v6882 = vunpack.c.l.b16 %v6793
    %v6883 = vunpack.c.h.b16 %v6793
    %v6884 = vunpack.c.l.b16 %v6794
    %v6885 = vunpack.c.h.b16 %v6794
    %v6886 = vunpack.c.l.b16 %v6795
    %v6887 = vunpack.c.h.b16 %v6795
    %v6888 = vunpack.c.l.b16 %v6796
    %v6889 = vunpack.c.h.b16 %v6796
    %v6890 = vunpack.c.l.b16 %v6797
    %v6891 = vunpack.c.h.b16 %v6797
    %v6892 = vunpack.c.l.b16 %v6798
    %v6893 = vunpack.c.h.b16 %v6798
    %v6894 = vunpack.c.l.b16 %v6799
    %v6895 = vunpack.c.h.b16 %v6799
    %v6896 = vpack.c.b16 %v6836, %v6832
    %v6897 = vpack.c.b16 %v6837, %v6833
    %v6898 = vpack.c.b16 %v6838, %v6834
    %v6899 = vpack.c.b16 %v6839, %v6835
    %v6900 = vpack.c.b16 %v6844, %v6840
    %v6901 = vpack.c.b16 %v6845, %v6841
    %v6902 = vpack.c.b16 %v6846, %v6842
    %v6903 = vpack.c.b16 %v6847, %v6843
    %v6904 = vpack.c.b16 %v6852, %v6848
    %v6905 = vpack.c.b16 %v6853, %v6849
    %v6906 = vpack.c.b16 %v6854, %v6850
    %v6907 = vpack.c.b16 %v6855, %v6851
    %v6908 = vpack.c.b16 %v6860, %v6856
    %v6909 = vpack.c.b16 %v6861, %v6857
    %v6910 = vpack.c.b16 %v6862, %v6858
    %v6911 = vpack.c.b16 %v6863, %v6859
    %v6912 = vpack.c.b16 %v6868, %v6864
    %v6913 = vpack.c.b16 %v6869, %v6865
    %v6914 = vpack.c.b16 %v6870, %v6866
    %v6915 = vpack.c.b16 %v6871, %v6867
    %v6916 = vpack.c.b16 %v6876, %v6872
    %v6917 = vpack.c.b16 %v6877, %v6873
    %v6918 = vpack.c.b16 %v6878, %v6874
    %v6919 = vpack.c.b16 %v6879, %v6875
    %v6920 = vpack.c.b16 %v6884, %v6880
    %v6921 = vpack.c.b16 %v6885, %v6881
    %v6922 = vpack.c.b16 %v6886, %v6882
    %v6923 = vpack.c.b16 %v6887, %v6883
    %v6924 = vpack.c.b16 %v6892, %v6888
    %v6925 = vpack.c.b16 %v6893, %v6889
    %v6926 = vpack.c.b16 %v6894, %v6890
    %v6927 = vpack.c.b16 %v6895, %v6891
    %6960 = vmatpush.bf16.msra.mxu0 %v6924
    %6961 = vmatpush.bf16.msra.mxu0 %v6920
    %6962 = vmatpush.bf16.msra.mxu0 %v6916
    %6963 = vmatpush.bf16.msra.mxu0 %v6912
    %6964 = vmatpush.bf16.msra.mxu0 %v6908
    %6965 = vmatpush.bf16.msra.mxu0 %v6904
    %6966 = vmatpush.bf16.msra.mxu0 %v6900
    %6967 = vmatpush.bf16.msra.mxu0 %v6896
    %6968 = vmatmul.bf16.gmra.mxu0 %v6767
    %v6969 = vpop.f32.mrf.mxu0
    %v6970 = vadd.f32 0.0, %v6969
    %v6971 = vpop.f32.mrf.mxu0
    %6972 = vdwg.mxu0
    %6973 = vmatpush.bf16.msra.mxu0 %v6925
    %6974 = vmatpush.bf16.msra.mxu0 %v6921
    %6975 = vmatpush.bf16.msra.mxu0 %v6917
    %6976 = vmatpush.bf16.msra.mxu0 %v6913
    %6977 = vmatpush.bf16.msra.mxu0 %v6909
    %6978 = vmatpush.bf16.msra.mxu0 %v6905
    %6979 = vmatpush.bf16.msra.mxu0 %v6901
    %6980 = vmatpush.bf16.msra.mxu0 %v6897
    %6981 = vmatmul.bf16.gmra.mxu0 %v6767
    %v6982 = vpop.f32.mrf.mxu0
    %v6983 = vadd.f32 0.0, %v6982
    %v6984 = vpop.f32.mrf.mxu0
    %6985 = vdwg.mxu0
    %6986 = vmatpush.bf16.msra.mxu0 %v6926
    %6987 = vmatpush.bf16.msra.mxu0 %v6922
    %6988 = vmatpush.bf16.msra.mxu0 %v6918
    %6989 = vmatpush.bf16.msra.mxu0 %v6914
    %6990 = vmatpush.bf16.msra.mxu0 %v6910
    %6991 = vmatpush.bf16.msra.mxu0 %v6906
    %6992 = vmatpush.bf16.msra.mxu0 %v6902
    %6993 = vmatpush.bf16.msra.mxu0 %v6898
    %6994 = vmatmul.bf16.gmra.mxu0 %v6767
    %v6995 = vpop.f32.mrf.mxu0
    %v6996 = vadd.f32 0.0, %v6995
    %v6997 = vpop.f32.mrf.mxu0
    %6998 = vdwg.mxu0
    %6999 = vmatpush.bf16.msra.mxu0 %v6927
    %7000 = vmatpush.bf16.msra.mxu0 %v6923
    %7001 = vmatpush.bf16.msra.mxu0 %v6919
    %7002 = vmatpush.bf16.msra.mxu0 %v6915
    %7003 = vmatpush.bf16.msra.mxu0 %v6911
    %7004 = vmatpush.bf16.msra.mxu0 %v6907
    %7005 = vmatpush.bf16.msra.mxu0 %v6903
    %7006 = vmatpush.bf16.msra.mxu0 %v6899
    %7007 = vmatmul.bf16.gmra.mxu0 %v6767
    %v7008 = vpop.f32.mrf.mxu0
    %v7009 = vadd.f32 0.0, %v7008
    %v7010 = vpop.f32.mrf.mxu0
    %7011 = vdwg.mxu0
    %v7012 = vadd.f32 %v6763, %v6970
    %v7013 = vadd.f32 %v6764, %v6983
    %v7014 = vadd.f32 %v6765, %v6996
    %v7015 = vadd.f32 %v6766, %v7009
    %v7016 = vadd.f32 %v7012, %v7013
    %v7017 = vadd.f32 %v7016, %v7014
    %v7018 = vadd.f32 %v7017, %v7015
    %7019 = vadd.xlane.f32.xlu0 %v7018
    %v7020 = vpop.xlane.xlu0 %7019
    %v7021 = vmul.f32 %v7020, %v1078
    %v7022 = vmul.f32 %v7012, %v7012
    %v7023 = vmul.f32 %v7013, %v7013
    %v7024 = vmul.f32 %v7014, %v7014
    %v7025 = vmul.f32 %v7015, %v7015
    %v7026 = vadd.f32 %v7022, %v7023
    %v7027 = vadd.f32 %v7026, %v7024
    %v7028 = vadd.f32 %v7027, %v7025
    %7029 = vadd.xlane.f32.xlu0 %v7028
    %v7030 = vpop.xlane.xlu0 %7029
    %v7031 = vmul.f32 %v7030, %v1078
    %v7032 = vmul.f32 %v7021, %v7021
    %v7033 = vsub.f32 %v7031, %v7032
    %v7034 = vsub.f32 %v7012, %v7021
    %v7035 = vsub.f32 %v7013, %v7021
    %v7036 = vsub.f32 %v7014, %v7021
    %v7037 = vsub.f32 %v7015, %v7021
    %v7038 = vadd.f32 %v7033, 0.001
    %v7039 = vrsqrt.pop %v7038
    %v7040 = vmul.f32 %v7039, %v7038
    %v7041 = vmul.f32 %v7040, %v7039
    %v7042 = vmul.f32 0.5, %v7041
    %v7043 = vsub.f32 1.5, %v7042
    %v7044 = vmul.f32 %v7039, %v7043
    %vm7045 = vweird.f32 %v7038
    %vm7046 = vweird.f32 %v7039
    %vm7047 = vmor %vm7045, %vm7046
    %v7048 = vsel %vm7047, %v7039, %v7044
    %v7049 = vmul.f32 %v7034, %v7048
    %v7050 = vmul.f32 %v7035, %v7048
    %v7051 = vmul.f32 %v7036, %v7048
    %v7052 = vmul.f32 %v7037, %v7048
    %v7053 = vmul.f32 %v7049, %v6262
    %v7054 = vmul.f32 %v7050, %v6263
    %v7055 = vmul.f32 %v7051, %v6264
    %v7056 = vmul.f32 %v7052, %v6265
    %v7057 = vadd.f32 %v7053, %v6278
    %v7058 = vadd.f32 %v7054, %v6279
    %v7059 = vadd.f32 %v7055, %v6280
    %v7060 = vadd.f32 %v7056, %v6281
    %v7061 = vxor.u32 %v7057, 2147483648
    %v7062 = vxor.u32 %v7058, 2147483648
    %v7063 = vxor.u32 %v7059, 2147483648
    %v7064 = vmul.f32 %v7061, 1.442695
    %v7065 = vpow.pop %v7064
    %v7066 = vmul.f32 %v7062, 1.442695
    %v7067 = vpow.pop %v7066
    %v7068 = vmul.f32 %v7063, 1.442695
    %v7069 = vpow.pop %v7068
    %v7070 = vadd.f32 %v7065, 1.0
    %v7071 = vadd.f32 %v7067, 1.0
    %v7072 = vadd.f32 %v7069, 1.0
    %v7073 = vrcp.pop %v7070
    %v7074 = vmul.f32 %v7070, %v7073
    %v7075 = vsub.f32 1.0, %v7074
    %v7076 = vmul.f32 %v7073, %v7075
    %v7077 = vadd.f32 %v7073, %v7076
    %vm7078 = vweird.f32 %v7070
    %vm7079 = vweird.f32 %v7073
    %vm7080 = vmor %vm7078, %vm7079
    %v7081 = vsel %vm7080, %v7073, %v7077
    %v7082 = vand.u32 2147483647, %v7070
    %vm7083 = vcmp.eq.f32.partialorder %v7082, 8.507059e+37
    %v7084 = vand.u32 %v7070, 2147483648
    %v7085 = vor.u32 1.1754944e-38, %v7084
    %v7086 = vsel %vm7083, %v7085, %v7081
    %v7087 = vmul.f32 1.0, %v7086
    %v7088 = vrcp.pop %v7071
    %v7089 = vmul.f32 %v7071, %v7088
    %v7090 = vsub.f32 1.0, %v7089
    %v7091 = vmul.f32 %v7088, %v7090
    %v7092 = vadd.f32 %v7088, %v7091
    %vm7093 = vweird.f32 %v7071
    %vm7094 = vweird.f32 %v7088
    %vm7095 = vmor %vm7093, %vm7094
    %v7096 = vsel %vm7095, %v7088, %v7092
    %v7097 = vand.u32 2147483647, %v7071
    %vm7098 = vcmp.eq.f32.partialorder %v7097, 8.507059e+37
    %v7099 = vand.u32 %v7071, 2147483648
    %v7100 = vor.u32 1.1754944e-38, %v7099
    %v7101 = vsel %vm7098, %v7100, %v7096
    %v7102 = vmul.f32 1.0, %v7101
    %v7103 = vrcp.pop %v7072
    %v7104 = vmul.f32 %v7072, %v7103
    %v7105 = vsub.f32 1.0, %v7104
    %v7106 = vmul.f32 %v7103, %v7105
    %v7107 = vadd.f32 %v7103, %v7106
    %vm7108 = vweird.f32 %v7072
    %vm7109 = vweird.f32 %v7103
    %vm7110 = vmor %vm7108, %vm7109
    %v7111 = vsel %vm7110, %v7103, %v7107
    %v7112 = vand.u32 2147483647, %v7072
    %vm7113 = vcmp.eq.f32.partialorder %v7112, 8.507059e+37
    %v7114 = vand.u32 %v7072, 2147483648
    %v7115 = vor.u32 1.1754944e-38, %v7114
    %v7116 = vsel %vm7113, %v7115, %v7111
    %v7117 = vmul.f32 1.0, %v7116
    %v7118 = vtanh.pop %v7060
    %v7119 = vmul.f32 %v7102, %v6758
    %v7120 = vmul.f32 %v7087, %v7118
    %v7121 = vadd.f32 %v7119, %v7120
    %7122 = vadd.xlane.f32.xlu0 %v7121
    %v7123 = vpop.xlane.xlu0 %7122
    %v7124 = vmul.f32 %v7123, %v268
    %v7125 = vmul.f32 %v7121, %v7121
    %7126 = vadd.xlane.f32.xlu0 %v7125
    %v7127 = vpop.xlane.xlu0 %7126
    %v7128 = vmul.f32 %v7127, %v268
    %v7129 = vmul.f32 %v7124, %v7124
    %v7130 = vsub.f32 %v7128, %v7129
    %v7131 = vsub.f32 %v7121, %v7124
    %v7132 = vadd.f32 %v7130, 0.001
    %v7133 = vrsqrt.pop %v7132
    %v7134 = vmul.f32 %v7133, %v7132
    %v7135 = vmul.f32 %v7134, %v7133
    %v7136 = vmul.f32 0.5, %v7135
    %v7137 = vsub.f32 1.5, %v7136
    %v7138 = vmul.f32 %v7133, %v7137
    %vm7139 = vweird.f32 %v7132
    %vm7140 = vweird.f32 %v7133
    %vm7141 = vmor %vm7139, %vm7140
    %v7142 = vsel %vm7141, %v7133, %v7138
    %v7143 = vmul.f32 %v7131, %v7142
    %v7144 = vmul.f32 %v7143, %v6369
    %v7145 = vadd.f32 %v7144, %v6371
    %v7146 = vtanh.pop %v7145
    %v7147 = vmul.f32 %v7117, %v7146
    %s7148 = scalar_lea.vmem [#allocation2], 16
    %7149 = vst [vmem:[%s7148] sm:$0xff] %v7147
    %v7150 = vld [vmem:[%s3395] sm:$0xff]
    %v7151 = vld [vmem:[%s3395 + $0x8] sm:$0xff]
    %v7152 = vld [vmem:[%s3395 + $0x10] sm:$0xff]
    %v7153 = vld [vmem:[%s3395 + $0x18] sm:$0xff]
    %v7154 = vpack.c.bf16 %v7147, %v7147
    %v7155 = vld [vmem:[%s5967] sm:$0xff]
    %v7156 = vld [vmem:[%s5967 + $0x8] sm:$0xff]
    %v7157 = vld [vmem:[%s5967 + $0x10] sm:$0xff]
    %v7158 = vld [vmem:[%s5967 + $0x18] sm:$0xff]
    %v7159 = vld [vmem:[%s5967 + $0x20] sm:$0xff]
    %v7160 = vld [vmem:[%s5967 + $0x28] sm:$0xff]
    %v7161 = vld [vmem:[%s5967 + $0x30] sm:$0xff]
    %v7162 = vld [vmem:[%s5967 + $0x38] sm:$0xff]
    %v7163 = vld [vmem:[%s5967 + $0x40] sm:$0xff]
    %v7164 = vld [vmem:[%s5967 + $0x48] sm:$0xff]
    %v7165 = vld [vmem:[%s5967 + $0x50] sm:$0xff]
    %v7166 = vld [vmem:[%s5967 + $0x58] sm:$0xff]
    %v7167 = vld [vmem:[%s5967 + $0x60] sm:$0xff]
    %v7168 = vld [vmem:[%s5967 + $0x68] sm:$0xff]
    %v7169 = vld [vmem:[%s5967 + $0x70] sm:$0xff]
    %v7170 = vld [vmem:[%s5967 + $0x78] sm:$0xff]
    %v7171 = vld [vmem:[%s5967 + $0x80] sm:$0xff]
    %v7172 = vld [vmem:[%s5967 + $0x88] sm:$0xff]
    %v7173 = vld [vmem:[%s5967 + $0x90] sm:$0xff]
    %v7174 = vld [vmem:[%s5967 + $0x98] sm:$0xff]
    %v7175 = vld [vmem:[%s5967 + $0xa0] sm:$0xff]
    %v7176 = vld [vmem:[%s5967 + $0xa8] sm:$0xff]
    %v7177 = vld [vmem:[%s5967 + $0xb0] sm:$0xff]
    %v7178 = vld [vmem:[%s5967 + $0xb8] sm:$0xff]
    %v7179 = vld [vmem:[%s5967 + $0xc0] sm:$0xff]
    %v7180 = vld [vmem:[%s5967 + $0xc8] sm:$0xff]
    %v7181 = vld [vmem:[%s5967 + $0xd0] sm:$0xff]
    %v7182 = vld [vmem:[%s5967 + $0xd8] sm:$0xff]
    %v7183 = vld [vmem:[%s5967 + $0xe0] sm:$0xff]
    %v7184 = vld [vmem:[%s5967 + $0xe8] sm:$0xff]
    %v7185 = vld [vmem:[%s5967 + $0xf0] sm:$0xff]
    %v7186 = vld [vmem:[%s5967 + $0xf8] sm:$0xff]
    %v7219 = vunpack.c.l.b16 %v7155
    %v7220 = vunpack.c.h.b16 %v7155
    %v7221 = vunpack.c.l.b16 %v7156
    %v7222 = vunpack.c.h.b16 %v7156
    %v7223 = vunpack.c.l.b16 %v7157
    %v7224 = vunpack.c.h.b16 %v7157
    %v7225 = vunpack.c.l.b16 %v7158
    %v7226 = vunpack.c.h.b16 %v7158
    %v7227 = vunpack.c.l.b16 %v7159
    %v7228 = vunpack.c.h.b16 %v7159
    %v7229 = vunpack.c.l.b16 %v7160
    %v7230 = vunpack.c.h.b16 %v7160
    %v7231 = vunpack.c.l.b16 %v7161
    %v7232 = vunpack.c.h.b16 %v7161
    %v7233 = vunpack.c.l.b16 %v7162
    %v7234 = vunpack.c.h.b16 %v7162
    %v7235 = vunpack.c.l.b16 %v7163
    %v7236 = vunpack.c.h.b16 %v7163
    %v7237 = vunpack.c.l.b16 %v7164
    %v7238 = vunpack.c.h.b16 %v7164
    %v7239 = vunpack.c.l.b16 %v7165
    %v7240 = vunpack.c.h.b16 %v7165
    %v7241 = vunpack.c.l.b16 %v7166
    %v7242 = vunpack.c.h.b16 %v7166
    %v7243 = vunpack.c.l.b16 %v7167
    %v7244 = vunpack.c.h.b16 %v7167
    %v7245 = vunpack.c.l.b16 %v7168
    %v7246 = vunpack.c.h.b16 %v7168
    %v7247 = vunpack.c.l.b16 %v7169
    %v7248 = vunpack.c.h.b16 %v7169
    %v7249 = vunpack.c.l.b16 %v7170
    %v7250 = vunpack.c.h.b16 %v7170
    %v7251 = vunpack.c.l.b16 %v7171
    %v7252 = vunpack.c.h.b16 %v7171
    %v7253 = vunpack.c.l.b16 %v7172
    %v7254 = vunpack.c.h.b16 %v7172
    %v7255 = vunpack.c.l.b16 %v7173
    %v7256 = vunpack.c.h.b16 %v7173
    %v7257 = vunpack.c.l.b16 %v7174
    %v7258 = vunpack.c.h.b16 %v7174
    %v7259 = vunpack.c.l.b16 %v7175
    %v7260 = vunpack.c.h.b16 %v7175
    %v7261 = vunpack.c.l.b16 %v7176
    %v7262 = vunpack.c.h.b16 %v7176
    %v7263 = vunpack.c.l.b16 %v7177
    %v7264 = vunpack.c.h.b16 %v7177
    %v7265 = vunpack.c.l.b16 %v7178
    %v7266 = vunpack.c.h.b16 %v7178
    %v7267 = vunpack.c.l.b16 %v7179
    %v7268 = vunpack.c.h.b16 %v7179
    %v7269 = vunpack.c.l.b16 %v7180
    %v7270 = vunpack.c.h.b16 %v7180
    %v7271 = vunpack.c.l.b16 %v7181
    %v7272 = vunpack.c.h.b16 %v7181
    %v7273 = vunpack.c.l.b16 %v7182
    %v7274 = vunpack.c.h.b16 %v7182
    %v7275 = vunpack.c.l.b16 %v7183
    %v7276 = vunpack.c.h.b16 %v7183
    %v7277 = vunpack.c.l.b16 %v7184
    %v7278 = vunpack.c.h.b16 %v7184
    %v7279 = vunpack.c.l.b16 %v7185
    %v7280 = vunpack.c.h.b16 %v7185
    %v7281 = vunpack.c.l.b16 %v7186
    %v7282 = vunpack.c.h.b16 %v7186
    %v7283 = vpack.c.b16 %v7223, %v7219
    %v7284 = vpack.c.b16 %v7224, %v7220
    %v7285 = vpack.c.b16 %v7225, %v7221
    %v7286 = vpack.c.b16 %v7226, %v7222
    %v7287 = vpack.c.b16 %v7231, %v7227
    %v7288 = vpack.c.b16 %v7232, %v7228
    %v7289 = vpack.c.b16 %v7233, %v7229
    %v7290 = vpack.c.b16 %v7234, %v7230
    %v7291 = vpack.c.b16 %v7239, %v7235
    %v7292 = vpack.c.b16 %v7240, %v7236
    %v7293 = vpack.c.b16 %v7241, %v7237
    %v7294 = vpack.c.b16 %v7242, %v7238
    %v7295 = vpack.c.b16 %v7247, %v7243
    %v7296 = vpack.c.b16 %v7248, %v7244
    %v7297 = vpack.c.b16 %v7249, %v7245
    %v7298 = vpack.c.b16 %v7250, %v7246
    %v7299 = vpack.c.b16 %v7255, %v7251
    %v7300 = vpack.c.b16 %v7256, %v7252
    %v7301 = vpack.c.b16 %v7257, %v7253
    %v7302 = vpack.c.b16 %v7258, %v7254
    %v7303 = vpack.c.b16 %v7263, %v7259
    %v7304 = vpack.c.b16 %v7264, %v7260
    %v7305 = vpack.c.b16 %v7265, %v7261
    %v7306 = vpack.c.b16 %v7266, %v7262
    %v7307 = vpack.c.b16 %v7271, %v7267
    %v7308 = vpack.c.b16 %v7272, %v7268
    %v7309 = vpack.c.b16 %v7273, %v7269
    %v7310 = vpack.c.b16 %v7274, %v7270
    %v7311 = vpack.c.b16 %v7279, %v7275
    %v7312 = vpack.c.b16 %v7280, %v7276
    %v7313 = vpack.c.b16 %v7281, %v7277
    %v7314 = vpack.c.b16 %v7282, %v7278
    %7347 = vmatpush.bf16.msra.mxu0 %v7311
    %7348 = vmatpush.bf16.msra.mxu0 %v7307
    %7349 = vmatpush.bf16.msra.mxu0 %v7303
    %7350 = vmatpush.bf16.msra.mxu0 %v7299
    %7351 = vmatpush.bf16.msra.mxu0 %v7295
    %7352 = vmatpush.bf16.msra.mxu0 %v7291
    %7353 = vmatpush.bf16.msra.mxu0 %v7287
    %7354 = vmatpush.bf16.msra.mxu0 %v7283
    %7355 = vmatmul.bf16.gmra.mxu0 %v7154
    %v7356 = vpop.f32.mrf.mxu0
    %v7357 = vadd.f32 0.0, %v7356
    %v7358 = vpop.f32.mrf.mxu0
    %7359 = vdwg.mxu0
    %7360 = vmatpush.bf16.msra.mxu0 %v7312
    %7361 = vmatpush.bf16.msra.mxu0 %v7308
    %7362 = vmatpush.bf16.msra.mxu0 %v7304
    %7363 = vmatpush.bf16.msra.mxu0 %v7300
    %7364 = vmatpush.bf16.msra.mxu0 %v7296
    %7365 = vmatpush.bf16.msra.mxu0 %v7292
    %7366 = vmatpush.bf16.msra.mxu0 %v7288
    %7367 = vmatpush.bf16.msra.mxu0 %v7284
    %7368 = vmatmul.bf16.gmra.mxu0 %v7154
    %v7369 = vpop.f32.mrf.mxu0
    %v7370 = vadd.f32 0.0, %v7369
    %v7371 = vpop.f32.mrf.mxu0
    %7372 = vdwg.mxu0
    %7373 = vmatpush.bf16.msra.mxu0 %v7313
    %7374 = vmatpush.bf16.msra.mxu0 %v7309
    %7375 = vmatpush.bf16.msra.mxu0 %v7305
    %7376 = vmatpush.bf16.msra.mxu0 %v7301
    %7377 = vmatpush.bf16.msra.mxu0 %v7297
    %7378 = vmatpush.bf16.msra.mxu0 %v7293
    %7379 = vmatpush.bf16.msra.mxu0 %v7289
    %7380 = vmatpush.bf16.msra.mxu0 %v7285
    %7381 = vmatmul.bf16.gmra.mxu0 %v7154
    %v7382 = vpop.f32.mrf.mxu0
    %v7383 = vadd.f32 0.0, %v7382
    %v7384 = vpop.f32.mrf.mxu0
    %7385 = vdwg.mxu0
    %7386 = vmatpush.bf16.msra.mxu0 %v7314
    %7387 = vmatpush.bf16.msra.mxu0 %v7310
    %7388 = vmatpush.bf16.msra.mxu0 %v7306
    %7389 = vmatpush.bf16.msra.mxu0 %v7302
    %7390 = vmatpush.bf16.msra.mxu0 %v7298
    %7391 = vmatpush.bf16.msra.mxu0 %v7294
    %7392 = vmatpush.bf16.msra.mxu0 %v7290
    %7393 = vmatpush.bf16.msra.mxu0 %v7286
    %7394 = vmatmul.bf16.gmra.mxu0 %v7154
    %v7395 = vpop.f32.mrf.mxu0
    %v7396 = vadd.f32 0.0, %v7395
    %v7397 = vpop.f32.mrf.mxu0
    %7398 = vdwg.mxu0
    %v7399 = vadd.f32 %v7150, %v7357
    %v7400 = vadd.f32 %v7151, %v7370
    %v7401 = vadd.f32 %v7152, %v7383
    %v7402 = vadd.f32 %v7153, %v7396
    %v7403 = vadd.f32 %v7399, %v7400
    %v7404 = vadd.f32 %v7403, %v7401
    %v7405 = vadd.f32 %v7404, %v7402
    %7406 = vadd.xlane.f32.xlu0 %v7405
    %v7407 = vpop.xlane.xlu0 %7406
    %v7408 = vmul.f32 %v7407, %v1078
    %v7409 = vmul.f32 %v7399, %v7399
    %v7410 = vmul.f32 %v7400, %v7400
    %v7411 = vmul.f32 %v7401, %v7401
    %v7412 = vmul.f32 %v7402, %v7402
    %v7413 = vadd.f32 %v7409, %v7410
    %v7414 = vadd.f32 %v7413, %v7411
    %v7415 = vadd.f32 %v7414, %v7412
    %7416 = vadd.xlane.f32.xlu0 %v7415
    %v7417 = vpop.xlane.xlu0 %7416
    %v7418 = vmul.f32 %v7417, %v1078
    %v7419 = vmul.f32 %v7408, %v7408
    %v7420 = vsub.f32 %v7418, %v7419
    %v7421 = vsub.f32 %v7399, %v7408
    %v7422 = vsub.f32 %v7400, %v7408
    %v7423 = vsub.f32 %v7401, %v7408
    %v7424 = vsub.f32 %v7402, %v7408
    %v7425 = vadd.f32 %v7420, 0.001
    %v7426 = vrsqrt.pop %v7425
    %v7427 = vmul.f32 %v7426, %v7425
    %v7428 = vmul.f32 %v7427, %v7426
    %v7429 = vmul.f32 0.5, %v7428
    %v7430 = vsub.f32 1.5, %v7429
    %v7431 = vmul.f32 %v7426, %v7430
    %vm7432 = vweird.f32 %v7425
    %vm7433 = vweird.f32 %v7426
    %vm7434 = vmor %vm7432, %vm7433
    %v7435 = vsel %vm7434, %v7426, %v7431
    %v7436 = vmul.f32 %v7421, %v7435
    %v7437 = vmul.f32 %v7422, %v7435
    %v7438 = vmul.f32 %v7423, %v7435
    %v7439 = vmul.f32 %v7424, %v7435
    %v7440 = vmul.f32 %v7436, %v6262
    %v7441 = vmul.f32 %v7437, %v6263
    %v7442 = vmul.f32 %v7438, %v6264
    %v7443 = vmul.f32 %v7439, %v6265
    %v7444 = vadd.f32 %v7440, %v6278
    %v7445 = vadd.f32 %v7441, %v6279
    %v7446 = vadd.f32 %v7442, %v6280
    %v7447 = vadd.f32 %v7443, %v6281
    %v7448 = vxor.u32 %v7444, 2147483648
    %v7449 = vxor.u32 %v7445, 2147483648
    %v7450 = vxor.u32 %v7446, 2147483648
    %v7451 = vmul.f32 %v7448, 1.442695
    %v7452 = vpow.pop %v7451
    %v7453 = vmul.f32 %v7449, 1.442695
    %v7454 = vpow.pop %v7453
    %v7455 = vmul.f32 %v7450, 1.442695
    %v7456 = vpow.pop %v7455
    %v7457 = vadd.f32 %v7452, 1.0
    %v7458 = vadd.f32 %v7454, 1.0
    %v7459 = vadd.f32 %v7456, 1.0
    %v7460 = vrcp.pop %v7457
    %v7461 = vmul.f32 %v7457, %v7460
    %v7462 = vsub.f32 1.0, %v7461
    %v7463 = vmul.f32 %v7460, %v7462
    %v7464 = vadd.f32 %v7460, %v7463
    %vm7465 = vweird.f32 %v7457
    %vm7466 = vweird.f32 %v7460
    %vm7467 = vmor %vm7465, %vm7466
    %v7468 = vsel %vm7467, %v7460, %v7464
    %v7469 = vand.u32 2147483647, %v7457
    %vm7470 = vcmp.eq.f32.partialorder %v7469, 8.507059e+37
    %v7471 = vand.u32 %v7457, 2147483648
    %v7472 = vor.u32 1.1754944e-38, %v7471
    %v7473 = vsel %vm7470, %v7472, %v7468
    %v7474 = vmul.f32 1.0, %v7473
    %v7475 = vrcp.pop %v7458
    %v7476 = vmul.f32 %v7458, %v7475
    %v7477 = vsub.f32 1.0, %v7476
    %v7478 = vmul.f32 %v7475, %v7477
    %v7479 = vadd.f32 %v7475, %v7478
    %vm7480 = vweird.f32 %v7458
    %vm7481 = vweird.f32 %v7475
    %vm7482 = vmor %vm7480, %vm7481
    %v7483 = vsel %vm7482, %v7475, %v7479
    %v7484 = vand.u32 2147483647, %v7458
    %vm7485 = vcmp.eq.f32.partialorder %v7484, 8.507059e+37
    %v7486 = vand.u32 %v7458, 2147483648
    %v7487 = vor.u32 1.1754944e-38, %v7486
    %v7488 = vsel %vm7485, %v7487, %v7483
    %v7489 = vmul.f32 1.0, %v7488
    %v7490 = vrcp.pop %v7459
    %v7491 = vmul.f32 %v7459, %v7490
    %v7492 = vsub.f32 1.0, %v7491
    %v7493 = vmul.f32 %v7490, %v7492
    %v7494 = vadd.f32 %v7490, %v7493
    %vm7495 = vweird.f32 %v7459
    %vm7496 = vweird.f32 %v7490
    %vm7497 = vmor %vm7495, %vm7496
    %v7498 = vsel %vm7497, %v7490, %v7494
    %v7499 = vand.u32 2147483647, %v7459
    %vm7500 = vcmp.eq.f32.partialorder %v7499, 8.507059e+37
    %v7501 = vand.u32 %v7459, 2147483648
    %v7502 = vor.u32 1.1754944e-38, %v7501
    %v7503 = vsel %vm7500, %v7502, %v7498
    %v7504 = vmul.f32 1.0, %v7503
    %v7505 = vtanh.pop %v7447
    %v7506 = vmul.f32 %v7489, %v7145
    %v7507 = vmul.f32 %v7474, %v7505
    %v7508 = vadd.f32 %v7506, %v7507
    %7509 = vadd.xlane.f32.xlu0 %v7508
    %v7510 = vpop.xlane.xlu0 %7509
    %v7511 = vmul.f32 %v7510, %v268
    %v7512 = vmul.f32 %v7508, %v7508
    %7513 = vadd.xlane.f32.xlu0 %v7512
    %v7514 = vpop.xlane.xlu0 %7513
    %v7515 = vmul.f32 %v7514, %v268
    %v7516 = vmul.f32 %v7511, %v7511
    %v7517 = vsub.f32 %v7515, %v7516
    %v7518 = vsub.f32 %v7508, %v7511
    %v7519 = vadd.f32 %v7517, 0.001
    %v7520 = vrsqrt.pop %v7519
    %v7521 = vmul.f32 %v7520, %v7519
    %v7522 = vmul.f32 %v7521, %v7520
    %v7523 = vmul.f32 0.5, %v7522
    %v7524 = vsub.f32 1.5, %v7523
    %v7525 = vmul.f32 %v7520, %v7524
    %vm7526 = vweird.f32 %v7519
    %vm7527 = vweird.f32 %v7520
    %vm7528 = vmor %vm7526, %vm7527
    %v7529 = vsel %vm7528, %v7520, %v7525
    %v7530 = vmul.f32 %v7518, %v7529
    %v7531 = vmul.f32 %v7530, %v6369
    %v7532 = vadd.f32 %v7531, %v6371
    %v7533 = vtanh.pop %v7532
    %v7534 = vmul.f32 %v7504, %v7533
    %s7535 = scalar_lea.vmem [#allocation2], 24
    %7536 = vst [vmem:[%s7535] sm:$0xff] %v7534
    %v7537 = vld [vmem:[%s4033] sm:$0xff]
    %v7538 = vld [vmem:[%s4033 + $0x8] sm:$0xff]
    %v7539 = vld [vmem:[%s4033 + $0x10] sm:$0xff]
    %v7540 = vld [vmem:[%s4033 + $0x18] sm:$0xff]
    %v7541 = vpack.c.bf16 %v7534, %v7534
    %v7542 = vld [vmem:[%s5967] sm:$0xff]
    %v7543 = vld [vmem:[%s5967 + $0x8] sm:$0xff]
    %v7544 = vld [vmem:[%s5967 + $0x10] sm:$0xff]
    %v7545 = vld [vmem:[%s5967 + $0x18] sm:$0xff]
    %v7546 = vld [vmem:[%s5967 + $0x20] sm:$0xff]
    %v7547 = vld [vmem:[%s5967 + $0x28] sm:$0xff]
    %v7548 = vld [vmem:[%s5967 + $0x30] sm:$0xff]
    %v7549 = vld [vmem:[%s5967 + $0x38] sm:$0xff]
    %v7550 = vld [vmem:[%s5967 + $0x40] sm:$0xff]
    %v7551 = vld [vmem:[%s5967 + $0x48] sm:$0xff]
    %v7552 = vld [vmem:[%s5967 + $0x50] sm:$0xff]
    %v7553 = vld [vmem:[%s5967 + $0x58] sm:$0xff]
    %v7554 = vld [vmem:[%s5967 + $0x60] sm:$0xff]
    %v7555 = vld [vmem:[%s5967 + $0x68] sm:$0xff]
    %v7556 = vld [vmem:[%s5967 + $0x70] sm:$0xff]
    %v7557 = vld [vmem:[%s5967 + $0x78] sm:$0xff]
    %v7558 = vld [vmem:[%s5967 + $0x80] sm:$0xff]
    %v7559 = vld [vmem:[%s5967 + $0x88] sm:$0xff]
    %v7560 = vld [vmem:[%s5967 + $0x90] sm:$0xff]
    %v7561 = vld [vmem:[%s5967 + $0x98] sm:$0xff]
    %v7562 = vld [vmem:[%s5967 + $0xa0] sm:$0xff]
    %v7563 = vld [vmem:[%s5967 + $0xa8] sm:$0xff]
    %v7564 = vld [vmem:[%s5967 + $0xb0] sm:$0xff]
    %v7565 = vld [vmem:[%s5967 + $0xb8] sm:$0xff]
    %v7566 = vld [vmem:[%s5967 + $0xc0] sm:$0xff]
    %v7567 = vld [vmem:[%s5967 + $0xc8] sm:$0xff]
    %v7568 = vld [vmem:[%s5967 + $0xd0] sm:$0xff]
    %v7569 = vld [vmem:[%s5967 + $0xd8] sm:$0xff]
    %v7570 = vld [vmem:[%s5967 + $0xe0] sm:$0xff]
    %v7571 = vld [vmem:[%s5967 + $0xe8] sm:$0xff]
    %v7572 = vld [vmem:[%s5967 + $0xf0] sm:$0xff]
    %v7573 = vld [vmem:[%s5967 + $0xf8] sm:$0xff]
    %v7606 = vunpack.c.l.b16 %v7542
    %v7607 = vunpack.c.h.b16 %v7542
    %v7608 = vunpack.c.l.b16 %v7543
    %v7609 = vunpack.c.h.b16 %v7543
    %v7610 = vunpack.c.l.b16 %v7544
    %v7611 = vunpack.c.h.b16 %v7544
    %v7612 = vunpack.c.l.b16 %v7545
    %v7613 = vunpack.c.h.b16 %v7545
    %v7614 = vunpack.c.l.b16 %v7546
    %v7615 = vunpack.c.h.b16 %v7546
    %v7616 = vunpack.c.l.b16 %v7547
    %v7617 = vunpack.c.h.b16 %v7547
    %v7618 = vunpack.c.l.b16 %v7548
    %v7619 = vunpack.c.h.b16 %v7548
    %v7620 = vunpack.c.l.b16 %v7549
    %v7621 = vunpack.c.h.b16 %v7549
    %v7622 = vunpack.c.l.b16 %v7550
    %v7623 = vunpack.c.h.b16 %v7550
    %v7624 = vunpack.c.l.b16 %v7551
    %v7625 = vunpack.c.h.b16 %v7551
    %v7626 = vunpack.c.l.b16 %v7552
    %v7627 = vunpack.c.h.b16 %v7552
    %v7628 = vunpack.c.l.b16 %v7553
    %v7629 = vunpack.c.h.b16 %v7553
    %v7630 = vunpack.c.l.b16 %v7554
    %v7631 = vunpack.c.h.b16 %v7554
    %v7632 = vunpack.c.l.b16 %v7555
    %v7633 = vunpack.c.h.b16 %v7555
    %v7634 = vunpack.c.l.b16 %v7556
    %v7635 = vunpack.c.h.b16 %v7556
    %v7636 = vunpack.c.l.b16 %v7557
    %v7637 = vunpack.c.h.b16 %v7557
    %v7638 = vunpack.c.l.b16 %v7558
    %v7639 = vunpack.c.h.b16 %v7558
    %v7640 = vunpack.c.l.b16 %v7559
    %v7641 = vunpack.c.h.b16 %v7559
    %v7642 = vunpack.c.l.b16 %v7560
    %v7643 = vunpack.c.h.b16 %v7560
    %v7644 = vunpack.c.l.b16 %v7561
    %v7645 = vunpack.c.h.b16 %v7561
    %v7646 = vunpack.c.l.b16 %v7562
    %v7647 = vunpack.c.h.b16 %v7562
    %v7648 = vunpack.c.l.b16 %v7563
    %v7649 = vunpack.c.h.b16 %v7563
    %v7650 = vunpack.c.l.b16 %v7564
    %v7651 = vunpack.c.h.b16 %v7564
    %v7652 = vunpack.c.l.b16 %v7565
    %v7653 = vunpack.c.h.b16 %v7565
    %v7654 = vunpack.c.l.b16 %v7566
    %v7655 = vunpack.c.h.b16 %v7566
    %v7656 = vunpack.c.l.b16 %v7567
    %v7657 = vunpack.c.h.b16 %v7567
    %v7658 = vunpack.c.l.b16 %v7568
    %v7659 = vunpack.c.h.b16 %v7568
    %v7660 = vunpack.c.l.b16 %v7569
    %v7661 = vunpack.c.h.b16 %v7569
    %v7662 = vunpack.c.l.b16 %v7570
    %v7663 = vunpack.c.h.b16 %v7570
    %v7664 = vunpack.c.l.b16 %v7571
    %v7665 = vunpack.c.h.b16 %v7571
    %v7666 = vunpack.c.l.b16 %v7572
    %v7667 = vunpack.c.h.b16 %v7572
    %v7668 = vunpack.c.l.b16 %v7573
    %v7669 = vunpack.c.h.b16 %v7573
    %v7670 = vpack.c.b16 %v7610, %v7606
    %v7671 = vpack.c.b16 %v7611, %v7607
    %v7672 = vpack.c.b16 %v7612, %v7608
    %v7673 = vpack.c.b16 %v7613, %v7609
    %v7674 = vpack.c.b16 %v7618, %v7614
    %v7675 = vpack.c.b16 %v7619, %v7615
    %v7676 = vpack.c.b16 %v7620, %v7616
    %v7677 = vpack.c.b16 %v7621, %v7617
    %v7678 = vpack.c.b16 %v7626, %v7622
    %v7679 = vpack.c.b16 %v7627, %v7623
    %v7680 = vpack.c.b16 %v7628, %v7624
    %v7681 = vpack.c.b16 %v7629, %v7625
    %v7682 = vpack.c.b16 %v7634, %v7630
    %v7683 = vpack.c.b16 %v7635, %v7631
    %v7684 = vpack.c.b16 %v7636, %v7632
    %v7685 = vpack.c.b16 %v7637, %v7633
    %v7686 = vpack.c.b16 %v7642, %v7638
    %v7687 = vpack.c.b16 %v7643, %v7639
    %v7688 = vpack.c.b16 %v7644, %v7640
    %v7689 = vpack.c.b16 %v7645, %v7641
    %v7690 = vpack.c.b16 %v7650, %v7646
    %v7691 = vpack.c.b16 %v7651, %v7647
    %v7692 = vpack.c.b16 %v7652, %v7648
    %v7693 = vpack.c.b16 %v7653, %v7649
    %v7694 = vpack.c.b16 %v7658, %v7654
    %v7695 = vpack.c.b16 %v7659, %v7655
    %v7696 = vpack.c.b16 %v7660, %v7656
    %v7697 = vpack.c.b16 %v7661, %v7657
    %v7698 = vpack.c.b16 %v7666, %v7662
    %v7699 = vpack.c.b16 %v7667, %v7663
    %v7700 = vpack.c.b16 %v7668, %v7664
    %v7701 = vpack.c.b16 %v7669, %v7665
    %7734 = vmatpush.bf16.msra.mxu0 %v7698
    %7735 = vmatpush.bf16.msra.mxu0 %v7694
    %7736 = vmatpush.bf16.msra.mxu0 %v7690
    %7737 = vmatpush.bf16.msra.mxu0 %v7686
    %7738 = vmatpush.bf16.msra.mxu0 %v7682
    %7739 = vmatpush.bf16.msra.mxu0 %v7678
    %7740 = vmatpush.bf16.msra.mxu0 %v7674
    %7741 = vmatpush.bf16.msra.mxu0 %v7670
    %7742 = vmatmul.bf16.gmra.mxu0 %v7541
    %v7743 = vpop.f32.mrf.mxu0
    %v7744 = vadd.f32 0.0, %v7743
    %v7745 = vpop.f32.mrf.mxu0
    %7746 = vdwg.mxu0
    %7747 = vmatpush.bf16.msra.mxu0 %v7699
    %7748 = vmatpush.bf16.msra.mxu0 %v7695
    %7749 = vmatpush.bf16.msra.mxu0 %v7691
    %7750 = vmatpush.bf16.msra.mxu0 %v7687
    %7751 = vmatpush.bf16.msra.mxu0 %v7683
    %7752 = vmatpush.bf16.msra.mxu0 %v7679
    %7753 = vmatpush.bf16.msra.mxu0 %v7675
    %7754 = vmatpush.bf16.msra.mxu0 %v7671
    %7755 = vmatmul.bf16.gmra.mxu0 %v7541
    %v7756 = vpop.f32.mrf.mxu0
    %v7757 = vadd.f32 0.0, %v7756
    %v7758 = vpop.f32.mrf.mxu0
    %7759 = vdwg.mxu0
    %7760 = vmatpush.bf16.msra.mxu0 %v7700
    %7761 = vmatpush.bf16.msra.mxu0 %v7696
    %7762 = vmatpush.bf16.msra.mxu0 %v7692
    %7763 = vmatpush.bf16.msra.mxu0 %v7688
    %7764 = vmatpush.bf16.msra.mxu0 %v7684
    %7765 = vmatpush.bf16.msra.mxu0 %v7680
    %7766 = vmatpush.bf16.msra.mxu0 %v7676
    %7767 = vmatpush.bf16.msra.mxu0 %v7672
    %7768 = vmatmul.bf16.gmra.mxu0 %v7541
    %v7769 = vpop.f32.mrf.mxu0
    %v7770 = vadd.f32 0.0, %v7769
    %v7771 = vpop.f32.mrf.mxu0
    %7772 = vdwg.mxu0
    %7773 = vmatpush.bf16.msra.mxu0 %v7701
    %7774 = vmatpush.bf16.msra.mxu0 %v7697
    %7775 = vmatpush.bf16.msra.mxu0 %v7693
    %7776 = vmatpush.bf16.msra.mxu0 %v7689
    %7777 = vmatpush.bf16.msra.mxu0 %v7685
    %7778 = vmatpush.bf16.msra.mxu0 %v7681
    %7779 = vmatpush.bf16.msra.mxu0 %v7677
    %7780 = vmatpush.bf16.msra.mxu0 %v7673
    %7781 = vmatmul.bf16.gmra.mxu0 %v7541
    %v7782 = vpop.f32.mrf.mxu0
    %v7783 = vadd.f32 0.0, %v7782
    %v7784 = vpop.f32.mrf.mxu0
    %7785 = vdwg.mxu0
    %v7786 = vadd.f32 %v7537, %v7744
    %v7787 = vadd.f32 %v7538, %v7757
    %v7788 = vadd.f32 %v7539, %v7770
    %v7789 = vadd.f32 %v7540, %v7783
    %v7790 = vadd.f32 %v7786, %v7787
    %v7791 = vadd.f32 %v7790, %v7788
    %v7792 = vadd.f32 %v7791, %v7789
    %7793 = vadd.xlane.f32.xlu0 %v7792
    %v7794 = vpop.xlane.xlu0 %7793
    %v7795 = vmul.f32 %v7794, %v1078
    %v7796 = vmul.f32 %v7786, %v7786
    %v7797 = vmul.f32 %v7787, %v7787
    %v7798 = vmul.f32 %v7788, %v7788
    %v7799 = vmul.f32 %v7789, %v7789
    %v7800 = vadd.f32 %v7796, %v7797
    %v7801 = vadd.f32 %v7800, %v7798
    %v7802 = vadd.f32 %v7801, %v7799
    %7803 = vadd.xlane.f32.xlu0 %v7802
    %v7804 = vpop.xlane.xlu0 %7803
    %v7805 = vmul.f32 %v7804, %v1078
    %v7806 = vmul.f32 %v7795, %v7795
    %v7807 = vsub.f32 %v7805, %v7806
    %v7808 = vsub.f32 %v7786, %v7795
    %v7809 = vsub.f32 %v7787, %v7795
    %v7810 = vsub.f32 %v7788, %v7795
    %v7811 = vsub.f32 %v7789, %v7795
    %v7812 = vadd.f32 %v7807, 0.001
    %v7813 = vrsqrt.pop %v7812
    %v7814 = vmul.f32 %v7813, %v7812
    %v7815 = vmul.f32 %v7814, %v7813
    %v7816 = vmul.f32 0.5, %v7815
    %v7817 = vsub.f32 1.5, %v7816
    %v7818 = vmul.f32 %v7813, %v7817
    %vm7819 = vweird.f32 %v7812
    %vm7820 = vweird.f32 %v7813
    %vm7821 = vmor %vm7819, %vm7820
    %v7822 = vsel %vm7821, %v7813, %v7818
    %v7823 = vmul.f32 %v7808, %v7822
    %v7824 = vmul.f32 %v7809, %v7822
    %v7825 = vmul.f32 %v7810, %v7822
    %v7826 = vmul.f32 %v7811, %v7822
    %v7827 = vmul.f32 %v7823, %v6262
    %v7828 = vmul.f32 %v7824, %v6263
    %v7829 = vmul.f32 %v7825, %v6264
    %v7830 = vmul.f32 %v7826, %v6265
    %v7831 = vadd.f32 %v7827, %v6278
    %v7832 = vadd.f32 %v7828, %v6279
    %v7833 = vadd.f32 %v7829, %v6280
    %v7834 = vadd.f32 %v7830, %v6281
    %v7835 = vxor.u32 %v7831, 2147483648
    %v7836 = vxor.u32 %v7832, 2147483648
    %v7837 = vxor.u32 %v7833, 2147483648
    %v7838 = vmul.f32 %v7835, 1.442695
    %v7839 = vpow.pop %v7838
    %v7840 = vmul.f32 %v7836, 1.442695
    %v7841 = vpow.pop %v7840
    %v7842 = vmul.f32 %v7837, 1.442695
    %v7843 = vpow.pop %v7842
    %v7844 = vadd.f32 %v7839, 1.0
    %v7845 = vadd.f32 %v7841, 1.0
    %v7846 = vadd.f32 %v7843, 1.0
    %v7847 = vrcp.pop %v7844
    %v7848 = vmul.f32 %v7844, %v7847
    %v7849 = vsub.f32 1.0, %v7848
    %v7850 = vmul.f32 %v7847, %v7849
    %v7851 = vadd.f32 %v7847, %v7850
    %vm7852 = vweird.f32 %v7844
    %vm7853 = vweird.f32 %v7847
    %vm7854 = vmor %vm7852, %vm7853
    %v7855 = vsel %vm7854, %v7847, %v7851
    %v7856 = vand.u32 2147483647, %v7844
    %vm7857 = vcmp.eq.f32.partialorder %v7856, 8.507059e+37
    %v7858 = vand.u32 %v7844, 2147483648
    %v7859 = vor.u32 1.1754944e-38, %v7858
    %v7860 = vsel %vm7857, %v7859, %v7855
    %v7861 = vmul.f32 1.0, %v7860
    %v7862 = vrcp.pop %v7845
    %v7863 = vmul.f32 %v7845, %v7862
    %v7864 = vsub.f32 1.0, %v7863
    %v7865 = vmul.f32 %v7862, %v7864
    %v7866 = vadd.f32 %v7862, %v7865
    %vm7867 = vweird.f32 %v7845
    %vm7868 = vweird.f32 %v7862
    %vm7869 = vmor %vm7867, %vm7868
    %v7870 = vsel %vm7869, %v7862, %v7866
    %v7871 = vand.u32 2147483647, %v7845
    %vm7872 = vcmp.eq.f32.partialorder %v7871, 8.507059e+37
    %v7873 = vand.u32 %v7845, 2147483648
    %v7874 = vor.u32 1.1754944e-38, %v7873
    %v7875 = vsel %vm7872, %v7874, %v7870
    %v7876 = vmul.f32 1.0, %v7875
    %v7877 = vrcp.pop %v7846
    %v7878 = vmul.f32 %v7846, %v7877
    %v7879 = vsub.f32 1.0, %v7878
    %v7880 = vmul.f32 %v7877, %v7879
    %v7881 = vadd.f32 %v7877, %v7880
    %vm7882 = vweird.f32 %v7846
    %vm7883 = vweird.f32 %v7877
    %vm7884 = vmor %vm7882, %vm7883
    %v7885 = vsel %vm7884, %v7877, %v7881
    %v7886 = vand.u32 2147483647, %v7846
    %vm7887 = vcmp.eq.f32.partialorder %v7886, 8.507059e+37
    %v7888 = vand.u32 %v7846, 2147483648
    %v7889 = vor.u32 1.1754944e-38, %v7888
    %v7890 = vsel %vm7887, %v7889, %v7885
    %v7891 = vmul.f32 1.0, %v7890
    %v7892 = vtanh.pop %v7834
    %v7893 = vmul.f32 %v7876, %v7532
    %v7894 = vmul.f32 %v7861, %v7892
    %v7895 = vadd.f32 %v7893, %v7894
    %7896 = vadd.xlane.f32.xlu0 %v7895
    %v7897 = vpop.xlane.xlu0 %7896
    %v7898 = vmul.f32 %v7897, %v268
    %v7899 = vmul.f32 %v7895, %v7895
    %7900 = vadd.xlane.f32.xlu0 %v7899
    %v7901 = vpop.xlane.xlu0 %7900
    %v7902 = vmul.f32 %v7901, %v268
    %v7903 = vmul.f32 %v7898, %v7898
    %v7904 = vsub.f32 %v7902, %v7903
    %v7905 = vsub.f32 %v7895, %v7898
    %v7906 = vadd.f32 %v7904, 0.001
    %v7907 = vrsqrt.pop %v7906
    %v7908 = vmul.f32 %v7907, %v7906
    %v7909 = vmul.f32 %v7908, %v7907
    %v7910 = vmul.f32 0.5, %v7909
    %v7911 = vsub.f32 1.5, %v7910
    %v7912 = vmul.f32 %v7907, %v7911
    %vm7913 = vweird.f32 %v7906
    %vm7914 = vweird.f32 %v7907
    %vm7915 = vmor %vm7913, %vm7914
    %v7916 = vsel %vm7915, %v7907, %v7912
    %v7917 = vmul.f32 %v7905, %v7916
    %v7918 = vmul.f32 %v7917, %v6369
    %v7919 = vadd.f32 %v7918, %v6371
    %v7920 = vtanh.pop %v7919
    %v7921 = vmul.f32 %v7891, %v7920
    %s7922 = scalar_lea.vmem [#allocation2], 32
    %7923 = vst [vmem:[%s7922] sm:$0xff] %v7921
    %v7924 = vld [vmem:[%s4671] sm:$0xff]
    %v7925 = vld [vmem:[%s4671 + $0x8] sm:$0xff]
    %v7926 = vld [vmem:[%s4671 + $0x10] sm:$0xff]
    %v7927 = vld [vmem:[%s4671 + $0x18] sm:$0xff]
    %v7928 = vpack.c.bf16 %v7921, %v7921
    %v7929 = vld [vmem:[%s5967] sm:$0xff]
    %v7930 = vld [vmem:[%s5967 + $0x8] sm:$0xff]
    %v7931 = vld [vmem:[%s5967 + $0x10] sm:$0xff]
    %v7932 = vld [vmem:[%s5967 + $0x18] sm:$0xff]
    %v7933 = vld [vmem:[%s5967 + $0x20] sm:$0xff]
    %v7934 = vld [vmem:[%s5967 + $0x28] sm:$0xff]
    %v7935 = vld [vmem:[%s5967 + $0x30] sm:$0xff]
    %v7936 = vld [vmem:[%s5967 + $0x38] sm:$0xff]
    %v7937 = vld [vmem:[%s5967 + $0x40] sm:$0xff]
    %v7938 = vld [vmem:[%s5967 + $0x48] sm:$0xff]
    %v7939 = vld [vmem:[%s5967 + $0x50] sm:$0xff]
    %v7940 = vld [vmem:[%s5967 + $0x58] sm:$0xff]
    %v7941 = vld [vmem:[%s5967 + $0x60] sm:$0xff]
    %v7942 = vld [vmem:[%s5967 + $0x68] sm:$0xff]
    %v7943 = vld [vmem:[%s5967 + $0x70] sm:$0xff]
    %v7944 = vld [vmem:[%s5967 + $0x78] sm:$0xff]
    %v7945 = vld [vmem:[%s5967 + $0x80] sm:$0xff]
    %v7946 = vld [vmem:[%s5967 + $0x88] sm:$0xff]
    %v7947 = vld [vmem:[%s5967 + $0x90] sm:$0xff]
    %v7948 = vld [vmem:[%s5967 + $0x98] sm:$0xff]
    %v7949 = vld [vmem:[%s5967 + $0xa0] sm:$0xff]
    %v7950 = vld [vmem:[%s5967 + $0xa8] sm:$0xff]
    %v7951 = vld [vmem:[%s5967 + $0xb0] sm:$0xff]
    %v7952 = vld [vmem:[%s5967 + $0xb8] sm:$0xff]
    %v7953 = vld [vmem:[%s5967 + $0xc0] sm:$0xff]
    %v7954 = vld [vmem:[%s5967 + $0xc8] sm:$0xff]
    %v7955 = vld [vmem:[%s5967 + $0xd0] sm:$0xff]
    %v7956 = vld [vmem:[%s5967 + $0xd8] sm:$0xff]
    %v7957 = vld [vmem:[%s5967 + $0xe0] sm:$0xff]
    %v7958 = vld [vmem:[%s5967 + $0xe8] sm:$0xff]
    %v7959 = vld [vmem:[%s5967 + $0xf0] sm:$0xff]
    %v7960 = vld [vmem:[%s5967 + $0xf8] sm:$0xff]
    %v7993 = vunpack.c.l.b16 %v7929
    %v7994 = vunpack.c.h.b16 %v7929
    %v7995 = vunpack.c.l.b16 %v7930
    %v7996 = vunpack.c.h.b16 %v7930
    %v7997 = vunpack.c.l.b16 %v7931
    %v7998 = vunpack.c.h.b16 %v7931
    %v7999 = vunpack.c.l.b16 %v7932
    %v8000 = vunpack.c.h.b16 %v7932
    %v8001 = vunpack.c.l.b16 %v7933
    %v8002 = vunpack.c.h.b16 %v7933
    %v8003 = vunpack.c.l.b16 %v7934
    %v8004 = vunpack.c.h.b16 %v7934
    %v8005 = vunpack.c.l.b16 %v7935
    %v8006 = vunpack.c.h.b16 %v7935
    %v8007 = vunpack.c.l.b16 %v7936
    %v8008 = vunpack.c.h.b16 %v7936
    %v8009 = vunpack.c.l.b16 %v7937
    %v8010 = vunpack.c.h.b16 %v7937
    %v8011 = vunpack.c.l.b16 %v7938
    %v8012 = vunpack.c.h.b16 %v7938
    %v8013 = vunpack.c.l.b16 %v7939
    %v8014 = vunpack.c.h.b16 %v7939
    %v8015 = vunpack.c.l.b16 %v7940
    %v8016 = vunpack.c.h.b16 %v7940
    %v8017 = vunpack.c.l.b16 %v7941
    %v8018 = vunpack.c.h.b16 %v7941
    %v8019 = vunpack.c.l.b16 %v7942
    %v8020 = vunpack.c.h.b16 %v7942
    %v8021 = vunpack.c.l.b16 %v7943
    %v8022 = vunpack.c.h.b16 %v7943
    %v8023 = vunpack.c.l.b16 %v7944
    %v8024 = vunpack.c.h.b16 %v7944
    %v8025 = vunpack.c.l.b16 %v7945
    %v8026 = vunpack.c.h.b16 %v7945
    %v8027 = vunpack.c.l.b16 %v7946
    %v8028 = vunpack.c.h.b16 %v7946
    %v8029 = vunpack.c.l.b16 %v7947
    %v8030 = vunpack.c.h.b16 %v7947
    %v8031 = vunpack.c.l.b16 %v7948
    %v8032 = vunpack.c.h.b16 %v7948
    %v8033 = vunpack.c.l.b16 %v7949
    %v8034 = vunpack.c.h.b16 %v7949
    %v8035 = vunpack.c.l.b16 %v7950
    %v8036 = vunpack.c.h.b16 %v7950
    %v8037 = vunpack.c.l.b16 %v7951
    %v8038 = vunpack.c.h.b16 %v7951
    %v8039 = vunpack.c.l.b16 %v7952
    %v8040 = vunpack.c.h.b16 %v7952
    %v8041 = vunpack.c.l.b16 %v7953
    %v8042 = vunpack.c.h.b16 %v7953
    %v8043 = vunpack.c.l.b16 %v7954
    %v8044 = vunpack.c.h.b16 %v7954
    %v8045 = vunpack.c.l.b16 %v7955
    %v8046 = vunpack.c.h.b16 %v7955
    %v8047 = vunpack.c.l.b16 %v7956
    %v8048 = vunpack.c.h.b16 %v7956
    %v8049 = vunpack.c.l.b16 %v7957
    %v8050 = vunpack.c.h.b16 %v7957
    %v8051 = vunpack.c.l.b16 %v7958
    %v8052 = vunpack.c.h.b16 %v7958
    %v8053 = vunpack.c.l.b16 %v7959
    %v8054 = vunpack.c.h.b16 %v7959
    %v8055 = vunpack.c.l.b16 %v7960
    %v8056 = vunpack.c.h.b16 %v7960
    %v8057 = vpack.c.b16 %v7997, %v7993
    %v8058 = vpack.c.b16 %v7998, %v7994
    %v8059 = vpack.c.b16 %v7999, %v7995
    %v8060 = vpack.c.b16 %v8000, %v7996
    %v8061 = vpack.c.b16 %v8005, %v8001
    %v8062 = vpack.c.b16 %v8006, %v8002
    %v8063 = vpack.c.b16 %v8007, %v8003
    %v8064 = vpack.c.b16 %v8008, %v8004
    %v8065 = vpack.c.b16 %v8013, %v8009
    %v8066 = vpack.c.b16 %v8014, %v8010
    %v8067 = vpack.c.b16 %v8015, %v8011
    %v8068 = vpack.c.b16 %v8016, %v8012
    %v8069 = vpack.c.b16 %v8021, %v8017
    %v8070 = vpack.c.b16 %v8022, %v8018
    %v8071 = vpack.c.b16 %v8023, %v8019
    %v8072 = vpack.c.b16 %v8024, %v8020
    %v8073 = vpack.c.b16 %v8029, %v8025
    %v8074 = vpack.c.b16 %v8030, %v8026
    %v8075 = vpack.c.b16 %v8031, %v8027
    %v8076 = vpack.c.b16 %v8032, %v8028
    %v8077 = vpack.c.b16 %v8037, %v8033
    %v8078 = vpack.c.b16 %v8038, %v8034
    %v8079 = vpack.c.b16 %v8039, %v8035
    %v8080 = vpack.c.b16 %v8040, %v8036
    %v8081 = vpack.c.b16 %v8045, %v8041
    %v8082 = vpack.c.b16 %v8046, %v8042
    %v8083 = vpack.c.b16 %v8047, %v8043
    %v8084 = vpack.c.b16 %v8048, %v8044
    %v8085 = vpack.c.b16 %v8053, %v8049
    %v8086 = vpack.c.b16 %v8054, %v8050
    %v8087 = vpack.c.b16 %v8055, %v8051
    %v8088 = vpack.c.b16 %v8056, %v8052
    %8121 = vmatpush.bf16.msra.mxu0 %v8085
    %8122 = vmatpush.bf16.msra.mxu0 %v8081
    %8123 = vmatpush.bf16.msra.mxu0 %v8077
    %8124 = vmatpush.bf16.msra.mxu0 %v8073
    %8125 = vmatpush.bf16.msra.mxu0 %v8069
    %8126 = vmatpush.bf16.msra.mxu0 %v8065
    %8127 = vmatpush.bf16.msra.mxu0 %v8061
    %8128 = vmatpush.bf16.msra.mxu0 %v8057
    %8129 = vmatmul.bf16.gmra.mxu0 %v7928
    %v8130 = vpop.f32.mrf.mxu0
    %v8131 = vadd.f32 0.0, %v8130
    %v8132 = vpop.f32.mrf.mxu0
    %8133 = vdwg.mxu0
    %8134 = vmatpush.bf16.msra.mxu0 %v8086
    %8135 = vmatpush.bf16.msra.mxu0 %v8082
    %8136 = vmatpush.bf16.msra.mxu0 %v8078
    %8137 = vmatpush.bf16.msra.mxu0 %v8074
    %8138 = vmatpush.bf16.msra.mxu0 %v8070
    %8139 = vmatpush.bf16.msra.mxu0 %v8066
    %8140 = vmatpush.bf16.msra.mxu0 %v8062
    %8141 = vmatpush.bf16.msra.mxu0 %v8058
    %8142 = vmatmul.bf16.gmra.mxu0 %v7928
    %v8143 = vpop.f32.mrf.mxu0
    %v8144 = vadd.f32 0.0, %v8143
    %v8145 = vpop.f32.mrf.mxu0
    %8146 = vdwg.mxu0
    %8147 = vmatpush.bf16.msra.mxu0 %v8087
    %8148 = vmatpush.bf16.msra.mxu0 %v8083
    %8149 = vmatpush.bf16.msra.mxu0 %v8079
    %8150 = vmatpush.bf16.msra.mxu0 %v8075
    %8151 = vmatpush.bf16.msra.mxu0 %v8071
    %8152 = vmatpush.bf16.msra.mxu0 %v8067
    %8153 = vmatpush.bf16.msra.mxu0 %v8063
    %8154 = vmatpush.bf16.msra.mxu0 %v8059
    %8155 = vmatmul.bf16.gmra.mxu0 %v7928
    %v8156 = vpop.f32.mrf.mxu0
    %v8157 = vadd.f32 0.0, %v8156
    %v8158 = vpop.f32.mrf.mxu0
    %8159 = vdwg.mxu0
    %8160 = vmatpush.bf16.msra.mxu0 %v8088
    %8161 = vmatpush.bf16.msra.mxu0 %v8084
    %8162 = vmatpush.bf16.msra.mxu0 %v8080
    %8163 = vmatpush.bf16.msra.mxu0 %v8076
    %8164 = vmatpush.bf16.msra.mxu0 %v8072
    %8165 = vmatpush.bf16.msra.mxu0 %v8068
    %8166 = vmatpush.bf16.msra.mxu0 %v8064
    %8167 = vmatpush.bf16.msra.mxu0 %v8060
    %8168 = vmatmul.bf16.gmra.mxu0 %v7928
    %v8169 = vpop.f32.mrf.mxu0
    %v8170 = vadd.f32 0.0, %v8169
    %v8171 = vpop.f32.mrf.mxu0
    %8172 = vdwg.mxu0
    %v8173 = vadd.f32 %v7924, %v8131
    %v8174 = vadd.f32 %v7925, %v8144
    %v8175 = vadd.f32 %v7926, %v8157
    %v8176 = vadd.f32 %v7927, %v8170
    %v8177 = vadd.f32 %v8173, %v8174
    %v8178 = vadd.f32 %v8177, %v8175
    %v8179 = vadd.f32 %v8178, %v8176
    %8180 = vadd.xlane.f32.xlu0 %v8179
    %v8181 = vpop.xlane.xlu0 %8180
    %v8182 = vmul.f32 %v8181, %v1078
    %v8183 = vmul.f32 %v8173, %v8173
    %v8184 = vmul.f32 %v8174, %v8174
    %v8185 = vmul.f32 %v8175, %v8175
    %v8186 = vmul.f32 %v8176, %v8176
    %v8187 = vadd.f32 %v8183, %v8184
    %v8188 = vadd.f32 %v8187, %v8185
    %v8189 = vadd.f32 %v8188, %v8186
    %8190 = vadd.xlane.f32.xlu0 %v8189
    %v8191 = vpop.xlane.xlu0 %8190
    %v8192 = vmul.f32 %v8191, %v1078
    %v8193 = vmul.f32 %v8182, %v8182
    %v8194 = vsub.f32 %v8192, %v8193
    %v8195 = vsub.f32 %v8173, %v8182
    %v8196 = vsub.f32 %v8174, %v8182
    %v8197 = vsub.f32 %v8175, %v8182
    %v8198 = vsub.f32 %v8176, %v8182
    %v8199 = vadd.f32 %v8194, 0.001
    %v8200 = vrsqrt.pop %v8199
    %v8201 = vmul.f32 %v8200, %v8199
    %v8202 = vmul.f32 %v8201, %v8200
    %v8203 = vmul.f32 0.5, %v8202
    %v8204 = vsub.f32 1.5, %v8203
    %v8205 = vmul.f32 %v8200, %v8204
    %vm8206 = vweird.f32 %v8199
    %vm8207 = vweird.f32 %v8200
    %vm8208 = vmor %vm8206, %vm8207
    %v8209 = vsel %vm8208, %v8200, %v8205
    %v8210 = vmul.f32 %v8195, %v8209
    %v8211 = vmul.f32 %v8196, %v8209
    %v8212 = vmul.f32 %v8197, %v8209
    %v8213 = vmul.f32 %v8198, %v8209
    %v8214 = vmul.f32 %v8210, %v6262
    %v8215 = vmul.f32 %v8211, %v6263
    %v8216 = vmul.f32 %v8212, %v6264
    %v8217 = vmul.f32 %v8213, %v6265
    %v8218 = vadd.f32 %v8214, %v6278
    %v8219 = vadd.f32 %v8215, %v6279
    %v8220 = vadd.f32 %v8216, %v6280
    %v8221 = vadd.f32 %v8217, %v6281
    %v8222 = vxor.u32 %v8218, 2147483648
    %v8223 = vxor.u32 %v8219, 2147483648
    %v8224 = vxor.u32 %v8220, 2147483648
    %v8225 = vmul.f32 %v8222, 1.442695
    %v8226 = vpow.pop %v8225
    %v8227 = vmul.f32 %v8223, 1.442695
    %v8228 = vpow.pop %v8227
    %v8229 = vmul.f32 %v8224, 1.442695
    %v8230 = vpow.pop %v8229
    %v8231 = vadd.f32 %v8226, 1.0
    %v8232 = vadd.f32 %v8228, 1.0
    %v8233 = vadd.f32 %v8230, 1.0
    %v8234 = vrcp.pop %v8231
    %v8235 = vmul.f32 %v8231, %v8234
    %v8236 = vsub.f32 1.0, %v8235
    %v8237 = vmul.f32 %v8234, %v8236
    %v8238 = vadd.f32 %v8234, %v8237
    %vm8239 = vweird.f32 %v8231
    %vm8240 = vweird.f32 %v8234
    %vm8241 = vmor %vm8239, %vm8240
    %v8242 = vsel %vm8241, %v8234, %v8238
    %v8243 = vand.u32 2147483647, %v8231
    %vm8244 = vcmp.eq.f32.partialorder %v8243, 8.507059e+37
    %v8245 = vand.u32 %v8231, 2147483648
    %v8246 = vor.u32 1.1754944e-38, %v8245
    %v8247 = vsel %vm8244, %v8246, %v8242
    %v8248 = vmul.f32 1.0, %v8247
    %v8249 = vrcp.pop %v8232
    %v8250 = vmul.f32 %v8232, %v8249
    %v8251 = vsub.f32 1.0, %v8250
    %v8252 = vmul.f32 %v8249, %v8251
    %v8253 = vadd.f32 %v8249, %v8252
    %vm8254 = vweird.f32 %v8232
    %vm8255 = vweird.f32 %v8249
    %vm8256 = vmor %vm8254, %vm8255
    %v8257 = vsel %vm8256, %v8249, %v8253
    %v8258 = vand.u32 2147483647, %v8232
    %vm8259 = vcmp.eq.f32.partialorder %v8258, 8.507059e+37
    %v8260 = vand.u32 %v8232, 2147483648
    %v8261 = vor.u32 1.1754944e-38, %v8260
    %v8262 = vsel %vm8259, %v8261, %v8257
    %v8263 = vmul.f32 1.0, %v8262
    %v8264 = vrcp.pop %v8233
    %v8265 = vmul.f32 %v8233, %v8264
    %v8266 = vsub.f32 1.0, %v8265
    %v8267 = vmul.f32 %v8264, %v8266
    %v8268 = vadd.f32 %v8264, %v8267
    %vm8269 = vweird.f32 %v8233
    %vm8270 = vweird.f32 %v8264
    %vm8271 = vmor %vm8269, %vm8270
    %v8272 = vsel %vm8271, %v8264, %v8268
    %v8273 = vand.u32 2147483647, %v8233
    %vm8274 = vcmp.eq.f32.partialorder %v8273, 8.507059e+37
    %v8275 = vand.u32 %v8233, 2147483648
    %v8276 = vor.u32 1.1754944e-38, %v8275
    %v8277 = vsel %vm8274, %v8276, %v8272
    %v8278 = vmul.f32 1.0, %v8277
    %v8279 = vtanh.pop %v8221
    %v8280 = vmul.f32 %v8263, %v7919
    %v8281 = vmul.f32 %v8248, %v8279
    %v8282 = vadd.f32 %v8280, %v8281
    %8283 = vadd.xlane.f32.xlu0 %v8282
    %v8284 = vpop.xlane.xlu0 %8283
    %v8285 = vmul.f32 %v8284, %v268
    %v8286 = vmul.f32 %v8282, %v8282
    %8287 = vadd.xlane.f32.xlu0 %v8286
    %v8288 = vpop.xlane.xlu0 %8287
    %v8289 = vmul.f32 %v8288, %v268
    %v8290 = vmul.f32 %v8285, %v8285
    %v8291 = vsub.f32 %v8289, %v8290
    %v8292 = vsub.f32 %v8282, %v8285
    %v8293 = vadd.f32 %v8291, 0.001
    %v8294 = vrsqrt.pop %v8293
    %v8295 = vmul.f32 %v8294, %v8293
    %v8296 = vmul.f32 %v8295, %v8294
    %v8297 = vmul.f32 0.5, %v8296
    %v8298 = vsub.f32 1.5, %v8297
    %v8299 = vmul.f32 %v8294, %v8298
    %vm8300 = vweird.f32 %v8293
    %vm8301 = vweird.f32 %v8294
    %vm8302 = vmor %vm8300, %vm8301
    %v8303 = vsel %vm8302, %v8294, %v8299
    %v8304 = vmul.f32 %v8292, %v8303
    %v8305 = vmul.f32 %v8304, %v6369
    %v8306 = vadd.f32 %v8305, %v6371
    %v8307 = vtanh.pop %v8306
    %v8308 = vmul.f32 %v8278, %v8307
    %s8309 = scalar_lea.vmem [#allocation2], 40
    %8310 = vst [vmem:[%s8309] sm:$0xff] %v8308
    %v8311 = vld [vmem:[%s5309] sm:$0xff]
    %v8312 = vld [vmem:[%s5309 + $0x8] sm:$0xff]
    %v8313 = vld [vmem:[%s5309 + $0x10] sm:$0xff]
    %v8314 = vld [vmem:[%s5309 + $0x18] sm:$0xff]
    %v8315 = vpack.c.bf16 %v8308, %v8308
    %v8316 = vld [vmem:[%s5967] sm:$0xff]
    %v8317 = vld [vmem:[%s5967 + $0x8] sm:$0xff]
    %v8318 = vld [vmem:[%s5967 + $0x10] sm:$0xff]
    %v8319 = vld [vmem:[%s5967 + $0x18] sm:$0xff]
    %v8320 = vld [vmem:[%s5967 + $0x20] sm:$0xff]
    %v8321 = vld [vmem:[%s5967 + $0x28] sm:$0xff]
    %v8322 = vld [vmem:[%s5967 + $0x30] sm:$0xff]
    %v8323 = vld [vmem:[%s5967 + $0x38] sm:$0xff]
    %v8324 = vld [vmem:[%s5967 + $0x40] sm:$0xff]
    %v8325 = vld [vmem:[%s5967 + $0x48] sm:$0xff]
    %v8326 = vld [vmem:[%s5967 + $0x50] sm:$0xff]
    %v8327 = vld [vmem:[%s5967 + $0x58] sm:$0xff]
    %v8328 = vld [vmem:[%s5967 + $0x60] sm:$0xff]
    %v8329 = vld [vmem:[%s5967 + $0x68] sm:$0xff]
    %v8330 = vld [vmem:[%s5967 + $0x70] sm:$0xff]
    %v8331 = vld [vmem:[%s5967 + $0x78] sm:$0xff]
    %v8332 = vld [vmem:[%s5967 + $0x80] sm:$0xff]
    %v8333 = vld [vmem:[%s5967 + $0x88] sm:$0xff]
    %v8334 = vld [vmem:[%s5967 + $0x90] sm:$0xff]
    %v8335 = vld [vmem:[%s5967 + $0x98] sm:$0xff]
    %v8336 = vld [vmem:[%s5967 + $0xa0] sm:$0xff]
    %v8337 = vld [vmem:[%s5967 + $0xa8] sm:$0xff]
    %v8338 = vld [vmem:[%s5967 + $0xb0] sm:$0xff]
    %v8339 = vld [vmem:[%s5967 + $0xb8] sm:$0xff]
    %v8340 = vld [vmem:[%s5967 + $0xc0] sm:$0xff]
    %v8341 = vld [vmem:[%s5967 + $0xc8] sm:$0xff]
    %v8342 = vld [vmem:[%s5967 + $0xd0] sm:$0xff]
    %v8343 = vld [vmem:[%s5967 + $0xd8] sm:$0xff]
    %v8344 = vld [vmem:[%s5967 + $0xe0] sm:$0xff]
    %v8345 = vld [vmem:[%s5967 + $0xe8] sm:$0xff]
    %v8346 = vld [vmem:[%s5967 + $0xf0] sm:$0xff]
    %v8347 = vld [vmem:[%s5967 + $0xf8] sm:$0xff]
    %v8380 = vunpack.c.l.b16 %v8316
    %v8381 = vunpack.c.h.b16 %v8316
    %v8382 = vunpack.c.l.b16 %v8317
    %v8383 = vunpack.c.h.b16 %v8317
    %v8384 = vunpack.c.l.b16 %v8318
    %v8385 = vunpack.c.h.b16 %v8318
    %v8386 = vunpack.c.l.b16 %v8319
    %v8387 = vunpack.c.h.b16 %v8319
    %v8388 = vunpack.c.l.b16 %v8320
    %v8389 = vunpack.c.h.b16 %v8320
    %v8390 = vunpack.c.l.b16 %v8321
    %v8391 = vunpack.c.h.b16 %v8321
    %v8392 = vunpack.c.l.b16 %v8322
    %v8393 = vunpack.c.h.b16 %v8322
    %v8394 = vunpack.c.l.b16 %v8323
    %v8395 = vunpack.c.h.b16 %v8323
    %v8396 = vunpack.c.l.b16 %v8324
    %v8397 = vunpack.c.h.b16 %v8324
    %v8398 = vunpack.c.l.b16 %v8325
    %v8399 = vunpack.c.h.b16 %v8325
    %v8400 = vunpack.c.l.b16 %v8326
    %v8401 = vunpack.c.h.b16 %v8326
    %v8402 = vunpack.c.l.b16 %v8327
    %v8403 = vunpack.c.h.b16 %v8327
    %v8404 = vunpack.c.l.b16 %v8328
    %v8405 = vunpack.c.h.b16 %v8328
    %v8406 = vunpack.c.l.b16 %v8329
    %v8407 = vunpack.c.h.b16 %v8329
    %v8408 = vunpack.c.l.b16 %v8330
    %v8409 = vunpack.c.h.b16 %v8330
    %v8410 = vunpack.c.l.b16 %v8331
    %v8411 = vunpack.c.h.b16 %v8331
    %v8412 = vunpack.c.l.b16 %v8332
    %v8413 = vunpack.c.h.b16 %v8332
    %v8414 = vunpack.c.l.b16 %v8333
    %v8415 = vunpack.c.h.b16 %v8333
    %v8416 = vunpack.c.l.b16 %v8334
    %v8417 = vunpack.c.h.b16 %v8334
    %v8418 = vunpack.c.l.b16 %v8335
    %v8419 = vunpack.c.h.b16 %v8335
    %v8420 = vunpack.c.l.b16 %v8336
    %v8421 = vunpack.c.h.b16 %v8336
    %v8422 = vunpack.c.l.b16 %v8337
    %v8423 = vunpack.c.h.b16 %v8337
    %v8424 = vunpack.c.l.b16 %v8338
    %v8425 = vunpack.c.h.b16 %v8338
    %v8426 = vunpack.c.l.b16 %v8339
    %v8427 = vunpack.c.h.b16 %v8339
    %v8428 = vunpack.c.l.b16 %v8340
    %v8429 = vunpack.c.h.b16 %v8340
    %v8430 = vunpack.c.l.b16 %v8341
    %v8431 = vunpack.c.h.b16 %v8341
    %v8432 = vunpack.c.l.b16 %v8342
    %v8433 = vunpack.c.h.b16 %v8342
    %v8434 = vunpack.c.l.b16 %v8343
    %v8435 = vunpack.c.h.b16 %v8343
    %v8436 = vunpack.c.l.b16 %v8344
    %v8437 = vunpack.c.h.b16 %v8344
    %v8438 = vunpack.c.l.b16 %v8345
    %v8439 = vunpack.c.h.b16 %v8345
    %v8440 = vunpack.c.l.b16 %v8346
    %v8441 = vunpack.c.h.b16 %v8346
    %v8442 = vunpack.c.l.b16 %v8347
    %v8443 = vunpack.c.h.b16 %v8347
    %v8444 = vpack.c.b16 %v8384, %v8380
    %v8445 = vpack.c.b16 %v8385, %v8381
    %v8446 = vpack.c.b16 %v8386, %v8382
    %v8447 = vpack.c.b16 %v8387, %v8383
    %v8448 = vpack.c.b16 %v8392, %v8388
    %v8449 = vpack.c.b16 %v8393, %v8389
    %v8450 = vpack.c.b16 %v8394, %v8390
    %v8451 = vpack.c.b16 %v8395, %v8391
    %v8452 = vpack.c.b16 %v8400, %v8396
    %v8453 = vpack.c.b16 %v8401, %v8397
    %v8454 = vpack.c.b16 %v8402, %v8398
    %v8455 = vpack.c.b16 %v8403, %v8399
    %v8456 = vpack.c.b16 %v8408, %v8404
    %v8457 = vpack.c.b16 %v8409, %v8405
    %v8458 = vpack.c.b16 %v8410, %v8406
    %v8459 = vpack.c.b16 %v8411, %v8407
    %v8460 = vpack.c.b16 %v8416, %v8412
    %v8461 = vpack.c.b16 %v8417, %v8413
    %v8462 = vpack.c.b16 %v8418, %v8414
    %v8463 = vpack.c.b16 %v8419, %v8415
    %v8464 = vpack.c.b16 %v8424, %v8420
    %v8465 = vpack.c.b16 %v8425, %v8421
    %v8466 = vpack.c.b16 %v8426, %v8422
    %v8467 = vpack.c.b16 %v8427, %v8423
    %v8468 = vpack.c.b16 %v8432, %v8428
    %v8469 = vpack.c.b16 %v8433, %v8429
    %v8470 = vpack.c.b16 %v8434, %v8430
    %v8471 = vpack.c.b16 %v8435, %v8431
    %v8472 = vpack.c.b16 %v8440, %v8436
    %v8473 = vpack.c.b16 %v8441, %v8437
    %v8474 = vpack.c.b16 %v8442, %v8438
    %v8475 = vpack.c.b16 %v8443, %v8439
    %8508 = vmatpush.bf16.msra.mxu0 %v8472
    %8509 = vmatpush.bf16.msra.mxu0 %v8468
    %8510 = vmatpush.bf16.msra.mxu0 %v8464
    %8511 = vmatpush.bf16.msra.mxu0 %v8460
    %8512 = vmatpush.bf16.msra.mxu0 %v8456
    %8513 = vmatpush.bf16.msra.mxu0 %v8452
    %8514 = vmatpush.bf16.msra.mxu0 %v8448
    %8515 = vmatpush.bf16.msra.mxu0 %v8444
    %8516 = vmatmul.bf16.gmra.mxu0 %v8315
    %v8517 = vpop.f32.mrf.mxu0
    %v8518 = vadd.f32 0.0, %v8517
    %v8519 = vpop.f32.mrf.mxu0
    %8520 = vdwg.mxu0
    %8521 = vmatpush.bf16.msra.mxu0 %v8473
    %8522 = vmatpush.bf16.msra.mxu0 %v8469
    %8523 = vmatpush.bf16.msra.mxu0 %v8465
    %8524 = vmatpush.bf16.msra.mxu0 %v8461
    %8525 = vmatpush.bf16.msra.mxu0 %v8457
    %8526 = vmatpush.bf16.msra.mxu0 %v8453
    %8527 = vmatpush.bf16.msra.mxu0 %v8449
    %8528 = vmatpush.bf16.msra.mxu0 %v8445
    %8529 = vmatmul.bf16.gmra.mxu0 %v8315
    %v8530 = vpop.f32.mrf.mxu0
    %v8531 = vadd.f32 0.0, %v8530
    %v8532 = vpop.f32.mrf.mxu0
    %8533 = vdwg.mxu0
    %8534 = vmatpush.bf16.msra.mxu0 %v8474
    %8535 = vmatpush.bf16.msra.mxu0 %v8470
    %8536 = vmatpush.bf16.msra.mxu0 %v8466
    %8537 = vmatpush.bf16.msra.mxu0 %v8462
    %8538 = vmatpush.bf16.msra.mxu0 %v8458
    %8539 = vmatpush.bf16.msra.mxu0 %v8454
    %8540 = vmatpush.bf16.msra.mxu0 %v8450
    %8541 = vmatpush.bf16.msra.mxu0 %v8446
    %8542 = vmatmul.bf16.gmra.mxu0 %v8315
    %v8543 = vpop.f32.mrf.mxu0
    %v8544 = vadd.f32 0.0, %v8543
    %v8545 = vpop.f32.mrf.mxu0
    %8546 = vdwg.mxu0
    %8547 = vmatpush.bf16.msra.mxu0 %v8475
    %8548 = vmatpush.bf16.msra.mxu0 %v8471
    %8549 = vmatpush.bf16.msra.mxu0 %v8467
    %8550 = vmatpush.bf16.msra.mxu0 %v8463
    %8551 = vmatpush.bf16.msra.mxu0 %v8459
    %8552 = vmatpush.bf16.msra.mxu0 %v8455
    %8553 = vmatpush.bf16.msra.mxu0 %v8451
    %8554 = vmatpush.bf16.msra.mxu0 %v8447
    %8555 = vmatmul.bf16.gmra.mxu0 %v8315
    %v8556 = vpop.f32.mrf.mxu0
    %v8557 = vadd.f32 0.0, %v8556
    %v8558 = vpop.f32.mrf.mxu0
    %8559 = vdwg.mxu0
    %v8560 = vadd.f32 %v8311, %v8518
    %v8561 = vadd.f32 %v8312, %v8531
    %v8562 = vadd.f32 %v8313, %v8544
    %v8563 = vadd.f32 %v8314, %v8557
    %v8564 = vadd.f32 %v8560, %v8561
    %v8565 = vadd.f32 %v8564, %v8562
    %v8566 = vadd.f32 %v8565, %v8563
    %8567 = vadd.xlane.f32.xlu0 %v8566
    %v8568 = vpop.xlane.xlu0 %8567
    %v8569 = vmul.f32 %v8568, %v1078
    %v8570 = vmul.f32 %v8560, %v8560
    %v8571 = vmul.f32 %v8561, %v8561
    %v8572 = vmul.f32 %v8562, %v8562
    %v8573 = vmul.f32 %v8563, %v8563
    %v8574 = vadd.f32 %v8570, %v8571
    %v8575 = vadd.f32 %v8574, %v8572
    %v8576 = vadd.f32 %v8575, %v8573
    %8577 = vadd.xlane.f32.xlu0 %v8576
    %v8578 = vpop.xlane.xlu0 %8577
    %v8579 = vmul.f32 %v8578, %v1078
    %v8580 = vmul.f32 %v8569, %v8569
    %v8581 = vsub.f32 %v8579, %v8580
    %v8582 = vsub.f32 %v8560, %v8569
    %v8583 = vsub.f32 %v8561, %v8569
    %v8584 = vsub.f32 %v8562, %v8569
    %v8585 = vsub.f32 %v8563, %v8569
    %v8586 = vadd.f32 %v8581, 0.001
    %v8587 = vrsqrt.pop %v8586
    %v8588 = vmul.f32 %v8587, %v8586
    %v8589 = vmul.f32 %v8588, %v8587
    %v8590 = vmul.f32 0.5, %v8589
    %v8591 = vsub.f32 1.5, %v8590
    %v8592 = vmul.f32 %v8587, %v8591
    %vm8593 = vweird.f32 %v8586
    %vm8594 = vweird.f32 %v8587
    %vm8595 = vmor %vm8593, %vm8594
    %v8596 = vsel %vm8595, %v8587, %v8592
    %v8597 = vmul.f32 %v8582, %v8596
    %v8598 = vmul.f32 %v8583, %v8596
    %v8599 = vmul.f32 %v8584, %v8596
    %v8600 = vmul.f32 %v8585, %v8596
    %v8601 = vmul.f32 %v8597, %v6262
    %v8602 = vmul.f32 %v8598, %v6263
    %v8603 = vmul.f32 %v8599, %v6264
    %v8604 = vmul.f32 %v8600, %v6265
    %v8605 = vadd.f32 %v8601, %v6278
    %v8606 = vadd.f32 %v8602, %v6279
    %v8607 = vadd.f32 %v8603, %v6280
    %v8608 = vadd.f32 %v8604, %v6281
    %v8609 = vxor.u32 %v8605, 2147483648
    %v8610 = vxor.u32 %v8606, 2147483648
    %v8611 = vxor.u32 %v8607, 2147483648
    %v8612 = vmul.f32 %v8609, 1.442695
    %v8613 = vpow.pop %v8612
    %v8614 = vmul.f32 %v8610, 1.442695
    %v8615 = vpow.pop %v8614
    %v8616 = vmul.f32 %v8611, 1.442695
    %v8617 = vpow.pop %v8616
    %v8618 = vadd.f32 %v8613, 1.0
    %v8619 = vadd.f32 %v8615, 1.0
    %v8620 = vadd.f32 %v8617, 1.0
    %v8621 = vrcp.pop %v8618
    %v8622 = vmul.f32 %v8618, %v8621
    %v8623 = vsub.f32 1.0, %v8622
    %v8624 = vmul.f32 %v8621, %v8623
    %v8625 = vadd.f32 %v8621, %v8624
    %vm8626 = vweird.f32 %v8618
    %vm8627 = vweird.f32 %v8621
    %vm8628 = vmor %vm8626, %vm8627
    %v8629 = vsel %vm8628, %v8621, %v8625
    %v8630 = vand.u32 2147483647, %v8618
    %vm8631 = vcmp.eq.f32.partialorder %v8630, 8.507059e+37
    %v8632 = vand.u32 %v8618, 2147483648
    %v8633 = vor.u32 1.1754944e-38, %v8632
    %v8634 = vsel %vm8631, %v8633, %v8629
    %v8635 = vmul.f32 1.0, %v8634
    %v8636 = vrcp.pop %v8619
    %v8637 = vmul.f32 %v8619, %v8636
    %v8638 = vsub.f32 1.0, %v8637
    %v8639 = vmul.f32 %v8636, %v8638
    %v8640 = vadd.f32 %v8636, %v8639
    %vm8641 = vweird.f32 %v8619
    %vm8642 = vweird.f32 %v8636
    %vm8643 = vmor %vm8641, %vm8642
    %v8644 = vsel %vm8643, %v8636, %v8640
    %v8645 = vand.u32 2147483647, %v8619
    %vm8646 = vcmp.eq.f32.partialorder %v8645, 8.507059e+37
    %v8647 = vand.u32 %v8619, 2147483648
    %v8648 = vor.u32 1.1754944e-38, %v8647
    %v8649 = vsel %vm8646, %v8648, %v8644
    %v8650 = vmul.f32 1.0, %v8649
    %v8651 = vrcp.pop %v8620
    %v8652 = vmul.f32 %v8620, %v8651
    %v8653 = vsub.f32 1.0, %v8652
    %v8654 = vmul.f32 %v8651, %v8653
    %v8655 = vadd.f32 %v8651, %v8654
    %vm8656 = vweird.f32 %v8620
    %vm8657 = vweird.f32 %v8651
    %vm8658 = vmor %vm8656, %vm8657
    %v8659 = vsel %vm8658, %v8651, %v8655
    %v8660 = vand.u32 2147483647, %v8620
    %vm8661 = vcmp.eq.f32.partialorder %v8660, 8.507059e+37
    %v8662 = vand.u32 %v8620, 2147483648
    %v8663 = vor.u32 1.1754944e-38, %v8662
    %v8664 = vsel %vm8661, %v8663, %v8659
    %v8665 = vmul.f32 1.0, %v8664
    %v8666 = vtanh.pop %v8608
    %v8667 = vmul.f32 %v8650, %v8306
    %v8668 = vmul.f32 %v8635, %v8666
    %v8669 = vadd.f32 %v8667, %v8668
    %8670 = vadd.xlane.f32.xlu0 %v8669
    %v8671 = vpop.xlane.xlu0 %8670
    %v8672 = vmul.f32 %v8671, %v268
    %v8673 = vmul.f32 %v8669, %v8669
    %8674 = vadd.xlane.f32.xlu0 %v8673
    %v8675 = vpop.xlane.xlu0 %8674
    %v8676 = vmul.f32 %v8675, %v268
    %v8677 = vmul.f32 %v8672, %v8672
    %v8678 = vsub.f32 %v8676, %v8677
    %v8679 = vsub.f32 %v8669, %v8672
    %v8680 = vadd.f32 %v8678, 0.001
    %v8681 = vrsqrt.pop %v8680
    %v8682 = vmul.f32 %v8681, %v8680
    %v8683 = vmul.f32 %v8682, %v8681
    %v8684 = vmul.f32 0.5, %v8683
    %v8685 = vsub.f32 1.5, %v8684
    %v8686 = vmul.f32 %v8681, %v8685
    %vm8687 = vweird.f32 %v8680
    %vm8688 = vweird.f32 %v8681
    %vm8689 = vmor %vm8687, %vm8688
    %v8690 = vsel %vm8689, %v8681, %v8686
    %v8691 = vmul.f32 %v8679, %v8690
    %v8692 = vmul.f32 %v8691, %v6369
    %v8693 = vadd.f32 %v8692, %v6371
    %v8694 = vtanh.pop %v8693
    %v8695 = vmul.f32 %v8665, %v8694
    %s8696 = scalar_lea.vmem [#allocation2], 48
    %8697 = vst [vmem:[%s8696] sm:$0xff] %v8695
    %v8698 = vld [vmem:[%s5947] sm:$0xff]
    %v8699 = vld [vmem:[%s5947 + $0x8] sm:$0xff]
    %v8700 = vld [vmem:[%s5947 + $0x10] sm:$0xff]
    %v8701 = vld [vmem:[%s5947 + $0x18] sm:$0xff]
    %v8702 = vpack.c.bf16 %v8695, %v8695
    %v8703 = vld [vmem:[%s5967] sm:$0xff]
    %v8704 = vld [vmem:[%s5967 + $0x8] sm:$0xff]
    %v8705 = vld [vmem:[%s5967 + $0x10] sm:$0xff]
    %v8706 = vld [vmem:[%s5967 + $0x18] sm:$0xff]
    %v8707 = vld [vmem:[%s5967 + $0x20] sm:$0xff]
    %v8708 = vld [vmem:[%s5967 + $0x28] sm:$0xff]
    %v8709 = vld [vmem:[%s5967 + $0x30] sm:$0xff]
    %v8710 = vld [vmem:[%s5967 + $0x38] sm:$0xff]
    %v8711 = vld [vmem:[%s5967 + $0x40] sm:$0xff]
    %v8712 = vld [vmem:[%s5967 + $0x48] sm:$0xff]
    %v8713 = vld [vmem:[%s5967 + $0x50] sm:$0xff]
    %v8714 = vld [vmem:[%s5967 + $0x58] sm:$0xff]
    %v8715 = vld [vmem:[%s5967 + $0x60] sm:$0xff]
    %v8716 = vld [vmem:[%s5967 + $0x68] sm:$0xff]
    %v8717 = vld [vmem:[%s5967 + $0x70] sm:$0xff]
    %v8718 = vld [vmem:[%s5967 + $0x78] sm:$0xff]
    %v8719 = vld [vmem:[%s5967 + $0x80] sm:$0xff]
    %v8720 = vld [vmem:[%s5967 + $0x88] sm:$0xff]
    %v8721 = vld [vmem:[%s5967 + $0x90] sm:$0xff]
    %v8722 = vld [vmem:[%s5967 + $0x98] sm:$0xff]
    %v8723 = vld [vmem:[%s5967 + $0xa0] sm:$0xff]
    %v8724 = vld [vmem:[%s5967 + $0xa8] sm:$0xff]
    %v8725 = vld [vmem:[%s5967 + $0xb0] sm:$0xff]
    %v8726 = vld [vmem:[%s5967 + $0xb8] sm:$0xff]
    %v8727 = vld [vmem:[%s5967 + $0xc0] sm:$0xff]
    %v8728 = vld [vmem:[%s5967 + $0xc8] sm:$0xff]
    %v8729 = vld [vmem:[%s5967 + $0xd0] sm:$0xff]
    %v8730 = vld [vmem:[%s5967 + $0xd8] sm:$0xff]
    %v8731 = vld [vmem:[%s5967 + $0xe0] sm:$0xff]
    %v8732 = vld [vmem:[%s5967 + $0xe8] sm:$0xff]
    %v8733 = vld [vmem:[%s5967 + $0xf0] sm:$0xff]
    %v8734 = vld [vmem:[%s5967 + $0xf8] sm:$0xff]
    %v8767 = vunpack.c.l.b16 %v8703
    %v8768 = vunpack.c.h.b16 %v8703
    %v8769 = vunpack.c.l.b16 %v8704
    %v8770 = vunpack.c.h.b16 %v8704
    %v8771 = vunpack.c.l.b16 %v8705
    %v8772 = vunpack.c.h.b16 %v8705
    %v8773 = vunpack.c.l.b16 %v8706
    %v8774 = vunpack.c.h.b16 %v8706
    %v8775 = vunpack.c.l.b16 %v8707
    %v8776 = vunpack.c.h.b16 %v8707
    %v8777 = vunpack.c.l.b16 %v8708
    %v8778 = vunpack.c.h.b16 %v8708
    %v8779 = vunpack.c.l.b16 %v8709
    %v8780 = vunpack.c.h.b16 %v8709
    %v8781 = vunpack.c.l.b16 %v8710
    %v8782 = vunpack.c.h.b16 %v8710
    %v8783 = vunpack.c.l.b16 %v8711
    %v8784 = vunpack.c.h.b16 %v8711
    %v8785 = vunpack.c.l.b16 %v8712
    %v8786 = vunpack.c.h.b16 %v8712
    %v8787 = vunpack.c.l.b16 %v8713
    %v8788 = vunpack.c.h.b16 %v8713
    %v8789 = vunpack.c.l.b16 %v8714
    %v8790 = vunpack.c.h.b16 %v8714
    %v8791 = vunpack.c.l.b16 %v8715
    %v8792 = vunpack.c.h.b16 %v8715
    %v8793 = vunpack.c.l.b16 %v8716
    %v8794 = vunpack.c.h.b16 %v8716
    %v8795 = vunpack.c.l.b16 %v8717
    %v8796 = vunpack.c.h.b16 %v8717
    %v8797 = vunpack.c.l.b16 %v8718
    %v8798 = vunpack.c.h.b16 %v8718
    %v8799 = vunpack.c.l.b16 %v8719
    %v8800 = vunpack.c.h.b16 %v8719
    %v8801 = vunpack.c.l.b16 %v8720
    %v8802 = vunpack.c.h.b16 %v8720
    %v8803 = vunpack.c.l.b16 %v8721
    %v8804 = vunpack.c.h.b16 %v8721
    %v8805 = vunpack.c.l.b16 %v8722
    %v8806 = vunpack.c.h.b16 %v8722
    %v8807 = vunpack.c.l.b16 %v8723
    %v8808 = vunpack.c.h.b16 %v8723
    %v8809 = vunpack.c.l.b16 %v8724
    %v8810 = vunpack.c.h.b16 %v8724
    %v8811 = vunpack.c.l.b16 %v8725
    %v8812 = vunpack.c.h.b16 %v8725
    %v8813 = vunpack.c.l.b16 %v8726
    %v8814 = vunpack.c.h.b16 %v8726
    %v8815 = vunpack.c.l.b16 %v8727
    %v8816 = vunpack.c.h.b16 %v8727
    %v8817 = vunpack.c.l.b16 %v8728
    %v8818 = vunpack.c.h.b16 %v8728
    %v8819 = vunpack.c.l.b16 %v8729
    %v8820 = vunpack.c.h.b16 %v8729
    %v8821 = vunpack.c.l.b16 %v8730
    %v8822 = vunpack.c.h.b16 %v8730
    %v8823 = vunpack.c.l.b16 %v8731
    %v8824 = vunpack.c.h.b16 %v8731
    %v8825 = vunpack.c.l.b16 %v8732
    %v8826 = vunpack.c.h.b16 %v8732
    %v8827 = vunpack.c.l.b16 %v8733
    %v8828 = vunpack.c.h.b16 %v8733
    %v8829 = vunpack.c.l.b16 %v8734
    %v8830 = vunpack.c.h.b16 %v8734
    %v8831 = vpack.c.b16 %v8771, %v8767
    %v8832 = vpack.c.b16 %v8772, %v8768
    %v8833 = vpack.c.b16 %v8773, %v8769
    %v8834 = vpack.c.b16 %v8774, %v8770
    %v8835 = vpack.c.b16 %v8779, %v8775
    %v8836 = vpack.c.b16 %v8780, %v8776
    %v8837 = vpack.c.b16 %v8781, %v8777
    %v8838 = vpack.c.b16 %v8782, %v8778
    %v8839 = vpack.c.b16 %v8787, %v8783
    %v8840 = vpack.c.b16 %v8788, %v8784
    %v8841 = vpack.c.b16 %v8789, %v8785
    %v8842 = vpack.c.b16 %v8790, %v8786
    %v8843 = vpack.c.b16 %v8795, %v8791
    %v8844 = vpack.c.b16 %v8796, %v8792
    %v8845 = vpack.c.b16 %v8797, %v8793
    %v8846 = vpack.c.b16 %v8798, %v8794
    %v8847 = vpack.c.b16 %v8803, %v8799
    %v8848 = vpack.c.b16 %v8804, %v8800
    %v8849 = vpack.c.b16 %v8805, %v8801
    %v8850 = vpack.c.b16 %v8806, %v8802
    %v8851 = vpack.c.b16 %v8811, %v8807
    %v8852 = vpack.c.b16 %v8812, %v8808
    %v8853 = vpack.c.b16 %v8813, %v8809
    %v8854 = vpack.c.b16 %v8814, %v8810
    %v8855 = vpack.c.b16 %v8819, %v8815
    %v8856 = vpack.c.b16 %v8820, %v8816
    %v8857 = vpack.c.b16 %v8821, %v8817
    %v8858 = vpack.c.b16 %v8822, %v8818
    %v8859 = vpack.c.b16 %v8827, %v8823
    %v8860 = vpack.c.b16 %v8828, %v8824
    %v8861 = vpack.c.b16 %v8829, %v8825
    %v8862 = vpack.c.b16 %v8830, %v8826
    %8895 = vmatpush.bf16.msra.mxu0 %v8859
    %8896 = vmatpush.bf16.msra.mxu0 %v8855
    %8897 = vmatpush.bf16.msra.mxu0 %v8851
    %8898 = vmatpush.bf16.msra.mxu0 %v8847
    %8899 = vmatpush.bf16.msra.mxu0 %v8843
    %8900 = vmatpush.bf16.msra.mxu0 %v8839
    %8901 = vmatpush.bf16.msra.mxu0 %v8835
    %8902 = vmatpush.bf16.msra.mxu0 %v8831
    %8903 = vmatmul.bf16.gmra.mxu0 %v8702
    %v8904 = vpop.f32.mrf.mxu0
    %v8905 = vadd.f32 0.0, %v8904
    %v8906 = vpop.f32.mrf.mxu0
    %8907 = vdwg.mxu0
    %8908 = vmatpush.bf16.msra.mxu0 %v8860
    %8909 = vmatpush.bf16.msra.mxu0 %v8856
    %8910 = vmatpush.bf16.msra.mxu0 %v8852
    %8911 = vmatpush.bf16.msra.mxu0 %v8848
    %8912 = vmatpush.bf16.msra.mxu0 %v8844
    %8913 = vmatpush.bf16.msra.mxu0 %v8840
    %8914 = vmatpush.bf16.msra.mxu0 %v8836
    %8915 = vmatpush.bf16.msra.mxu0 %v8832
    %8916 = vmatmul.bf16.gmra.mxu0 %v8702
    %v8917 = vpop.f32.mrf.mxu0
    %v8918 = vadd.f32 0.0, %v8917
    %v8919 = vpop.f32.mrf.mxu0
    %8920 = vdwg.mxu0
    %8921 = vmatpush.bf16.msra.mxu0 %v8861
    %8922 = vmatpush.bf16.msra.mxu0 %v8857
    %8923 = vmatpush.bf16.msra.mxu0 %v8853
    %8924 = vmatpush.bf16.msra.mxu0 %v8849
    %8925 = vmatpush.bf16.msra.mxu0 %v8845
    %8926 = vmatpush.bf16.msra.mxu0 %v8841
    %8927 = vmatpush.bf16.msra.mxu0 %v8837
    %8928 = vmatpush.bf16.msra.mxu0 %v8833
    %8929 = vmatmul.bf16.gmra.mxu0 %v8702
    %v8930 = vpop.f32.mrf.mxu0
    %v8931 = vadd.f32 0.0, %v8930
    %v8932 = vpop.f32.mrf.mxu0
    %8933 = vdwg.mxu0
    %8934 = vmatpush.bf16.msra.mxu0 %v8862
    %8935 = vmatpush.bf16.msra.mxu0 %v8858
    %8936 = vmatpush.bf16.msra.mxu0 %v8854
    %8937 = vmatpush.bf16.msra.mxu0 %v8850
    %8938 = vmatpush.bf16.msra.mxu0 %v8846
    %8939 = vmatpush.bf16.msra.mxu0 %v8842
    %8940 = vmatpush.bf16.msra.mxu0 %v8838
    %8941 = vmatpush.bf16.msra.mxu0 %v8834
    %8942 = vmatmul.bf16.gmra.mxu0 %v8702
    %v8943 = vpop.f32.mrf.mxu0
    %v8944 = vadd.f32 0.0, %v8943
    %v8945 = vpop.f32.mrf.mxu0
    %8946 = vdwg.mxu0
    %v8947 = vadd.f32 %v8698, %v8905
    %v8948 = vadd.f32 %v8699, %v8918
    %v8949 = vadd.f32 %v8700, %v8931
    %v8950 = vadd.f32 %v8701, %v8944
    %v8951 = vadd.f32 %v8947, %v8948
    %v8952 = vadd.f32 %v8951, %v8949
    %v8953 = vadd.f32 %v8952, %v8950
    %8954 = vadd.xlane.f32.xlu0 %v8953
    %v8955 = vpop.xlane.xlu0 %8954
    %v8956 = vmul.f32 %v8955, %v1078
    %v8957 = vmul.f32 %v8947, %v8947
    %v8958 = vmul.f32 %v8948, %v8948
    %v8959 = vmul.f32 %v8949, %v8949
    %v8960 = vmul.f32 %v8950, %v8950
    %v8961 = vadd.f32 %v8957, %v8958
    %v8962 = vadd.f32 %v8961, %v8959
    %v8963 = vadd.f32 %v8962, %v8960
    %8964 = vadd.xlane.f32.xlu0 %v8963
    %v8965 = vpop.xlane.xlu0 %8964
    %v8966 = vmul.f32 %v8965, %v1078
    %v8967 = vmul.f32 %v8956, %v8956
    %v8968 = vsub.f32 %v8966, %v8967
    %v8969 = vsub.f32 %v8947, %v8956
    %v8970 = vsub.f32 %v8948, %v8956
    %v8971 = vsub.f32 %v8949, %v8956
    %v8972 = vsub.f32 %v8950, %v8956
    %v8973 = vadd.f32 %v8968, 0.001
    %v8974 = vrsqrt.pop %v8973
    %v8975 = vmul.f32 %v8974, %v8973
    %v8976 = vmul.f32 %v8975, %v8974
    %v8977 = vmul.f32 0.5, %v8976
    %v8978 = vsub.f32 1.5, %v8977
    %v8979 = vmul.f32 %v8974, %v8978
    %vm8980 = vweird.f32 %v8973
    %vm8981 = vweird.f32 %v8974
    %vm8982 = vmor %vm8980, %vm8981
    %v8983 = vsel %vm8982, %v8974, %v8979
    %v8984 = vmul.f32 %v8969, %v8983
    %v8985 = vmul.f32 %v8970, %v8983
    %v8986 = vmul.f32 %v8971, %v8983
    %v8987 = vmul.f32 %v8972, %v8983
    %v8988 = vmul.f32 %v8984, %v6262
    %v8989 = vmul.f32 %v8985, %v6263
    %v8990 = vmul.f32 %v8986, %v6264
    %v8991 = vmul.f32 %v8987, %v6265
    %v8992 = vadd.f32 %v8988, %v6278
    %v8993 = vadd.f32 %v8989, %v6279
    %v8994 = vadd.f32 %v8990, %v6280
    %v8995 = vadd.f32 %v8991, %v6281
    %v8996 = vxor.u32 %v8992, 2147483648
    %v8997 = vxor.u32 %v8993, 2147483648
    %v8998 = vxor.u32 %v8994, 2147483648
    %v8999 = vmul.f32 %v8996, 1.442695
    %v9000 = vpow.pop %v8999
    %v9001 = vmul.f32 %v8997, 1.442695
    %v9002 = vpow.pop %v9001
    %v9003 = vmul.f32 %v8998, 1.442695
    %v9004 = vpow.pop %v9003
    %v9005 = vadd.f32 %v9000, 1.0
    %v9006 = vadd.f32 %v9002, 1.0
    %v9007 = vadd.f32 %v9004, 1.0
    %v9008 = vrcp.pop %v9005
    %v9009 = vmul.f32 %v9005, %v9008
    %v9010 = vsub.f32 1.0, %v9009
    %v9011 = vmul.f32 %v9008, %v9010
    %v9012 = vadd.f32 %v9008, %v9011
    %vm9013 = vweird.f32 %v9005
    %vm9014 = vweird.f32 %v9008
    %vm9015 = vmor %vm9013, %vm9014
    %v9016 = vsel %vm9015, %v9008, %v9012
    %v9017 = vand.u32 2147483647, %v9005
    %vm9018 = vcmp.eq.f32.partialorder %v9017, 8.507059e+37
    %v9019 = vand.u32 %v9005, 2147483648
    %v9020 = vor.u32 1.1754944e-38, %v9019
    %v9021 = vsel %vm9018, %v9020, %v9016
    %v9022 = vmul.f32 1.0, %v9021
    %v9023 = vrcp.pop %v9006
    %v9024 = vmul.f32 %v9006, %v9023
    %v9025 = vsub.f32 1.0, %v9024
    %v9026 = vmul.f32 %v9023, %v9025
    %v9027 = vadd.f32 %v9023, %v9026
    %vm9028 = vweird.f32 %v9006
    %vm9029 = vweird.f32 %v9023
    %vm9030 = vmor %vm9028, %vm9029
    %v9031 = vsel %vm9030, %v9023, %v9027
    %v9032 = vand.u32 2147483647, %v9006
    %vm9033 = vcmp.eq.f32.partialorder %v9032, 8.507059e+37
    %v9034 = vand.u32 %v9006, 2147483648
    %v9035 = vor.u32 1.1754944e-38, %v9034
    %v9036 = vsel %vm9033, %v9035, %v9031
    %v9037 = vmul.f32 1.0, %v9036
    %v9038 = vrcp.pop %v9007
    %v9039 = vmul.f32 %v9007, %v9038
    %v9040 = vsub.f32 1.0, %v9039
    %v9041 = vmul.f32 %v9038, %v9040
    %v9042 = vadd.f32 %v9038, %v9041
    %vm9043 = vweird.f32 %v9007
    %vm9044 = vweird.f32 %v9038
    %vm9045 = vmor %vm9043, %vm9044
    %v9046 = vsel %vm9045, %v9038, %v9042
    %v9047 = vand.u32 2147483647, %v9007
    %vm9048 = vcmp.eq.f32.partialorder %v9047, 8.507059e+37
    %v9049 = vand.u32 %v9007, 2147483648
    %v9050 = vor.u32 1.1754944e-38, %v9049
    %v9051 = vsel %vm9048, %v9050, %v9046
    %v9052 = vmul.f32 1.0, %v9051
    %v9053 = vtanh.pop %v8995
    %v9054 = vmul.f32 %v9037, %v8693
    %v9055 = vmul.f32 %v9022, %v9053
    %v9056 = vadd.f32 %v9054, %v9055
    %9057 = vadd.xlane.f32.xlu0 %v9056
    %v9058 = vpop.xlane.xlu0 %9057
    %v9059 = vmul.f32 %v9058, %v268
    %v9060 = vmul.f32 %v9056, %v9056
    %9061 = vadd.xlane.f32.xlu0 %v9060
    %v9062 = vpop.xlane.xlu0 %9061
    %v9063 = vmul.f32 %v9062, %v268
    %v9064 = vmul.f32 %v9059, %v9059
    %v9065 = vsub.f32 %v9063, %v9064
    %v9066 = vsub.f32 %v9056, %v9059
    %v9067 = vadd.f32 %v9065, 0.001
    %v9068 = vrsqrt.pop %v9067
    %v9069 = vmul.f32 %v9068, %v9067
    %v9070 = vmul.f32 %v9069, %v9068
    %v9071 = vmul.f32 0.5, %v9070
    %v9072 = vsub.f32 1.5, %v9071
    %v9073 = vmul.f32 %v9068, %v9072
    %vm9074 = vweird.f32 %v9067
    %vm9075 = vweird.f32 %v9068
    %vm9076 = vmor %vm9074, %vm9075
    %v9077 = vsel %vm9076, %v9068, %v9073
    %v9078 = vmul.f32 %v9066, %v9077
    %v9079 = vmul.f32 %v9078, %v6369
    %v9080 = vadd.f32 %v9079, %v6371
    %v9081 = vtanh.pop %v9080
    %v9082 = vmul.f32 %v9052, %v9081
    %s9083 = scalar_lea.vmem [#allocation2], 56
    %9084 = vst [vmem:[%s9083] sm:$0xff] %v9082
    %s9085 = scalar_lea.vmem [#allocation14], 8
    %9086 = vst [vmem:[%s9085] sm:$0xff] %v9082
    %s9087 = scalar_lea.vmem [#allocation16], 8
    %9088 = vst [vmem:[%s9087] sm:$0xff] %v9080
    %v9089 = vld [vmem:[%s10] sm:$0x77]
    %v9090 = vld [vmem:[#allocation2] sm:$0xff]
    %v9091 = vld [vmem:[#allocation2 + $0x8] sm:$0xff]
    %v9092 = vld [vmem:[#allocation2 + $0x10] sm:$0xff]
    %v9093 = vld [vmem:[#allocation2 + $0x18] sm:$0xff]
    %v9094 = vld [vmem:[#allocation2 + $0x20] sm:$0xff]
    %v9095 = vld [vmem:[#allocation2 + $0x28] sm:$0xff]
    %v9096 = vld [vmem:[#allocation2 + $0x30] sm:$0xff]
    %v9097 = vld [vmem:[#allocation2 + $0x38] sm:$0xff]
    %v9098 = vpack.c.bf16 %v9091, %v9090
    %v9099 = vpack.c.bf16 %v9093, %v9092
    %v9100 = vpack.c.bf16 %v9095, %v9094
    %v9101 = vpack.c.bf16 %v9097, %v9096
    %v9102 = vld [vmem:[#allocation12] sm:$0xff]
    %v9103 = vld [vmem:[#allocation12 + $0x8] sm:$0xff]
    %v9104 = vld [vmem:[#allocation12 + $0x10] sm:$0xff]
    %v9105 = vld [vmem:[#allocation12 + $0x18] sm:$0xff]
    %v9106 = vld [vmem:[#allocation12 + $0x20] sm:$0xff]
    %v9107 = vld [vmem:[#allocation12 + $0x28] sm:$0xff]
    %v9108 = vld [vmem:[#allocation12 + $0x30] sm:$0xff]
    %v9109 = vld [vmem:[#allocation12 + $0x38] sm:$0xff]
    %v9110 = vld [vmem:[#allocation12 + $0x40] sm:$0xff]
    %v9111 = vld [vmem:[#allocation12 + $0x48] sm:$0xff]
    %v9112 = vld [vmem:[#allocation12 + $0x50] sm:$0xff]
    %v9113 = vld [vmem:[#allocation12 + $0x58] sm:$0xff]
    %v9114 = vld [vmem:[#allocation12 + $0x60] sm:$0xff]
    %v9115 = vld [vmem:[#allocation12 + $0x68] sm:$0xff]
    %v9116 = vld [vmem:[#allocation12 + $0x70] sm:$0xff]
    %v9117 = vld [vmem:[#allocation12 + $0x78] sm:$0xff]
    %v9119 = vperm.slane %v9089, 0
    %v9120 = vperm.slane %v9089, 4
    %v9123 = vperm.slane %v9119, 0
    %v9124 = vperm.slane %v9120, 0
    %v9141 = vunpack.c.l.b16 %v9102
    %v9142 = vunpack.c.h.b16 %v9102
    %v9143 = vunpack.c.l.b16 %v9103
    %v9144 = vunpack.c.h.b16 %v9103
    %v9145 = vunpack.c.l.b16 %v9104
    %v9146 = vunpack.c.h.b16 %v9104
    %v9147 = vunpack.c.l.b16 %v9105
    %v9148 = vunpack.c.h.b16 %v9105
    %v9149 = vunpack.c.l.b16 %v9106
    %v9150 = vunpack.c.h.b16 %v9106
    %v9151 = vunpack.c.l.b16 %v9107
    %v9152 = vunpack.c.h.b16 %v9107
    %v9153 = vunpack.c.l.b16 %v9108
    %v9154 = vunpack.c.h.b16 %v9108
    %v9155 = vunpack.c.l.b16 %v9109
    %v9156 = vunpack.c.h.b16 %v9109
    %v9157 = vunpack.c.l.b16 %v9110
    %v9158 = vunpack.c.h.b16 %v9110
    %v9159 = vunpack.c.l.b16 %v9111
    %v9160 = vunpack.c.h.b16 %v9111
    %v9161 = vunpack.c.l.b16 %v9112
    %v9162 = vunpack.c.h.b16 %v9112
    %v9163 = vunpack.c.l.b16 %v9113
    %v9164 = vunpack.c.h.b16 %v9113
    %v9165 = vunpack.c.l.b16 %v9114
    %v9166 = vunpack.c.h.b16 %v9114
    %v9167 = vunpack.c.l.b16 %v9115
    %v9168 = vunpack.c.h.b16 %v9115
    %v9169 = vunpack.c.l.b16 %v9116
    %v9170 = vunpack.c.h.b16 %v9116
    %v9171 = vunpack.c.l.b16 %v9117
    %v9172 = vunpack.c.h.b16 %v9117
    %v9173 = vpack.c.b16 %v9143, %v9141
    %v9174 = vpack.c.b16 %v9144, %v9142
    %v9175 = vpack.c.b16 %v9147, %v9145
    %v9176 = vpack.c.b16 %v9148, %v9146
    %v9177 = vpack.c.b16 %v9151, %v9149
    %v9178 = vpack.c.b16 %v9152, %v9150
    %v9179 = vpack.c.b16 %v9155, %v9153
    %v9180 = vpack.c.b16 %v9156, %v9154
    %v9181 = vpack.c.b16 %v9159, %v9157
    %v9182 = vpack.c.b16 %v9160, %v9158
    %v9183 = vpack.c.b16 %v9163, %v9161
    %v9184 = vpack.c.b16 %v9164, %v9162
    %v9185 = vpack.c.b16 %v9167, %v9165
    %v9186 = vpack.c.b16 %v9168, %v9166
    %v9187 = vpack.c.b16 %v9171, %v9169
    %v9188 = vpack.c.b16 %v9172, %v9170
    %9205 = vmatpush.bf16.msra.mxu0 %v9187
    %9206 = vmatpush.bf16.msra.mxu0 %v9185
    %9207 = vmatpush.bf16.msra.mxu0 %v9183
    %9208 = vmatpush.bf16.msra.mxu0 %v9181
    %9209 = vmatpush.bf16.msra.mxu0 %v9179
    %9210 = vmatpush.bf16.msra.mxu0 %v9177
    %9211 = vmatpush.bf16.msra.mxu0 %v9175
    %9212 = vmatpush.bf16.msra.mxu0 %v9173
    %9213 = vmatmul.bf16.gmra.mxu0 %v9098
    %v9214 = vpop.f32.mrf.mxu0
    %v9215 = vadd.f32 %v9123, %v9214
    %v9216 = vpop.f32.mrf.mxu0
    %v9217 = vadd.f32 %v9123, %v9216
    %9218 = vmatmul.bf16.gmra.mxu0 %v9099
    %v9219 = vpop.f32.mrf.mxu0
    %v9220 = vadd.f32 %v9123, %v9219
    %v9221 = vpop.f32.mrf.mxu0
    %v9222 = vadd.f32 %v9123, %v9221
    %9223 = vmatmul.bf16.gmra.mxu0 %v9100
    %v9224 = vpop.f32.mrf.mxu0
    %v9225 = vadd.f32 %v9123, %v9224
    %v9226 = vpop.f32.mrf.mxu0
    %v9227 = vadd.f32 %v9123, %v9226
    %9228 = vmatmul.bf16.gmra.mxu0 %v9101
    %v9229 = vpop.f32.mrf.mxu0
    %v9230 = vadd.f32 %v9123, %v9229
    %v9231 = vpop.f32.mrf.mxu0
    %v9232 = vadd.f32 %v9123, %v9231
    %9233 = vdwg.mxu0
    %9234 = vmatpush.bf16.msra.mxu0 %v9188
    %9235 = vmatpush.bf16.msra.mxu0 %v9186
    %9236 = vmatpush.bf16.msra.mxu0 %v9184
    %9237 = vmatpush.bf16.msra.mxu0 %v9182
    %9238 = vmatpush.bf16.msra.mxu0 %v9180
    %9239 = vmatpush.bf16.msra.mxu0 %v9178
    %9240 = vmatpush.bf16.msra.mxu0 %v9176
    %9241 = vmatpush.bf16.msra.mxu0 %v9174
    %9242 = vmatmul.bf16.gmra.mxu0 %v9098
    %v9243 = vpop.f32.mrf.mxu0
    %v9244 = vadd.f32 %v9124, %v9243
    %v9245 = vpop.f32.mrf.mxu0
    %v9246 = vadd.f32 %v9124, %v9245
    %9247 = vmatmul.bf16.gmra.mxu0 %v9099
    %v9248 = vpop.f32.mrf.mxu0
    %v9249 = vadd.f32 %v9124, %v9248
    %v9250 = vpop.f32.mrf.mxu0
    %v9251 = vadd.f32 %v9124, %v9250
    %9252 = vmatmul.bf16.gmra.mxu0 %v9100
    %v9253 = vpop.f32.mrf.mxu0
    %v9254 = vadd.f32 %v9124, %v9253
    %v9255 = vpop.f32.mrf.mxu0
    %v9256 = vadd.f32 %v9124, %v9255
    %9257 = vmatmul.bf16.gmra.mxu0 %v9101
    %v9258 = vpop.f32.mrf.mxu0
    %v9259 = vadd.f32 %v9124, %v9258
    %v9260 = vpop.f32.mrf.mxu0
    %v9261 = vadd.f32 %v9124, %v9260
    %9262 = vdwg.mxu0
    %v9263 = vadd.f32 %v9215, %v9244
    %9264 = vadd.xlane.f32.xlu0 %v9263
    %v9265 = vpop.xlane.xlu0 %9264
    %v9266 = vadd.f32 %v9217, %v9246
    %9267 = vadd.xlane.f32.xlu0 %v9266
    %v9268 = vpop.xlane.xlu0 %9267
    %v9269 = vadd.f32 %v9220, %v9249
    %9270 = vadd.xlane.f32.xlu0 %v9269
    %v9271 = vpop.xlane.xlu0 %9270
    %v9272 = vadd.f32 %v9222, %v9251
    %9273 = vadd.xlane.f32.xlu0 %v9272
    %v9274 = vpop.xlane.xlu0 %9273
    %v9275 = vadd.f32 %v9225, %v9254
    %9276 = vadd.xlane.f32.xlu0 %v9275
    %v9277 = vpop.xlane.xlu0 %9276
    %v9278 = vadd.f32 %v9227, %v9256
    %9279 = vadd.xlane.f32.xlu0 %v9278
    %v9280 = vpop.xlane.xlu0 %9279
    %v9281 = vadd.f32 %v9230, %v9259
    %9282 = vadd.xlane.f32.xlu0 %v9281
    %v9283 = vpop.xlane.xlu0 %9282
    %v9284 = vadd.f32 %v9232, %v9261
    %9285 = vadd.xlane.f32.xlu0 %v9284
    %v9286 = vpop.xlane.xlu0 %9285
    %v9287 = vrcp.pop 256.0
    %v9288 = vmul.f32 256.0, %v9287
    %v9289 = vsub.f32 1.0, %v9288
    %v9290 = vmul.f32 %v9287, %v9289
    %v9291 = vadd.f32 %v9287, %v9290
    %vm9292 = vweird.f32 %v9287
    %v9293 = vsel %vm9292, %v9287, %v9291
    %v9294 = vmul.f32 %v9265, %v9293
    %v9295 = vmul.f32 %v9268, %v9293
    %v9296 = vmul.f32 %v9271, %v9293
    %v9297 = vmul.f32 %v9274, %v9293
    %v9298 = vmul.f32 %v9277, %v9293
    %v9299 = vmul.f32 %v9280, %v9293
    %v9300 = vmul.f32 %v9283, %v9293
    %v9301 = vmul.f32 %v9286, %v9293
    %v9302 = vmul.f32 %v9215, %v9215
    %v9303 = vmul.f32 %v9244, %v9244
    %v9304 = vmul.f32 %v9217, %v9217
    %v9305 = vmul.f32 %v9246, %v9246
    %v9306 = vmul.f32 %v9220, %v9220
    %v9307 = vmul.f32 %v9249, %v9249
    %v9308 = vmul.f32 %v9222, %v9222
    %v9309 = vmul.f32 %v9251, %v9251
    %v9310 = vmul.f32 %v9225, %v9225
    %v9311 = vmul.f32 %v9254, %v9254
    %v9312 = vmul.f32 %v9227, %v9227
    %v9313 = vmul.f32 %v9256, %v9256
    %v9314 = vmul.f32 %v9230, %v9230
    %v9315 = vmul.f32 %v9259, %v9259
    %v9316 = vmul.f32 %v9232, %v9232
    %v9317 = vmul.f32 %v9261, %v9261
    %v9318 = vadd.f32 %v9302, %v9303
    %9319 = vadd.xlane.f32.xlu0 %v9318
    %v9320 = vpop.xlane.xlu0 %9319
    %v9321 = vadd.f32 %v9304, %v9305
    %9322 = vadd.xlane.f32.xlu0 %v9321
    %v9323 = vpop.xlane.xlu0 %9322
    %v9324 = vadd.f32 %v9306, %v9307
    %9325 = vadd.xlane.f32.xlu0 %v9324
    %v9326 = vpop.xlane.xlu0 %9325
    %v9327 = vadd.f32 %v9308, %v9309
    %9328 = vadd.xlane.f32.xlu0 %v9327
    %v9329 = vpop.xlane.xlu0 %9328
    %v9330 = vadd.f32 %v9310, %v9311
    %9331 = vadd.xlane.f32.xlu0 %v9330
    %v9332 = vpop.xlane.xlu0 %9331
    %v9333 = vadd.f32 %v9312, %v9313
    %9334 = vadd.xlane.f32.xlu0 %v9333
    %v9335 = vpop.xlane.xlu0 %9334
    %v9336 = vadd.f32 %v9314, %v9315
    %9337 = vadd.xlane.f32.xlu0 %v9336
    %v9338 = vpop.xlane.xlu0 %9337
    %v9339 = vadd.f32 %v9316, %v9317
    %9340 = vadd.xlane.f32.xlu0 %v9339
    %v9341 = vpop.xlane.xlu0 %9340
    %v9342 = vmul.f32 %v9320, %v9293
    %v9343 = vmul.f32 %v9323, %v9293
    %v9344 = vmul.f32 %v9326, %v9293
    %v9345 = vmul.f32 %v9329, %v9293
    %v9346 = vmul.f32 %v9332, %v9293
    %v9347 = vmul.f32 %v9335, %v9293
    %v9348 = vmul.f32 %v9338, %v9293
    %v9349 = vmul.f32 %v9341, %v9293
    %v9350 = vmul.f32 %v9294, %v9294
    %v9351 = vmul.f32 %v9295, %v9295
    %v9352 = vmul.f32 %v9296, %v9296
    %v9353 = vmul.f32 %v9297, %v9297
    %v9354 = vmul.f32 %v9298, %v9298
    %v9355 = vmul.f32 %v9299, %v9299
    %v9356 = vmul.f32 %v9300, %v9300
    %v9357 = vmul.f32 %v9301, %v9301
    %v9358 = vsub.f32 %v9342, %v9350
    %v9359 = vsub.f32 %v9343, %v9351
    %v9360 = vsub.f32 %v9344, %v9352
    %v9361 = vsub.f32 %v9345, %v9353
    %v9362 = vsub.f32 %v9346, %v9354
    %v9363 = vsub.f32 %v9347, %v9355
    %v9364 = vsub.f32 %v9348, %v9356
    %v9365 = vsub.f32 %v9349, %v9357
    %v9366 = vsub.f32 %v9215, %v9294
    %v9367 = vsub.f32 %v9244, %v9294
    %v9368 = vsub.f32 %v9217, %v9295
    %v9369 = vsub.f32 %v9246, %v9295
    %v9370 = vsub.f32 %v9220, %v9296
    %v9371 = vsub.f32 %v9249, %v9296
    %v9372 = vsub.f32 %v9222, %v9297
    %v9373 = vsub.f32 %v9251, %v9297
    %v9374 = vsub.f32 %v9225, %v9298
    %v9375 = vsub.f32 %v9254, %v9298
    %v9376 = vsub.f32 %v9227, %v9299
    %v9377 = vsub.f32 %v9256, %v9299
    %v9378 = vsub.f32 %v9230, %v9300
    %v9379 = vsub.f32 %v9259, %v9300
    %v9380 = vsub.f32 %v9232, %v9301
    %v9381 = vsub.f32 %v9261, %v9301
    %v9382 = vadd.f32 %v9358, 1e-05
    %v9383 = vadd.f32 %v9359, 1e-05
    %v9384 = vadd.f32 %v9360, 1e-05
    %v9385 = vadd.f32 %v9361, 1e-05
    %v9386 = vadd.f32 %v9362, 1e-05
    %v9387 = vadd.f32 %v9363, 1e-05
    %v9388 = vadd.f32 %v9364, 1e-05
    %v9389 = vadd.f32 %v9365, 1e-05
    %v9390 = vrsqrt.pop %v9382
    %v9391 = vmul.f32 %v9390, %v9382
    %v9392 = vmul.f32 %v9391, %v9390
    %v9393 = vmul.f32 0.5, %v9392
    %v9394 = vsub.f32 1.5, %v9393
    %v9395 = vmul.f32 %v9390, %v9394
    %vm9396 = vweird.f32 %v9382
    %vm9397 = vweird.f32 %v9390
    %vm9398 = vmor %vm9396, %vm9397
    %v9399 = vsel %vm9398, %v9390, %v9395
    %v9400 = vrsqrt.pop %v9383
    %v9401 = vmul.f32 %v9400, %v9383
    %v9402 = vmul.f32 %v9401, %v9400
    %v9403 = vmul.f32 0.5, %v9402
    %v9404 = vsub.f32 1.5, %v9403
    %v9405 = vmul.f32 %v9400, %v9404
    %vm9406 = vweird.f32 %v9383
    %vm9407 = vweird.f32 %v9400
    %vm9408 = vmor %vm9406, %vm9407
    %v9409 = vsel %vm9408, %v9400, %v9405
    %v9410 = vrsqrt.pop %v9384
    %v9411 = vmul.f32 %v9410, %v9384
    %v9412 = vmul.f32 %v9411, %v9410
    %v9413 = vmul.f32 0.5, %v9412
    %v9414 = vsub.f32 1.5, %v9413
    %v9415 = vmul.f32 %v9410, %v9414
    %vm9416 = vweird.f32 %v9384
    %vm9417 = vweird.f32 %v9410
    %vm9418 = vmor %vm9416, %vm9417
    %v9419 = vsel %vm9418, %v9410, %v9415
    %v9420 = vrsqrt.pop %v9385
    %v9421 = vmul.f32 %v9420, %v9385
    %v9422 = vmul.f32 %v9421, %v9420
    %v9423 = vmul.f32 0.5, %v9422
    %v9424 = vsub.f32 1.5, %v9423
    %v9425 = vmul.f32 %v9420, %v9424
    %vm9426 = vweird.f32 %v9385
    %vm9427 = vweird.f32 %v9420
    %vm9428 = vmor %vm9426, %vm9427
    %v9429 = vsel %vm9428, %v9420, %v9425
    %v9430 = vrsqrt.pop %v9386
    %v9431 = vmul.f32 %v9430, %v9386
    %v9432 = vmul.f32 %v9431, %v9430
    %v9433 = vmul.f32 0.5, %v9432
    %v9434 = vsub.f32 1.5, %v9433
    %v9435 = vmul.f32 %v9430, %v9434
    %vm9436 = vweird.f32 %v9386
    %vm9437 = vweird.f32 %v9430
    %vm9438 = vmor %vm9436, %vm9437
    %v9439 = vsel %vm9438, %v9430, %v9435
    %v9440 = vrsqrt.pop %v9387
    %v9441 = vmul.f32 %v9440, %v9387
    %v9442 = vmul.f32 %v9441, %v9440
    %v9443 = vmul.f32 0.5, %v9442
    %v9444 = vsub.f32 1.5, %v9443
    %v9445 = vmul.f32 %v9440, %v9444
    %vm9446 = vweird.f32 %v9387
    %vm9447 = vweird.f32 %v9440
    %vm9448 = vmor %vm9446, %vm9447
    %v9449 = vsel %vm9448, %v9440, %v9445
    %v9450 = vrsqrt.pop %v9388
    %v9451 = vmul.f32 %v9450, %v9388
    %v9452 = vmul.f32 %v9451, %v9450
    %v9453 = vmul.f32 0.5, %v9452
    %v9454 = vsub.f32 1.5, %v9453
    %v9455 = vmul.f32 %v9450, %v9454
    %vm9456 = vweird.f32 %v9388
    %vm9457 = vweird.f32 %v9450
    %vm9458 = vmor %vm9456, %vm9457
    %v9459 = vsel %vm9458, %v9450, %v9455
    %v9460 = vrsqrt.pop %v9389
    %v9461 = vmul.f32 %v9460, %v9389
    %v9462 = vmul.f32 %v9461, %v9460
    %v9463 = vmul.f32 0.5, %v9462
    %v9464 = vsub.f32 1.5, %v9463
    %v9465 = vmul.f32 %v9460, %v9464
    %vm9466 = vweird.f32 %v9389
    %vm9467 = vweird.f32 %v9460
    %vm9468 = vmor %vm9466, %vm9467
    %v9469 = vsel %vm9468, %v9460, %v9465
    %v9470 = vmul.f32 %v9366, %v9399
    %v9471 = vmul.f32 %v9367, %v9399
    %v9472 = vmul.f32 %v9368, %v9409
    %v9473 = vmul.f32 %v9369, %v9409
    %v9474 = vmul.f32 %v9370, %v9419
    %v9475 = vmul.f32 %v9371, %v9419
    %v9476 = vmul.f32 %v9372, %v9429
    %v9477 = vmul.f32 %v9373, %v9429
    %v9478 = vmul.f32 %v9374, %v9439
    %v9479 = vmul.f32 %v9375, %v9439
    %v9480 = vmul.f32 %v9376, %v9449
    %v9481 = vmul.f32 %v9377, %v9449
    %v9482 = vmul.f32 %v9378, %v9459
    %v9483 = vmul.f32 %v9379, %v9459
    %v9484 = vmul.f32 %v9380, %v9469
    %v9485 = vmul.f32 %v9381, %v9469
    %v9486 = vperm.slane %v9089, 1
    %v9487 = vperm.slane %v9089, 5
    %v9490 = vperm.slane %v9486, 1
    %v9491 = vperm.slane %v9487, 1
    %v9492 = vmul.f32 %v9470, %v9490
    %v9493 = vmul.f32 %v9471, %v9491
    %v9494 = vmul.f32 %v9472, %v9490
    %v9495 = vmul.f32 %v9473, %v9491
    %v9496 = vmul.f32 %v9474, %v9490
    %v9497 = vmul.f32 %v9475, %v9491
    %v9498 = vmul.f32 %v9476, %v9490
    %v9499 = vmul.f32 %v9477, %v9491
    %v9500 = vmul.f32 %v9478, %v9490
    %v9501 = vmul.f32 %v9479, %v9491
    %v9502 = vmul.f32 %v9480, %v9490
    %v9503 = vmul.f32 %v9481, %v9491
    %v9504 = vmul.f32 %v9482, %v9490
    %v9505 = vmul.f32 %v9483, %v9491
    %v9506 = vmul.f32 %v9484, %v9490
    %v9507 = vmul.f32 %v9485, %v9491
    %v9508 = vperm.slane %v9089, 2
    %v9509 = vperm.slane %v9089, 6
    %v9512 = vperm.slane %v9508, 2
    %v9513 = vperm.slane %v9509, 2
    %v9514 = vadd.f32 %v9492, %v9512
    %v9515 = vadd.f32 %v9493, %v9513
    %v9516 = vadd.f32 %v9494, %v9512
    %v9517 = vadd.f32 %v9495, %v9513
    %v9518 = vadd.f32 %v9496, %v9512
    %v9519 = vadd.f32 %v9497, %v9513
    %v9520 = vadd.f32 %v9498, %v9512
    %v9521 = vadd.f32 %v9499, %v9513
    %v9522 = vadd.f32 %v9500, %v9512
    %v9523 = vadd.f32 %v9501, %v9513
    %v9524 = vadd.f32 %v9502, %v9512
    %v9525 = vadd.f32 %v9503, %v9513
    %v9526 = vadd.f32 %v9504, %v9512
    %v9527 = vadd.f32 %v9505, %v9513
    %v9528 = vadd.f32 %v9506, %v9512
    %v9529 = vadd.f32 %v9507, %v9513
    %9530 = vst [vmem:[#allocation13] sm:$0xff] %v9514
    %9531 = vst [vmem:[#allocation13 + $0x8] sm:$0xff] %v9515
    %9532 = vst [vmem:[#allocation13 + $0x10] sm:$0xff] %v9516
    %9533 = vst [vmem:[#allocation13 + $0x18] sm:$0xff] %v9517
    %9534 = vst [vmem:[#allocation13 + $0x20] sm:$0xff] %v9518
    %9535 = vst [vmem:[#allocation13 + $0x28] sm:$0xff] %v9519
    %9536 = vst [vmem:[#allocation13 + $0x30] sm:$0xff] %v9520
    %9537 = vst [vmem:[#allocation13 + $0x38] sm:$0xff] %v9521
    %9538 = vst [vmem:[#allocation13 + $0x40] sm:$0xff] %v9522
    %9539 = vst [vmem:[#allocation13 + $0x48] sm:$0xff] %v9523
    %9540 = vst [vmem:[#allocation13 + $0x50] sm:$0xff] %v9524
    %9541 = vst [vmem:[#allocation13 + $0x58] sm:$0xff] %v9525
    %9542 = vst [vmem:[#allocation13 + $0x60] sm:$0xff] %v9526
    %9543 = vst [vmem:[#allocation13 + $0x68] sm:$0xff] %v9527
    %9544 = vst [vmem:[#allocation13 + $0x70] sm:$0xff] %v9528
    %9545 = vst [vmem:[#allocation13 + $0x78] sm:$0xff] %v9529
    // Predicated region
    $region66: #{tpu_custom_call.1} parent=1 // pred_check
      _
    $region67: #{tpu_custom_call.1} parent=1 // pred_check_branch
      %9547 = sbr.rel (0) target = $region69
    $region68: #{tpu_custom_call.1} parent=1 // pred_region
      %9549 = vsyncadd [#allocation6], 0
      %s9550 = sshll.u32 [#allocation13], 4
      %s9551 = int_to_ptr.vmem [resolvable:$true] %s9550
      %s9552 = sshll.u32 %s11, 4
      %s9553 = int_to_ptr.hbm [resolvable:$true] %s9552
      %9558 = dma.vmem_to_hbm [thread:$0]  %s9551, 2048, %s9553, [#allocation6], 256, 256, 16
    $region69: #{tpu_custom_call.1} parent=1 // pred_fallthru
      _
    // Predicated region
    $region70: #{tpu_custom_call.1} parent=1 // pred_check
      _
    $region71: #{tpu_custom_call.1} parent=1 // pred_check_branch
      %9560 = sbr.rel (0) target = $region73
    $region72: #{tpu_custom_call.1} parent=1 // pred_region
      %9562 = vsyncadd [#allocation15], 0
      %s9563 = sshll.u32 [#allocation14], 4
      %s9564 = int_to_ptr.vmem [resolvable:$true] %s9563
      %s9565 = sshll.u32 %s12, 4
      %s9566 = int_to_ptr.hbm [resolvable:$true] %s9565
      %9571 = dma.vmem_to_hbm [thread:$0]  %s9564, 256, %s9566, [#allocation15], 128, 128, 8
    $region73: #{tpu_custom_call.1} parent=1 // pred_fallthru
      _
    // Predicated region
    $region74: #{tpu_custom_call.1} parent=1 // pred_check
      _
    $region75: #{tpu_custom_call.1} parent=1 // pred_check_branch
      %9573 = sbr.rel (0) target = $region77
    $region76: #{tpu_custom_call.1} parent=1 // pred_region
      %9575 = vsyncadd [#allocation15], 0
      %s9576 = sshll.u32 [#allocation16], 4
      %s9577 = int_to_ptr.vmem [resolvable:$true] %s9576
      %s9578 = sshll.u32 %s13, 4
      %s9579 = int_to_ptr.hbm [resolvable:$true] %s9578
      %9584 = dma.vmem_to_hbm [thread:$0]  %s9577, 256, %s9579, [#allocation15], 128, 128, 8
    $region77: #{tpu_custom_call.1} parent=1 // pred_fallthru
      _
    // Predicated region
    $region78: #{tpu_custom_call.1} parent=1 // pred_check
      _
    $region79: #{tpu_custom_call.1} parent=1 // pred_check_branch
      %9586 = sbr.rel (0) target = $region81
    $region80: #{tpu_custom_call.1} parent=1 // pred_region
      %9588 = dma.done [#allocation6], 2048
    $region81: #{tpu_custom_call.1} parent=1 // pred_fallthru
      _
    // Predicated region
    $region82: #{tpu_custom_call.1} parent=1 // pred_check
      _
    $region83: #{tpu_custom_call.1} parent=1 // pred_check_branch
      %9590 = sbr.rel (0) target = $region85
    $region84: #{tpu_custom_call.1} parent=1 // pred_region
      %9592 = dma.done [#allocation15], 256
    $region85: #{tpu_custom_call.1} parent=1 // pred_fallthru
      _
    // Predicated region
    $region86: #{tpu_custom_call.1} parent=1 // pred_check
      _
    $region87: #{tpu_custom_call.1} parent=1 // pred_check_branch
      %9594 = sbr.rel (0) target = $region89
    $region88: #{tpu_custom_call.1} parent=1 // pred_region
      %9596 = dma.done [#allocation15], 256
    $region89: #{tpu_custom_call.1} parent=1 // pred_fallthru
      _
    %9597 = vsyncpa [#allocation5], 1
    %9598 = vsyncpa [#allocation8], 1
    %9599 = vsyncpa [#allocation11], 1
    %9600 = vsyncpa [#allocation6], 1
    %9601 = vsyncpa [#allocation15], 1

</llo_original>
